<compile_context>
chip_gen: v7x
topology: tpu7x:2x2x1
jax: 0.10.0
libtpu: 0.0.40
codegen_flags: <defaults>
</compile_context>

<pallas_src>
import functools
import math

import jax
import jax.numpy as jnp
from jax import lax
from jax.experimental import pallas as pl
from jax.experimental.pallas import tpu as pltpu


def _pick_tile_h(h):
    """Largest row tile in {64,32,16,8} that divides h and gives >= 2 tiles."""
    for t in (64, 32, 16, 8):
        if h % t == 0 and h // t >= 2:
            return t
    return h  # fallback: whole image as a single row tile


def _vmem_limit(*byte_counts):
    # Blocks are (at most) double-buffered by the auto-pipeliner.
    need = 2 * sum(int(v) for v in byte_counts) + (2 << 20)
    return int(min(max(need, 8 << 20), 64 << 20))   # cap for v7x (64 MiB / TC)


# ----------------------------------------------------------------------------
# Kernel A: direct 3x3 "same" conv (9 accumulating tap matmuls) + folded BN
#           bias + optional ReLU.  Grid = (batch, row tile); whole padded
#           per-batch image resident in VMEM, each step computes tm_h rows.
# ----------------------------------------------------------------------------
def _conv3x3_kernel(x_ref, w_ref, b_ref, o_ref, *, tm_h, relu):
    # x_ref: (h+2, w+2, cin) bf16   (whole padded image, one batch element)
    # w_ref: (9, cin, cout)  bf16   (BN scale already folded in)
    # b_ref: (1, cout)       f32    (folded BN bias)
    # o_ref: (tm_h, w, cout)
    out_w, cout = o_ref.shape[1], o_ref.shape[2]
    r0 = pl.program_id(1) * tm_h
    win = x_ref[pl.ds(r0, tm_h + 2)]                       # (tm_h+2, w+2, cin)
    acc = jnp.zeros((tm_h * out_w, cout), jnp.float32)
    for dy in range(3):
        rows = win[dy:dy + tm_h]                           # (tm_h, w+2, cin)
        for dx in range(3):
            tap = rows[:, dx:dx + out_w, :].reshape(tm_h * out_w, -1)
            acc = acc + jnp.dot(tap, w_ref[dy * 3 + dx],
                                preferred_element_type=jnp.float32)
    y = acc + b_ref[...]
    if relu:
        y = jnp.maximum(y, 0.0)
    o_ref[...] = y.reshape(tm_h, out_w, cout).astype(o_ref.dtype)


def conv3x3_bn_relu(x_nhwc, p, *, relu=True, out_dtype=jnp.bfloat16):
    b, h, w, cin = x_nhwc.shape
    cout = p['w'].shape[0]
    scale, bias = bn_scale_bias(p)
    # (cout, cin, 3, 3) -> (3, 3, cin, cout), fold BN scale, flatten taps.
    w9 = (p['w'].transpose(2, 3, 1, 0) * scale[0]).reshape(9, cin, cout)
    w9 = w9.astype(jnp.bfloat16)
    xp = jnp.pad(x_nhwc.astype(jnp.bfloat16), ((0, 0), (1, 1), (1, 1), (0, 0)))
    tm_h = _pick_tile_h(h)
    n_rt = h // tm_h
    hp, wp = h + 2, w + 2

    xp_blk = hp * wp * cin * 2
    out_blk = tm_h * w * cout * jnp.dtype(out_dtype).itemsize
    w_bytes = 9 * cin * cout * 2

    return pl.pallas_call(
        functools.partial(_conv3x3_kernel, tm_h=tm_h, relu=relu),
        out_shape=jax.ShapeDtypeStruct((b, h, w, cout), out_dtype),
        grid=(b, n_rt),
        in_specs=[
            # whole padded image per batch (block index constant across ri)
            pl.BlockSpec((None, hp, wp, cin), lambda bi, ri: (bi, 0, 0, 0)),
            pl.BlockSpec((9, cin, cout), lambda bi, ri: (0, 0, 0)),
            pl.BlockSpec((1, cout), lambda bi, ri: (0, 0)),
        ],
        out_specs=pl.BlockSpec((None, tm_h, w, cout),
                               lambda bi, ri: (bi, ri, 0, 0)),
        compiler_params=pltpu.CompilerParams(
            dimension_semantics=("parallel", "parallel"),
            vmem_limit_bytes=_vmem_limit(xp_blk, out_blk, w_bytes)),
        cost_estimate=pl.CostEstimate(
            flops=2 * b * h * w * 9 * cin * cout,
            transcendentals=0,
            bytes_accessed=b * hp * wp * cin * 2 + w_bytes
                           + b * h * w * cout * jnp.dtype(out_dtype).itemsize),
    )(xp, w9, bias)


# ----------------------------------------------------------------------------
# Kernel A': fused out3 (3x3 conv+BN+ReLU) + out4 (1x1 conv+BN, cout=1) + map
# ----------------------------------------------------------------------------
def _conv3x3_out34_kernel(x_ref, w3_ref, b3_ref, w4_ref, b4_ref, map_ref,
                          xc_ref, out_ref, *, tm_h):
    # x_ref:  (h+2, w+2, cin) bf16;  w3_ref: (9, cin, cout) bf16
    # b3_ref: (1, cout) f32;  w4_ref: (1, 1, cout) f32 (out4 weight row * BN scale)
    # b4_ref: (1, 1, 1) f32;  map_ref: (tm_h, w, 1) f32 (interpolated map)
    # xc_ref: (tm_h, w, cout) f32;  out_ref: (tm_h, w, 1) f32
    out_w, cout = xc_ref.shape[1], xc_ref.shape[2]
    r0 = pl.program_id(1) * tm_h
    win = x_ref[pl.ds(r0, tm_h + 2)]
    acc = jnp.zeros((tm_h * out_w, cout), jnp.float32)
    for dy in range(3):
        rows = win[dy:dy + tm_h]
        for dx in range(3):
            tap = rows[:, dx:dx + out_w, :].reshape(tm_h * out_w, -1)
            acc = acc + jnp.dot(tap, w3_ref[dy * 3 + dx],
                                preferred_element_type=jnp.float32)
    y3 = jnp.maximum(acc + b3_ref[...], 0.0).reshape(tm_h, out_w, cout)
    xc_ref[...] = y3.astype(xc_ref.dtype)
    # out4 (channel -> 1): VPU multiply + lane reduction (no N=1 MXU matmul),
    # then folded BN bias + residual map add.
    o4 = jnp.sum(y3 * w4_ref[...], axis=-1, keepdims=True)       # (tm_h, w, 1)
    out_ref[...] = (o4 + b4_ref[...] + map_ref[...]).astype(out_ref.dtype)


def conv_out34_fused(x_nhwc, p3, p4, map_nhwc1):
    b, h, w, cin = x_nhwc.shape
    cout = p3['w'].shape[0]
    s3, b3 = bn_scale_bias(p3)
    w3 = (p3['w'].transpose(2, 3, 1, 0) * s3[0]).reshape(9, cin, cout)
    w3 = w3.astype(jnp.bfloat16)
    s4, b4 = bn_scale_bias(p4)                      # (1, 1) each (out4: 1 channel)
    # out4 weight is (1, cin=channel, 1, 1) -> row vector over the channel axis.
    w4 = (p4['w'].reshape(1, cout) * s4).reshape(1, 1, cout)
    b4 = b4.reshape(1, 1, 1)

    xp = jnp.pad(x_nhwc.astype(jnp.bfloat16), ((0, 0), (1, 1), (1, 1), (0, 0)))
    tm_h = _pick_tile_h(h)
    n_rt = h // tm_h
    hp, wp = h + 2, w + 2

    xp_blk = hp * wp * cin * 2
    xc_blk = tm_h * w * cout * 4
    out_blk = tm_h * w * 4
    map_blk = tm_h * w * 4
    w_bytes = 9 * cin * cout * 2

    xc, out = pl.pallas_call(
        functools.partial(_conv3x3_out34_kernel, tm_h=tm_h),
        out_shape=(jax.ShapeDtypeStruct((b, h, w, cout), jnp.float32),
                   jax.ShapeDtypeStruct((b, h, w, 1), jnp.float32)),
        grid=(b, n_rt),
        in_specs=[
            pl.BlockSpec((None, hp, wp, cin), lambda bi, ri: (bi, 0, 0, 0)),
            pl.BlockSpec((9, cin, cout), lambda bi, ri: (0, 0, 0)),
            pl.BlockSpec((1, cout), lambda bi, ri: (0, 0)),
            pl.BlockSpec((1, 1, cout), lambda bi, ri: (0, 0, 0)),
            pl.BlockSpec((1, 1, 1), lambda bi, ri: (0, 0, 0)),
            pl.BlockSpec((None, tm_h, w, 1), lambda bi, ri: (bi, ri, 0, 0)),
        ],
        out_specs=(pl.BlockSpec((None, tm_h, w, cout),
                                lambda bi, ri: (bi, ri, 0, 0)),
                   pl.BlockSpec((None, tm_h, w, 1),
                                lambda bi, ri: (bi, ri, 0, 0))),
        compiler_params=pltpu.CompilerParams(
            dimension_semantics=("parallel", "parallel"),
            vmem_limit_bytes=_vmem_limit(xp_blk, xc_blk, out_blk, map_blk,
                                         w_bytes)),
        cost_estimate=pl.CostEstimate(
            flops=2 * b * h * w * cout * (9 * cin + 1),
            transcendentals=0,
            bytes_accessed=b * hp * wp * cin * 2 + w_bytes
                           + b * h * w * (cout + 2) * 4),
    )(xp, w3, b3, w4, b4, map_nhwc1)
    return xc, out


# ----------------------------------------------------------------------------
# Kernel B: fused UACA attention core (per batch element)
#   prob(map) -> context = prob @ f -> key/value 1x1-conv+BN+ReLU stacks
#   -> sim = softmax(q k / sqrt(c)) -> out = sim @ v
# ----------------------------------------------------------------------------
def _uaca_attn_kernel(map_ref, f_ref, q_ref, w1_ref, b1_ref, w2_ref, b2_ref,
                      o_ref, *, channel):
    m = map_ref[0]                                   # (1, hw)
    hw = m.shape[-1]
    p = jax.nn.sigmoid(m) - 0.5
    fg = jnp.clip(p, 0.0, 1.0)
    bg = jnp.clip(-p, 0.0, 1.0)
    cg = 0.5 - jnp.abs(p)
    # Pad prob to 8 sublane rows (zeros); rows 3..7 are sliced away below.
    prob8 = jnp.concatenate(
        [fg, bg, cg, jnp.zeros((5, hw), jnp.float32)], axis=0)      # (8, hw)

    f = f_ref[0]                                     # (hw, c)  raw view of x
    ctx = jnp.dot(prob8, f, preferred_element_type=jnp.float32)     # (8, c)

    # key/value 1x1-conv stacks; layer 1 co-batched (shared ctx input),
    # layer 2 block-diagonal; BN scales folded into the weights.
    y1 = jnp.maximum(
        jnp.dot(ctx, w1_ref[...], preferred_element_type=jnp.float32)
        + b1_ref[...], 0.0)                          # (8, 2*channel)
    y2 = jnp.maximum(
        jnp.dot(y1, w2_ref[...], preferred_element_type=jnp.float32)
        + b2_ref[...], 0.0)                          # (8, 2*channel)
    k3 = y2[:3, :channel]                            # (3, channel)
    v3 = y2[:3, channel:]                            # (3, channel)

    q = q_ref[0].astype(jnp.float32)                 # (hw, channel)
    sim = lax.dot_general(q, k3, (((1,), (1,)), ((), ())),
                          preferred_element_type=jnp.float32)       # (hw, 3)
    sim = sim * (channel ** -0.5)
    sim = sim - jnp.max(sim, axis=-1, keepdims=True)
    e = jnp.exp(sim)
    sm = e / jnp.sum(e, axis=-1, keepdims=True)      # softmax over 3 contexts
    o_ref[0] = jnp.dot(sm, v3,
                       preferred_element_type=jnp.float32).astype(o_ref.dtype)


def uaca_attention(map_flat3, f, q, key_params, value_params, channel):
    b, hw, c = f.shape

    def prep(p):
        cout, cin = p['w'].shape[:2]
        s, bb = bn_scale_bias(p)
        return p['w'].reshape(cout, cin).T * s, bb   # (cin, cout) folded, (1, cout)

    wk1, bk1 = prep(key_params[0])
    wk2, bk2 = prep(key_params[1])
    wv1, bv1 = prep(value_params[0])
    wv2, bv2 = prep(value_params[1])
    w1 = jnp.concatenate([wk1, wv1], axis=1)          # (c, 2*channel)
    b1 = jnp.concatenate([bk1, bv1], axis=1)          # (1, 2*channel)
    z = jnp.zeros((channel, channel), jnp.float32)
    w2 = jnp.concatenate(
        [jnp.concatenate([wk2, z], axis=1),
         jnp.concatenate([z, wv2], axis=1)], axis=0)  # (2*channel, 2*channel)
    b2 = jnp.concatenate([bk2, bv2], axis=1)          # (1, 2*channel)

    def full(shape):
        return pl.BlockSpec(shape, lambda i: tuple(0 for _ in shape))

    def per_batch(tail):
        return pl.BlockSpec((1,) + tail, lambda i: (i,) + tuple(0 for _ in tail))

    blk_bytes = hw * 4 + hw * c * 4 + hw * channel * 2 + hw * channel * 2

    return pl.pallas_call(
        functools.partial(_uaca_attn_kernel, channel=channel),
        out_shape=jax.ShapeDtypeStruct((b, hw, channel), jnp.bfloat16),
        grid=(b,),
        in_specs=[
            per_batch((1, hw)),
            per_batch((hw, c)),
            per_batch((hw, channel)),
            full(w1.shape), full(b1.shape),
            full(w2.shape), full(b2.shape),
        ],
        out_specs=per_batch((hw, channel)),
        compiler_params=pltpu.CompilerParams(
            dimension_semantics=("parallel",),
            vmem_limit_bytes=_vmem_limit(blk_bytes)),
    )(map_flat3, f, q, w1, b1, w2, b2)


# ----------------------------------------------------------------------------
# Parameters (deterministic, shapes as in the PyTorch module)
# ----------------------------------------------------------------------------
def make_conv_params(key, cin, cout, k):
    fan_in = cin * k * k
    std = math.sqrt(2.0 / fan_in)                    # kaiming_normal_, fan_in
    w = jax.random.normal(key, (cout, cin, k, k), jnp.float32) * std
    return dict(w=w,
                gamma=jnp.ones((cout,), jnp.float32),
                beta=jnp.zeros((cout,), jnp.float32),
                mean=jnp.zeros((cout,), jnp.float32),
                var=jnp.ones((cout,), jnp.float32))


def bn_scale_bias(p, eps=1e-5):
    scale = p['gamma'] / jnp.sqrt(p['var'] + eps)
    bias = p['beta'] - p['mean'] * scale
    return scale.reshape(1, -1), bias.reshape(1, -1)


def make_params(key, in_channel, channel):
    ks = jax.random.split(key, 10)
    return {
        'query': [make_conv_params(ks[0], in_channel, channel, 3),
                  make_conv_params(ks[1], channel, channel, 3)],
        'key':   [make_conv_params(ks[2], in_channel, channel, 1),
                  make_conv_params(ks[3], channel, channel, 1)],
        'value': [make_conv_params(ks[4], in_channel, channel, 1),
                  make_conv_params(ks[5], channel, channel, 1)],
        'out1': make_conv_params(ks[6], channel, channel, 3),
        'out2': make_conv_params(ks[7], in_channel + channel, channel, 3),
        'out3': make_conv_params(ks[8], channel, channel, 3),
        'out4': make_conv_params(ks[9], channel, 1, 1),
    }


# ----------------------------------------------------------------------------
# UACA forward (NHWC layout kept end-to-end; NCHW only at the boundary)
# ----------------------------------------------------------------------------
def _uaca_forward(x, map_in, params):
    b, c, h, w = x.shape
    channel = params['query'][1]['w'].shape[0]
    hw = h * w

    # bilinear resize of map to x's spatial size (align_corners=False)
    map_r = jax.image.resize(map_in, (b, map_in.shape[1], h, w),
                             method='bilinear')

    # NOTE: reproduces the raw-memory `x.view(b, h*w, -1)` of the reference
    # exactly (NO channel/spatial permute) -- bug-compatible behavior.
    f = x.reshape(b, hw, c)
    map_flat3 = map_r.reshape(b, 1, hw)

    x_nhwc = jnp.transpose(x, (0, 2, 3, 1)).astype(jnp.bfloat16)

    # query = conv_query(x), produced directly in (b, hw, channel) layout
    q = conv3x3_bn_relu(x_nhwc, params['query'][0])
    q = conv3x3_bn_relu(q, params['query'][1])
    q = q.reshape(b, hw, channel)

    # fused prob/context/key/value/attention -> (b, hw, channel) (== NHWC)
    ctx = uaca_attention(map_flat3, f, q, params['key'], params['value'],
                         channel)
    ctx = ctx.reshape(b, h, w, channel)

    ctx = conv3x3_bn_relu(ctx, params['out1'])
    xc = jnp.concatenate([x_nhwc, ctx], axis=-1)
    xc = conv3x3_bn_relu(xc, params['out2'])

    # out3 + out4 + residual map add fused into a single kernel
    xc_nhwc, out_nhwc1 = conv_out34_fused(xc, params['out3'], params['out4'],
                                          map_r.reshape(b, h, w, 1))
    x_out = jnp.transpose(xc_nhwc, (0, 3, 1, 2))     # (b, channel, h, w) f32
    out = out_nhwc1.reshape(b, 1, h, w)
    return x_out, out


uaca_forward = jax.jit(_uaca_forward)


if __name__ == "__main__":
    key = jax.random.PRNGKey(0)
    kx, km, kp = jax.random.split(key, 3)

    b, in_channel, h, w = 2, 4, 16, 16
    channel = 32

    x = jax.random.normal(kx, (b, in_channel, h, w), jnp.float32)
    map_in = jax.random.normal(km, (b, 1, 8, 8), jnp.float32)
    params = make_params(kp, in_channel, channel)

    x_out, out = uaca_forward(x, map_in, params)
    jax.block_until_ready((x_out, out))
    assert x_out.shape == (b, channel, h, w)
    assert out.shape == (b, 1, h, w)
    print("KERNEL_OK")
</pallas_src>

<mosaic_0001>
module attributes {stable_mosaic.version = 11 : i64} {
  func.func @_conv3x3_kernel(%arg0: i32, %arg1: i32, %arg2: memref<1x18x18x4xbf16, #tpu.memory_space<vmem>>, %arg3: memref<9x4x32xbf16, #tpu.memory_space<vmem>>, %arg4: memref<1x32xf32, #tpu.memory_space<vmem>>, %arg5: memref<1x8x16x32xbf16, #tpu.memory_space<vmem>>) attributes {dimension_semantics = [#tpu.dimension_semantics<parallel>, #tpu.dimension_semantics<parallel>], iteration_bounds = array<i64: 2, 2>, scalar_prefetch = 0 : i64, scratch_operands = 0 : i64, tpu.core_type = #tpu.core_type<tc>, window_params = [{transform_indices = @transform_0, window_bounds = array<i64: 1, 18, 18, 4>}, {pipeline_mode = #tpu.pipeline_mode<synchronous>, transform_indices = @transform_1, window_bounds = array<i64: 9, 4, 32>}, {pipeline_mode = #tpu.pipeline_mode<synchronous>, transform_indices = @transform_2, window_bounds = array<i64: 1, 32>}, {transform_indices = @transform_3, window_bounds = array<i64: 1, 8, 16, 32>}]} {
    %c8_i32 = arith.constant 8 : i32
    %0 = arith.muli %arg1, %c8_i32 : i32
    %c0 = arith.constant 0 : index
    %1 = arith.index_cast %0 : i32 to index
    %c0_0 = arith.constant 0 : index
    %c0_1 = arith.constant 0 : index
    %2 = vector.load %arg2[%c0, %1, %c0_0, %c0_1] : memref<1x18x18x4xbf16, #tpu.memory_space<vmem>>, vector<1x10x18x4xbf16>
    %3 = vector.shape_cast %2 : vector<1x10x18x4xbf16> to vector<10x18x4xbf16>
    %cst = arith.constant 0.000000e+00 : f32
    %4 = vector.broadcast %cst : f32 to vector<128x32xf32>
    %5 = vector.extract_strided_slice %3 {offsets = [0, 0, 0], sizes = [8, 18, 4], strides = [1, 1, 1]} : vector<10x18x4xbf16> to vector<8x18x4xbf16>
    %6 = vector.extract_strided_slice %5 {offsets = [0, 0, 0], sizes = [8, 16, 4], strides = [1, 1, 1]} : vector<8x18x4xbf16> to vector<8x16x4xbf16>
    %7 = vector.shape_cast %6 : vector<8x16x4xbf16> to vector<128x4xbf16>
    %c0_2 = arith.constant 0 : index
    %c0_3 = arith.constant 0 : index
    %c0_4 = arith.constant 0 : index
    %8 = vector.load %arg3[%c0_2, %c0_3, %c0_4] : memref<9x4x32xbf16, #tpu.memory_space<vmem>>, vector<1x4x32xbf16>
    %9 = vector.shape_cast %8 : vector<1x4x32xbf16> to vector<4x32xbf16>
    %cst_5 = arith.constant dense<0.000000e+00> : vector<128x32xf32>
    %10 = tpu.matmul %7, %9, %cst_5 {dimension_numbers = #tpu.dot_dimension_numbers<[1], [0], [0], [1], [0, 0, 1, 1], [], []>} : vector<128x4xbf16>, vector<4x32xbf16>, vector<128x32xf32> -> vector<128x32xf32>
    %11 = arith.addf %4, %10 : vector<128x32xf32>
    %12 = vector.extract_strided_slice %5 {offsets = [0, 1, 0], sizes = [8, 16, 4], strides = [1, 1, 1]} : vector<8x18x4xbf16> to vector<8x16x4xbf16>
    %13 = vector.shape_cast %12 : vector<8x16x4xbf16> to vector<128x4xbf16>
    %c1 = arith.constant 1 : index
    %c0_6 = arith.constant 0 : index
    %c0_7 = arith.constant 0 : index
    %14 = vector.load %arg3[%c1, %c0_6, %c0_7] : memref<9x4x32xbf16, #tpu.memory_space<vmem>>, vector<1x4x32xbf16>
    %15 = vector.shape_cast %14 : vector<1x4x32xbf16> to vector<4x32xbf16>
    %cst_8 = arith.constant dense<0.000000e+00> : vector<128x32xf32>
    %16 = tpu.matmul %13, %15, %cst_8 {dimension_numbers = #tpu.dot_dimension_numbers<[1], [0], [0], [1], [0, 0, 1, 1], [], []>} : vector<128x4xbf16>, vector<4x32xbf16>, vector<128x32xf32> -> vector<128x32xf32>
    %17 = arith.addf %11, %16 : vector<128x32xf32>
    %18 = vector.extract_strided_slice %5 {offsets = [0, 2, 0], sizes = [8, 16, 4], strides = [1, 1, 1]} : vector<8x18x4xbf16> to vector<8x16x4xbf16>
    %19 = vector.shape_cast %18 : vector<8x16x4xbf16> to vector<128x4xbf16>
    %c2 = arith.constant 2 : index
    %c0_9 = arith.constant 0 : index
    %c0_10 = arith.constant 0 : index
    %20 = vector.load %arg3[%c2, %c0_9, %c0_10] : memref<9x4x32xbf16, #tpu.memory_space<vmem>>, vector<1x4x32xbf16>
    %21 = vector.shape_cast %20 : vector<1x4x32xbf16> to vector<4x32xbf16>
    %cst_11 = arith.constant dense<0.000000e+00> : vector<128x32xf32>
    %22 = tpu.matmul %19, %21, %cst_11 {dimension_numbers = #tpu.dot_dimension_numbers<[1], [0], [0], [1], [0, 0, 1, 1], [], []>} : vector<128x4xbf16>, vector<4x32xbf16>, vector<128x32xf32> -> vector<128x32xf32>
    %23 = arith.addf %17, %22 : vector<128x32xf32>
    %24 = vector.extract_strided_slice %3 {offsets = [1, 0, 0], sizes = [8, 18, 4], strides = [1, 1, 1]} : vector<10x18x4xbf16> to vector<8x18x4xbf16>
    %25 = vector.extract_strided_slice %24 {offsets = [0, 0, 0], sizes = [8, 16, 4], strides = [1, 1, 1]} : vector<8x18x4xbf16> to vector<8x16x4xbf16>
    %26 = vector.shape_cast %25 : vector<8x16x4xbf16> to vector<128x4xbf16>
    %c3 = arith.constant 3 : index
    %c0_12 = arith.constant 0 : index
    %c0_13 = arith.constant 0 : index
    %27 = vector.load %arg3[%c3, %c0_12, %c0_13] : memref<9x4x32xbf16, #tpu.memory_space<vmem>>, vector<1x4x32xbf16>
    %28 = vector.shape_cast %27 : vector<1x4x32xbf16> to vector<4x32xbf16>
    %cst_14 = arith.constant dense<0.000000e+00> : vector<128x32xf32>
    %29 = tpu.matmul %26, %28, %cst_14 {dimension_numbers = #tpu.dot_dimension_numbers<[1], [0], [0], [1], [0, 0, 1, 1], [], []>} : vector<128x4xbf16>, vector<4x32xbf16>, vector<128x32xf32> -> vector<128x32xf32>
    %30 = arith.addf %23, %29 : vector<128x32xf32>
    %31 = vector.extract_strided_slice %24 {offsets = [0, 1, 0], sizes = [8, 16, 4], strides = [1, 1, 1]} : vector<8x18x4xbf16> to vector<8x16x4xbf16>
    %32 = vector.shape_cast %31 : vector<8x16x4xbf16> to vector<128x4xbf16>
    %c4 = arith.constant 4 : index
    %c0_15 = arith.constant 0 : index
    %c0_16 = arith.constant 0 : index
    %33 = vector.load %arg3[%c4, %c0_15, %c0_16] : memref<9x4x32xbf16, #tpu.memory_space<vmem>>, vector<1x4x32xbf16>
    %34 = vector.shape_cast %33 : vector<1x4x32xbf16> to vector<4x32xbf16>
    %cst_17 = arith.constant dense<0.000000e+00> : vector<128x32xf32>
    %35 = tpu.matmul %32, %34, %cst_17 {dimension_numbers = #tpu.dot_dimension_numbers<[1], [0], [0], [1], [0, 0, 1, 1], [], []>} : vector<128x4xbf16>, vector<4x32xbf16>, vector<128x32xf32> -> vector<128x32xf32>
    %36 = arith.addf %30, %35 : vector<128x32xf32>
    %37 = vector.extract_strided_slice %24 {offsets = [0, 2, 0], sizes = [8, 16, 4], strides = [1, 1, 1]} : vector<8x18x4xbf16> to vector<8x16x4xbf16>
    %38 = vector.shape_cast %37 : vector<8x16x4xbf16> to vector<128x4xbf16>
    %c5 = arith.constant 5 : index
    %c0_18 = arith.constant 0 : index
    %c0_19 = arith.constant 0 : index
    %39 = vector.load %arg3[%c5, %c0_18, %c0_19] : memref<9x4x32xbf16, #tpu.memory_space<vmem>>, vector<1x4x32xbf16>
    %40 = vector.shape_cast %39 : vector<1x4x32xbf16> to vector<4x32xbf16>
    %cst_20 = arith.constant dense<0.000000e+00> : vector<128x32xf32>
    %41 = tpu.matmul %38, %40, %cst_20 {dimension_numbers = #tpu.dot_dimension_numbers<[1], [0], [0], [1], [0, 0, 1, 1], [], []>} : vector<128x4xbf16>, vector<4x32xbf16>, vector<128x32xf32> -> vector<128x32xf32>
    %42 = arith.addf %36, %41 : vector<128x32xf32>
    %43 = vector.extract_strided_slice %3 {offsets = [2, 0, 0], sizes = [8, 18, 4], strides = [1, 1, 1]} : vector<10x18x4xbf16> to vector<8x18x4xbf16>
    %44 = vector.extract_strided_slice %43 {offsets = [0, 0, 0], sizes = [8, 16, 4], strides = [1, 1, 1]} : vector<8x18x4xbf16> to vector<8x16x4xbf16>
    %45 = vector.shape_cast %44 : vector<8x16x4xbf16> to vector<128x4xbf16>
    %c6 = arith.constant 6 : index
    %c0_21 = arith.constant 0 : index
    %c0_22 = arith.constant 0 : index
    %46 = vector.load %arg3[%c6, %c0_21, %c0_22] : memref<9x4x32xbf16, #tpu.memory_space<vmem>>, vector<1x4x32xbf16>
    %47 = vector.shape_cast %46 : vector<1x4x32xbf16> to vector<4x32xbf16>
    %cst_23 = arith.constant dense<0.000000e+00> : vector<128x32xf32>
    %48 = tpu.matmul %45, %47, %cst_23 {dimension_numbers = #tpu.dot_dimension_numbers<[1], [0], [0], [1], [0, 0, 1, 1], [], []>} : vector<128x4xbf16>, vector<4x32xbf16>, vector<128x32xf32> -> vector<128x32xf32>
    %49 = arith.addf %42, %48 : vector<128x32xf32>
    %50 = vector.extract_strided_slice %43 {offsets = [0, 1, 0], sizes = [8, 16, 4], strides = [1, 1, 1]} : vector<8x18x4xbf16> to vector<8x16x4xbf16>
    %51 = vector.shape_cast %50 : vector<8x16x4xbf16> to vector<128x4xbf16>
    %c7 = arith.constant 7 : index
    %c0_24 = arith.constant 0 : index
    %c0_25 = arith.constant 0 : index
    %52 = vector.load %arg3[%c7, %c0_24, %c0_25] : memref<9x4x32xbf16, #tpu.memory_space<vmem>>, vector<1x4x32xbf16>
    %53 = vector.shape_cast %52 : vector<1x4x32xbf16> to vector<4x32xbf16>
    %cst_26 = arith.constant dense<0.000000e+00> : vector<128x32xf32>
    %54 = tpu.matmul %51, %53, %cst_26 {dimension_numbers = #tpu.dot_dimension_numbers<[1], [0], [0], [1], [0, 0, 1, 1], [], []>} : vector<128x4xbf16>, vector<4x32xbf16>, vector<128x32xf32> -> vector<128x32xf32>
    %55 = arith.addf %49, %54 : vector<128x32xf32>
    %56 = vector.extract_strided_slice %43 {offsets = [0, 2, 0], sizes = [8, 16, 4], strides = [1, 1, 1]} : vector<8x18x4xbf16> to vector<8x16x4xbf16>
    %57 = vector.shape_cast %56 : vector<8x16x4xbf16> to vector<128x4xbf16>
    %c8 = arith.constant 8 : index
    %c0_27 = arith.constant 0 : index
    %c0_28 = arith.constant 0 : index
    %58 = vector.load %arg3[%c8, %c0_27, %c0_28] : memref<9x4x32xbf16, #tpu.memory_space<vmem>>, vector<1x4x32xbf16>
    %59 = vector.shape_cast %58 : vector<1x4x32xbf16> to vector<4x32xbf16>
    %cst_29 = arith.constant dense<0.000000e+00> : vector<128x32xf32>
    %60 = tpu.matmul %57, %59, %cst_29 {dimension_numbers = #tpu.dot_dimension_numbers<[1], [0], [0], [1], [0, 0, 1, 1], [], []>} : vector<128x4xbf16>, vector<4x32xbf16>, vector<128x32xf32> -> vector<128x32xf32>
    %61 = arith.addf %55, %60 : vector<128x32xf32>
    %c0_30 = arith.constant 0 : index
    %c0_31 = arith.constant 0 : index
    %62 = vector.load %arg4[%c0_30, %c0_31] : memref<1x32xf32, #tpu.memory_space<vmem>>, vector<1x32xf32>
    %63 = vector.broadcast %62 : vector<1x32xf32> to vector<128x32xf32>
    %64 = arith.addf %61, %63 : vector<128x32xf32>
    %cst_32 = arith.constant 0.000000e+00 : f32
    %65 = vector.broadcast %cst_32 : f32 to vector<128x32xf32>
    %66 = arith.maximumf %64, %65 : vector<128x32xf32>
    %67 = vector.shape_cast %66 : vector<128x32xf32> to vector<8x16x32xf32>
    %68 = arith.truncf %67 : vector<8x16x32xf32> to vector<8x16x32xbf16>
    %c0_33 = arith.constant 0 : index
    %c0_34 = arith.constant 0 : index
    %c0_35 = arith.constant 0 : index
    %c0_36 = arith.constant 0 : index
    %69 = vector.load %arg5[%c0_33, %c0_34, %c0_35, %c0_36] : memref<1x8x16x32xbf16, #tpu.memory_space<vmem>>, vector<1x8x16x32xbf16>
    %70 = vector.shape_cast %69 : vector<1x8x16x32xbf16> to vector<8x16x32xbf16>
    %71 = vector.shape_cast %68 : vector<8x16x32xbf16> to vector<1x8x16x32xbf16>
    tpu.vector_store %arg5[%c0_33, %c0_34, %c0_35, %c0_36], %71 {strides = array<i32>} : memref<1x8x16x32xbf16, #tpu.memory_space<vmem>>, vector<1x8x16x32xbf16>,
    return
  }
  func.func @transform_0(%arg0: i32, %arg1: i32) -> (i32, i32, i32, i32) {
    %c0_i32 = arith.constant 0 : i32
    %c0_i32_0 = arith.constant 0 : i32
    %c0_i32_1 = arith.constant 0 : i32
    %c0_i32_2 = arith.constant 0 : i32
    return %arg0, %c0_i32, %c0_i32_0, %c0_i32_1 : i32, i32, i32, i32
  }
  func.func @transform_1(%arg0: i32, %arg1: i32) -> (i32, i32, i32) {
    %c0_i32 = arith.constant 0 : i32
    %c0_i32_0 = arith.constant 0 : i32
    %c0_i32_1 = arith.constant 0 : i32
    %c0_i32_2 = arith.constant 0 : i32
    return %c0_i32, %c0_i32_0, %c0_i32_1 : i32, i32, i32
  }
  func.func @transform_2(%arg0: i32, %arg1: i32) -> (i32, i32) {
    %c0_i32 = arith.constant 0 : i32
    %c0_i32_0 = arith.constant 0 : i32
    %c0_i32_1 = arith.constant 0 : i32
    return %c0_i32, %c0_i32_0 : i32, i32
  }
  func.func @transform_3(%arg0: i32, %arg1: i32) -> (i32, i32, i32, i32) {
    %c0_i32 = arith.constant 0 : i32
    %c0_i32_0 = arith.constant 0 : i32
    %c0_i32_1 = arith.constant 0 : i32
    return %arg0, %arg1, %c0_i32, %c0_i32_0 : i32, i32, i32, i32
  }
}

module attributes {stable_mosaic.version = 11 : i64} {
  func.func @_conv3x3_kernel(%arg0: i32, %arg1: i32, %arg2: memref<1x18x18x32xbf16, #tpu.memory_space<vmem>>, %arg3: memref<9x32x32xbf16, #tpu.memory_space<vmem>>, %arg4: memref<1x32xf32, #tpu.memory_space<vmem>>, %arg5: memref<1x8x16x32xbf16, #tpu.memory_space<vmem>>) attributes {dimension_semantics = [#tpu.dimension_semantics<parallel>, #tpu.dimension_semantics<parallel>], iteration_bounds = array<i64: 2, 2>, scalar_prefetch = 0 : i64, scratch_operands = 0 : i64, tpu.core_type = #tpu.core_type<tc>, window_params = [{transform_indices = @transform_0, window_bounds = array<i64: 1, 18, 18, 32>}, {pipeline_mode = #tpu.pipeline_mode<synchronous>, transform_indices = @transform_1, window_bounds = array<i64: 9, 32, 32>}, {pipeline_mode = #tpu.pipeline_mode<synchronous>, transform_indices = @transform_2, window_bounds = array<i64: 1, 32>}, {transform_indices = @transform_3, window_bounds = array<i64: 1, 8, 16, 32>}]} {
    %c8_i32 = arith.constant 8 : i32
    %0 = arith.muli %arg1, %c8_i32 : i32
    %c0 = arith.constant 0 : index
    %1 = arith.index_cast %0 : i32 to index
    %c0_0 = arith.constant 0 : index
    %c0_1 = arith.constant 0 : index
    %2 = vector.load %arg2[%c0, %1, %c0_0, %c0_1] : memref<1x18x18x32xbf16, #tpu.memory_space<vmem>>, vector<1x10x18x32xbf16>
    %3 = vector.shape_cast %2 : vector<1x10x18x32xbf16> to vector<10x18x32xbf16>
    %cst = arith.constant 0.000000e+00 : f32
    %4 = vector.broadcast %cst : f32 to vector<128x32xf32>
    %5 = vector.extract_strided_slice %3 {offsets = [0, 0, 0], sizes = [8, 18, 32], strides = [1, 1, 1]} : vector<10x18x32xbf16> to vector<8x18x32xbf16>
    %6 = vector.extract_strided_slice %5 {offsets = [0, 0, 0], sizes = [8, 16, 32], strides = [1, 1, 1]} : vector<8x18x32xbf16> to vector<8x16x32xbf16>
    %7 = vector.shape_cast %6 : vector<8x16x32xbf16> to vector<128x32xbf16>
    %c0_2 = arith.constant 0 : index
    %c0_3 = arith.constant 0 : index
    %c0_4 = arith.constant 0 : index
    %8 = vector.load %arg3[%c0_2, %c0_3, %c0_4] : memref<9x32x32xbf16, #tpu.memory_space<vmem>>, vector<1x32x32xbf16>
    %9 = vector.shape_cast %8 : vector<1x32x32xbf16> to vector<32x32xbf16>
    %cst_5 = arith.constant dense<0.000000e+00> : vector<128x32xf32>
    %10 = tpu.matmul %7, %9, %cst_5 {dimension_numbers = #tpu.dot_dimension_numbers<[1], [0], [0], [1], [0, 0, 1, 1], [], []>} : vector<128x32xbf16>, vector<32x32xbf16>, vector<128x32xf32> -> vector<128x32xf32>
    %11 = arith.addf %4, %10 : vector<128x32xf32>
    %12 = vector.extract_strided_slice %5 {offsets = [0, 1, 0], sizes = [8, 16, 32], strides = [1, 1, 1]} : vector<8x18x32xbf16> to vector<8x16x32xbf16>
    %13 = vector.shape_cast %12 : vector<8x16x32xbf16> to vector<128x32xbf16>
    %c1 = arith.constant 1 : index
    %c0_6 = arith.constant 0 : index
    %c0_7 = arith.constant 0 : index
    %14 = vector.load %arg3[%c1, %c0_6, %c0_7] : memref<9x32x32xbf16, #tpu.memory_space<vmem>>, vector<1x32x32xbf16>
    %15 = vector.shape_cast %14 : vector<1x32x32xbf16> to vector<32x32xbf16>
    %cst_8 = arith.constant dense<0.000000e+00> : vector<128x32xf32>
    %16 = tpu.matmul %13, %15, %cst_8 {dimension_numbers = #tpu.dot_dimension_numbers<[1], [0], [0], [1], [0, 0, 1, 1], [], []>} : vector<128x32xbf16>, vector<32x32xbf16>, vector<128x32xf32> -> vector<128x32xf32>
    %17 = arith.addf %11, %16 : vector<128x32xf32>
    %18 = vector.extract_strided_slice %5 {offsets = [0, 2, 0], sizes = [8, 16, 32], strides = [1, 1, 1]} : vector<8x18x32xbf16> to vector<8x16x32xbf16>
    %19 = vector.shape_cast %18 : vector<8x16x32xbf16> to vector<128x32xbf16>
    %c2 = arith.constant 2 : index
    %c0_9 = arith.constant 0 : index
    %c0_10 = arith.constant 0 : index
    %20 = vector.load %arg3[%c2, %c0_9, %c0_10] : memref<9x32x32xbf16, #tpu.memory_space<vmem>>, vector<1x32x32xbf16>
    %21 = vector.shape_cast %20 : vector<1x32x32xbf16> to vector<32x32xbf16>
    %cst_11 = arith.constant dense<0.000000e+00> : vector<128x32xf32>
    %22 = tpu.matmul %19, %21, %cst_11 {dimension_numbers = #tpu.dot_dimension_numbers<[1], [0], [0], [1], [0, 0, 1, 1], [], []>} : vector<128x32xbf16>, vector<32x32xbf16>, vector<128x32xf32> -> vector<128x32xf32>
    %23 = arith.addf %17, %22 : vector<128x32xf32>
    %24 = vector.extract_strided_slice %3 {offsets = [1, 0, 0], sizes = [8, 18, 32], strides = [1, 1, 1]} : vector<10x18x32xbf16> to vector<8x18x32xbf16>
    %25 = vector.extract_strided_slice %24 {offsets = [0, 0, 0], sizes = [8, 16, 32], strides = [1, 1, 1]} : vector<8x18x32xbf16> to vector<8x16x32xbf16>
    %26 = vector.shape_cast %25 : vector<8x16x32xbf16> to vector<128x32xbf16>
    %c3 = arith.constant 3 : index
    %c0_12 = arith.constant 0 : index
    %c0_13 = arith.constant 0 : index
    %27 = vector.load %arg3[%c3, %c0_12, %c0_13] : memref<9x32x32xbf16, #tpu.memory_space<vmem>>, vector<1x32x32xbf16>
    %28 = vector.shape_cast %27 : vector<1x32x32xbf16> to vector<32x32xbf16>
    %cst_14 = arith.constant dense<0.000000e+00> : vector<128x32xf32>
    %29 = tpu.matmul %26, %28, %cst_14 {dimension_numbers = #tpu.dot_dimension_numbers<[1], [0], [0], [1], [0, 0, 1, 1], [], []>} : vector<128x32xbf16>, vector<32x32xbf16>, vector<128x32xf32> -> vector<128x32xf32>
    %30 = arith.addf %23, %29 : vector<128x32xf32>
    %31 = vector.extract_strided_slice %24 {offsets = [0, 1, 0], sizes = [8, 16, 32], strides = [1, 1, 1]} : vector<8x18x32xbf16> to vector<8x16x32xbf16>
    %32 = vector.shape_cast %31 : vector<8x16x32xbf16> to vector<128x32xbf16>
    %c4 = arith.constant 4 : index
    %c0_15 = arith.constant 0 : index
    %c0_16 = arith.constant 0 : index
    %33 = vector.load %arg3[%c4, %c0_15, %c0_16] : memref<9x32x32xbf16, #tpu.memory_space<vmem>>, vector<1x32x32xbf16>
    %34 = vector.shape_cast %33 : vector<1x32x32xbf16> to vector<32x32xbf16>
    %cst_17 = arith.constant dense<0.000000e+00> : vector<128x32xf32>
    %35 = tpu.matmul %32, %34, %cst_17 {dimension_numbers = #tpu.dot_dimension_numbers<[1], [0], [0], [1], [0, 0, 1, 1], [], []>} : vector<128x32xbf16>, vector<32x32xbf16>, vector<128x32xf32> -> vector<128x32xf32>
    %36 = arith.addf %30, %35 : vector<128x32xf32>
    %37 = vector.extract_strided_slice %24 {offsets = [0, 2, 0], sizes = [8, 16, 32], strides = [1, 1, 1]} : vector<8x18x32xbf16> to vector<8x16x32xbf16>
    %38 = vector.shape_cast %37 : vector<8x16x32xbf16> to vector<128x32xbf16>
    %c5 = arith.constant 5 : index
    %c0_18 = arith.constant 0 : index
    %c0_19 = arith.constant 0 : index
    %39 = vector.load %arg3[%c5, %c0_18, %c0_19] : memref<9x32x32xbf16, #tpu.memory_space<vmem>>, vector<1x32x32xbf16>
    %40 = vector.shape_cast %39 : vector<1x32x32xbf16> to vector<32x32xbf16>
    %cst_20 = arith.constant dense<0.000000e+00> : vector<128x32xf32>
    %41 = tpu.matmul %38, %40, %cst_20 {dimension_numbers = #tpu.dot_dimension_numbers<[1], [0], [0], [1], [0, 0, 1, 1], [], []>} : vector<128x32xbf16>, vector<32x32xbf16>, vector<128x32xf32> -> vector<128x32xf32>
    %42 = arith.addf %36, %41 : vector<128x32xf32>
    %43 = vector.extract_strided_slice %3 {offsets = [2, 0, 0], sizes = [8, 18, 32], strides = [1, 1, 1]} : vector<10x18x32xbf16> to vector<8x18x32xbf16>
    %44 = vector.extract_strided_slice %43 {offsets = [0, 0, 0], sizes = [8, 16, 32], strides = [1, 1, 1]} : vector<8x18x32xbf16> to vector<8x16x32xbf16>
    %45 = vector.shape_cast %44 : vector<8x16x32xbf16> to vector<128x32xbf16>
    %c6 = arith.constant 6 : index
    %c0_21 = arith.constant 0 : index
    %c0_22 = arith.constant 0 : index
    %46 = vector.load %arg3[%c6, %c0_21, %c0_22] : memref<9x32x32xbf16, #tpu.memory_space<vmem>>, vector<1x32x32xbf16>
    %47 = vector.shape_cast %46 : vector<1x32x32xbf16> to vector<32x32xbf16>
    %cst_23 = arith.constant dense<0.000000e+00> : vector<128x32xf32>
    %48 = tpu.matmul %45, %47, %cst_23 {dimension_numbers = #tpu.dot_dimension_numbers<[1], [0], [0], [1], [0, 0, 1, 1], [], []>} : vector<128x32xbf16>, vector<32x32xbf16>, vector<128x32xf32> -> vector<128x32xf32>
    %49 = arith.addf %42, %48 : vector<128x32xf32>
    %50 = vector.extract_strided_slice %43 {offsets = [0, 1, 0], sizes = [8, 16, 32], strides = [1, 1, 1]} : vector<8x18x32xbf16> to vector<8x16x32xbf16>
    %51 = vector.shape_cast %50 : vector<8x16x32xbf16> to vector<128x32xbf16>
    %c7 = arith.constant 7 : index
    %c0_24 = arith.constant 0 : index
    %c0_25 = arith.constant 0 : index
    %52 = vector.load %arg3[%c7, %c0_24, %c0_25] : memref<9x32x32xbf16, #tpu.memory_space<vmem>>, vector<1x32x32xbf16>
    %53 = vector.shape_cast %52 : vector<1x32x32xbf16> to vector<32x32xbf16>
    %cst_26 = arith.constant dense<0.000000e+00> : vector<128x32xf32>
    %54 = tpu.matmul %51, %53, %cst_26 {dimension_numbers = #tpu.dot_dimension_numbers<[1], [0], [0], [1], [0, 0, 1, 1], [], []>} : vector<128x32xbf16>, vector<32x32xbf16>, vector<128x32xf32> -> vector<128x32xf32>
    %55 = arith.addf %49, %54 : vector<128x32xf32>
    %56 = vector.extract_strided_slice %43 {offsets = [0, 2, 0], sizes = [8, 16, 32], strides = [1, 1, 1]} : vector<8x18x32xbf16> to vector<8x16x32xbf16>
    %57 = vector.shape_cast %56 : vector<8x16x32xbf16> to vector<128x32xbf16>
    %c8 = arith.constant 8 : index
    %c0_27 = arith.constant 0 : index
    %c0_28 = arith.constant 0 : index
    %58 = vector.load %arg3[%c8, %c0_27, %c0_28] : memref<9x32x32xbf16, #tpu.memory_space<vmem>>, vector<1x32x32xbf16>
    %59 = vector.shape_cast %58 : vector<1x32x32xbf16> to vector<32x32xbf16>
    %cst_29 = arith.constant dense<0.000000e+00> : vector<128x32xf32>
    %60 = tpu.matmul %57, %59, %cst_29 {dimension_numbers = #tpu.dot_dimension_numbers<[1], [0], [0], [1], [0, 0, 1, 1], [], []>} : vector<128x32xbf16>, vector<32x32xbf16>, vector<128x32xf32> -> vector<128x32xf32>
    %61 = arith.addf %55, %60 : vector<128x32xf32>
    %c0_30 = arith.constant 0 : index
    %c0_31 = arith.constant 0 : index
    %62 = vector.load %arg4[%c0_30, %c0_31] : memref<1x32xf32, #tpu.memory_space<vmem>>, vector<1x32xf32>
    %63 = vector.broadcast %62 : vector<1x32xf32> to vector<128x32xf32>
    %64 = arith.addf %61, %63 : vector<128x32xf32>
    %cst_32 = arith.constant 0.000000e+00 : f32
    %65 = vector.broadcast %cst_32 : f32 to vector<128x32xf32>
    %66 = arith.maximumf %64, %65 : vector<128x32xf32>
    %67 = vector.shape_cast %66 : vector<128x32xf32> to vector<8x16x32xf32>
    %68 = arith.truncf %67 : vector<8x16x32xf32> to vector<8x16x32xbf16>
    %c0_33 = arith.constant 0 : index
    %c0_34 = arith.constant 0 : index
    %c0_35 = arith.constant 0 : index
    %c0_36 = arith.constant 0 : index
    %69 = vector.load %arg5[%c0_33, %c0_34, %c0_35, %c0_36] : memref<1x8x16x32xbf16, #tpu.memory_space<vmem>>, vector<1x8x16x32xbf16>
    %70 = vector.shape_cast %69 : vector<1x8x16x32xbf16> to vector<8x16x32xbf16>
    %71 = vector.shape_cast %68 : vector<8x16x32xbf16> to vector<1x8x16x32xbf16>
    tpu.vector_store %arg5[%c0_33, %c0_34, %c0_35, %c0_36], %71 {strides = array<i32>} : memref<1x8x16x32xbf16, #tpu.memory_space<vmem>>, vector<1x8x16x32xbf16>,
    return
  }
  func.func @transform_0(%arg0: i32, %arg1: i32) -> (i32, i32, i32, i32) {
    %c0_i32 = arith.constant 0 : i32
    %c0_i32_0 = arith.constant 0 : i32
    %c0_i32_1 = arith.constant 0 : i32
    %c0_i32_2 = arith.constant 0 : i32
    return %arg0, %c0_i32, %c0_i32_0, %c0_i32_1 : i32, i32, i32, i32
  }
  func.func @transform_1(%arg0: i32, %arg1: i32) -> (i32, i32, i32) {
    %c0_i32 = arith.constant 0 : i32
    %c0_i32_0 = arith.constant 0 : i32
    %c0_i32_1 = arith.constant 0 : i32
    %c0_i32_2 = arith.constant 0 : i32
    return %c0_i32, %c0_i32_0, %c0_i32_1 : i32, i32, i32
  }
  func.func @transform_2(%arg0: i32, %arg1: i32) -> (i32, i32) {
    %c0_i32 = arith.constant 0 : i32
    %c0_i32_0 = arith.constant 0 : i32
    %c0_i32_1 = arith.constant 0 : i32
    return %c0_i32, %c0_i32_0 : i32, i32
  }
  func.func @transform_3(%arg0: i32, %arg1: i32) -> (i32, i32, i32, i32) {
    %c0_i32 = arith.constant 0 : i32
    %c0_i32_0 = arith.constant 0 : i32
    %c0_i32_1 = arith.constant 0 : i32
    return %arg0, %arg1, %c0_i32, %c0_i32_0 : i32, i32, i32, i32
  }
}

module attributes {stable_mosaic.version = 11 : i64} {
  func.func @_uaca_attn_kernel(%arg0: i32, %arg1: memref<1x1x256xf32, #tpu.memory_space<vmem>>, %arg2: memref<1x256x4xf32, #tpu.memory_space<vmem>>, %arg3: memref<1x256x32xbf16, #tpu.memory_space<vmem>>, %arg4: memref<4x64xf32, #tpu.memory_space<vmem>>, %arg5: memref<1x64xf32, #tpu.memory_space<vmem>>, %arg6: memref<64x64xf32, #tpu.memory_space<vmem>>, %arg7: memref<1x64xf32, #tpu.memory_space<vmem>>, %arg8: memref<1x256x32xbf16, #tpu.memory_space<vmem>>) attributes {dimension_semantics = [#tpu.dimension_semantics<parallel>], iteration_bounds = array<i64: 2>, scalar_prefetch = 0 : i64, scratch_operands = 0 : i64, tpu.core_type = #tpu.core_type<tc>, window_params = [{transform_indices = @transform_0, window_bounds = array<i64: 1, 1, 256>}, {transform_indices = @transform_1, window_bounds = array<i64: 1, 256, 4>}, {transform_indices = @transform_2, window_bounds = array<i64: 1, 256, 32>}, {pipeline_mode = #tpu.pipeline_mode<synchronous>, transform_indices = @transform_3, window_bounds = array<i64: 4, 64>}, {pipeline_mode = #tpu.pipeline_mode<synchronous>, transform_indices = @transform_4, window_bounds = array<i64: 1, 64>}, {pipeline_mode = #tpu.pipeline_mode<synchronous>, transform_indices = @transform_5, window_bounds = array<i64: 64, 64>}, {pipeline_mode = #tpu.pipeline_mode<synchronous>, transform_indices = @transform_6, window_bounds = array<i64: 1, 64>}, {transform_indices = @transform_7, window_bounds = array<i64: 1, 256, 32>}]} {
    %c0 = arith.constant 0 : index
    %c0_0 = arith.constant 0 : index
    %c0_1 = arith.constant 0 : index
    %0 = vector.load %arg1[%c0, %c0_0, %c0_1] : memref<1x1x256xf32, #tpu.memory_space<vmem>>, vector<1x1x256xf32>
    %1 = vector.shape_cast %0 : vector<1x1x256xf32> to vector<1x256xf32>
    %2 = arith.negf %1 : vector<1x256xf32>
    %3 = math.exp %2 : vector<1x256xf32>
    %cst = arith.constant 1.000000e+00 : f32
    %4 = vector.broadcast %cst : f32 to vector<1x256xf32>
    %5 = arith.addf %4, %3 : vector<1x256xf32>
    %6 = arith.divf %4, %5 : vector<1x256xf32>
    %cst_2 = arith.constant 5.000000e-01 : f32
    %7 = vector.broadcast %cst_2 : f32 to vector<1x256xf32>
    %8 = arith.subf %6, %7 : vector<1x256xf32>
    %cst_3 = arith.constant 0.000000e+00 : f32
    %cst_4 = arith.constant 1.000000e+00 : f32
    %9 = vector.broadcast %cst_3 : f32 to vector<1x256xf32>
    %10 = arith.maximumf %9, %8 : vector<1x256xf32>
    %11 = vector.broadcast %cst_4 : f32 to vector<1x256xf32>
    %12 = arith.minimumf %11, %10 : vector<1x256xf32>
    %cst_5 = arith.constant 0.000000e+00 : f32
    %13 = vector.broadcast %cst_5 : f32 to vector<1x256xf32>
    %14 = arith.subf %13, %8 : vector<1x256xf32>
    %cst_6 = arith.constant 0.000000e+00 : f32
    %cst_7 = arith.constant 1.000000e+00 : f32
    %15 = vector.broadcast %cst_6 : f32 to vector<1x256xf32>
    %16 = arith.maximumf %15, %14 : vector<1x256xf32>
    %17 = vector.broadcast %cst_7 : f32 to vector<1x256xf32>
    %18 = arith.minimumf %17, %16 : vector<1x256xf32>
    %19 = math.absf %8 : vector<1x256xf32>
    %cst_8 = arith.constant 5.000000e-01 : f32
    %20 = vector.broadcast %cst_8 : f32 to vector<1x256xf32>
    %21 = arith.subf %20, %19 : vector<1x256xf32>
    %cst_9 = arith.constant 0.000000e+00 : f32
    %22 = vector.broadcast %cst_9 : f32 to vector<5x256xf32>
    %23 = tpu.concatenate %12, %18, %21, %22 in 0 : vector<1x256xf32>, vector<1x256xf32>, vector<1x256xf32>, vector<5x256xf32> -> vector<8x256xf32>
    %c0_10 = arith.constant 0 : index
    %c0_11 = arith.constant 0 : index
    %c0_12 = arith.constant 0 : index
    %24 = vector.load %arg2[%c0_10, %c0_11, %c0_12] : memref<1x256x4xf32, #tpu.memory_space<vmem>>, vector<1x256x4xf32>
    %25 = vector.shape_cast %24 : vector<1x256x4xf32> to vector<256x4xf32>
    %cst_13 = arith.constant dense<0.000000e+00> : vector<8x4xf32>
    %26 = tpu.matmul %23, %25, %cst_13 {dimension_numbers = #tpu.dot_dimension_numbers<[1], [0], [0], [1], [0, 0, 1, 1], [], []>} : vector<8x256xf32>, vector<256x4xf32>, vector<8x4xf32> -> vector<8x4xf32>
    %c0_14 = arith.constant 0 : index
    %c0_15 = arith.constant 0 : index
    %27 = vector.load %arg4[%c0_14, %c0_15] : memref<4x64xf32, #tpu.memory_space<vmem>>, vector<4x64xf32>
    %cst_16 = arith.constant dense<0.000000e+00> : vector<8x64xf32>
    %28 = tpu.matmul %26, %27, %cst_16 {dimension_numbers = #tpu.dot_dimension_numbers<[1], [0], [0], [1], [0, 0, 1, 1], [], []>} : vector<8x4xf32>, vector<4x64xf32>, vector<8x64xf32> -> vector<8x64xf32>
    %c0_17 = arith.constant 0 : index
    %c0_18 = arith.constant 0 : index
    %29 = vector.load %arg5[%c0_17, %c0_18] : memref<1x64xf32, #tpu.memory_space<vmem>>, vector<1x64xf32>
    %30 = vector.broadcast %29 : vector<1x64xf32> to vector<8x64xf32>
    %31 = arith.addf %28, %30 : vector<8x64xf32>
    %cst_19 = arith.constant 0.000000e+00 : f32
    %32 = vector.broadcast %cst_19 : f32 to vector<8x64xf32>
    %33 = arith.maximumf %31, %32 : vector<8x64xf32>
    %c0_20 = arith.constant 0 : index
    %c0_21 = arith.constant 0 : index
    %34 = vector.load %arg6[%c0_20, %c0_21] : memref<64x64xf32, #tpu.memory_space<vmem>>, vector<64x64xf32>
    %cst_22 = arith.constant dense<0.000000e+00> : vector<8x64xf32>
    %35 = tpu.matmul %33, %34, %cst_22 {dimension_numbers = #tpu.dot_dimension_numbers<[1], [0], [0], [1], [0, 0, 1, 1], [], []>} : vector<8x64xf32>, vector<64x64xf32>, vector<8x64xf32> -> vector<8x64xf32>
    %c0_23 = arith.constant 0 : index
    %c0_24 = arith.constant 0 : index
    %36 = vector.load %arg7[%c0_23, %c0_24] : memref<1x64xf32, #tpu.memory_space<vmem>>, vector<1x64xf32>
    %37 = vector.broadcast %36 : vector<1x64xf32> to vector<8x64xf32>
    %38 = arith.addf %35, %37 : vector<8x64xf32>
    %cst_25 = arith.constant 0.000000e+00 : f32
    %39 = vector.broadcast %cst_25 : f32 to vector<8x64xf32>
    %40 = arith.maximumf %38, %39 : vector<8x64xf32>
    %41 = vector.extract_strided_slice %40 {offsets = [0, 0], sizes = [3, 32], strides = [1, 1]} : vector<8x64xf32> to vector<3x32xf32>
    %42 = vector.extract_strided_slice %40 {offsets = [0, 32], sizes = [3, 32], strides = [1, 1]} : vector<8x64xf32> to vector<3x32xf32>
    %c0_26 = arith.constant 0 : index
    %c0_27 = arith.constant 0 : index
    %c0_28 = arith.constant 0 : index
    %43 = vector.load %arg3[%c0_26, %c0_27, %c0_28] : memref<1x256x32xbf16, #tpu.memory_space<vmem>>, vector<1x256x32xbf16>
    %44 = vector.shape_cast %43 : vector<1x256x32xbf16> to vector<256x32xbf16>
    %45 = arith.extf %44 : vector<256x32xbf16> to vector<256x32xf32>
    %cst_29 = arith.constant dense<0.000000e+00> : vector<256x3xf32>
    %46 = tpu.matmul %45, %41, %cst_29 {dimension_numbers = #tpu.dot_dimension_numbers<[1], [1], [0], [0], [0, 0, 1, 0], [], []>} : vector<256x32xf32>, vector<3x32xf32>, vector<256x3xf32> -> vector<256x3xf32>
    %cst_30 = arith.constant 0.176776692 : f32
    %47 = vector.broadcast %cst_30 : f32 to vector<256x3xf32>
    %48 = arith.mulf %46, %47 : vector<256x3xf32>
    %cst_31 = arith.constant dense<0xFF800000> : vector<256xf32>
    %49 = vector.multi_reduction <maximumf>, %48, %cst_31 [1] : vector<256x3xf32> to vector<256xf32>
    %50 = vector.shape_cast %49 : vector<256xf32> to vector<256x1xf32>
    %51 = vector.broadcast %50 : vector<256x1xf32> to vector<256x3xf32>
    %52 = arith.subf %48, %51 : vector<256x3xf32>
    %53 = math.exp %52 : vector<256x3xf32>
    %cst_32 = arith.constant dense<0.000000e+00> : vector<256xf32>
    %54 = vector.multi_reduction <add>, %53, %cst_32 [1] : vector<256x3xf32> to vector<256xf32>
    %55 = vector.shape_cast %54 : vector<256xf32> to vector<256x1xf32>
    %56 = vector.broadcast %55 : vector<256x1xf32> to vector<256x3xf32>
    %57 = arith.divf %53, %56 : vector<256x3xf32>
    %cst_33 = arith.constant dense<0.000000e+00> : vector<256x32xf32>
    %58 = tpu.matmul %57, %42, %cst_33 {dimension_numbers = #tpu.dot_dimension_numbers<[1], [0], [0], [1], [0, 0, 1, 1], [], []>} : vector<256x3xf32>, vector<3x32xf32>, vector<256x32xf32> -> vector<256x32xf32>
    %59 = arith.truncf %58 : vector<256x32xf32> to vector<256x32xbf16>
    %c0_34 = arith.constant 0 : index
    %c0_35 = arith.constant 0 : index
    %c0_36 = arith.constant 0 : index
    %60 = vector.load %arg8[%c0_34, %c0_35, %c0_36] : memref<1x256x32xbf16, #tpu.memory_space<vmem>>, vector<1x256x32xbf16>
    %61 = vector.shape_cast %60 : vector<1x256x32xbf16> to vector<256x32xbf16>
    %62 = vector.shape_cast %59 : vector<256x32xbf16> to vector<1x256x32xbf16>
    tpu.vector_store %arg8[%c0_34, %c0_35, %c0_36], %62 {strides = array<i32>} : memref<1x256x32xbf16, #tpu.memory_space<vmem>>, vector<1x256x32xbf16>,
    return
  }
  func.func @transform_0(%arg0: i32) -> (i32, i32, i32) {
    %c0_i32 = arith.constant 0 : i32
    %c0_i32_0 = arith.constant 0 : i32
    %c0_i32_1 = arith.constant 0 : i32
    return %arg0, %c0_i32, %c0_i32_0 : i32, i32, i32
  }
  func.func @transform_1(%arg0: i32) -> (i32, i32, i32) {
    %c0_i32 = arith.constant 0 : i32
    %c0_i32_0 = arith.constant 0 : i32
    %c0_i32_1 = arith.constant 0 : i32
    return %arg0, %c0_i32, %c0_i32_0 : i32, i32, i32
  }
  func.func @transform_2(%arg0: i32) -> (i32, i32, i32) {
    %c0_i32 = arith.constant 0 : i32
    %c0_i32_0 = arith.constant 0 : i32
    %c0_i32_1 = arith.constant 0 : i32
    return %arg0, %c0_i32, %c0_i32_0 : i32, i32, i32
  }
  func.func @transform_3(%arg0: i32) -> (i32, i32) {
    %c0_i32 = arith.constant 0 : i32
    %c0_i32_0 = arith.constant 0 : i32
    %c0_i32_1 = arith.constant 0 : i32
    return %c0_i32, %c0_i32_0 : i32, i32
  }
  func.func @transform_4(%arg0: i32) -> (i32, i32) {
    %c0_i32 = arith.constant 0 : i32
    %c0_i32_0 = arith.constant 0 : i32
    %c0_i32_1 = arith.constant 0 : i32
    return %c0_i32, %c0_i32_0 : i32, i32
  }
  func.func @transform_5(%arg0: i32) -> (i32, i32) {
    %c0_i32 = arith.constant 0 : i32
    %c0_i32_0 = arith.constant 0 : i32
    %c0_i32_1 = arith.constant 0 : i32
    return %c0_i32, %c0_i32_0 : i32, i32
  }
  func.func @transform_6(%arg0: i32) -> (i32, i32) {
    %c0_i32 = arith.constant 0 : i32
    %c0_i32_0 = arith.constant 0 : i32
    %c0_i32_1 = arith.constant 0 : i32
    return %c0_i32, %c0_i32_0 : i32, i32
  }
  func.func @transform_7(%arg0: i32) -> (i32, i32, i32) {
    %c0_i32 = arith.constant 0 : i32
    %c0_i32_0 = arith.constant 0 : i32
    %c0_i32_1 = arith.constant 0 : i32
    return %arg0, %c0_i32, %c0_i32_0 : i32, i32, i32
  }
}

module attributes {stable_mosaic.version = 11 : i64} {
  func.func @_conv3x3_kernel(%arg0: i32, %arg1: i32, %arg2: memref<1x18x18x36xbf16, #tpu.memory_space<vmem>>, %arg3: memref<9x36x32xbf16, #tpu.memory_space<vmem>>, %arg4: memref<1x32xf32, #tpu.memory_space<vmem>>, %arg5: memref<1x8x16x32xbf16, #tpu.memory_space<vmem>>) attributes {dimension_semantics = [#tpu.dimension_semantics<parallel>, #tpu.dimension_semantics<parallel>], iteration_bounds = array<i64: 2, 2>, scalar_prefetch = 0 : i64, scratch_operands = 0 : i64, tpu.core_type = #tpu.core_type<tc>, window_params = [{transform_indices = @transform_0, window_bounds = array<i64: 1, 18, 18, 36>}, {pipeline_mode = #tpu.pipeline_mode<synchronous>, transform_indices = @transform_1, window_bounds = array<i64: 9, 36, 32>}, {pipeline_mode = #tpu.pipeline_mode<synchronous>, transform_indices = @transform_2, window_bounds = array<i64: 1, 32>}, {transform_indices = @transform_3, window_bounds = array<i64: 1, 8, 16, 32>}]} {
    %c8_i32 = arith.constant 8 : i32
    %0 = arith.muli %arg1, %c8_i32 : i32
    %c0 = arith.constant 0 : index
    %1 = arith.index_cast %0 : i32 to index
    %c0_0 = arith.constant 0 : index
    %c0_1 = arith.constant 0 : index
    %2 = vector.load %arg2[%c0, %1, %c0_0, %c0_1] : memref<1x18x18x36xbf16, #tpu.memory_space<vmem>>, vector<1x10x18x36xbf16>
    %3 = vector.shape_cast %2 : vector<1x10x18x36xbf16> to vector<10x18x36xbf16>
    %cst = arith.constant 0.000000e+00 : f32
    %4 = vector.broadcast %cst : f32 to vector<128x32xf32>
    %5 = vector.extract_strided_slice %3 {offsets = [0, 0, 0], sizes = [8, 18, 36], strides = [1, 1, 1]} : vector<10x18x36xbf16> to vector<8x18x36xbf16>
    %6 = vector.extract_strided_slice %5 {offsets = [0, 0, 0], sizes = [8, 16, 36], strides = [1, 1, 1]} : vector<8x18x36xbf16> to vector<8x16x36xbf16>
    %7 = vector.shape_cast %6 : vector<8x16x36xbf16> to vector<128x36xbf16>
    %c0_2 = arith.constant 0 : index
    %c0_3 = arith.constant 0 : index
    %c0_4 = arith.constant 0 : index
    %8 = vector.load %arg3[%c0_2, %c0_3, %c0_4] : memref<9x36x32xbf16, #tpu.memory_space<vmem>>, vector<1x36x32xbf16>
    %9 = vector.shape_cast %8 : vector<1x36x32xbf16> to vector<36x32xbf16>
    %cst_5 = arith.constant dense<0.000000e+00> : vector<128x32xf32>
    %10 = tpu.matmul %7, %9, %cst_5 {dimension_numbers = #tpu.dot_dimension_numbers<[1], [0], [0], [1], [0, 0, 1, 1], [], []>} : vector<128x36xbf16>, vector<36x32xbf16>, vector<128x32xf32> -> vector<128x32xf32>
    %11 = arith.addf %4, %10 : vector<128x32xf32>
    %12 = vector.extract_strided_slice %5 {offsets = [0, 1, 0], sizes = [8, 16, 36], strides = [1, 1, 1]} : vector<8x18x36xbf16> to vector<8x16x36xbf16>
    %13 = vector.shape_cast %12 : vector<8x16x36xbf16> to vector<128x36xbf16>
    %c1 = arith.constant 1 : index
    %c0_6 = arith.constant 0 : index
    %c0_7 = arith.constant 0 : index
    %14 = vector.load %arg3[%c1, %c0_6, %c0_7] : memref<9x36x32xbf16, #tpu.memory_space<vmem>>, vector<1x36x32xbf16>
    %15 = vector.shape_cast %14 : vector<1x36x32xbf16> to vector<36x32xbf16>
    %cst_8 = arith.constant dense<0.000000e+00> : vector<128x32xf32>
    %16 = tpu.matmul %13, %15, %cst_8 {dimension_numbers = #tpu.dot_dimension_numbers<[1], [0], [0], [1], [0, 0, 1, 1], [], []>} : vector<128x36xbf16>, vector<36x32xbf16>, vector<128x32xf32> -> vector<128x32xf32>
    %17 = arith.addf %11, %16 : vector<128x32xf32>
    %18 = vector.extract_strided_slice %5 {offsets = [0, 2, 0], sizes = [8, 16, 36], strides = [1, 1, 1]} : vector<8x18x36xbf16> to vector<8x16x36xbf16>
    %19 = vector.shape_cast %18 : vector<8x16x36xbf16> to vector<128x36xbf16>
    %c2 = arith.constant 2 : index
    %c0_9 = arith.constant 0 : index
    %c0_10 = arith.constant 0 : index
    %20 = vector.load %arg3[%c2, %c0_9, %c0_10] : memref<9x36x32xbf16, #tpu.memory_space<vmem>>, vector<1x36x32xbf16>
    %21 = vector.shape_cast %20 : vector<1x36x32xbf16> to vector<36x32xbf16>
    %cst_11 = arith.constant dense<0.000000e+00> : vector<128x32xf32>
    %22 = tpu.matmul %19, %21, %cst_11 {dimension_numbers = #tpu.dot_dimension_numbers<[1], [0], [0], [1], [0, 0, 1, 1], [], []>} : vector<128x36xbf16>, vector<36x32xbf16>, vector<128x32xf32> -> vector<128x32xf32>
    %23 = arith.addf %17, %22 : vector<128x32xf32>
    %24 = vector.extract_strided_slice %3 {offsets = [1, 0, 0], sizes = [8, 18, 36], strides = [1, 1, 1]} : vector<10x18x36xbf16> to vector<8x18x36xbf16>
    %25 = vector.extract_strided_slice %24 {offsets = [0, 0, 0], sizes = [8, 16, 36], strides = [1, 1, 1]} : vector<8x18x36xbf16> to vector<8x16x36xbf16>
    %26 = vector.shape_cast %25 : vector<8x16x36xbf16> to vector<128x36xbf16>
    %c3 = arith.constant 3 : index
    %c0_12 = arith.constant 0 : index
    %c0_13 = arith.constant 0 : index
    %27 = vector.load %arg3[%c3, %c0_12, %c0_13] : memref<9x36x32xbf16, #tpu.memory_space<vmem>>, vector<1x36x32xbf16>
    %28 = vector.shape_cast %27 : vector<1x36x32xbf16> to vector<36x32xbf16>
    %cst_14 = arith.constant dense<0.000000e+00> : vector<128x32xf32>
    %29 = tpu.matmul %26, %28, %cst_14 {dimension_numbers = #tpu.dot_dimension_numbers<[1], [0], [0], [1], [0, 0, 1, 1], [], []>} : vector<128x36xbf16>, vector<36x32xbf16>, vector<128x32xf32> -> vector<128x32xf32>
    %30 = arith.addf %23, %29 : vector<128x32xf32>
    %31 = vector.extract_strided_slice %24 {offsets = [0, 1, 0], sizes = [8, 16, 36], strides = [1, 1, 1]} : vector<8x18x36xbf16> to vector<8x16x36xbf16>
    %32 = vector.shape_cast %31 : vector<8x16x36xbf16> to vector<128x36xbf16>
    %c4 = arith.constant 4 : index
    %c0_15 = arith.constant 0 : index
    %c0_16 = arith.constant 0 : index
    %33 = vector.load %arg3[%c4, %c0_15, %c0_16] : memref<9x36x32xbf16, #tpu.memory_space<vmem>>, vector<1x36x32xbf16>
    %34 = vector.shape_cast %33 : vector<1x36x32xbf16> to vector<36x32xbf16>
    %cst_17 = arith.constant dense<0.000000e+00> : vector<128x32xf32>
    %35 = tpu.matmul %32, %34, %cst_17 {dimension_numbers = #tpu.dot_dimension_numbers<[1], [0], [0], [1], [0, 0, 1, 1], [], []>} : vector<128x36xbf16>, vector<36x32xbf16>, vector<128x32xf32> -> vector<128x32xf32>
    %36 = arith.addf %30, %35 : vector<128x32xf32>
    %37 = vector.extract_strided_slice %24 {offsets = [0, 2, 0], sizes = [8, 16, 36], strides = [1, 1, 1]} : vector<8x18x36xbf16> to vector<8x16x36xbf16>
    %38 = vector.shape_cast %37 : vector<8x16x36xbf16> to vector<128x36xbf16>
    %c5 = arith.constant 5 : index
    %c0_18 = arith.constant 0 : index
    %c0_19 = arith.constant 0 : index
    %39 = vector.load %arg3[%c5, %c0_18, %c0_19] : memref<9x36x32xbf16, #tpu.memory_space<vmem>>, vector<1x36x32xbf16>
    %40 = vector.shape_cast %39 : vector<1x36x32xbf16> to vector<36x32xbf16>
    %cst_20 = arith.constant dense<0.000000e+00> : vector<128x32xf32>
    %41 = tpu.matmul %38, %40, %cst_20 {dimension_numbers = #tpu.dot_dimension_numbers<[1], [0], [0], [1], [0, 0, 1, 1], [], []>} : vector<128x36xbf16>, vector<36x32xbf16>, vector<128x32xf32> -> vector<128x32xf32>
    %42 = arith.addf %36, %41 : vector<128x32xf32>
    %43 = vector.extract_strided_slice %3 {offsets = [2, 0, 0], sizes = [8, 18, 36], strides = [1, 1, 1]} : vector<10x18x36xbf16> to vector<8x18x36xbf16>
    %44 = vector.extract_strided_slice %43 {offsets = [0, 0, 0], sizes = [8, 16, 36], strides = [1, 1, 1]} : vector<8x18x36xbf16> to vector<8x16x36xbf16>
    %45 = vector.shape_cast %44 : vector<8x16x36xbf16> to vector<128x36xbf16>
    %c6 = arith.constant 6 : index
    %c0_21 = arith.constant 0 : index
    %c0_22 = arith.constant 0 : index
    %46 = vector.load %arg3[%c6, %c0_21, %c0_22] : memref<9x36x32xbf16, #tpu.memory_space<vmem>>, vector<1x36x32xbf16>
    %47 = vector.shape_cast %46 : vector<1x36x32xbf16> to vector<36x32xbf16>
    %cst_23 = arith.constant dense<0.000000e+00> : vector<128x32xf32>
    %48 = tpu.matmul %45, %47, %cst_23 {dimension_numbers = #tpu.dot_dimension_numbers<[1], [0], [0], [1], [0, 0, 1, 1], [], []>} : vector<128x36xbf16>, vector<36x32xbf16>, vector<128x32xf32> -> vector<128x32xf32>
    %49 = arith.addf %42, %48 : vector<128x32xf32>
    %50 = vector.extract_strided_slice %43 {offsets = [0, 1, 0], sizes = [8, 16, 36], strides = [1, 1, 1]} : vector<8x18x36xbf16> to vector<8x16x36xbf16>
    %51 = vector.shape_cast %50 : vector<8x16x36xbf16> to vector<128x36xbf16>
    %c7 = arith.constant 7 : index
    %c0_24 = arith.constant 0 : index
    %c0_25 = arith.constant 0 : index
    %52 = vector.load %arg3[%c7, %c0_24, %c0_25] : memref<9x36x32xbf16, #tpu.memory_space<vmem>>, vector<1x36x32xbf16>
    %53 = vector.shape_cast %52 : vector<1x36x32xbf16> to vector<36x32xbf16>
    %cst_26 = arith.constant dense<0.000000e+00> : vector<128x32xf32>
    %54 = tpu.matmul %51, %53, %cst_26 {dimension_numbers = #tpu.dot_dimension_numbers<[1], [0], [0], [1], [0, 0, 1, 1], [], []>} : vector<128x36xbf16>, vector<36x32xbf16>, vector<128x32xf32> -> vector<128x32xf32>
    %55 = arith.addf %49, %54 : vector<128x32xf32>
    %56 = vector.extract_strided_slice %43 {offsets = [0, 2, 0], sizes = [8, 16, 36], strides = [1, 1, 1]} : vector<8x18x36xbf16> to vector<8x16x36xbf16>
    %57 = vector.shape_cast %56 : vector<8x16x36xbf16> to vector<128x36xbf16>
    %c8 = arith.constant 8 : index
    %c0_27 = arith.constant 0 : index
    %c0_28 = arith.constant 0 : index
    %58 = vector.load %arg3[%c8, %c0_27, %c0_28] : memref<9x36x32xbf16, #tpu.memory_space<vmem>>, vector<1x36x32xbf16>
    %59 = vector.shape_cast %58 : vector<1x36x32xbf16> to vector<36x32xbf16>
    %cst_29 = arith.constant dense<0.000000e+00> : vector<128x32xf32>
    %60 = tpu.matmul %57, %59, %cst_29 {dimension_numbers = #tpu.dot_dimension_numbers<[1], [0], [0], [1], [0, 0, 1, 1], [], []>} : vector<128x36xbf16>, vector<36x32xbf16>, vector<128x32xf32> -> vector<128x32xf32>
    %61 = arith.addf %55, %60 : vector<128x32xf32>
    %c0_30 = arith.constant 0 : index
    %c0_31 = arith.constant 0 : index
    %62 = vector.load %arg4[%c0_30, %c0_31] : memref<1x32xf32, #tpu.memory_space<vmem>>, vector<1x32xf32>
    %63 = vector.broadcast %62 : vector<1x32xf32> to vector<128x32xf32>
    %64 = arith.addf %61, %63 : vector<128x32xf32>
    %cst_32 = arith.constant 0.000000e+00 : f32
    %65 = vector.broadcast %cst_32 : f32 to vector<128x32xf32>
    %66 = arith.maximumf %64, %65 : vector<128x32xf32>
    %67 = vector.shape_cast %66 : vector<128x32xf32> to vector<8x16x32xf32>
    %68 = arith.truncf %67 : vector<8x16x32xf32> to vector<8x16x32xbf16>
    %c0_33 = arith.constant 0 : index
    %c0_34 = arith.constant 0 : index
    %c0_35 = arith.constant 0 : index
    %c0_36 = arith.constant 0 : index
    %69 = vector.load %arg5[%c0_33, %c0_34, %c0_35, %c0_36] : memref<1x8x16x32xbf16, #tpu.memory_space<vmem>>, vector<1x8x16x32xbf16>
    %70 = vector.shape_cast %69 : vector<1x8x16x32xbf16> to vector<8x16x32xbf16>
    %71 = vector.shape_cast %68 : vector<8x16x32xbf16> to vector<1x8x16x32xbf16>
    tpu.vector_store %arg5[%c0_33, %c0_34, %c0_35, %c0_36], %71 {strides = array<i32>} : memref<1x8x16x32xbf16, #tpu.memory_space<vmem>>, vector<1x8x16x32xbf16>,
    return
  }
  func.func @transform_0(%arg0: i32, %arg1: i32) -> (i32, i32, i32, i32) {
    %c0_i32 = arith.constant 0 : i32
    %c0_i32_0 = arith.constant 0 : i32
    %c0_i32_1 = arith.constant 0 : i32
    %c0_i32_2 = arith.constant 0 : i32
    return %arg0, %c0_i32, %c0_i32_0, %c0_i32_1 : i32, i32, i32, i32
  }
  func.func @transform_1(%arg0: i32, %arg1: i32) -> (i32, i32, i32) {
    %c0_i32 = arith.constant 0 : i32
    %c0_i32_0 = arith.constant 0 : i32
    %c0_i32_1 = arith.constant 0 : i32
    %c0_i32_2 = arith.constant 0 : i32
    return %c0_i32, %c0_i32_0, %c0_i32_1 : i32, i32, i32
  }
  func.func @transform_2(%arg0: i32, %arg1: i32) -> (i32, i32) {
    %c0_i32 = arith.constant 0 : i32
    %c0_i32_0 = arith.constant 0 : i32
    %c0_i32_1 = arith.constant 0 : i32
    return %c0_i32, %c0_i32_0 : i32, i32
  }
  func.func @transform_3(%arg0: i32, %arg1: i32) -> (i32, i32, i32, i32) {
    %c0_i32 = arith.constant 0 : i32
    %c0_i32_0 = arith.constant 0 : i32
    %c0_i32_1 = arith.constant 0 : i32
    return %arg0, %arg1, %c0_i32, %c0_i32_0 : i32, i32, i32, i32
  }
}

module attributes {stable_mosaic.version = 11 : i64} {
  func.func @_conv3x3_out34_kernel(%arg0: i32, %arg1: i32, %arg2: memref<1x18x18x32xbf16, #tpu.memory_space<vmem>>, %arg3: memref<9x32x32xbf16, #tpu.memory_space<vmem>>, %arg4: memref<1x32xf32, #tpu.memory_space<vmem>>, %arg5: memref<1x1x32xf32, #tpu.memory_space<vmem>>, %arg6: memref<1x1x1xf32, #tpu.memory_space<vmem>>, %arg7: memref<1x8x16x1xf32, #tpu.memory_space<vmem>>, %arg8: memref<1x8x16x32xf32, #tpu.memory_space<vmem>>, %arg9: memref<1x8x16x1xf32, #tpu.memory_space<vmem>>) attributes {dimension_semantics = [#tpu.dimension_semantics<parallel>, #tpu.dimension_semantics<parallel>], iteration_bounds = array<i64: 2, 2>, scalar_prefetch = 0 : i64, scratch_operands = 0 : i64, tpu.core_type = #tpu.core_type<tc>, window_params = [{transform_indices = @transform_0, window_bounds = array<i64: 1, 18, 18, 32>}, {pipeline_mode = #tpu.pipeline_mode<synchronous>, transform_indices = @transform_1, window_bounds = array<i64: 9, 32, 32>}, {pipeline_mode = #tpu.pipeline_mode<synchronous>, transform_indices = @transform_2, window_bounds = array<i64: 1, 32>}, {pipeline_mode = #tpu.pipeline_mode<synchronous>, transform_indices = @transform_3, window_bounds = array<i64: 1, 1, 32>}, {pipeline_mode = #tpu.pipeline_mode<synchronous>, transform_indices = @transform_4, window_bounds = array<i64: 1, 1, 1>}, {transform_indices = @transform_5, window_bounds = array<i64: 1, 8, 16, 1>}, {transform_indices = @transform_6, window_bounds = array<i64: 1, 8, 16, 32>}, {transform_indices = @transform_7, window_bounds = array<i64: 1, 8, 16, 1>}]} {
    %c8_i32 = arith.constant 8 : i32
    %0 = arith.muli %arg1, %c8_i32 : i32
    %c0 = arith.constant 0 : index
    %1 = arith.index_cast %0 : i32 to index
    %c0_0 = arith.constant 0 : index
    %c0_1 = arith.constant 0 : index
    %2 = vector.load %arg2[%c0, %1, %c0_0, %c0_1] : memref<1x18x18x32xbf16, #tpu.memory_space<vmem>>, vector<1x10x18x32xbf16>
    %3 = vector.shape_cast %2 : vector<1x10x18x32xbf16> to vector<10x18x32xbf16>
    %cst = arith.constant 0.000000e+00 : f32
    %4 = vector.broadcast %cst : f32 to vector<128x32xf32>
    %5 = vector.extract_strided_slice %3 {offsets = [0, 0, 0], sizes = [8, 18, 32], strides = [1, 1, 1]} : vector<10x18x32xbf16> to vector<8x18x32xbf16>
    %6 = vector.extract_strided_slice %5 {offsets = [0, 0, 0], sizes = [8, 16, 32], strides = [1, 1, 1]} : vector<8x18x32xbf16> to vector<8x16x32xbf16>
    %7 = vector.shape_cast %6 : vector<8x16x32xbf16> to vector<128x32xbf16>
    %c0_2 = arith.constant 0 : index
    %c0_3 = arith.constant 0 : index
    %c0_4 = arith.constant 0 : index
    %8 = vector.load %arg3[%c0_2, %c0_3, %c0_4] : memref<9x32x32xbf16, #tpu.memory_space<vmem>>, vector<1x32x32xbf16>
    %9 = vector.shape_cast %8 : vector<1x32x32xbf16> to vector<32x32xbf16>
    %cst_5 = arith.constant dense<0.000000e+00> : vector<128x32xf32>
    %10 = tpu.matmul %7, %9, %cst_5 {dimension_numbers = #tpu.dot_dimension_numbers<[1], [0], [0], [1], [0, 0, 1, 1], [], []>} : vector<128x32xbf16>, vector<32x32xbf16>, vector<128x32xf32> -> vector<128x32xf32>
    %11 = arith.addf %4, %10 : vector<128x32xf32>
    %12 = vector.extract_strided_slice %5 {offsets = [0, 1, 0], sizes = [8, 16, 32], strides = [1, 1, 1]} : vector<8x18x32xbf16> to vector<8x16x32xbf16>
    %13 = vector.shape_cast %12 : vector<8x16x32xbf16> to vector<128x32xbf16>
    %c1 = arith.constant 1 : index
    %c0_6 = arith.constant 0 : index
    %c0_7 = arith.constant 0 : index
    %14 = vector.load %arg3[%c1, %c0_6, %c0_7] : memref<9x32x32xbf16, #tpu.memory_space<vmem>>, vector<1x32x32xbf16>
    %15 = vector.shape_cast %14 : vector<1x32x32xbf16> to vector<32x32xbf16>
    %cst_8 = arith.constant dense<0.000000e+00> : vector<128x32xf32>
    %16 = tpu.matmul %13, %15, %cst_8 {dimension_numbers = #tpu.dot_dimension_numbers<[1], [0], [0], [1], [0, 0, 1, 1], [], []>} : vector<128x32xbf16>, vector<32x32xbf16>, vector<128x32xf32> -> vector<128x32xf32>
    %17 = arith.addf %11, %16 : vector<128x32xf32>
    %18 = vector.extract_strided_slice %5 {offsets = [0, 2, 0], sizes = [8, 16, 32], strides = [1, 1, 1]} : vector<8x18x32xbf16> to vector<8x16x32xbf16>
    %19 = vector.shape_cast %18 : vector<8x16x32xbf16> to vector<128x32xbf16>
    %c2 = arith.constant 2 : index
    %c0_9 = arith.constant 0 : index
    %c0_10 = arith.constant 0 : index
    %20 = vector.load %arg3[%c2, %c0_9, %c0_10] : memref<9x32x32xbf16, #tpu.memory_space<vmem>>, vector<1x32x32xbf16>
    %21 = vector.shape_cast %20 : vector<1x32x32xbf16> to vector<32x32xbf16>
    %cst_11 = arith.constant dense<0.000000e+00> : vector<128x32xf32>
    %22 = tpu.matmul %19, %21, %cst_11 {dimension_numbers = #tpu.dot_dimension_numbers<[1], [0], [0], [1], [0, 0, 1, 1], [], []>} : vector<128x32xbf16>, vector<32x32xbf16>, vector<128x32xf32> -> vector<128x32xf32>
    %23 = arith.addf %17, %22 : vector<128x32xf32>
    %24 = vector.extract_strided_slice %3 {offsets = [1, 0, 0], sizes = [8, 18, 32], strides = [1, 1, 1]} : vector<10x18x32xbf16> to vector<8x18x32xbf16>
    %25 = vector.extract_strided_slice %24 {offsets = [0, 0, 0], sizes = [8, 16, 32], strides = [1, 1, 1]} : vector<8x18x32xbf16> to vector<8x16x32xbf16>
    %26 = vector.shape_cast %25 : vector<8x16x32xbf16> to vector<128x32xbf16>
    %c3 = arith.constant 3 : index
    %c0_12 = arith.constant 0 : index
    %c0_13 = arith.constant 0 : index
    %27 = vector.load %arg3[%c3, %c0_12, %c0_13] : memref<9x32x32xbf16, #tpu.memory_space<vmem>>, vector<1x32x32xbf16>
    %28 = vector.shape_cast %27 : vector<1x32x32xbf16> to vector<32x32xbf16>
    %cst_14 = arith.constant dense<0.000000e+00> : vector<128x32xf32>
    %29 = tpu.matmul %26, %28, %cst_14 {dimension_numbers = #tpu.dot_dimension_numbers<[1], [0], [0], [1], [0, 0, 1, 1], [], []>} : vector<128x32xbf16>, vector<32x32xbf16>, vector<128x32xf32> -> vector<128x32xf32>
    %30 = arith.addf %23, %29 : vector<128x32xf32>
    %31 = vector.extract_strided_slice %24 {offsets = [0, 1, 0], sizes = [8, 16, 32], strides = [1, 1, 1]} : vector<8x18x32xbf16> to vector<8x16x32xbf16>
    %32 = vector.shape_cast %31 : vector<8x16x32xbf16> to vector<128x32xbf16>
    %c4 = arith.constant 4 : index
    %c0_15 = arith.constant 0 : index
    %c0_16 = arith.constant 0 : index
    %33 = vector.load %arg3[%c4, %c0_15, %c0_16] : memref<9x32x32xbf16, #tpu.memory_space<vmem>>, vector<1x32x32xbf16>
    %34 = vector.shape_cast %33 : vector<1x32x32xbf16> to vector<32x32xbf16>
    %cst_17 = arith.constant dense<0.000000e+00> : vector<128x32xf32>
    %35 = tpu.matmul %32, %34, %cst_17 {dimension_numbers = #tpu.dot_dimension_numbers<[1], [0], [0], [1], [0, 0, 1, 1], [], []>} : vector<128x32xbf16>, vector<32x32xbf16>, vector<128x32xf32> -> vector<128x32xf32>
    %36 = arith.addf %30, %35 : vector<128x32xf32>
    %37 = vector.extract_strided_slice %24 {offsets = [0, 2, 0], sizes = [8, 16, 32], strides = [1, 1, 1]} : vector<8x18x32xbf16> to vector<8x16x32xbf16>
    %38 = vector.shape_cast %37 : vector<8x16x32xbf16> to vector<128x32xbf16>
    %c5 = arith.constant 5 : index
    %c0_18 = arith.constant 0 : index
    %c0_19 = arith.constant 0 : index
    %39 = vector.load %arg3[%c5, %c0_18, %c0_19] : memref<9x32x32xbf16, #tpu.memory_space<vmem>>, vector<1x32x32xbf16>
    %40 = vector.shape_cast %39 : vector<1x32x32xbf16> to vector<32x32xbf16>
    %cst_20 = arith.constant dense<0.000000e+00> : vector<128x32xf32>
    %41 = tpu.matmul %38, %40, %cst_20 {dimension_numbers = #tpu.dot_dimension_numbers<[1], [0], [0], [1], [0, 0, 1, 1], [], []>} : vector<128x32xbf16>, vector<32x32xbf16>, vector<128x32xf32> -> vector<128x32xf32>
    %42 = arith.addf %36, %41 : vector<128x32xf32>
    %43 = vector.extract_strided_slice %3 {offsets = [2, 0, 0], sizes = [8, 18, 32], strides = [1, 1, 1]} : vector<10x18x32xbf16> to vector<8x18x32xbf16>
    %44 = vector.extract_strided_slice %43 {offsets = [0, 0, 0], sizes = [8, 16, 32], strides = [1, 1, 1]} : vector<8x18x32xbf16> to vector<8x16x32xbf16>
    %45 = vector.shape_cast %44 : vector<8x16x32xbf16> to vector<128x32xbf16>
    %c6 = arith.constant 6 : index
    %c0_21 = arith.constant 0 : index
    %c0_22 = arith.constant 0 : index
    %46 = vector.load %arg3[%c6, %c0_21, %c0_22] : memref<9x32x32xbf16, #tpu.memory_space<vmem>>, vector<1x32x32xbf16>
    %47 = vector.shape_cast %46 : vector<1x32x32xbf16> to vector<32x32xbf16>
    %cst_23 = arith.constant dense<0.000000e+00> : vector<128x32xf32>
    %48 = tpu.matmul %45, %47, %cst_23 {dimension_numbers = #tpu.dot_dimension_numbers<[1], [0], [0], [1], [0, 0, 1, 1], [], []>} : vector<128x32xbf16>, vector<32x32xbf16>, vector<128x32xf32> -> vector<128x32xf32>
    %49 = arith.addf %42, %48 : vector<128x32xf32>
    %50 = vector.extract_strided_slice %43 {offsets = [0, 1, 0], sizes = [8, 16, 32], strides = [1, 1, 1]} : vector<8x18x32xbf16> to vector<8x16x32xbf16>
    %51 = vector.shape_cast %50 : vector<8x16x32xbf16> to vector<128x32xbf16>
    %c7 = arith.constant 7 : index
    %c0_24 = arith.constant 0 : index
    %c0_25 = arith.constant 0 : index
    %52 = vector.load %arg3[%c7, %c0_24, %c0_25] : memref<9x32x32xbf16, #tpu.memory_space<vmem>>, vector<1x32x32xbf16>
    %53 = vector.shape_cast %52 : vector<1x32x32xbf16> to vector<32x32xbf16>
    %cst_26 = arith.constant dense<0.000000e+00> : vector<128x32xf32>
    %54 = tpu.matmul %51, %53, %cst_26 {dimension_numbers = #tpu.dot_dimension_numbers<[1], [0], [0], [1], [0, 0, 1, 1], [], []>} : vector<128x32xbf16>, vector<32x32xbf16>, vector<128x32xf32> -> vector<128x32xf32>
    %55 = arith.addf %49, %54 : vector<128x32xf32>
    %56 = vector.extract_strided_slice %43 {offsets = [0, 2, 0], sizes = [8, 16, 32], strides = [1, 1, 1]} : vector<8x18x32xbf16> to vector<8x16x32xbf16>
    %57 = vector.shape_cast %56 : vector<8x16x32xbf16> to vector<128x32xbf16>
    %c8 = arith.constant 8 : index
    %c0_27 = arith.constant 0 : index
    %c0_28 = arith.constant 0 : index
    %58 = vector.load %arg3[%c8, %c0_27, %c0_28] : memref<9x32x32xbf16, #tpu.memory_space<vmem>>, vector<1x32x32xbf16>
    %59 = vector.shape_cast %58 : vector<1x32x32xbf16> to vector<32x32xbf16>
    %cst_29 = arith.constant dense<0.000000e+00> : vector<128x32xf32>
    %60 = tpu.matmul %57, %59, %cst_29 {dimension_numbers = #tpu.dot_dimension_numbers<[1], [0], [0], [1], [0, 0, 1, 1], [], []>} : vector<128x32xbf16>, vector<32x32xbf16>, vector<128x32xf32> -> vector<128x32xf32>
    %61 = arith.addf %55, %60 : vector<128x32xf32>
    %c0_30 = arith.constant 0 : index
    %c0_31 = arith.constant 0 : index
    %62 = vector.load %arg4[%c0_30, %c0_31] : memref<1x32xf32, #tpu.memory_space<vmem>>, vector<1x32xf32>
    %63 = vector.broadcast %62 : vector<1x32xf32> to vector<128x32xf32>
    %64 = arith.addf %61, %63 : vector<128x32xf32>
    %cst_32 = arith.constant 0.000000e+00 : f32
    %65 = vector.broadcast %cst_32 : f32 to vector<128x32xf32>
    %66 = arith.maximumf %64, %65 : vector<128x32xf32>
    %67 = vector.shape_cast %66 : vector<128x32xf32> to vector<8x16x32xf32>
    %c0_33 = arith.constant 0 : index
    %c0_34 = arith.constant 0 : index
    %c0_35 = arith.constant 0 : index
    %c0_36 = arith.constant 0 : index
    %68 = vector.load %arg8[%c0_33, %c0_34, %c0_35, %c0_36] : memref<1x8x16x32xf32, #tpu.memory_space<vmem>>, vector<1x8x16x32xf32>
    %69 = vector.shape_cast %68 : vector<1x8x16x32xf32> to vector<8x16x32xf32>
    %70 = vector.shape_cast %67 : vector<8x16x32xf32> to vector<1x8x16x32xf32>
    tpu.vector_store %arg8[%c0_33, %c0_34, %c0_35, %c0_36], %70 {strides = array<i32>} : memref<1x8x16x32xf32, #tpu.memory_space<vmem>>, vector<1x8x16x32xf32>,
    %c0_37 = arith.constant 0 : index
    %c0_38 = arith.constant 0 : index
    %c0_39 = arith.constant 0 : index
    %71 = vector.load %arg5[%c0_37, %c0_38, %c0_39] : memref<1x1x32xf32, #tpu.memory_space<vmem>>, vector<1x1x32xf32>
    %72 = vector.broadcast %71 : vector<1x1x32xf32> to vector<8x16x32xf32>
    %73 = arith.mulf %67, %72 : vector<8x16x32xf32>
    %cst_40 = arith.constant dense<0.000000e+00> : vector<8x16xf32>
    %74 = vector.multi_reduction <add>, %73, %cst_40 [2] : vector<8x16x32xf32> to vector<8x16xf32>
    %75 = vector.shape_cast %74 : vector<8x16xf32> to vector<8x16x1xf32>
    %c0_41 = arith.constant 0 : index
    %c0_42 = arith.constant 0 : index
    %c0_43 = arith.constant 0 : index
    %76 = vector.load %arg6[%c0_41, %c0_42, %c0_43] : memref<1x1x1xf32, #tpu.memory_space<vmem>>, vector<1x1x1xf32>
    %77 = vector.broadcast %76 : vector<1x1x1xf32> to vector<8x16x1xf32>
    %78 = arith.addf %75, %77 : vector<8x16x1xf32>
    %c0_44 = arith.constant 0 : index
    %c0_45 = arith.constant 0 : index
    %c0_46 = arith.constant 0 : index
    %c0_47 = arith.constant 0 : index
    %79 = vector.load %arg7[%c0_44, %c0_45, %c0_46, %c0_47] : memref<1x8x16x1xf32, #tpu.memory_space<vmem>>, vector<1x8x16x1xf32>
    %80 = vector.shape_cast %79 : vector<1x8x16x1xf32> to vector<8x16x1xf32>
    %81 = arith.addf %78, %80 : vector<8x16x1xf32>
    %c0_48 = arith.constant 0 : index
    %c0_49 = arith.constant 0 : index
    %c0_50 = arith.constant 0 : index
    %c0_51 = arith.constant 0 : index
    %82 = vector.load %arg9[%c0_48, %c0_49, %c0_50, %c0_51] : memref<1x8x16x1xf32, #tpu.memory_space<vmem>>, vector<1x8x16x1xf32>
    %83 = vector.shape_cast %82 : vector<1x8x16x1xf32> to vector<8x16x1xf32>
    %84 = vector.shape_cast %81 : vector<8x16x1xf32> to vector<1x8x16x1xf32>
    tpu.vector_store %arg9[%c0_48, %c0_49, %c0_50, %c0_51], %84 {strides = array<i32>} : memref<1x8x16x1xf32, #tpu.memory_space<vmem>>, vector<1x8x16x1xf32>,
    return
  }
  func.func @transform_0(%arg0: i32, %arg1: i32) -> (i32, i32, i32, i32) {
    %c0_i32 = arith.constant 0 : i32
    %c0_i32_0 = arith.constant 0 : i32
    %c0_i32_1 = arith.constant 0 : i32
    %c0_i32_2 = arith.constant 0 : i32
    return %arg0, %c0_i32, %c0_i32_0, %c0_i32_1 : i32, i32, i32, i32
  }
  func.func @transform_1(%arg0: i32, %arg1: i32) -> (i32, i32, i32) {
    %c0_i32 = arith.constant 0 : i32
    %c0_i32_0 = arith.constant 0 : i32
    %c0_i32_1 = arith.constant 0 : i32
    %c0_i32_2 = arith.constant 0 : i32
    return %c0_i32, %c0_i32_0, %c0_i32_1 : i32, i32, i32
  }
  func.func @transform_2(%arg0: i32, %arg1: i32) -> (i32, i32) {
    %c0_i32 = arith.constant 0 : i32
    %c0_i32_0 = arith.constant 0 : i32
    %c0_i32_1 = arith.constant 0 : i32
    return %c0_i32, %c0_i32_0 : i32, i32
  }
  func.func @transform_3(%arg0: i32, %arg1: i32) -> (i32, i32, i32) {
    %c0_i32 = arith.constant 0 : i32
    %c0_i32_0 = arith.constant 0 : i32
    %c0_i32_1 = arith.constant 0 : i32
    %c0_i32_2 = arith.constant 0 : i32
    return %c0_i32, %c0_i32_0, %c0_i32_1 : i32, i32, i32
  }
  func.func @transform_4(%arg0: i32, %arg1: i32) -> (i32, i32, i32) {
    %c0_i32 = arith.constant 0 : i32
    %c0_i32_0 = arith.constant 0 : i32
    %c0_i32_1 = arith.constant 0 : i32
    %c0_i32_2 = arith.constant 0 : i32
    return %c0_i32, %c0_i32_0, %c0_i32_1 : i32, i32, i32
  }
  func.func @transform_5(%arg0: i32, %arg1: i32) -> (i32, i32, i32, i32) {
    %c0_i32 = arith.constant 0 : i32
    %c0_i32_0 = arith.constant 0 : i32
    %c0_i32_1 = arith.constant 0 : i32
    return %arg0, %arg1, %c0_i32, %c0_i32_0 : i32, i32, i32, i32
  }
  func.func @transform_6(%arg0: i32, %arg1: i32) -> (i32, i32, i32, i32) {
    %c0_i32 = arith.constant 0 : i32
    %c0_i32_0 = arith.constant 0 : i32
    %c0_i32_1 = arith.constant 0 : i32
    return %arg0, %arg1, %c0_i32, %c0_i32_0 : i32, i32, i32, i32
  }
  func.func @transform_7(%arg0: i32, %arg1: i32) -> (i32, i32, i32, i32) {
    %c0_i32 = arith.constant 0 : i32
    %c0_i32_0 = arith.constant 0 : i32
    %c0_i32_1 = arith.constant 0 : i32
    return %arg0, %arg1, %c0_i32, %c0_i32_0 : i32, i32, i32, i32
  }
}

</mosaic_0001>

<llo_original>
// kernel: _uaca_forward.6
$region0: #{_uaca_forward.6}
  #allocation0 [shape = 'u32[]', space=smem, size = 0x4, offset = 0x4, fixed_abs, tag = 'smem constant byte address 0x4 - core index']
  #allocation1 [shape = 'u32[144,128]{1,0:T(1,128)}', space=vmem, size = 0x12000, scoped, tag = 'internal scratch']
  %s0 = inlined_call_operand.vmem [shape: bf16[2,18,18,4], index: 0, kind: input, shape index: {}]
  %s1 = inlined_call_operand.vmem [shape: bf16[9,4,32], index: 1, kind: input, shape index: {}]
  %s2 = inlined_call_operand.vmem [shape: f32[1,32], index: 2, kind: input, shape index: {}]
  %s3 = inlined_call_operand.vmem [shape: bf16[2,16,16,32], index: 3, kind: output, shape index: {}]
  %s4 = sld [smem:[#allocation0]]
  $region45: #{_uaca_forward.6} parent=0
    _
  %s6 = ssub.s32 1, %s4
  %s7 = scalar_select 0, %s6, %s4
  loop: start=0, step=1, limit=6
  $region2: #{_uaca_forward.6} parent=0 // loop_pre_header
    _
  $region3: #{_uaca_forward.6} parent=0 // loop_header
    %s9 = sphi 0, %s13
    %p10 = scmp.ge.s32.totalorder %s9, 6
    %s16 = sphi 0, %s28
    %s17 = sphi 0, %s24
    %s18 = sphi 0, %s16
    %s19 = sphi 0, %s17
    %s20 = sphi 0, %s18
    %s21 = sphi 0, %s19
    %s31 = sphi 0, %s33
    %s34 = sphi 0, %s31
    %s35 = sphi 0, %s34
    %s51 = sphi 0, %s35
    %s55 = sphi 0, %s55
    %s57 = sphi 0, %s55
    %s58 = sphi 0, %s57
    %s72 = sphi 0, %s58
    %s76 = sphi 0, %s76
    %s78 = sphi 0, %s76
    %s79 = sphi 0, %s78
    %s93 = sphi 0, %s79
    %s101 = sphi 0, %s103
    %s104 = sphi 0, %s101
    %s105 = sphi 0, %s104
    %s121 = sphi 0, %s105
  $region4: #{_uaca_forward.6} parent=0 // loop_header_branch
    %12 = sbr.rel (%p10) target = $region8
  $region5: #{_uaca_forward.6} parent=0 // loop_body
    %s14 = ssub.s32 %s9, 1
    %s15 = ssub.s32 %s9, 2
    %s22 = sadd.s32 1, %s17
    %p23 = scmp.ge.s32.totalorder %s22, 2
    %s24 = scalar_select %p23, 0, %s22
    %s25 = sadd.s32 1, %s16
    %s26 = scalar_select %p23, %s25, %s16
    %p27 = scmp.ge.s32.totalorder %s26, 2
    %s28 = scalar_select %p27, 0, %s26
    %s29 = ssub.s32 %s16, %s28
    %p30 = scmp.eq.s32.totalorder %s29, 0
    %s32 = sadd.s32 %s31, 1
    %s33 = scalar_select %p30, %s31, %s32
    %p36 = pneg %p30
    %p37 = scmp.eq.s32.totalorder %s9, 3
    %p38 = por %p36, %p37
    %p39 = scmp.ne.s32.totalorder %s31, %s34
    %p40 = scmp.eq.s32.totalorder %s9, 0
    %p41 = por %p39, %p40
    %p42 = scmp.ne.s32.totalorder %s31, %s34
    %p43 = scmp.eq.s32.totalorder %s14, 3
    %p44 = por %p42, %p43
    %p45 = scmp.ne.s32.totalorder %s34, %s35
    %p46 = scmp.eq.s32.totalorder %s14, 0
    %p47 = por %p45, %p46
    %p48 = scmp.ne.s32.totalorder %s34, %s35
    %p49 = scmp.eq.s32.totalorder %s15, 3
    %p50 = por %p48, %p49
    %p52 = scmp.ne.s32.totalorder %s35, %s51
    %p53 = scmp.eq.s32.totalorder %s15, 0
    %p54 = por %p52, %p53
    %s56 = sadd.s32 %s55, 1
    %p59 = scmp.eq.s32.totalorder %s9, 3
    %p60 = scmp.ne.s32.totalorder %s55, %s57
    %p61 = scmp.eq.s32.totalorder %s9, 0
    %p62 = por %p60, %p61
    %p63 = scmp.ne.s32.totalorder %s55, %s57
    %p64 = scmp.eq.s32.totalorder %s14, 3
    %p65 = por %p63, %p64
    %p66 = scmp.ne.s32.totalorder %s57, %s58
    %p67 = scmp.eq.s32.totalorder %s14, 0
    %p68 = por %p66, %p67
    %p69 = scmp.ne.s32.totalorder %s57, %s58
    %p70 = scmp.eq.s32.totalorder %s15, 3
    %p71 = por %p69, %p70
    %p73 = scmp.ne.s32.totalorder %s58, %s72
    %p74 = scmp.eq.s32.totalorder %s15, 0
    %p75 = por %p73, %p74
    %s77 = sadd.s32 %s76, 1
    %p80 = scmp.eq.s32.totalorder %s9, 3
    %p81 = scmp.ne.s32.totalorder %s76, %s78
    %p82 = scmp.eq.s32.totalorder %s9, 0
    %p83 = por %p81, %p82
    %p84 = scmp.ne.s32.totalorder %s76, %s78
    %p85 = scmp.eq.s32.totalorder %s14, 3
    %p86 = por %p84, %p85
    %p87 = scmp.ne.s32.totalorder %s78, %s79
    %p88 = scmp.eq.s32.totalorder %s14, 0
    %p89 = por %p87, %p88
    %p90 = scmp.ne.s32.totalorder %s78, %s79
    %p91 = scmp.eq.s32.totalorder %s15, 3
    %p92 = por %p90, %p91
    %p94 = scmp.ne.s32.totalorder %s79, %s93
    %p95 = scmp.eq.s32.totalorder %s15, 0
    %p96 = por %p94, %p95
    %s97 = ssub.s32 %s16, %s28
    %s98 = ssub.s32 %s17, %s24
    %s99 = sor.u32 %s97, %s98
    %p100 = scmp.eq.s32.totalorder %s99, 0
    %s102 = sadd.s32 %s101, 1
    %s103 = scalar_select %p100, %s101, %s102
    %p106 = pneg %p100
    %p107 = scmp.eq.s32.totalorder %s9, 3
    %p108 = por %p106, %p107
    %p109 = scmp.ne.s32.totalorder %s101, %s104
    %p110 = scmp.eq.s32.totalorder %s9, 0
    %p111 = por %p109, %p110
    %p112 = scmp.ne.s32.totalorder %s101, %s104
    %p113 = scmp.eq.s32.totalorder %s14, 3
    %p114 = por %p112, %p113
    %p115 = scmp.ne.s32.totalorder %s104, %s105
    %p116 = scmp.eq.s32.totalorder %s14, 0
    %p117 = por %p115, %p116
    %p118 = scmp.ne.s32.totalorder %s104, %s105
    %p119 = scmp.eq.s32.totalorder %s15, 3
    %p120 = por %p118, %p119
    %p122 = scmp.ne.s32.totalorder %s105, %s121
    %p123 = scmp.eq.s32.totalorder %s15, 0
    %p124 = por %p122, %p123
    %p125 = scmp.le.s32.totalorder 1, %s9
    %p126 = scmp.lt.s32.totalorder %s9, 5
    %p127 = pnand %p125, %p126
    %p128 = pneg %p127
    // Predicated region
    $region9: #{_uaca_forward.6} parent=5 // pred_check
      _
    $region10: #{_uaca_forward.6} parent=5 // pred_check_branch
      %130 = sbr.rel (%p127) target = $region12
    $region11: #{_uaca_forward.6} parent=5 // pred_region
      %s131 = ssub.s32 %s9, 1
      // Predicated region
      $region13: #{_uaca_forward.6} parent=11 // pred_check
        %p132 = pneg %p68
      $region14: #{_uaca_forward.6} parent=11 // pred_check_branch
        %134 = sbr.rel (%p132) target = $region16
      $region15: #{_uaca_forward.6} parent=11 // pred_region
        _
      $region16: #{_uaca_forward.6} parent=11 // pred_fallthru
        _
      // Predicated region
      $region17: #{_uaca_forward.6} parent=11 // pred_check
        %p135 = pneg %p89
      $region18: #{_uaca_forward.6} parent=11 // pred_check_branch
        %137 = sbr.rel (%p135) target = $region20
      $region19: #{_uaca_forward.6} parent=11 // pred_region
        _
      $region20: #{_uaca_forward.6} parent=11 // pred_fallthru
        _
    $region12: #{_uaca_forward.6} parent=5 // pred_fallthru
      _
    %p138 = scmp.lt.s32.totalorder %s9, 4
    // Predicated region
    $region21: #{_uaca_forward.6} parent=5 // pred_check
      %p139 = pneg %p138
    $region22: #{_uaca_forward.6} parent=5 // pred_check_branch
      %141 = sbr.rel (%p139) target = $region24
    $region23: #{_uaca_forward.6} parent=5 // pred_region
      // Predicated region
      $region25: #{_uaca_forward.6} parent=23 // pred_check
        %p142 = pneg %p41
      $region26: #{_uaca_forward.6} parent=23 // pred_check_branch
        %144 = sbr.rel (%p142) target = $region28
      $region27: #{_uaca_forward.6} parent=23 // pred_region
        %p145 = scmp.lt.s32.totalorder %s16, 1
        %s146 = scalar_select %p145, %s16, 1
        %s147 = smul.addr %s146, 54
        %s148 = smul.addr %s147, 4
        %s149 = scalar_lea.vmem %s0, %s148
      $region28: #{_uaca_forward.6} parent=23 // pred_fallthru
        _
    $region24: #{_uaca_forward.6} parent=5 // pred_fallthru
      _
    %p150 = scmp.le.s32.totalorder 1, %s9
    %p151 = scmp.lt.s32.totalorder %s9, 5
    %p152 = pnand %p150, %p151
    %p153 = pneg %p152
    // Predicated region
    $region29: #{_uaca_forward.6} parent=5 // pred_check
      _
    $region30: #{_uaca_forward.6} parent=5 // pred_check_branch
      %155 = sbr.rel (%p152) target = $region32
    $region31: #{_uaca_forward.6} parent=5 // pred_region
      %s156 = ssub.s32 %s9, 1
      %p157 = scmp.lt.s32.totalorder %s18, 1
      %s158 = scalar_select %p157, %s18, 1
      %s159 = smul.addr %s158, 54
      %s160 = smul.addr %s159, 4
      %s161 = scalar_lea.vmem %s0, %s160
      %p162 = pneg %p47
      %p163 = pneg %p44
      %p164 = pneg %p68
      %p165 = pneg %p65
      %p166 = pneg %p89
      %p167 = pneg %p86
      %p168 = pneg %p117
      %p169 = pneg %p114
      %s170 = smul.u32 8, %s19
      %p171 = scmp.lt.s32.totalorder %s18, 1
      %s172 = scalar_select %p171, %s18, 1
      %p173 = scmp.lt.s32.totalorder %s170, 15
      %s174 = scalar_select %p173, %s170, 15
      %s175 = smul.addr %s174, 2
      %s176 = smul.addr %s172, 32
      %s177 = sadd.s32 %s175, %s176
      %s178 = smul.addr %s177, 4
      %s179 = scalar_lea.vmem %s3, %s178
      %p180 = scmp.lt.s32.totalorder %s18, 1
      %s181 = scalar_select %p180, %s18, 1
      %s182 = smul.addr %s181, 54
      %s183 = smul.addr %s182, 4
      %s184 = scalar_lea.vmem %s0, %s183
      %s185 = smul.u32 8, %s19
      %p186 = scmp.lt.s32.totalorder %s18, 1
      %s187 = scalar_select %p186, %s18, 1
      %p188 = scmp.lt.s32.totalorder %s185, 15
      %s189 = scalar_select %p188, %s185, 15
      %s190 = smul.addr %s189, 2
      %s191 = smul.addr %s187, 32
      %s192 = sadd.s32 %s190, %s191
      %s193 = smul.addr %s192, 4
      %s194 = scalar_lea.vmem %s3, %s193
      %s195 = smul.u32 8, %s19
      %s197 = smul.u32 %s19, 8
      %s198 = smul.u32 %s197, 3
      %s199 = smul.addr %s198, 4
      %s200 = scalar_lea.vmem %s184, %s199
      %v201 = vld [vmem:[%s200] sm:$0xf]
      %v202 = vld [vmem:[%s200 + $0x4] sm:$0xf]
      %v203 = vld [vmem:[%s200 + $0x8] sm:$0x1]
      %v204 = vld [vmem:[%s200 + $0xc] sm:$0xf]
      %v205 = vld [vmem:[%s200 + $0x10] sm:$0xf]
      %v206 = vld [vmem:[%s200 + $0x14] sm:$0x1]
      %v207 = vld [vmem:[%s200 + $0x18] sm:$0xf]
      %v208 = vld [vmem:[%s200 + $0x1c] sm:$0xf]
      %v209 = vld [vmem:[%s200 + $0x20] sm:$0x1]
      %v210 = vld [vmem:[%s200 + $0x24] sm:$0xf]
      %v211 = vld [vmem:[%s200 + $0x28] sm:$0xf]
      %v212 = vld [vmem:[%s200 + $0x2c] sm:$0x1]
      %v213 = vld [vmem:[%s200 + $0x30] sm:$0xf]
      %v214 = vld [vmem:[%s200 + $0x34] sm:$0xf]
      %v215 = vld [vmem:[%s200 + $0x38] sm:$0x1]
      %v216 = vld [vmem:[%s200 + $0x3c] sm:$0xf]
      %v217 = vld [vmem:[%s200 + $0x40] sm:$0xf]
      %v218 = vld [vmem:[%s200 + $0x44] sm:$0x1]
      %v219 = vld [vmem:[%s200 + $0x48] sm:$0xf]
      %v220 = vld [vmem:[%s200 + $0x4c] sm:$0xf]
      %v221 = vld [vmem:[%s200 + $0x50] sm:$0x1]
      %v222 = vld [vmem:[%s200 + $0x54] sm:$0xf]
      %v223 = vld [vmem:[%s200 + $0x58] sm:$0xf]
      %v224 = vld [vmem:[%s200 + $0x5c] sm:$0x1]
      %v225 = vld [vmem:[%s200 + $0x60] sm:$0xf]
      %v226 = vld [vmem:[%s200 + $0x64] sm:$0xf]
      %v227 = vld [vmem:[%s200 + $0x68] sm:$0x1]
      %v228 = vld [vmem:[%s200 + $0x6c] sm:$0xf]
      %v229 = vld [vmem:[%s200 + $0x70] sm:$0xf]
      %v230 = vld [vmem:[%s200 + $0x74] sm:$0x1]
      %v231 = vld [vmem:[%s1] sm:$0x3]
      %vm232 = vsmask.f32 3328
      %vm233 = vsmask.f32 7440
      %vm234 = vmor %vm232, %vm233
      %v236 = vshrl.u32 %v201, 16
      %v238 = vrot.slane %v236, 4
      %v239 = vshll.u32 %v201, 16
      %v241 = vrot.slane %v239, 5
      %v242 = vor.u32 %v238, %v241
      %v243 = vrot.slane %v242, 4
      %v245 = vshll.u32 %v202, 16
      %v247 = vrot.slane %v245, 5
      %v248 = vsel %vm234, %v243, %v247
      %v249 = vshrl.u32 %v202, 16
      %v251 = vrot.slane %v249, 4
      %v252 = vor.u32 %v251, %v247
      %v253 = vrot.slane %v252, 4
      %v255 = vshll.u32 %v203, 16
      %v257 = vrot.slane %v255, 5
      %v258 = vsel %vm234, %v253, %v257
      %v260 = vshrl.u32 %v204, 16
      %v262 = vrot.slane %v260, 4
      %v263 = vshll.u32 %v204, 16
      %v265 = vrot.slane %v263, 5
      %v266 = vor.u32 %v262, %v265
      %v267 = vrot.slane %v266, 4
      %v269 = vshll.u32 %v205, 16
      %v271 = vrot.slane %v269, 5
      %v272 = vsel %vm234, %v267, %v271
      %v273 = vshrl.u32 %v205, 16
      %v275 = vrot.slane %v273, 4
      %v276 = vor.u32 %v275, %v271
      %v277 = vrot.slane %v276, 4
      %v279 = vshll.u32 %v206, 16
      %v281 = vrot.slane %v279, 5
      %v282 = vsel %vm234, %v277, %v281
      %v284 = vshrl.u32 %v207, 16
      %v286 = vrot.slane %v284, 4
      %v287 = vshll.u32 %v207, 16
      %v289 = vrot.slane %v287, 5
      %v290 = vor.u32 %v286, %v289
      %v291 = vrot.slane %v290, 4
      %v293 = vshll.u32 %v208, 16
      %v295 = vrot.slane %v293, 5
      %v296 = vsel %vm234, %v291, %v295
      %v297 = vshrl.u32 %v208, 16
      %v299 = vrot.slane %v297, 4
      %v300 = vor.u32 %v299, %v295
      %v301 = vrot.slane %v300, 4
      %v303 = vshll.u32 %v209, 16
      %v305 = vrot.slane %v303, 5
      %v306 = vsel %vm234, %v301, %v305
      %v308 = vshrl.u32 %v210, 16
      %v310 = vrot.slane %v308, 4
      %v311 = vshll.u32 %v210, 16
      %v313 = vrot.slane %v311, 5
      %v314 = vor.u32 %v310, %v313
      %v315 = vrot.slane %v314, 4
      %v317 = vshll.u32 %v211, 16
      %v319 = vrot.slane %v317, 5
      %v320 = vsel %vm234, %v315, %v319
      %v321 = vshrl.u32 %v211, 16
      %v323 = vrot.slane %v321, 4
      %v324 = vor.u32 %v323, %v319
      %v325 = vrot.slane %v324, 4
      %v327 = vshll.u32 %v212, 16
      %v329 = vrot.slane %v327, 5
      %v330 = vsel %vm234, %v325, %v329
      %v332 = vshrl.u32 %v213, 16
      %v334 = vrot.slane %v332, 4
      %v335 = vshll.u32 %v213, 16
      %v337 = vrot.slane %v335, 5
      %v338 = vor.u32 %v334, %v337
      %v339 = vrot.slane %v338, 4
      %v341 = vshll.u32 %v214, 16
      %v343 = vrot.slane %v341, 5
      %v344 = vsel %vm234, %v339, %v343
      %v345 = vshrl.u32 %v214, 16
      %v347 = vrot.slane %v345, 4
      %v348 = vor.u32 %v347, %v343
      %v349 = vrot.slane %v348, 4
      %v351 = vshll.u32 %v215, 16
      %v353 = vrot.slane %v351, 5
      %v354 = vsel %vm234, %v349, %v353
      %v356 = vshrl.u32 %v216, 16
      %v358 = vrot.slane %v356, 4
      %v359 = vshll.u32 %v216, 16
      %v361 = vrot.slane %v359, 5
      %v362 = vor.u32 %v358, %v361
      %v363 = vrot.slane %v362, 4
      %v365 = vshll.u32 %v217, 16
      %v367 = vrot.slane %v365, 5
      %v368 = vsel %vm234, %v363, %v367
      %v369 = vshrl.u32 %v217, 16
      %v371 = vrot.slane %v369, 4
      %v372 = vor.u32 %v371, %v367
      %v373 = vrot.slane %v372, 4
      %v375 = vshll.u32 %v218, 16
      %v377 = vrot.slane %v375, 5
      %v378 = vsel %vm234, %v373, %v377
      %v380 = vshrl.u32 %v219, 16
      %v382 = vrot.slane %v380, 4
      %v383 = vshll.u32 %v219, 16
      %v385 = vrot.slane %v383, 5
      %v386 = vor.u32 %v382, %v385
      %v387 = vrot.slane %v386, 4
      %v389 = vshll.u32 %v220, 16
      %v391 = vrot.slane %v389, 5
      %v392 = vsel %vm234, %v387, %v391
      %v393 = vshrl.u32 %v220, 16
      %v395 = vrot.slane %v393, 4
      %v396 = vor.u32 %v395, %v391
      %v397 = vrot.slane %v396, 4
      %v399 = vshll.u32 %v221, 16
      %v401 = vrot.slane %v399, 5
      %v402 = vsel %vm234, %v397, %v401
      %v404 = vshrl.u32 %v222, 16
      %v406 = vrot.slane %v404, 4
      %v407 = vshll.u32 %v222, 16
      %v409 = vrot.slane %v407, 5
      %v410 = vor.u32 %v406, %v409
      %v411 = vrot.slane %v410, 4
      %v413 = vshll.u32 %v223, 16
      %v415 = vrot.slane %v413, 5
      %v416 = vsel %vm234, %v411, %v415
      %v417 = vshrl.u32 %v223, 16
      %v419 = vrot.slane %v417, 4
      %v420 = vor.u32 %v419, %v415
      %v421 = vrot.slane %v420, 4
      %v423 = vshll.u32 %v224, 16
      %v425 = vrot.slane %v423, 5
      %v426 = vsel %vm234, %v421, %v425
      %s427 = scalar_lea.vmem %s1, 2
      %v428 = vld [vmem:[%s427] sm:$0x3]
      %v429 = vunpack.c.l.b16 %v248
      %v430 = vunpack.c.l.b16 %v258
      %v431 = vunpack.c.l.b16 %v272
      %v432 = vunpack.c.l.b16 %v282
      %v433 = vunpack.c.l.b16 %v296
      %v434 = vunpack.c.l.b16 %v306
      %v435 = vunpack.c.l.b16 %v320
      %v436 = vunpack.c.l.b16 %v330
      %v437 = vunpack.c.l.b16 %v344
      %v438 = vunpack.c.l.b16 %v354
      %v439 = vunpack.c.l.b16 %v368
      %v440 = vunpack.c.l.b16 %v378
      %v441 = vunpack.c.l.b16 %v392
      %v442 = vunpack.c.l.b16 %v402
      %v443 = vunpack.c.l.b16 %v416
      %v444 = vunpack.c.l.b16 %v426
      %v445 = vpack.c.b16 %v430, %v429
      %v446 = vpack.c.b16 %v432, %v431
      %v447 = vpack.c.b16 %v434, %v433
      %v448 = vpack.c.b16 %v436, %v435
      %v449 = vpack.c.b16 %v438, %v437
      %v450 = vpack.c.b16 %v440, %v439
      %v451 = vpack.c.b16 %v442, %v441
      %v452 = vpack.c.b16 %v444, %v443
      %vm453 = vcmask 31744
      %v455 = vsel %vm453, %v445, 0
      %v458 = vsel %vm453, %v446, 0
      %v461 = vsel %vm453, %v447, 0
      %v464 = vsel %vm453, %v448, 0
      %v467 = vsel %vm453, %v449, 0
      %v470 = vsel %vm453, %v450, 0
      %v473 = vsel %vm453, %v451, 0
      %v476 = vsel %vm453, %v452, 0
      %vm478 = vcmask 1041408
      %v480 = vsel %vm478, %v428, 0
      %482 = vmatprep.subr.bf16.mxu0 0
      %483 = vmatpush1.bf16.msra.mxu0 %v480
      %484 = vmatprep.subr.bf16.mxu0 0
      %485 = vmatpush1.bf16.msra.mxu0 0
      %486 = vmatprep.subr.bf16.mxu0 0
      %487 = vmatpush1.bf16.msra.mxu0 0
      %488 = vmatprep.subr.bf16.mxu0 0
      %489 = vmatpush1.bf16.msra.mxu0 0
      %490 = vmatprep.subr.bf16.mxu0 0
      %491 = vmatpush1.bf16.msra.mxu0 0
      %492 = vmatprep.subr.bf16.mxu0 0
      %493 = vmatpush1.bf16.msra.mxu0 0
      %494 = vmatprep.subr.bf16.mxu0 0
      %495 = vmatpush1.bf16.msra.mxu0 0
      %496 = vmatprep.subr.bf16.mxu0 0
      %497 = vmatpush1.bf16.msra.mxu0 0
      %498 = vmatprep.subr.bf16.mxu0 0
      %499 = vmatpush1.bf16.msra.mxu0 0
      %500 = vmatprep.subr.bf16.mxu0 0
      %501 = vmatpush1.bf16.msra.mxu0 0
      %502 = vmatprep.subr.bf16.mxu0 0
      %503 = vmatpush1.bf16.msra.mxu0 0
      %504 = vmatprep.subr.bf16.mxu0 0
      %505 = vmatpush1.bf16.msra.mxu0 0
      %506 = vmatprep.subr.bf16.mxu0 0
      %507 = vmatpush1.bf16.msra.mxu0 0
      %508 = vmatprep.subr.bf16.mxu0 0
      %509 = vmatpush1.bf16.msra.mxu0 0
      %510 = vmatprep.subr.bf16.mxu0 0
      %511 = vmatpush1.bf16.msra.mxu0 0
      %512 = vmatprep.subr.bf16.mxu0 0
      %513 = vmatpush1.bf16.msra.mxu0 0
      %514 = vmatprep.mubr.bf16.mxu0 0
      %515 = vmatmul.mubr.bf16.gmra.mrb[0].mxu0 %v455
      %v516 = vpop.f32.mrb[0].mxu0
      %v517 = vadd.f32 0.0, %v516
      %v518 = vpop.f32.mrb[0].mxu0
      %v519 = vpop.f32.mrb[0].mxu0
      %v520 = vadd.f32 0.0, %v519
      %v521 = vpop.f32.mrb[0].mxu0
      %522 = vmatprep.mubr.bf16.mxu0 0
      %523 = vmatmul.mubr.bf16.gmra.mrb[0].mxu0 %v458
      %v524 = vpop.f32.mrb[0].mxu0
      %v525 = vadd.f32 0.0, %v524
      %v526 = vpop.f32.mrb[0].mxu0
      %v527 = vpop.f32.mrb[0].mxu0
      %v528 = vadd.f32 0.0, %v527
      %v529 = vpop.f32.mrb[0].mxu0
      %530 = vmatprep.mubr.bf16.mxu0 0
      %531 = vmatmul.mubr.bf16.gmra.mrb[0].mxu0 %v461
      %v532 = vpop.f32.mrb[0].mxu0
      %v533 = vadd.f32 0.0, %v532
      %v534 = vpop.f32.mrb[0].mxu0
      %v535 = vpop.f32.mrb[0].mxu0
      %v536 = vadd.f32 0.0, %v535
      %v537 = vpop.f32.mrb[0].mxu0
      %538 = vmatprep.mubr.bf16.mxu0 0
      %539 = vmatmul.mubr.bf16.gmra.mrb[0].mxu0 %v464
      %v540 = vpop.f32.mrb[0].mxu0
      %v541 = vadd.f32 0.0, %v540
      %v542 = vpop.f32.mrb[0].mxu0
      %v543 = vpop.f32.mrb[0].mxu0
      %v544 = vadd.f32 0.0, %v543
      %v545 = vpop.f32.mrb[0].mxu0
      %546 = vmatprep.mubr.bf16.mxu0 0
      %547 = vmatmul.mubr.bf16.gmra.mrb[0].mxu0 %v467
      %v548 = vpop.f32.mrb[0].mxu0
      %v549 = vadd.f32 0.0, %v548
      %v550 = vpop.f32.mrb[0].mxu0
      %v551 = vpop.f32.mrb[0].mxu0
      %v552 = vadd.f32 0.0, %v551
      %v553 = vpop.f32.mrb[0].mxu0
      %554 = vmatprep.mubr.bf16.mxu0 0
      %555 = vmatmul.mubr.bf16.gmra.mrb[0].mxu0 %v470
      %v556 = vpop.f32.mrb[0].mxu0
      %v557 = vadd.f32 0.0, %v556
      %v558 = vpop.f32.mrb[0].mxu0
      %v559 = vpop.f32.mrb[0].mxu0
      %v560 = vadd.f32 0.0, %v559
      %v561 = vpop.f32.mrb[0].mxu0
      %562 = vmatprep.mubr.bf16.mxu0 0
      %563 = vmatmul.mubr.bf16.gmra.mrb[0].mxu0 %v473
      %v564 = vpop.f32.mrb[0].mxu0
      %v565 = vadd.f32 0.0, %v564
      %v566 = vpop.f32.mrb[0].mxu0
      %v567 = vpop.f32.mrb[0].mxu0
      %v568 = vadd.f32 0.0, %v567
      %v569 = vpop.f32.mrb[0].mxu0
      %570 = vmatprep.mubr.bf16.mxu0 0
      %571 = vmatmul.mubr.bf16.gmra.mrb[0].mxu0 %v476
      %v572 = vpop.f32.mrb[0].mxu0
      %v573 = vadd.f32 0.0, %v572
      %v574 = vpop.f32.mrb[0].mxu0
      %v575 = vpop.f32.mrb[0].mxu0
      %v576 = vadd.f32 0.0, %v575
      %v577 = vpop.f32.mrb[0].mxu0
      %578 = vdwg.mxu0
      %v595 = vunpack.c.l.b16 %v201
      %v596 = vunpack.c.l.b16 %v202
      %v597 = vunpack.c.l.b16 %v204
      %v598 = vunpack.c.l.b16 %v205
      %v599 = vunpack.c.l.b16 %v207
      %v600 = vunpack.c.l.b16 %v208
      %v601 = vunpack.c.l.b16 %v210
      %v602 = vunpack.c.l.b16 %v211
      %v603 = vunpack.c.l.b16 %v213
      %v604 = vunpack.c.l.b16 %v214
      %v605 = vunpack.c.l.b16 %v216
      %v606 = vunpack.c.l.b16 %v217
      %v607 = vunpack.c.l.b16 %v219
      %v608 = vunpack.c.l.b16 %v220
      %v609 = vunpack.c.l.b16 %v222
      %v610 = vunpack.c.l.b16 %v223
      %v611 = vpack.c.b16 %v596, %v595
      %v612 = vpack.c.b16 %v598, %v597
      %v613 = vpack.c.b16 %v600, %v599
      %v614 = vpack.c.b16 %v602, %v601
      %v615 = vpack.c.b16 %v604, %v603
      %v616 = vpack.c.b16 %v606, %v605
      %v617 = vpack.c.b16 %v608, %v607
      %v618 = vpack.c.b16 %v610, %v609
      %v620 = vsel %vm453, %v611, 0
      %v623 = vsel %vm453, %v612, 0
      %v626 = vsel %vm453, %v613, 0
      %v629 = vsel %vm453, %v614, 0
      %v632 = vsel %vm453, %v615, 0
      %v635 = vsel %vm453, %v616, 0
      %v638 = vsel %vm453, %v617, 0
      %v641 = vsel %vm453, %v618, 0
      %v644 = vsel %vm478, %v231, 0
      %646 = vmatprep.subr.bf16.mxu0 0
      %647 = vmatpush1.bf16.msra.mxu0 %v644
      %648 = vmatprep.subr.bf16.mxu0 0
      %649 = vmatpush1.bf16.msra.mxu0 0
      %650 = vmatprep.subr.bf16.mxu0 0
      %651 = vmatpush1.bf16.msra.mxu0 0
      %652 = vmatprep.subr.bf16.mxu0 0
      %653 = vmatpush1.bf16.msra.mxu0 0
      %654 = vmatprep.subr.bf16.mxu0 0
      %655 = vmatpush1.bf16.msra.mxu0 0
      %656 = vmatprep.subr.bf16.mxu0 0
      %657 = vmatpush1.bf16.msra.mxu0 0
      %658 = vmatprep.subr.bf16.mxu0 0
      %659 = vmatpush1.bf16.msra.mxu0 0
      %660 = vmatprep.subr.bf16.mxu0 0
      %661 = vmatpush1.bf16.msra.mxu0 0
      %662 = vmatprep.subr.bf16.mxu0 0
      %663 = vmatpush1.bf16.msra.mxu0 0
      %664 = vmatprep.subr.bf16.mxu0 0
      %665 = vmatpush1.bf16.msra.mxu0 0
      %666 = vmatprep.subr.bf16.mxu0 0
      %667 = vmatpush1.bf16.msra.mxu0 0
      %668 = vmatprep.subr.bf16.mxu0 0
      %669 = vmatpush1.bf16.msra.mxu0 0
      %670 = vmatprep.subr.bf16.mxu0 0
      %671 = vmatpush1.bf16.msra.mxu0 0
      %672 = vmatprep.subr.bf16.mxu0 0
      %673 = vmatpush1.bf16.msra.mxu0 0
      %674 = vmatprep.subr.bf16.mxu0 0
      %675 = vmatpush1.bf16.msra.mxu0 0
      %676 = vmatprep.subr.bf16.mxu0 0
      %677 = vmatpush1.bf16.msra.mxu0 0
      %678 = vmatprep.mubr.bf16.mxu0 0
      %679 = vmatmul.mubr.bf16.gmra.mrb[0].mxu0 %v620
      %v680 = vpop.f32.mrb[0].mxu0
      %v681 = vadd.f32 %v517, %v680
      %v682 = vpop.f32.mrb[0].mxu0
      %v683 = vpop.f32.mrb[0].mxu0
      %v684 = vadd.f32 %v520, %v683
      %v685 = vpop.f32.mrb[0].mxu0
      %686 = vmatprep.mubr.bf16.mxu0 0
      %687 = vmatmul.mubr.bf16.gmra.mrb[0].mxu0 %v623
      %v688 = vpop.f32.mrb[0].mxu0
      %v689 = vadd.f32 %v525, %v688
      %v690 = vpop.f32.mrb[0].mxu0
      %v691 = vpop.f32.mrb[0].mxu0
      %v692 = vadd.f32 %v528, %v691
      %v693 = vpop.f32.mrb[0].mxu0
      %694 = vmatprep.mubr.bf16.mxu0 0
      %695 = vmatmul.mubr.bf16.gmra.mrb[0].mxu0 %v626
      %v696 = vpop.f32.mrb[0].mxu0
      %v697 = vadd.f32 %v533, %v696
      %v698 = vpop.f32.mrb[0].mxu0
      %v699 = vpop.f32.mrb[0].mxu0
      %v700 = vadd.f32 %v536, %v699
      %v701 = vpop.f32.mrb[0].mxu0
      %702 = vmatprep.mubr.bf16.mxu0 0
      %703 = vmatmul.mubr.bf16.gmra.mrb[0].mxu0 %v629
      %v704 = vpop.f32.mrb[0].mxu0
      %v705 = vadd.f32 %v541, %v704
      %v706 = vpop.f32.mrb[0].mxu0
      %v707 = vpop.f32.mrb[0].mxu0
      %v708 = vadd.f32 %v544, %v707
      %v709 = vpop.f32.mrb[0].mxu0
      %710 = vmatprep.mubr.bf16.mxu0 0
      %711 = vmatmul.mubr.bf16.gmra.mrb[0].mxu0 %v632
      %v712 = vpop.f32.mrb[0].mxu0
      %v713 = vadd.f32 %v549, %v712
      %v714 = vpop.f32.mrb[0].mxu0
      %v715 = vpop.f32.mrb[0].mxu0
      %v716 = vadd.f32 %v552, %v715
      %v717 = vpop.f32.mrb[0].mxu0
      %718 = vmatprep.mubr.bf16.mxu0 0
      %719 = vmatmul.mubr.bf16.gmra.mrb[0].mxu0 %v635
      %v720 = vpop.f32.mrb[0].mxu0
      %v721 = vadd.f32 %v557, %v720
      %v722 = vpop.f32.mrb[0].mxu0
      %v723 = vpop.f32.mrb[0].mxu0
      %v724 = vadd.f32 %v560, %v723
      %v725 = vpop.f32.mrb[0].mxu0
      %726 = vmatprep.mubr.bf16.mxu0 0
      %727 = vmatmul.mubr.bf16.gmra.mrb[0].mxu0 %v638
      %v728 = vpop.f32.mrb[0].mxu0
      %v729 = vadd.f32 %v565, %v728
      %v730 = vpop.f32.mrb[0].mxu0
      %v731 = vpop.f32.mrb[0].mxu0
      %v732 = vadd.f32 %v568, %v731
      %v733 = vpop.f32.mrb[0].mxu0
      %734 = vmatprep.mubr.bf16.mxu0 0
      %735 = vmatmul.mubr.bf16.gmra.mrb[0].mxu0 %v641
      %v736 = vpop.f32.mrb[0].mxu0
      %v737 = vadd.f32 %v573, %v736
      %v738 = vpop.f32.mrb[0].mxu0
      %v739 = vpop.f32.mrb[0].mxu0
      %v740 = vadd.f32 %v576, %v739
      %v741 = vpop.f32.mrb[0].mxu0
      %742 = vdwg.mxu0
      %vm751 = vcmask 1042432
      %vm752 = vcmask 1046532
      %vm753 = vmor %vm751, %vm752
      %v754 = vrot.slane %v201, 5
      %v755 = vrot.slane %v754, 4
      %v756 = vrot.slane %v202, 5
      %v757 = vsel %vm753, %v755, %v756
      %v758 = vrot.slane %v756, 4
      %v759 = vrot.slane %v203, 5
      %v760 = vsel %vm753, %v758, %v759
      %v761 = vrot.slane %v204, 5
      %v762 = vrot.slane %v761, 4
      %v763 = vrot.slane %v205, 5
      %v764 = vsel %vm753, %v762, %v763
      %v765 = vrot.slane %v763, 4
      %v766 = vrot.slane %v206, 5
      %v767 = vsel %vm753, %v765, %v766
      %v768 = vrot.slane %v207, 5
      %v769 = vrot.slane %v768, 4
      %v770 = vrot.slane %v208, 5
      %v771 = vsel %vm753, %v769, %v770
      %v772 = vrot.slane %v770, 4
      %v773 = vrot.slane %v209, 5
      %v774 = vsel %vm753, %v772, %v773
      %v775 = vrot.slane %v210, 5
      %v776 = vrot.slane %v775, 4
      %v777 = vrot.slane %v211, 5
      %v778 = vsel %vm753, %v776, %v777
      %v779 = vrot.slane %v777, 4
      %v780 = vrot.slane %v212, 5
      %v781 = vsel %vm753, %v779, %v780
      %v782 = vrot.slane %v213, 5
      %v783 = vrot.slane %v782, 4
      %v784 = vrot.slane %v214, 5
      %v785 = vsel %vm753, %v783, %v784
      %v786 = vrot.slane %v784, 4
      %v787 = vrot.slane %v215, 5
      %v788 = vsel %vm753, %v786, %v787
      %v789 = vrot.slane %v216, 5
      %v790 = vrot.slane %v789, 4
      %v791 = vrot.slane %v217, 5
      %v792 = vsel %vm753, %v790, %v791
      %v793 = vrot.slane %v791, 4
      %v794 = vrot.slane %v218, 5
      %v795 = vsel %vm753, %v793, %v794
      %v796 = vrot.slane %v219, 5
      %v797 = vrot.slane %v796, 4
      %v798 = vrot.slane %v220, 5
      %v799 = vsel %vm753, %v797, %v798
      %v800 = vrot.slane %v798, 4
      %v801 = vrot.slane %v221, 5
      %v802 = vsel %vm753, %v800, %v801
      %v803 = vrot.slane %v222, 5
      %v804 = vrot.slane %v803, 4
      %v805 = vrot.slane %v223, 5
      %v806 = vsel %vm753, %v804, %v805
      %v807 = vrot.slane %v805, 4
      %v808 = vrot.slane %v224, 5
      %v809 = vsel %vm753, %v807, %v808
      %s810 = scalar_lea.vmem %s1, 4
      %v811 = vld [vmem:[%s810] sm:$0x3]
      %v812 = vunpack.c.l.b16 %v757
      %v813 = vunpack.c.l.b16 %v760
      %v814 = vunpack.c.l.b16 %v764
      %v815 = vunpack.c.l.b16 %v767
      %v816 = vunpack.c.l.b16 %v771
      %v817 = vunpack.c.l.b16 %v774
      %v818 = vunpack.c.l.b16 %v778
      %v819 = vunpack.c.l.b16 %v781
      %v820 = vunpack.c.l.b16 %v785
      %v821 = vunpack.c.l.b16 %v788
      %v822 = vunpack.c.l.b16 %v792
      %v823 = vunpack.c.l.b16 %v795
      %v824 = vunpack.c.l.b16 %v799
      %v825 = vunpack.c.l.b16 %v802
      %v826 = vunpack.c.l.b16 %v806
      %v827 = vunpack.c.l.b16 %v809
      %v828 = vpack.c.b16 %v813, %v812
      %v829 = vpack.c.b16 %v815, %v814
      %v830 = vpack.c.b16 %v817, %v816
      %v831 = vpack.c.b16 %v819, %v818
      %v832 = vpack.c.b16 %v821, %v820
      %v833 = vpack.c.b16 %v823, %v822
      %v834 = vpack.c.b16 %v825, %v824
      %v835 = vpack.c.b16 %v827, %v826
      %v837 = vsel %vm453, %v828, 0
      %v840 = vsel %vm453, %v829, 0
      %v843 = vsel %vm453, %v830, 0
      %v846 = vsel %vm453, %v831, 0
      %v849 = vsel %vm453, %v832, 0
      %v852 = vsel %vm453, %v833, 0
      %v855 = vsel %vm453, %v834, 0
      %v858 = vsel %vm453, %v835, 0
      %v861 = vsel %vm478, %v811, 0
      %863 = vmatprep.subr.bf16.mxu0 0
      %864 = vmatpush1.bf16.msra.mxu0 %v861
      %865 = vmatprep.subr.bf16.mxu0 0
      %866 = vmatpush1.bf16.msra.mxu0 0
      %867 = vmatprep.subr.bf16.mxu0 0
      %868 = vmatpush1.bf16.msra.mxu0 0
      %869 = vmatprep.subr.bf16.mxu0 0
      %870 = vmatpush1.bf16.msra.mxu0 0
      %871 = vmatprep.subr.bf16.mxu0 0
      %872 = vmatpush1.bf16.msra.mxu0 0
      %873 = vmatprep.subr.bf16.mxu0 0
      %874 = vmatpush1.bf16.msra.mxu0 0
      %875 = vmatprep.subr.bf16.mxu0 0
      %876 = vmatpush1.bf16.msra.mxu0 0
      %877 = vmatprep.subr.bf16.mxu0 0
      %878 = vmatpush1.bf16.msra.mxu0 0
      %879 = vmatprep.subr.bf16.mxu0 0
      %880 = vmatpush1.bf16.msra.mxu0 0
      %881 = vmatprep.subr.bf16.mxu0 0
      %882 = vmatpush1.bf16.msra.mxu0 0
      %883 = vmatprep.subr.bf16.mxu0 0
      %884 = vmatpush1.bf16.msra.mxu0 0
      %885 = vmatprep.subr.bf16.mxu0 0
      %886 = vmatpush1.bf16.msra.mxu0 0
      %887 = vmatprep.subr.bf16.mxu0 0
      %888 = vmatpush1.bf16.msra.mxu0 0
      %889 = vmatprep.subr.bf16.mxu0 0
      %890 = vmatpush1.bf16.msra.mxu0 0
      %891 = vmatprep.subr.bf16.mxu0 0
      %892 = vmatpush1.bf16.msra.mxu0 0
      %893 = vmatprep.subr.bf16.mxu0 0
      %894 = vmatpush1.bf16.msra.mxu0 0
      %895 = vmatprep.mubr.bf16.mxu0 0
      %896 = vmatmul.mubr.bf16.gmra.mrb[0].mxu0 %v837
      %v897 = vpop.f32.mrb[0].mxu0
      %v898 = vadd.f32 0.0, %v897
      %v899 = vpop.f32.mrb[0].mxu0
      %v900 = vpop.f32.mrb[0].mxu0
      %v901 = vadd.f32 0.0, %v900
      %v902 = vpop.f32.mrb[0].mxu0
      %903 = vmatprep.mubr.bf16.mxu0 0
      %904 = vmatmul.mubr.bf16.gmra.mrb[0].mxu0 %v840
      %v905 = vpop.f32.mrb[0].mxu0
      %v906 = vadd.f32 0.0, %v905
      %v907 = vpop.f32.mrb[0].mxu0
      %v908 = vpop.f32.mrb[0].mxu0
      %v909 = vadd.f32 0.0, %v908
      %v910 = vpop.f32.mrb[0].mxu0
      %911 = vmatprep.mubr.bf16.mxu0 0
      %912 = vmatmul.mubr.bf16.gmra.mrb[0].mxu0 %v843
      %v913 = vpop.f32.mrb[0].mxu0
      %v914 = vadd.f32 0.0, %v913
      %v915 = vpop.f32.mrb[0].mxu0
      %v916 = vpop.f32.mrb[0].mxu0
      %v917 = vadd.f32 0.0, %v916
      %v918 = vpop.f32.mrb[0].mxu0
      %919 = vmatprep.mubr.bf16.mxu0 0
      %920 = vmatmul.mubr.bf16.gmra.mrb[0].mxu0 %v846
      %v921 = vpop.f32.mrb[0].mxu0
      %v922 = vadd.f32 0.0, %v921
      %v923 = vpop.f32.mrb[0].mxu0
      %v924 = vpop.f32.mrb[0].mxu0
      %v925 = vadd.f32 0.0, %v924
      %v926 = vpop.f32.mrb[0].mxu0
      %927 = vmatprep.mubr.bf16.mxu0 0
      %928 = vmatmul.mubr.bf16.gmra.mrb[0].mxu0 %v849
      %v929 = vpop.f32.mrb[0].mxu0
      %v930 = vadd.f32 0.0, %v929
      %v931 = vpop.f32.mrb[0].mxu0
      %v932 = vpop.f32.mrb[0].mxu0
      %v933 = vadd.f32 0.0, %v932
      %v934 = vpop.f32.mrb[0].mxu0
      %935 = vmatprep.mubr.bf16.mxu0 0
      %936 = vmatmul.mubr.bf16.gmra.mrb[0].mxu0 %v852
      %v937 = vpop.f32.mrb[0].mxu0
      %v938 = vadd.f32 0.0, %v937
      %v939 = vpop.f32.mrb[0].mxu0
      %v940 = vpop.f32.mrb[0].mxu0
      %v941 = vadd.f32 0.0, %v940
      %v942 = vpop.f32.mrb[0].mxu0
      %943 = vmatprep.mubr.bf16.mxu0 0
      %944 = vmatmul.mubr.bf16.gmra.mrb[0].mxu0 %v855
      %v945 = vpop.f32.mrb[0].mxu0
      %v946 = vadd.f32 0.0, %v945
      %v947 = vpop.f32.mrb[0].mxu0
      %v948 = vpop.f32.mrb[0].mxu0
      %v949 = vadd.f32 0.0, %v948
      %v950 = vpop.f32.mrb[0].mxu0
      %951 = vmatprep.mubr.bf16.mxu0 0
      %952 = vmatmul.mubr.bf16.gmra.mrb[0].mxu0 %v858
      %v953 = vpop.f32.mrb[0].mxu0
      %v954 = vadd.f32 0.0, %v953
      %v955 = vpop.f32.mrb[0].mxu0
      %v956 = vpop.f32.mrb[0].mxu0
      %v957 = vadd.f32 0.0, %v956
      %v958 = vpop.f32.mrb[0].mxu0
      %959 = vdwg.mxu0
      %v960 = vadd.f32 %v681, %v898
      %v961 = vadd.f32 %v684, %v901
      %v962 = vadd.f32 %v689, %v906
      %v963 = vadd.f32 %v692, %v909
      %v964 = vadd.f32 %v697, %v914
      %v965 = vadd.f32 %v700, %v917
      %v966 = vadd.f32 %v705, %v922
      %v967 = vadd.f32 %v708, %v925
      %v968 = vadd.f32 %v713, %v930
      %v969 = vadd.f32 %v716, %v933
      %v970 = vadd.f32 %v721, %v938
      %v971 = vadd.f32 %v724, %v941
      %v972 = vadd.f32 %v729, %v946
      %v973 = vadd.f32 %v732, %v949
      %v974 = vadd.f32 %v737, %v954
      %v975 = vadd.f32 %v740, %v957
      %s976 = scalar_lea.vmem %s1, 6
      %v977 = vld [vmem:[%s976] sm:$0x3]
      %v980 = vunpack.c.l.b16 %v225
      %v981 = vunpack.c.l.b16 %v226
      %v982 = vpack.c.b16 %v981, %v980
      %v984 = vsel %vm453, %v982, 0
      %v987 = vsel %vm478, %v977, 0
      %989 = vmatprep.subr.bf16.mxu0 0
      %990 = vmatpush1.bf16.msra.mxu0 %v987
      %991 = vmatprep.subr.bf16.mxu0 0
      %992 = vmatpush1.bf16.msra.mxu0 0
      %993 = vmatprep.subr.bf16.mxu0 0
      %994 = vmatpush1.bf16.msra.mxu0 0
      %995 = vmatprep.subr.bf16.mxu0 0
      %996 = vmatpush1.bf16.msra.mxu0 0
      %997 = vmatprep.subr.bf16.mxu0 0
      %998 = vmatpush1.bf16.msra.mxu0 0
      %999 = vmatprep.subr.bf16.mxu0 0
      %1000 = vmatpush1.bf16.msra.mxu0 0
      %1001 = vmatprep.subr.bf16.mxu0 0
      %1002 = vmatpush1.bf16.msra.mxu0 0
      %1003 = vmatprep.subr.bf16.mxu0 0
      %1004 = vmatpush1.bf16.msra.mxu0 0
      %1005 = vmatprep.subr.bf16.mxu0 0
      %1006 = vmatpush1.bf16.msra.mxu0 0
      %1007 = vmatprep.subr.bf16.mxu0 0
      %1008 = vmatpush1.bf16.msra.mxu0 0
      %1009 = vmatprep.subr.bf16.mxu0 0
      %1010 = vmatpush1.bf16.msra.mxu0 0
      %1011 = vmatprep.subr.bf16.mxu0 0
      %1012 = vmatpush1.bf16.msra.mxu0 0
      %1013 = vmatprep.subr.bf16.mxu0 0
      %1014 = vmatpush1.bf16.msra.mxu0 0
      %1015 = vmatprep.subr.bf16.mxu0 0
      %1016 = vmatpush1.bf16.msra.mxu0 0
      %1017 = vmatprep.subr.bf16.mxu0 0
      %1018 = vmatpush1.bf16.msra.mxu0 0
      %1019 = vmatprep.subr.bf16.mxu0 0
      %1020 = vmatpush1.bf16.msra.mxu0 0
      %1021 = vmatprep.mubr.bf16.mxu0 0
      %1022 = vmatmul.mubr.bf16.gmra.mrb[0].mxu0 %v623
      %v1023 = vpop.f32.mrb[0].mxu0
      %v1024 = vadd.f32 0.0, %v1023
      %v1025 = vpop.f32.mrb[0].mxu0
      %v1026 = vpop.f32.mrb[0].mxu0
      %v1027 = vadd.f32 0.0, %v1026
      %v1028 = vpop.f32.mrb[0].mxu0
      %1029 = vmatprep.mubr.bf16.mxu0 0
      %1030 = vmatmul.mubr.bf16.gmra.mrb[0].mxu0 %v626
      %v1031 = vpop.f32.mrb[0].mxu0
      %v1032 = vadd.f32 0.0, %v1031
      %v1033 = vpop.f32.mrb[0].mxu0
      %v1034 = vpop.f32.mrb[0].mxu0
      %v1035 = vadd.f32 0.0, %v1034
      %v1036 = vpop.f32.mrb[0].mxu0
      %1037 = vmatprep.mubr.bf16.mxu0 0
      %1038 = vmatmul.mubr.bf16.gmra.mrb[0].mxu0 %v629
      %v1039 = vpop.f32.mrb[0].mxu0
      %v1040 = vadd.f32 0.0, %v1039
      %v1041 = vpop.f32.mrb[0].mxu0
      %v1042 = vpop.f32.mrb[0].mxu0
      %v1043 = vadd.f32 0.0, %v1042
      %v1044 = vpop.f32.mrb[0].mxu0
      %1045 = vmatprep.mubr.bf16.mxu0 0
      %1046 = vmatmul.mubr.bf16.gmra.mrb[0].mxu0 %v632
      %v1047 = vpop.f32.mrb[0].mxu0
      %v1048 = vadd.f32 0.0, %v1047
      %v1049 = vpop.f32.mrb[0].mxu0
      %v1050 = vpop.f32.mrb[0].mxu0
      %v1051 = vadd.f32 0.0, %v1050
      %v1052 = vpop.f32.mrb[0].mxu0
      %1053 = vmatprep.mubr.bf16.mxu0 0
      %1054 = vmatmul.mubr.bf16.gmra.mrb[0].mxu0 %v635
      %v1055 = vpop.f32.mrb[0].mxu0
      %v1056 = vadd.f32 0.0, %v1055
      %v1057 = vpop.f32.mrb[0].mxu0
      %v1058 = vpop.f32.mrb[0].mxu0
      %v1059 = vadd.f32 0.0, %v1058
      %v1060 = vpop.f32.mrb[0].mxu0
      %1061 = vmatprep.mubr.bf16.mxu0 0
      %1062 = vmatmul.mubr.bf16.gmra.mrb[0].mxu0 %v638
      %v1063 = vpop.f32.mrb[0].mxu0
      %v1064 = vadd.f32 0.0, %v1063
      %v1065 = vpop.f32.mrb[0].mxu0
      %v1066 = vpop.f32.mrb[0].mxu0
      %v1067 = vadd.f32 0.0, %v1066
      %v1068 = vpop.f32.mrb[0].mxu0
      %1069 = vmatprep.mubr.bf16.mxu0 0
      %1070 = vmatmul.mubr.bf16.gmra.mrb[0].mxu0 %v641
      %v1071 = vpop.f32.mrb[0].mxu0
      %v1072 = vadd.f32 0.0, %v1071
      %v1073 = vpop.f32.mrb[0].mxu0
      %v1074 = vpop.f32.mrb[0].mxu0
      %v1075 = vadd.f32 0.0, %v1074
      %v1076 = vpop.f32.mrb[0].mxu0
      %1077 = vmatprep.mubr.bf16.mxu0 0
      %1078 = vmatmul.mubr.bf16.gmra.mrb[0].mxu0 %v984
      %v1079 = vpop.f32.mrb[0].mxu0
      %v1080 = vadd.f32 0.0, %v1079
      %v1081 = vpop.f32.mrb[0].mxu0
      %v1082 = vpop.f32.mrb[0].mxu0
      %v1083 = vadd.f32 0.0, %v1082
      %v1084 = vpop.f32.mrb[0].mxu0
      %1085 = vdwg.mxu0
      %v1086 = vadd.f32 %v960, %v1024
      %v1087 = vadd.f32 %v961, %v1027
      %v1088 = vadd.f32 %v962, %v1032
      %v1089 = vadd.f32 %v963, %v1035
      %v1090 = vadd.f32 %v964, %v1040
      %v1091 = vadd.f32 %v965, %v1043
      %v1092 = vadd.f32 %v966, %v1048
      %v1093 = vadd.f32 %v967, %v1051
      %v1094 = vadd.f32 %v968, %v1056
      %v1095 = vadd.f32 %v969, %v1059
      %v1096 = vadd.f32 %v970, %v1064
      %v1097 = vadd.f32 %v971, %v1067
      %v1098 = vadd.f32 %v972, %v1072
      %v1099 = vadd.f32 %v973, %v1075
      %v1100 = vadd.f32 %v974, %v1080
      %v1101 = vadd.f32 %v975, %v1083
      %v1103 = vshrl.u32 %v225, 16
      %v1105 = vrot.slane %v1103, 4
      %v1106 = vshll.u32 %v225, 16
      %v1108 = vrot.slane %v1106, 5
      %v1109 = vor.u32 %v1105, %v1108
      %v1110 = vrot.slane %v1109, 4
      %v1112 = vshll.u32 %v226, 16
      %v1114 = vrot.slane %v1112, 5
      %v1115 = vsel %vm234, %v1110, %v1114
      %v1116 = vshrl.u32 %v226, 16
      %v1118 = vrot.slane %v1116, 4
      %v1119 = vor.u32 %v1118, %v1114
      %v1120 = vrot.slane %v1119, 4
      %v1122 = vshll.u32 %v227, 16
      %v1124 = vrot.slane %v1122, 5
      %v1125 = vsel %vm234, %v1120, %v1124
      %s1126 = scalar_lea.vmem %s1, 8
      %v1127 = vld [vmem:[%s1126] sm:$0x3]
      %v1128 = vunpack.c.l.b16 %v1115
      %v1129 = vunpack.c.l.b16 %v1125
      %v1130 = vpack.c.b16 %v1129, %v1128
      %v1132 = vsel %vm453, %v1130, 0
      %v1135 = vsel %vm478, %v1127, 0
      %1137 = vmatprep.subr.bf16.mxu0 0
      %1138 = vmatpush1.bf16.msra.mxu0 %v1135
      %1139 = vmatprep.subr.bf16.mxu0 0
      %1140 = vmatpush1.bf16.msra.mxu0 0
      %1141 = vmatprep.subr.bf16.mxu0 0
      %1142 = vmatpush1.bf16.msra.mxu0 0
      %1143 = vmatprep.subr.bf16.mxu0 0
      %1144 = vmatpush1.bf16.msra.mxu0 0
      %1145 = vmatprep.subr.bf16.mxu0 0
      %1146 = vmatpush1.bf16.msra.mxu0 0
      %1147 = vmatprep.subr.bf16.mxu0 0
      %1148 = vmatpush1.bf16.msra.mxu0 0
      %1149 = vmatprep.subr.bf16.mxu0 0
      %1150 = vmatpush1.bf16.msra.mxu0 0
      %1151 = vmatprep.subr.bf16.mxu0 0
      %1152 = vmatpush1.bf16.msra.mxu0 0
      %1153 = vmatprep.subr.bf16.mxu0 0
      %1154 = vmatpush1.bf16.msra.mxu0 0
      %1155 = vmatprep.subr.bf16.mxu0 0
      %1156 = vmatpush1.bf16.msra.mxu0 0
      %1157 = vmatprep.subr.bf16.mxu0 0
      %1158 = vmatpush1.bf16.msra.mxu0 0
      %1159 = vmatprep.subr.bf16.mxu0 0
      %1160 = vmatpush1.bf16.msra.mxu0 0
      %1161 = vmatprep.subr.bf16.mxu0 0
      %1162 = vmatpush1.bf16.msra.mxu0 0
      %1163 = vmatprep.subr.bf16.mxu0 0
      %1164 = vmatpush1.bf16.msra.mxu0 0
      %1165 = vmatprep.subr.bf16.mxu0 0
      %1166 = vmatpush1.bf16.msra.mxu0 0
      %1167 = vmatprep.subr.bf16.mxu0 0
      %1168 = vmatpush1.bf16.msra.mxu0 0
      %1169 = vmatprep.mubr.bf16.mxu0 0
      %1170 = vmatmul.mubr.bf16.gmra.mrb[0].mxu0 %v458
      %v1171 = vpop.f32.mrb[0].mxu0
      %v1172 = vadd.f32 0.0, %v1171
      %v1173 = vpop.f32.mrb[0].mxu0
      %v1174 = vpop.f32.mrb[0].mxu0
      %v1175 = vadd.f32 0.0, %v1174
      %v1176 = vpop.f32.mrb[0].mxu0
      %1177 = vmatprep.mubr.bf16.mxu0 0
      %1178 = vmatmul.mubr.bf16.gmra.mrb[0].mxu0 %v461
      %v1179 = vpop.f32.mrb[0].mxu0
      %v1180 = vadd.f32 0.0, %v1179
      %v1181 = vpop.f32.mrb[0].mxu0
      %v1182 = vpop.f32.mrb[0].mxu0
      %v1183 = vadd.f32 0.0, %v1182
      %v1184 = vpop.f32.mrb[0].mxu0
      %1185 = vmatprep.mubr.bf16.mxu0 0
      %1186 = vmatmul.mubr.bf16.gmra.mrb[0].mxu0 %v464
      %v1187 = vpop.f32.mrb[0].mxu0
      %v1188 = vadd.f32 0.0, %v1187
      %v1189 = vpop.f32.mrb[0].mxu0
      %v1190 = vpop.f32.mrb[0].mxu0
      %v1191 = vadd.f32 0.0, %v1190
      %v1192 = vpop.f32.mrb[0].mxu0
      %1193 = vmatprep.mubr.bf16.mxu0 0
      %1194 = vmatmul.mubr.bf16.gmra.mrb[0].mxu0 %v467
      %v1195 = vpop.f32.mrb[0].mxu0
      %v1196 = vadd.f32 0.0, %v1195
      %v1197 = vpop.f32.mrb[0].mxu0
      %v1198 = vpop.f32.mrb[0].mxu0
      %v1199 = vadd.f32 0.0, %v1198
      %v1200 = vpop.f32.mrb[0].mxu0
      %1201 = vmatprep.mubr.bf16.mxu0 0
      %1202 = vmatmul.mubr.bf16.gmra.mrb[0].mxu0 %v470
      %v1203 = vpop.f32.mrb[0].mxu0
      %v1204 = vadd.f32 0.0, %v1203
      %v1205 = vpop.f32.mrb[0].mxu0
      %v1206 = vpop.f32.mrb[0].mxu0
      %v1207 = vadd.f32 0.0, %v1206
      %v1208 = vpop.f32.mrb[0].mxu0
      %1209 = vmatprep.mubr.bf16.mxu0 0
      %1210 = vmatmul.mubr.bf16.gmra.mrb[0].mxu0 %v473
      %v1211 = vpop.f32.mrb[0].mxu0
      %v1212 = vadd.f32 0.0, %v1211
      %v1213 = vpop.f32.mrb[0].mxu0
      %v1214 = vpop.f32.mrb[0].mxu0
      %v1215 = vadd.f32 0.0, %v1214
      %v1216 = vpop.f32.mrb[0].mxu0
      %1217 = vmatprep.mubr.bf16.mxu0 0
      %1218 = vmatmul.mubr.bf16.gmra.mrb[0].mxu0 %v476
      %v1219 = vpop.f32.mrb[0].mxu0
      %v1220 = vadd.f32 0.0, %v1219
      %v1221 = vpop.f32.mrb[0].mxu0
      %v1222 = vpop.f32.mrb[0].mxu0
      %v1223 = vadd.f32 0.0, %v1222
      %v1224 = vpop.f32.mrb[0].mxu0
      %1225 = vmatprep.mubr.bf16.mxu0 0
      %1226 = vmatmul.mubr.bf16.gmra.mrb[0].mxu0 %v1132
      %v1227 = vpop.f32.mrb[0].mxu0
      %v1228 = vadd.f32 0.0, %v1227
      %v1229 = vpop.f32.mrb[0].mxu0
      %v1230 = vpop.f32.mrb[0].mxu0
      %v1231 = vadd.f32 0.0, %v1230
      %v1232 = vpop.f32.mrb[0].mxu0
      %1233 = vdwg.mxu0
      %v1234 = vadd.f32 %v1086, %v1172
      %v1235 = vadd.f32 %v1087, %v1175
      %v1236 = vadd.f32 %v1088, %v1180
      %v1237 = vadd.f32 %v1089, %v1183
      %v1238 = vadd.f32 %v1090, %v1188
      %v1239 = vadd.f32 %v1091, %v1191
      %v1240 = vadd.f32 %v1092, %v1196
      %v1241 = vadd.f32 %v1093, %v1199
      %v1242 = vadd.f32 %v1094, %v1204
      %v1243 = vadd.f32 %v1095, %v1207
      %v1244 = vadd.f32 %v1096, %v1212
      %v1245 = vadd.f32 %v1097, %v1215
      %v1246 = vadd.f32 %v1098, %v1220
      %v1247 = vadd.f32 %v1099, %v1223
      %v1248 = vadd.f32 %v1100, %v1228
      %v1249 = vadd.f32 %v1101, %v1231
      %v1251 = vrot.slane %v225, 5
      %v1252 = vrot.slane %v1251, 4
      %v1253 = vrot.slane %v226, 5
      %v1254 = vsel %vm753, %v1252, %v1253
      %v1255 = vrot.slane %v1253, 4
      %v1256 = vrot.slane %v227, 5
      %v1257 = vsel %vm753, %v1255, %v1256
      %s1258 = scalar_lea.vmem %s1, 10
      %v1259 = vld [vmem:[%s1258] sm:$0x3]
      %v1260 = vunpack.c.l.b16 %v1254
      %v1261 = vunpack.c.l.b16 %v1257
      %v1262 = vpack.c.b16 %v1261, %v1260
      %v1264 = vsel %vm453, %v1262, 0
      %v1267 = vsel %vm478, %v1259, 0
      %1269 = vmatprep.subr.bf16.mxu0 0
      %1270 = vmatpush1.bf16.msra.mxu0 %v1267
      %1271 = vmatprep.subr.bf16.mxu0 0
      %1272 = vmatpush1.bf16.msra.mxu0 0
      %1273 = vmatprep.subr.bf16.mxu0 0
      %1274 = vmatpush1.bf16.msra.mxu0 0
      %1275 = vmatprep.subr.bf16.mxu0 0
      %1276 = vmatpush1.bf16.msra.mxu0 0
      %1277 = vmatprep.subr.bf16.mxu0 0
      %1278 = vmatpush1.bf16.msra.mxu0 0
      %1279 = vmatprep.subr.bf16.mxu0 0
      %1280 = vmatpush1.bf16.msra.mxu0 0
      %1281 = vmatprep.subr.bf16.mxu0 0
      %1282 = vmatpush1.bf16.msra.mxu0 0
      %1283 = vmatprep.subr.bf16.mxu0 0
      %1284 = vmatpush1.bf16.msra.mxu0 0
      %1285 = vmatprep.subr.bf16.mxu0 0
      %1286 = vmatpush1.bf16.msra.mxu0 0
      %1287 = vmatprep.subr.bf16.mxu0 0
      %1288 = vmatpush1.bf16.msra.mxu0 0
      %1289 = vmatprep.subr.bf16.mxu0 0
      %1290 = vmatpush1.bf16.msra.mxu0 0
      %1291 = vmatprep.subr.bf16.mxu0 0
      %1292 = vmatpush1.bf16.msra.mxu0 0
      %1293 = vmatprep.subr.bf16.mxu0 0
      %1294 = vmatpush1.bf16.msra.mxu0 0
      %1295 = vmatprep.subr.bf16.mxu0 0
      %1296 = vmatpush1.bf16.msra.mxu0 0
      %1297 = vmatprep.subr.bf16.mxu0 0
      %1298 = vmatpush1.bf16.msra.mxu0 0
      %1299 = vmatprep.subr.bf16.mxu0 0
      %1300 = vmatpush1.bf16.msra.mxu0 0
      %1301 = vmatprep.mubr.bf16.mxu0 0
      %1302 = vmatmul.mubr.bf16.gmra.mrb[0].mxu0 %v840
      %v1303 = vpop.f32.mrb[0].mxu0
      %v1304 = vadd.f32 0.0, %v1303
      %v1305 = vpop.f32.mrb[0].mxu0
      %v1306 = vpop.f32.mrb[0].mxu0
      %v1307 = vadd.f32 0.0, %v1306
      %v1308 = vpop.f32.mrb[0].mxu0
      %1309 = vmatprep.mubr.bf16.mxu0 0
      %1310 = vmatmul.mubr.bf16.gmra.mrb[0].mxu0 %v843
      %v1311 = vpop.f32.mrb[0].mxu0
      %v1312 = vadd.f32 0.0, %v1311
      %v1313 = vpop.f32.mrb[0].mxu0
      %v1314 = vpop.f32.mrb[0].mxu0
      %v1315 = vadd.f32 0.0, %v1314
      %v1316 = vpop.f32.mrb[0].mxu0
      %1317 = vmatprep.mubr.bf16.mxu0 0
      %1318 = vmatmul.mubr.bf16.gmra.mrb[0].mxu0 %v846
      %v1319 = vpop.f32.mrb[0].mxu0
      %v1320 = vadd.f32 0.0, %v1319
      %v1321 = vpop.f32.mrb[0].mxu0
      %v1322 = vpop.f32.mrb[0].mxu0
      %v1323 = vadd.f32 0.0, %v1322
      %v1324 = vpop.f32.mrb[0].mxu0
      %1325 = vmatprep.mubr.bf16.mxu0 0
      %1326 = vmatmul.mubr.bf16.gmra.mrb[0].mxu0 %v849
      %v1327 = vpop.f32.mrb[0].mxu0
      %v1328 = vadd.f32 0.0, %v1327
      %v1329 = vpop.f32.mrb[0].mxu0
      %v1330 = vpop.f32.mrb[0].mxu0
      %v1331 = vadd.f32 0.0, %v1330
      %v1332 = vpop.f32.mrb[0].mxu0
      %1333 = vmatprep.mubr.bf16.mxu0 0
      %1334 = vmatmul.mubr.bf16.gmra.mrb[0].mxu0 %v852
      %v1335 = vpop.f32.mrb[0].mxu0
      %v1336 = vadd.f32 0.0, %v1335
      %v1337 = vpop.f32.mrb[0].mxu0
      %v1338 = vpop.f32.mrb[0].mxu0
      %v1339 = vadd.f32 0.0, %v1338
      %v1340 = vpop.f32.mrb[0].mxu0
      %1341 = vmatprep.mubr.bf16.mxu0 0
      %1342 = vmatmul.mubr.bf16.gmra.mrb[0].mxu0 %v855
      %v1343 = vpop.f32.mrb[0].mxu0
      %v1344 = vadd.f32 0.0, %v1343
      %v1345 = vpop.f32.mrb[0].mxu0
      %v1346 = vpop.f32.mrb[0].mxu0
      %v1347 = vadd.f32 0.0, %v1346
      %v1348 = vpop.f32.mrb[0].mxu0
      %1349 = vmatprep.mubr.bf16.mxu0 0
      %1350 = vmatmul.mubr.bf16.gmra.mrb[0].mxu0 %v858
      %v1351 = vpop.f32.mrb[0].mxu0
      %v1352 = vadd.f32 0.0, %v1351
      %v1353 = vpop.f32.mrb[0].mxu0
      %v1354 = vpop.f32.mrb[0].mxu0
      %v1355 = vadd.f32 0.0, %v1354
      %v1356 = vpop.f32.mrb[0].mxu0
      %1357 = vmatprep.mubr.bf16.mxu0 0
      %1358 = vmatmul.mubr.bf16.gmra.mrb[0].mxu0 %v1264
      %v1359 = vpop.f32.mrb[0].mxu0
      %v1360 = vadd.f32 0.0, %v1359
      %v1361 = vpop.f32.mrb[0].mxu0
      %v1362 = vpop.f32.mrb[0].mxu0
      %v1363 = vadd.f32 0.0, %v1362
      %v1364 = vpop.f32.mrb[0].mxu0
      %1365 = vdwg.mxu0
      %v1366 = vadd.f32 %v1234, %v1304
      %v1367 = vadd.f32 %v1235, %v1307
      %v1368 = vadd.f32 %v1236, %v1312
      %v1369 = vadd.f32 %v1237, %v1315
      %v1370 = vadd.f32 %v1238, %v1320
      %v1371 = vadd.f32 %v1239, %v1323
      %v1372 = vadd.f32 %v1240, %v1328
      %v1373 = vadd.f32 %v1241, %v1331
      %v1374 = vadd.f32 %v1242, %v1336
      %v1375 = vadd.f32 %v1243, %v1339
      %v1376 = vadd.f32 %v1244, %v1344
      %v1377 = vadd.f32 %v1245, %v1347
      %v1378 = vadd.f32 %v1246, %v1352
      %v1379 = vadd.f32 %v1247, %v1355
      %v1380 = vadd.f32 %v1248, %v1360
      %v1381 = vadd.f32 %v1249, %v1363
      %s1382 = scalar_lea.vmem %s1, 12
      %v1383 = vld [vmem:[%s1382] sm:$0x3]
      %v1386 = vunpack.c.l.b16 %v228
      %v1387 = vunpack.c.l.b16 %v229
      %v1388 = vpack.c.b16 %v1387, %v1386
      %v1390 = vsel %vm453, %v1388, 0
      %v1393 = vsel %vm478, %v1383, 0
      %1395 = vmatprep.subr.bf16.mxu0 0
      %1396 = vmatpush1.bf16.msra.mxu0 %v1393
      %1397 = vmatprep.subr.bf16.mxu0 0
      %1398 = vmatpush1.bf16.msra.mxu0 0
      %1399 = vmatprep.subr.bf16.mxu0 0
      %1400 = vmatpush1.bf16.msra.mxu0 0
      %1401 = vmatprep.subr.bf16.mxu0 0
      %1402 = vmatpush1.bf16.msra.mxu0 0
      %1403 = vmatprep.subr.bf16.mxu0 0
      %1404 = vmatpush1.bf16.msra.mxu0 0
      %1405 = vmatprep.subr.bf16.mxu0 0
      %1406 = vmatpush1.bf16.msra.mxu0 0
      %1407 = vmatprep.subr.bf16.mxu0 0
      %1408 = vmatpush1.bf16.msra.mxu0 0
      %1409 = vmatprep.subr.bf16.mxu0 0
      %1410 = vmatpush1.bf16.msra.mxu0 0
      %1411 = vmatprep.subr.bf16.mxu0 0
      %1412 = vmatpush1.bf16.msra.mxu0 0
      %1413 = vmatprep.subr.bf16.mxu0 0
      %1414 = vmatpush1.bf16.msra.mxu0 0
      %1415 = vmatprep.subr.bf16.mxu0 0
      %1416 = vmatpush1.bf16.msra.mxu0 0
      %1417 = vmatprep.subr.bf16.mxu0 0
      %1418 = vmatpush1.bf16.msra.mxu0 0
      %1419 = vmatprep.subr.bf16.mxu0 0
      %1420 = vmatpush1.bf16.msra.mxu0 0
      %1421 = vmatprep.subr.bf16.mxu0 0
      %1422 = vmatpush1.bf16.msra.mxu0 0
      %1423 = vmatprep.subr.bf16.mxu0 0
      %1424 = vmatpush1.bf16.msra.mxu0 0
      %1425 = vmatprep.subr.bf16.mxu0 0
      %1426 = vmatpush1.bf16.msra.mxu0 0
      %1427 = vmatprep.mubr.bf16.mxu0 0
      %1428 = vmatmul.mubr.bf16.gmra.mrb[0].mxu0 %v626
      %v1429 = vpop.f32.mrb[0].mxu0
      %v1430 = vadd.f32 0.0, %v1429
      %v1431 = vpop.f32.mrb[0].mxu0
      %v1432 = vpop.f32.mrb[0].mxu0
      %v1433 = vadd.f32 0.0, %v1432
      %v1434 = vpop.f32.mrb[0].mxu0
      %1435 = vmatprep.mubr.bf16.mxu0 0
      %1436 = vmatmul.mubr.bf16.gmra.mrb[0].mxu0 %v629
      %v1437 = vpop.f32.mrb[0].mxu0
      %v1438 = vadd.f32 0.0, %v1437
      %v1439 = vpop.f32.mrb[0].mxu0
      %v1440 = vpop.f32.mrb[0].mxu0
      %v1441 = vadd.f32 0.0, %v1440
      %v1442 = vpop.f32.mrb[0].mxu0
      %1443 = vmatprep.mubr.bf16.mxu0 0
      %1444 = vmatmul.mubr.bf16.gmra.mrb[0].mxu0 %v632
      %v1445 = vpop.f32.mrb[0].mxu0
      %v1446 = vadd.f32 0.0, %v1445
      %v1447 = vpop.f32.mrb[0].mxu0
      %v1448 = vpop.f32.mrb[0].mxu0
      %v1449 = vadd.f32 0.0, %v1448
      %v1450 = vpop.f32.mrb[0].mxu0
      %1451 = vmatprep.mubr.bf16.mxu0 0
      %1452 = vmatmul.mubr.bf16.gmra.mrb[0].mxu0 %v635
      %v1453 = vpop.f32.mrb[0].mxu0
      %v1454 = vadd.f32 0.0, %v1453
      %v1455 = vpop.f32.mrb[0].mxu0
      %v1456 = vpop.f32.mrb[0].mxu0
      %v1457 = vadd.f32 0.0, %v1456
      %v1458 = vpop.f32.mrb[0].mxu0
      %1459 = vmatprep.mubr.bf16.mxu0 0
      %1460 = vmatmul.mubr.bf16.gmra.mrb[0].mxu0 %v638
      %v1461 = vpop.f32.mrb[0].mxu0
      %v1462 = vadd.f32 0.0, %v1461
      %v1463 = vpop.f32.mrb[0].mxu0
      %v1464 = vpop.f32.mrb[0].mxu0
      %v1465 = vadd.f32 0.0, %v1464
      %v1466 = vpop.f32.mrb[0].mxu0
      %1467 = vmatprep.mubr.bf16.mxu0 0
      %1468 = vmatmul.mubr.bf16.gmra.mrb[0].mxu0 %v641
      %v1469 = vpop.f32.mrb[0].mxu0
      %v1470 = vadd.f32 0.0, %v1469
      %v1471 = vpop.f32.mrb[0].mxu0
      %v1472 = vpop.f32.mrb[0].mxu0
      %v1473 = vadd.f32 0.0, %v1472
      %v1474 = vpop.f32.mrb[0].mxu0
      %1475 = vmatprep.mubr.bf16.mxu0 0
      %1476 = vmatmul.mubr.bf16.gmra.mrb[0].mxu0 %v984
      %v1477 = vpop.f32.mrb[0].mxu0
      %v1478 = vadd.f32 0.0, %v1477
      %v1479 = vpop.f32.mrb[0].mxu0
      %v1480 = vpop.f32.mrb[0].mxu0
      %v1481 = vadd.f32 0.0, %v1480
      %v1482 = vpop.f32.mrb[0].mxu0
      %1483 = vmatprep.mubr.bf16.mxu0 0
      %1484 = vmatmul.mubr.bf16.gmra.mrb[0].mxu0 %v1390
      %v1485 = vpop.f32.mrb[0].mxu0
      %v1486 = vadd.f32 0.0, %v1485
      %v1487 = vpop.f32.mrb[0].mxu0
      %v1488 = vpop.f32.mrb[0].mxu0
      %v1489 = vadd.f32 0.0, %v1488
      %v1490 = vpop.f32.mrb[0].mxu0
      %1491 = vdwg.mxu0
      %v1492 = vadd.f32 %v1366, %v1430
      %v1493 = vadd.f32 %v1367, %v1433
      %v1494 = vadd.f32 %v1368, %v1438
      %v1495 = vadd.f32 %v1369, %v1441
      %v1496 = vadd.f32 %v1370, %v1446
      %v1497 = vadd.f32 %v1371, %v1449
      %v1498 = vadd.f32 %v1372, %v1454
      %v1499 = vadd.f32 %v1373, %v1457
      %v1500 = vadd.f32 %v1374, %v1462
      %v1501 = vadd.f32 %v1375, %v1465
      %v1502 = vadd.f32 %v1376, %v1470
      %v1503 = vadd.f32 %v1377, %v1473
      %v1504 = vadd.f32 %v1378, %v1478
      %v1505 = vadd.f32 %v1379, %v1481
      %v1506 = vadd.f32 %v1380, %v1486
      %v1507 = vadd.f32 %v1381, %v1489
      %v1509 = vshrl.u32 %v228, 16
      %v1511 = vrot.slane %v1509, 4
      %v1512 = vshll.u32 %v228, 16
      %v1514 = vrot.slane %v1512, 5
      %v1515 = vor.u32 %v1511, %v1514
      %v1516 = vrot.slane %v1515, 4
      %v1518 = vshll.u32 %v229, 16
      %v1520 = vrot.slane %v1518, 5
      %v1521 = vsel %vm234, %v1516, %v1520
      %v1522 = vshrl.u32 %v229, 16
      %v1524 = vrot.slane %v1522, 4
      %v1525 = vor.u32 %v1524, %v1520
      %v1526 = vrot.slane %v1525, 4
      %v1528 = vshll.u32 %v230, 16
      %v1530 = vrot.slane %v1528, 5
      %v1531 = vsel %vm234, %v1526, %v1530
      %s1532 = scalar_lea.vmem %s1, 14
      %v1533 = vld [vmem:[%s1532] sm:$0x3]
      %v1534 = vunpack.c.l.b16 %v1521
      %v1535 = vunpack.c.l.b16 %v1531
      %v1536 = vpack.c.b16 %v1535, %v1534
      %v1538 = vsel %vm453, %v1536, 0
      %v1541 = vsel %vm478, %v1533, 0
      %1543 = vmatprep.subr.bf16.mxu0 0
      %1544 = vmatpush1.bf16.msra.mxu0 %v1541
      %1545 = vmatprep.subr.bf16.mxu0 0
      %1546 = vmatpush1.bf16.msra.mxu0 0
      %1547 = vmatprep.subr.bf16.mxu0 0
      %1548 = vmatpush1.bf16.msra.mxu0 0
      %1549 = vmatprep.subr.bf16.mxu0 0
      %1550 = vmatpush1.bf16.msra.mxu0 0
      %1551 = vmatprep.subr.bf16.mxu0 0
      %1552 = vmatpush1.bf16.msra.mxu0 0
      %1553 = vmatprep.subr.bf16.mxu0 0
      %1554 = vmatpush1.bf16.msra.mxu0 0
      %1555 = vmatprep.subr.bf16.mxu0 0
      %1556 = vmatpush1.bf16.msra.mxu0 0
      %1557 = vmatprep.subr.bf16.mxu0 0
      %1558 = vmatpush1.bf16.msra.mxu0 0
      %1559 = vmatprep.subr.bf16.mxu0 0
      %1560 = vmatpush1.bf16.msra.mxu0 0
      %1561 = vmatprep.subr.bf16.mxu0 0
      %1562 = vmatpush1.bf16.msra.mxu0 0
      %1563 = vmatprep.subr.bf16.mxu0 0
      %1564 = vmatpush1.bf16.msra.mxu0 0
      %1565 = vmatprep.subr.bf16.mxu0 0
      %1566 = vmatpush1.bf16.msra.mxu0 0
      %1567 = vmatprep.subr.bf16.mxu0 0
      %1568 = vmatpush1.bf16.msra.mxu0 0
      %1569 = vmatprep.subr.bf16.mxu0 0
      %1570 = vmatpush1.bf16.msra.mxu0 0
      %1571 = vmatprep.subr.bf16.mxu0 0
      %1572 = vmatpush1.bf16.msra.mxu0 0
      %1573 = vmatprep.subr.bf16.mxu0 0
      %1574 = vmatpush1.bf16.msra.mxu0 0
      %1575 = vmatprep.mubr.bf16.mxu0 0
      %1576 = vmatmul.mubr.bf16.gmra.mrb[0].mxu0 %v461
      %v1577 = vpop.f32.mrb[0].mxu0
      %v1578 = vadd.f32 0.0, %v1577
      %v1579 = vpop.f32.mrb[0].mxu0
      %v1580 = vpop.f32.mrb[0].mxu0
      %v1581 = vadd.f32 0.0, %v1580
      %v1582 = vpop.f32.mrb[0].mxu0
      %1583 = vmatprep.mubr.bf16.mxu0 0
      %1584 = vmatmul.mubr.bf16.gmra.mrb[0].mxu0 %v464
      %v1585 = vpop.f32.mrb[0].mxu0
      %v1586 = vadd.f32 0.0, %v1585
      %v1587 = vpop.f32.mrb[0].mxu0
      %v1588 = vpop.f32.mrb[0].mxu0
      %v1589 = vadd.f32 0.0, %v1588
      %v1590 = vpop.f32.mrb[0].mxu0
      %1591 = vmatprep.mubr.bf16.mxu0 0
      %1592 = vmatmul.mubr.bf16.gmra.mrb[0].mxu0 %v467
      %v1593 = vpop.f32.mrb[0].mxu0
      %v1594 = vadd.f32 0.0, %v1593
      %v1595 = vpop.f32.mrb[0].mxu0
      %v1596 = vpop.f32.mrb[0].mxu0
      %v1597 = vadd.f32 0.0, %v1596
      %v1598 = vpop.f32.mrb[0].mxu0
      %1599 = vmatprep.mubr.bf16.mxu0 0
      %1600 = vmatmul.mubr.bf16.gmra.mrb[0].mxu0 %v470
      %v1601 = vpop.f32.mrb[0].mxu0
      %v1602 = vadd.f32 0.0, %v1601
      %v1603 = vpop.f32.mrb[0].mxu0
      %v1604 = vpop.f32.mrb[0].mxu0
      %v1605 = vadd.f32 0.0, %v1604
      %v1606 = vpop.f32.mrb[0].mxu0
      %1607 = vmatprep.mubr.bf16.mxu0 0
      %1608 = vmatmul.mubr.bf16.gmra.mrb[0].mxu0 %v473
      %v1609 = vpop.f32.mrb[0].mxu0
      %v1610 = vadd.f32 0.0, %v1609
      %v1611 = vpop.f32.mrb[0].mxu0
      %v1612 = vpop.f32.mrb[0].mxu0
      %v1613 = vadd.f32 0.0, %v1612
      %v1614 = vpop.f32.mrb[0].mxu0
      %1615 = vmatprep.mubr.bf16.mxu0 0
      %1616 = vmatmul.mubr.bf16.gmra.mrb[0].mxu0 %v476
      %v1617 = vpop.f32.mrb[0].mxu0
      %v1618 = vadd.f32 0.0, %v1617
      %v1619 = vpop.f32.mrb[0].mxu0
      %v1620 = vpop.f32.mrb[0].mxu0
      %v1621 = vadd.f32 0.0, %v1620
      %v1622 = vpop.f32.mrb[0].mxu0
      %1623 = vmatprep.mubr.bf16.mxu0 0
      %1624 = vmatmul.mubr.bf16.gmra.mrb[0].mxu0 %v1132
      %v1625 = vpop.f32.mrb[0].mxu0
      %v1626 = vadd.f32 0.0, %v1625
      %v1627 = vpop.f32.mrb[0].mxu0
      %v1628 = vpop.f32.mrb[0].mxu0
      %v1629 = vadd.f32 0.0, %v1628
      %v1630 = vpop.f32.mrb[0].mxu0
      %1631 = vmatprep.mubr.bf16.mxu0 0
      %1632 = vmatmul.mubr.bf16.gmra.mrb[0].mxu0 %v1538
      %v1633 = vpop.f32.mrb[0].mxu0
      %v1634 = vadd.f32 0.0, %v1633
      %v1635 = vpop.f32.mrb[0].mxu0
      %v1636 = vpop.f32.mrb[0].mxu0
      %v1637 = vadd.f32 0.0, %v1636
      %v1638 = vpop.f32.mrb[0].mxu0
      %1639 = vdwg.mxu0
      %v1640 = vadd.f32 %v1492, %v1578
      %v1641 = vadd.f32 %v1493, %v1581
      %v1642 = vadd.f32 %v1494, %v1586
      %v1643 = vadd.f32 %v1495, %v1589
      %v1644 = vadd.f32 %v1496, %v1594
      %v1645 = vadd.f32 %v1497, %v1597
      %v1646 = vadd.f32 %v1498, %v1602
      %v1647 = vadd.f32 %v1499, %v1605
      %v1648 = vadd.f32 %v1500, %v1610
      %v1649 = vadd.f32 %v1501, %v1613
      %v1650 = vadd.f32 %v1502, %v1618
      %v1651 = vadd.f32 %v1503, %v1621
      %v1652 = vadd.f32 %v1504, %v1626
      %v1653 = vadd.f32 %v1505, %v1629
      %v1654 = vadd.f32 %v1506, %v1634
      %v1655 = vadd.f32 %v1507, %v1637
      %v1657 = vrot.slane %v228, 5
      %v1658 = vrot.slane %v1657, 4
      %v1659 = vrot.slane %v229, 5
      %v1660 = vsel %vm753, %v1658, %v1659
      %v1661 = vrot.slane %v1659, 4
      %v1662 = vrot.slane %v230, 5
      %v1663 = vsel %vm753, %v1661, %v1662
      %s1664 = scalar_lea.vmem %s1, 16
      %v1665 = vld [vmem:[%s1664] sm:$0x3]
      %v1666 = vunpack.c.l.b16 %v1660
      %v1667 = vunpack.c.l.b16 %v1663
      %v1668 = vpack.c.b16 %v1667, %v1666
      %v1670 = vsel %vm453, %v1668, 0
      %v1673 = vsel %vm478, %v1665, 0
      %1675 = vmatprep.subr.bf16.mxu0 0
      %1676 = vmatpush1.bf16.msra.mxu0 %v1673
      %1677 = vmatprep.subr.bf16.mxu0 0
      %1678 = vmatpush1.bf16.msra.mxu0 0
      %1679 = vmatprep.subr.bf16.mxu0 0
      %1680 = vmatpush1.bf16.msra.mxu0 0
      %1681 = vmatprep.subr.bf16.mxu0 0
      %1682 = vmatpush1.bf16.msra.mxu0 0
      %1683 = vmatprep.subr.bf16.mxu0 0
      %1684 = vmatpush1.bf16.msra.mxu0 0
      %1685 = vmatprep.subr.bf16.mxu0 0
      %1686 = vmatpush1.bf16.msra.mxu0 0
      %1687 = vmatprep.subr.bf16.mxu0 0
      %1688 = vmatpush1.bf16.msra.mxu0 0
      %1689 = vmatprep.subr.bf16.mxu0 0
      %1690 = vmatpush1.bf16.msra.mxu0 0
      %1691 = vmatprep.subr.bf16.mxu0 0
      %1692 = vmatpush1.bf16.msra.mxu0 0
      %1693 = vmatprep.subr.bf16.mxu0 0
      %1694 = vmatpush1.bf16.msra.mxu0 0
      %1695 = vmatprep.subr.bf16.mxu0 0
      %1696 = vmatpush1.bf16.msra.mxu0 0
      %1697 = vmatprep.subr.bf16.mxu0 0
      %1698 = vmatpush1.bf16.msra.mxu0 0
      %1699 = vmatprep.subr.bf16.mxu0 0
      %1700 = vmatpush1.bf16.msra.mxu0 0
      %1701 = vmatprep.subr.bf16.mxu0 0
      %1702 = vmatpush1.bf16.msra.mxu0 0
      %1703 = vmatprep.subr.bf16.mxu0 0
      %1704 = vmatpush1.bf16.msra.mxu0 0
      %1705 = vmatprep.subr.bf16.mxu0 0
      %1706 = vmatpush1.bf16.msra.mxu0 0
      %1707 = vmatprep.mubr.bf16.mxu0 0
      %1708 = vmatmul.mubr.bf16.gmra.mrb[0].mxu0 %v843
      %v1709 = vpop.f32.mrb[0].mxu0
      %v1710 = vadd.f32 0.0, %v1709
      %v1711 = vpop.f32.mrb[0].mxu0
      %v1712 = vpop.f32.mrb[0].mxu0
      %v1713 = vadd.f32 0.0, %v1712
      %v1714 = vpop.f32.mrb[0].mxu0
      %1715 = vmatprep.mubr.bf16.mxu0 0
      %1716 = vmatmul.mubr.bf16.gmra.mrb[0].mxu0 %v846
      %v1717 = vpop.f32.mrb[0].mxu0
      %v1718 = vadd.f32 0.0, %v1717
      %v1719 = vpop.f32.mrb[0].mxu0
      %v1720 = vpop.f32.mrb[0].mxu0
      %v1721 = vadd.f32 0.0, %v1720
      %v1722 = vpop.f32.mrb[0].mxu0
      %1723 = vmatprep.mubr.bf16.mxu0 0
      %1724 = vmatmul.mubr.bf16.gmra.mrb[0].mxu0 %v849
      %v1725 = vpop.f32.mrb[0].mxu0
      %v1726 = vadd.f32 0.0, %v1725
      %v1727 = vpop.f32.mrb[0].mxu0
      %v1728 = vpop.f32.mrb[0].mxu0
      %v1729 = vadd.f32 0.0, %v1728
      %v1730 = vpop.f32.mrb[0].mxu0
      %1731 = vmatprep.mubr.bf16.mxu0 0
      %1732 = vmatmul.mubr.bf16.gmra.mrb[0].mxu0 %v852
      %v1733 = vpop.f32.mrb[0].mxu0
      %v1734 = vadd.f32 0.0, %v1733
      %v1735 = vpop.f32.mrb[0].mxu0
      %v1736 = vpop.f32.mrb[0].mxu0
      %v1737 = vadd.f32 0.0, %v1736
      %v1738 = vpop.f32.mrb[0].mxu0
      %1739 = vmatprep.mubr.bf16.mxu0 0
      %1740 = vmatmul.mubr.bf16.gmra.mrb[0].mxu0 %v855
      %v1741 = vpop.f32.mrb[0].mxu0
      %v1742 = vadd.f32 0.0, %v1741
      %v1743 = vpop.f32.mrb[0].mxu0
      %v1744 = vpop.f32.mrb[0].mxu0
      %v1745 = vadd.f32 0.0, %v1744
      %v1746 = vpop.f32.mrb[0].mxu0
      %1747 = vmatprep.mubr.bf16.mxu0 0
      %1748 = vmatmul.mubr.bf16.gmra.mrb[0].mxu0 %v858
      %v1749 = vpop.f32.mrb[0].mxu0
      %v1750 = vadd.f32 0.0, %v1749
      %v1751 = vpop.f32.mrb[0].mxu0
      %v1752 = vpop.f32.mrb[0].mxu0
      %v1753 = vadd.f32 0.0, %v1752
      %v1754 = vpop.f32.mrb[0].mxu0
      %1755 = vmatprep.mubr.bf16.mxu0 0
      %1756 = vmatmul.mubr.bf16.gmra.mrb[0].mxu0 %v1264
      %v1757 = vpop.f32.mrb[0].mxu0
      %v1758 = vadd.f32 0.0, %v1757
      %v1759 = vpop.f32.mrb[0].mxu0
      %v1760 = vpop.f32.mrb[0].mxu0
      %v1761 = vadd.f32 0.0, %v1760
      %v1762 = vpop.f32.mrb[0].mxu0
      %1763 = vmatprep.mubr.bf16.mxu0 0
      %1764 = vmatmul.mubr.bf16.gmra.mrb[0].mxu0 %v1670
      %v1765 = vpop.f32.mrb[0].mxu0
      %v1766 = vadd.f32 0.0, %v1765
      %v1767 = vpop.f32.mrb[0].mxu0
      %v1768 = vpop.f32.mrb[0].mxu0
      %v1769 = vadd.f32 0.0, %v1768
      %v1770 = vpop.f32.mrb[0].mxu0
      %1771 = vdwg.mxu0
      %v1772 = vadd.f32 %v1640, %v1710
      %v1773 = vadd.f32 %v1641, %v1713
      %v1774 = vadd.f32 %v1642, %v1718
      %v1775 = vadd.f32 %v1643, %v1721
      %v1776 = vadd.f32 %v1644, %v1726
      %v1777 = vadd.f32 %v1645, %v1729
      %v1778 = vadd.f32 %v1646, %v1734
      %v1779 = vadd.f32 %v1647, %v1737
      %v1780 = vadd.f32 %v1648, %v1742
      %v1781 = vadd.f32 %v1649, %v1745
      %v1782 = vadd.f32 %v1650, %v1750
      %v1783 = vadd.f32 %v1651, %v1753
      %v1784 = vadd.f32 %v1652, %v1758
      %v1785 = vadd.f32 %v1653, %v1761
      %v1786 = vadd.f32 %v1654, %v1766
      %v1787 = vadd.f32 %v1655, %v1769
      %v1788 = vld [vmem:[%s2] sm:$0x1]
      %v1790 = vlaneseq
      %v1791 = vshrl.u32 %v1790, 7
      %v1792 = vsub.s32 0, %v1791
      %v1793 = vrot.slane %v1788, %v1792
      %v1795 = vadd.f32 %v1772, %v1793
      %v1796 = vadd.f32 %v1773, %v1793
      %v1797 = vadd.f32 %v1774, %v1793
      %v1798 = vadd.f32 %v1775, %v1793
      %v1799 = vadd.f32 %v1776, %v1793
      %v1800 = vadd.f32 %v1777, %v1793
      %v1801 = vadd.f32 %v1778, %v1793
      %v1802 = vadd.f32 %v1779, %v1793
      %v1803 = vadd.f32 %v1780, %v1793
      %v1804 = vadd.f32 %v1781, %v1793
      %v1805 = vadd.f32 %v1782, %v1793
      %v1806 = vadd.f32 %v1783, %v1793
      %v1807 = vadd.f32 %v1784, %v1793
      %v1808 = vadd.f32 %v1785, %v1793
      %v1809 = vadd.f32 %v1786, %v1793
      %v1810 = vadd.f32 %v1787, %v1793
      %v1811 = vmax.f32 %v1795, 0.0
      %v1812 = vmax.f32 %v1796, 0.0
      %v1813 = vmax.f32 %v1797, 0.0
      %v1814 = vmax.f32 %v1798, 0.0
      %v1815 = vmax.f32 %v1799, 0.0
      %v1816 = vmax.f32 %v1800, 0.0
      %v1817 = vmax.f32 %v1801, 0.0
      %v1818 = vmax.f32 %v1802, 0.0
      %v1819 = vmax.f32 %v1803, 0.0
      %v1820 = vmax.f32 %v1804, 0.0
      %v1821 = vmax.f32 %v1805, 0.0
      %v1822 = vmax.f32 %v1806, 0.0
      %v1823 = vmax.f32 %v1807, 0.0
      %v1824 = vmax.f32 %v1808, 0.0
      %v1825 = vmax.f32 %v1809, 0.0
      %v1826 = vmax.f32 %v1810, 0.0
      %v1827 = vpack.c.bf16 %v1812, %v1811
      %v1828 = vpack.c.bf16 %v1814, %v1813
      %v1829 = vpack.c.bf16 %v1816, %v1815
      %v1830 = vpack.c.bf16 %v1818, %v1817
      %v1831 = vpack.c.bf16 %v1820, %v1819
      %v1832 = vpack.c.bf16 %v1822, %v1821
      %v1833 = vpack.c.bf16 %v1824, %v1823
      %v1834 = vpack.c.bf16 %v1826, %v1825
      %v1843 = vunpack.c.l.b16 %v1827
      %v1844 = vunpack.c.h.b16 %v1827
      %v1845 = vunpack.c.l.b16 %v1828
      %v1846 = vunpack.c.h.b16 %v1828
      %v1847 = vunpack.c.l.b16 %v1829
      %v1848 = vunpack.c.h.b16 %v1829
      %v1849 = vunpack.c.l.b16 %v1830
      %v1850 = vunpack.c.h.b16 %v1830
      %v1851 = vunpack.c.l.b16 %v1831
      %v1852 = vunpack.c.h.b16 %v1831
      %v1853 = vunpack.c.l.b16 %v1832
      %v1854 = vunpack.c.h.b16 %v1832
      %v1855 = vunpack.c.l.b16 %v1833
      %v1856 = vunpack.c.h.b16 %v1833
      %v1857 = vunpack.c.l.b16 %v1834
      %v1858 = vunpack.c.h.b16 %v1834
      %v1859 = vpack.c.b16 %v1843, %v1843
      %v1860 = vpack.c.b16 %v1844, %v1844
      %v1861 = vpack.c.b16 %v1845, %v1845
      %v1862 = vpack.c.b16 %v1846, %v1846
      %v1863 = vpack.c.b16 %v1847, %v1847
      %v1864 = vpack.c.b16 %v1848, %v1848
      %v1865 = vpack.c.b16 %v1849, %v1849
      %v1866 = vpack.c.b16 %v1850, %v1850
      %v1867 = vpack.c.b16 %v1851, %v1851
      %v1868 = vpack.c.b16 %v1852, %v1852
      %v1869 = vpack.c.b16 %v1853, %v1853
      %v1870 = vpack.c.b16 %v1854, %v1854
      %v1871 = vpack.c.b16 %v1855, %v1855
      %v1872 = vpack.c.b16 %v1856, %v1856
      %v1873 = vpack.c.b16 %v1857, %v1857
      %v1874 = vpack.c.b16 %v1858, %v1858
      %vm1891 = vcmask 257024
      %1892 = vst.msk [vmem:[%s194] sm:$0xf] %vm1891, %v1859
      %1893 = vst.msk [vmem:[%s194 + $0x4] sm:$0xf] %vm1891, %v1860
      %1894 = vst.msk [vmem:[%s194 + $0x8] sm:$0xf] %vm1891, %v1861
      %1895 = vst.msk [vmem:[%s194 + $0xc] sm:$0xf] %vm1891, %v1862
      %1896 = vst.msk [vmem:[%s194 + $0x10] sm:$0xf] %vm1891, %v1863
      %1897 = vst.msk [vmem:[%s194 + $0x14] sm:$0xf] %vm1891, %v1864
      %1898 = vst.msk [vmem:[%s194 + $0x18] sm:$0xf] %vm1891, %v1865
      %1899 = vst.msk [vmem:[%s194 + $0x1c] sm:$0xf] %vm1891, %v1866
      %1900 = vst.msk [vmem:[%s194 + $0x20] sm:$0xf] %vm1891, %v1867
      %1901 = vst.msk [vmem:[%s194 + $0x24] sm:$0xf] %vm1891, %v1868
      %1902 = vst.msk [vmem:[%s194 + $0x28] sm:$0xf] %vm1891, %v1869
      %1903 = vst.msk [vmem:[%s194 + $0x2c] sm:$0xf] %vm1891, %v1870
      %1904 = vst.msk [vmem:[%s194 + $0x30] sm:$0xf] %vm1891, %v1871
      %1905 = vst.msk [vmem:[%s194 + $0x34] sm:$0xf] %vm1891, %v1872
      %1906 = vst.msk [vmem:[%s194 + $0x38] sm:$0xf] %vm1891, %v1873
      %1907 = vst.msk [vmem:[%s194 + $0x3c] sm:$0xf] %vm1891, %v1874
      %s1908 = smul.u32 8, %s19
      %p1909 = scmp.lt.s32.totalorder %s18, 1
      %s1910 = scalar_select %p1909, %s18, 1
      %p1911 = scmp.lt.s32.totalorder %s1908, 15
      %s1912 = scalar_select %p1911, %s1908, 15
      %s1913 = smul.addr %s1912, 2
      %s1914 = smul.addr %s1910, 32
      %s1915 = sadd.s32 %s1913, %s1914
      %s1916 = smul.addr %s1915, 4
      %s1917 = scalar_lea.vmem %s3, %s1916
      // Predicated region
      $region33: #{_uaca_forward.6} parent=31 // pred_check
        %p1918 = pneg %p114
      $region34: #{_uaca_forward.6} parent=31 // pred_check_branch
        %1920 = sbr.rel (%p1918) target = $region36
      $region35: #{_uaca_forward.6} parent=31 // pred_region
        %s1921 = smul.u32 8, %s19
      $region36: #{_uaca_forward.6} parent=31 // pred_fallthru
        _
    $region32: #{_uaca_forward.6} parent=5 // pred_fallthru
      _
    %p1922 = scmp.le.s32.totalorder 2, %s9
    // Predicated region
    $region37: #{_uaca_forward.6} parent=5 // pred_check
      %p1923 = pneg %p1922
    $region38: #{_uaca_forward.6} parent=5 // pred_check_branch
      %1925 = sbr.rel (%p1923) target = $region40
    $region39: #{_uaca_forward.6} parent=5 // pred_region
      %s1926 = ssub.s32 %s9, 2
      // Predicated region
      $region41: #{_uaca_forward.6} parent=39 // pred_check
        %p1927 = pneg %p120
      $region42: #{_uaca_forward.6} parent=39 // pred_check_branch
        %1929 = sbr.rel (%p1927) target = $region44
      $region43: #{_uaca_forward.6} parent=39 // pred_region
        %s1930 = smul.u32 8, %s21
        %p1931 = scmp.lt.s32.totalorder %s20, 1
        %s1932 = scalar_select %p1931, %s20, 1
        %p1933 = scmp.lt.s32.totalorder %s1930, 15
        %s1934 = scalar_select %p1933, %s1930, 15
        %s1935 = smul.addr %s1934, 2
        %s1936 = smul.addr %s1932, 32
        %s1937 = sadd.s32 %s1935, %s1936
        %s1938 = smul.addr %s1937, 4
        %s1939 = scalar_lea.vmem %s3, %s1938
      $region44: #{_uaca_forward.6} parent=39 // pred_fallthru
        _
    $region40: #{_uaca_forward.6} parent=5 // pred_fallthru
      _
  $region6: #{_uaca_forward.6} parent=0 // loop_footer
    %s13 = sadd.s32 1, %s9
  $region7: #{_uaca_forward.6} parent=0 // loop_footer_branch
    %8 = sbr.rel target = $region3
  $region8: #{_uaca_forward.6} parent=0 // loop_exit
    _

// kernel: _uaca_forward.7
$region0: #{_uaca_forward.7}
  #allocation0 [shape = 'u32[]', space=smem, size = 0x4, offset = 0x4, fixed_abs, tag = 'smem constant byte address 0x4 - core index']
  #allocation1 [shape = 'u32[144,128]{1,0:T(1,128)}', space=vmem, size = 0x12000, scoped, tag = 'internal scratch']
  %s0 = inlined_call_operand.vmem [shape: bf16[2,18,18,32], index: 0, kind: input, shape index: {}]
  %s1 = inlined_call_operand.vmem [shape: bf16[9,32,32], index: 1, kind: input, shape index: {}]
  %s2 = inlined_call_operand.vmem [shape: f32[1,32], index: 2, kind: input, shape index: {}]
  %s3 = inlined_call_operand.vmem [shape: bf16[2,16,16,32], index: 3, kind: output, shape index: {}]
  %s4 = sld [smem:[#allocation0]]
  $region45: #{_uaca_forward.7} parent=0
    _
  %s6 = ssub.s32 1, %s4
  %s7 = scalar_select 0, %s6, %s4
  loop: start=0, step=1, limit=6
  $region2: #{_uaca_forward.7} parent=0 // loop_pre_header
    _
  $region3: #{_uaca_forward.7} parent=0 // loop_header
    %s9 = sphi 0, %s13
    %p10 = scmp.ge.s32.totalorder %s9, 6
    %s16 = sphi 0, %s28
    %s17 = sphi 0, %s24
    %s18 = sphi 0, %s16
    %s19 = sphi 0, %s17
    %s20 = sphi 0, %s18
    %s21 = sphi 0, %s19
    %s31 = sphi 0, %s33
    %s34 = sphi 0, %s31
    %s35 = sphi 0, %s34
    %s51 = sphi 0, %s35
    %s55 = sphi 0, %s55
    %s57 = sphi 0, %s55
    %s58 = sphi 0, %s57
    %s72 = sphi 0, %s58
    %s76 = sphi 0, %s76
    %s78 = sphi 0, %s76
    %s79 = sphi 0, %s78
    %s93 = sphi 0, %s79
    %s101 = sphi 0, %s103
    %s104 = sphi 0, %s101
    %s105 = sphi 0, %s104
    %s121 = sphi 0, %s105
  $region4: #{_uaca_forward.7} parent=0 // loop_header_branch
    %12 = sbr.rel (%p10) target = $region8
  $region5: #{_uaca_forward.7} parent=0 // loop_body
    %s14 = ssub.s32 %s9, 1
    %s15 = ssub.s32 %s9, 2
    %s22 = sadd.s32 1, %s17
    %p23 = scmp.ge.s32.totalorder %s22, 2
    %s24 = scalar_select %p23, 0, %s22
    %s25 = sadd.s32 1, %s16
    %s26 = scalar_select %p23, %s25, %s16
    %p27 = scmp.ge.s32.totalorder %s26, 2
    %s28 = scalar_select %p27, 0, %s26
    %s29 = ssub.s32 %s16, %s28
    %p30 = scmp.eq.s32.totalorder %s29, 0
    %s32 = sadd.s32 %s31, 1
    %s33 = scalar_select %p30, %s31, %s32
    %p36 = pneg %p30
    %p37 = scmp.eq.s32.totalorder %s9, 3
    %p38 = por %p36, %p37
    %p39 = scmp.ne.s32.totalorder %s31, %s34
    %p40 = scmp.eq.s32.totalorder %s9, 0
    %p41 = por %p39, %p40
    %p42 = scmp.ne.s32.totalorder %s31, %s34
    %p43 = scmp.eq.s32.totalorder %s14, 3
    %p44 = por %p42, %p43
    %p45 = scmp.ne.s32.totalorder %s34, %s35
    %p46 = scmp.eq.s32.totalorder %s14, 0
    %p47 = por %p45, %p46
    %p48 = scmp.ne.s32.totalorder %s34, %s35
    %p49 = scmp.eq.s32.totalorder %s15, 3
    %p50 = por %p48, %p49
    %p52 = scmp.ne.s32.totalorder %s35, %s51
    %p53 = scmp.eq.s32.totalorder %s15, 0
    %p54 = por %p52, %p53
    %s56 = sadd.s32 %s55, 1
    %p59 = scmp.eq.s32.totalorder %s9, 3
    %p60 = scmp.ne.s32.totalorder %s55, %s57
    %p61 = scmp.eq.s32.totalorder %s9, 0
    %p62 = por %p60, %p61
    %p63 = scmp.ne.s32.totalorder %s55, %s57
    %p64 = scmp.eq.s32.totalorder %s14, 3
    %p65 = por %p63, %p64
    %p66 = scmp.ne.s32.totalorder %s57, %s58
    %p67 = scmp.eq.s32.totalorder %s14, 0
    %p68 = por %p66, %p67
    %p69 = scmp.ne.s32.totalorder %s57, %s58
    %p70 = scmp.eq.s32.totalorder %s15, 3
    %p71 = por %p69, %p70
    %p73 = scmp.ne.s32.totalorder %s58, %s72
    %p74 = scmp.eq.s32.totalorder %s15, 0
    %p75 = por %p73, %p74
    %s77 = sadd.s32 %s76, 1
    %p80 = scmp.eq.s32.totalorder %s9, 3
    %p81 = scmp.ne.s32.totalorder %s76, %s78
    %p82 = scmp.eq.s32.totalorder %s9, 0
    %p83 = por %p81, %p82
    %p84 = scmp.ne.s32.totalorder %s76, %s78
    %p85 = scmp.eq.s32.totalorder %s14, 3
    %p86 = por %p84, %p85
    %p87 = scmp.ne.s32.totalorder %s78, %s79
    %p88 = scmp.eq.s32.totalorder %s14, 0
    %p89 = por %p87, %p88
    %p90 = scmp.ne.s32.totalorder %s78, %s79
    %p91 = scmp.eq.s32.totalorder %s15, 3
    %p92 = por %p90, %p91
    %p94 = scmp.ne.s32.totalorder %s79, %s93
    %p95 = scmp.eq.s32.totalorder %s15, 0
    %p96 = por %p94, %p95
    %s97 = ssub.s32 %s16, %s28
    %s98 = ssub.s32 %s17, %s24
    %s99 = sor.u32 %s97, %s98
    %p100 = scmp.eq.s32.totalorder %s99, 0
    %s102 = sadd.s32 %s101, 1
    %s103 = scalar_select %p100, %s101, %s102
    %p106 = pneg %p100
    %p107 = scmp.eq.s32.totalorder %s9, 3
    %p108 = por %p106, %p107
    %p109 = scmp.ne.s32.totalorder %s101, %s104
    %p110 = scmp.eq.s32.totalorder %s9, 0
    %p111 = por %p109, %p110
    %p112 = scmp.ne.s32.totalorder %s101, %s104
    %p113 = scmp.eq.s32.totalorder %s14, 3
    %p114 = por %p112, %p113
    %p115 = scmp.ne.s32.totalorder %s104, %s105
    %p116 = scmp.eq.s32.totalorder %s14, 0
    %p117 = por %p115, %p116
    %p118 = scmp.ne.s32.totalorder %s104, %s105
    %p119 = scmp.eq.s32.totalorder %s15, 3
    %p120 = por %p118, %p119
    %p122 = scmp.ne.s32.totalorder %s105, %s121
    %p123 = scmp.eq.s32.totalorder %s15, 0
    %p124 = por %p122, %p123
    %p125 = scmp.le.s32.totalorder 1, %s9
    %p126 = scmp.lt.s32.totalorder %s9, 5
    %p127 = pnand %p125, %p126
    %p128 = pneg %p127
    // Predicated region
    $region9: #{_uaca_forward.7} parent=5 // pred_check
      _
    $region10: #{_uaca_forward.7} parent=5 // pred_check_branch
      %130 = sbr.rel (%p127) target = $region12
    $region11: #{_uaca_forward.7} parent=5 // pred_region
      %s131 = ssub.s32 %s9, 1
      // Predicated region
      $region13: #{_uaca_forward.7} parent=11 // pred_check
        %p132 = pneg %p68
      $region14: #{_uaca_forward.7} parent=11 // pred_check_branch
        %134 = sbr.rel (%p132) target = $region16
      $region15: #{_uaca_forward.7} parent=11 // pred_region
        _
      $region16: #{_uaca_forward.7} parent=11 // pred_fallthru
        _
      // Predicated region
      $region17: #{_uaca_forward.7} parent=11 // pred_check
        %p135 = pneg %p89
      $region18: #{_uaca_forward.7} parent=11 // pred_check_branch
        %137 = sbr.rel (%p135) target = $region20
      $region19: #{_uaca_forward.7} parent=11 // pred_region
        _
      $region20: #{_uaca_forward.7} parent=11 // pred_fallthru
        _
    $region12: #{_uaca_forward.7} parent=5 // pred_fallthru
      _
    %p138 = scmp.lt.s32.totalorder %s9, 4
    // Predicated region
    $region21: #{_uaca_forward.7} parent=5 // pred_check
      %p139 = pneg %p138
    $region22: #{_uaca_forward.7} parent=5 // pred_check_branch
      %141 = sbr.rel (%p139) target = $region24
    $region23: #{_uaca_forward.7} parent=5 // pred_region
      // Predicated region
      $region25: #{_uaca_forward.7} parent=23 // pred_check
        %p142 = pneg %p41
      $region26: #{_uaca_forward.7} parent=23 // pred_check_branch
        %144 = sbr.rel (%p142) target = $region28
      $region27: #{_uaca_forward.7} parent=23 // pred_region
        %p145 = scmp.lt.s32.totalorder %s16, 1
        %s146 = scalar_select %p145, %s16, 1
        %s147 = smul.addr %s146, 54
        %s148 = smul.addr %s147, 4
        %s149 = scalar_lea.vmem %s0, %s148
      $region28: #{_uaca_forward.7} parent=23 // pred_fallthru
        _
    $region24: #{_uaca_forward.7} parent=5 // pred_fallthru
      _
    %p150 = scmp.le.s32.totalorder 1, %s9
    %p151 = scmp.lt.s32.totalorder %s9, 5
    %p152 = pnand %p150, %p151
    %p153 = pneg %p152
    // Predicated region
    $region29: #{_uaca_forward.7} parent=5 // pred_check
      _
    $region30: #{_uaca_forward.7} parent=5 // pred_check_branch
      %155 = sbr.rel (%p152) target = $region32
    $region31: #{_uaca_forward.7} parent=5 // pred_region
      %s156 = ssub.s32 %s9, 1
      %p157 = scmp.lt.s32.totalorder %s18, 1
      %s158 = scalar_select %p157, %s18, 1
      %s159 = smul.addr %s158, 54
      %s160 = smul.addr %s159, 4
      %s161 = scalar_lea.vmem %s0, %s160
      %p162 = pneg %p47
      %p163 = pneg %p44
      %p164 = pneg %p68
      %p165 = pneg %p65
      %p166 = pneg %p89
      %p167 = pneg %p86
      %p168 = pneg %p117
      %p169 = pneg %p114
      %s170 = smul.u32 8, %s19
      %p171 = scmp.lt.s32.totalorder %s18, 1
      %s172 = scalar_select %p171, %s18, 1
      %p173 = scmp.lt.s32.totalorder %s170, 15
      %s174 = scalar_select %p173, %s170, 15
      %s175 = smul.addr %s174, 2
      %s176 = smul.addr %s172, 32
      %s177 = sadd.s32 %s175, %s176
      %s178 = smul.addr %s177, 4
      %s179 = scalar_lea.vmem %s3, %s178
      %p180 = scmp.lt.s32.totalorder %s18, 1
      %s181 = scalar_select %p180, %s18, 1
      %s182 = smul.addr %s181, 54
      %s183 = smul.addr %s182, 4
      %s184 = scalar_lea.vmem %s0, %s183
      %s185 = smul.u32 8, %s19
      %p186 = scmp.lt.s32.totalorder %s18, 1
      %s187 = scalar_select %p186, %s18, 1
      %p188 = scmp.lt.s32.totalorder %s185, 15
      %s189 = scalar_select %p188, %s185, 15
      %s190 = smul.addr %s189, 2
      %s191 = smul.addr %s187, 32
      %s192 = sadd.s32 %s190, %s191
      %s193 = smul.addr %s192, 4
      %s194 = scalar_lea.vmem %s3, %s193
      %s195 = smul.u32 8, %s19
      %s197 = smul.u32 %s19, 8
      %s198 = smul.u32 %s197, 3
      %s199 = smul.addr %s198, 4
      %s200 = scalar_lea.vmem %s184, %s199
      %v201 = vld [vmem:[%s200] sm:$0xf]
      %v202 = vld [vmem:[%s200 + $0x4] sm:$0xf]
      %v203 = vld [vmem:[%s200 + $0x8] sm:$0x1]
      %v204 = vld [vmem:[%s200 + $0xc] sm:$0xf]
      %v205 = vld [vmem:[%s200 + $0x10] sm:$0xf]
      %v206 = vld [vmem:[%s200 + $0x14] sm:$0x1]
      %v207 = vld [vmem:[%s200 + $0x18] sm:$0xf]
      %v208 = vld [vmem:[%s200 + $0x1c] sm:$0xf]
      %v209 = vld [vmem:[%s200 + $0x20] sm:$0x1]
      %v210 = vld [vmem:[%s200 + $0x24] sm:$0xf]
      %v211 = vld [vmem:[%s200 + $0x28] sm:$0xf]
      %v212 = vld [vmem:[%s200 + $0x2c] sm:$0x1]
      %v213 = vld [vmem:[%s200 + $0x30] sm:$0xf]
      %v214 = vld [vmem:[%s200 + $0x34] sm:$0xf]
      %v215 = vld [vmem:[%s200 + $0x38] sm:$0x1]
      %v216 = vld [vmem:[%s200 + $0x3c] sm:$0xf]
      %v217 = vld [vmem:[%s200 + $0x40] sm:$0xf]
      %v218 = vld [vmem:[%s200 + $0x44] sm:$0x1]
      %v219 = vld [vmem:[%s200 + $0x48] sm:$0xf]
      %v220 = vld [vmem:[%s200 + $0x4c] sm:$0xf]
      %v221 = vld [vmem:[%s200 + $0x50] sm:$0x1]
      %v222 = vld [vmem:[%s200 + $0x54] sm:$0xf]
      %v223 = vld [vmem:[%s200 + $0x58] sm:$0xf]
      %v224 = vld [vmem:[%s200 + $0x5c] sm:$0x1]
      %v225 = vld [vmem:[%s200 + $0x60] sm:$0xf]
      %v226 = vld [vmem:[%s200 + $0x64] sm:$0xf]
      %v227 = vld [vmem:[%s200 + $0x68] sm:$0x1]
      %v228 = vld [vmem:[%s200 + $0x6c] sm:$0xf]
      %v229 = vld [vmem:[%s200 + $0x70] sm:$0xf]
      %v230 = vld [vmem:[%s200 + $0x74] sm:$0x1]
      %v231 = vld [vmem:[%s1] sm:$0xf]
      %v232 = vld [vmem:[%s1 + $0x4] sm:$0xf]
      %v233 = vld [vmem:[%s1 + $0x8] sm:$0xf]
      %v234 = vld [vmem:[%s1 + $0xc] sm:$0xf]
      %vm235 = vsmask.f32 3328
      %vm236 = vsmask.f32 7440
      %vm237 = vmor %vm235, %vm236
      %v239 = vshrl.u32 %v201, 16
      %v241 = vrot.slane %v239, 4
      %v242 = vshll.u32 %v201, 16
      %v244 = vrot.slane %v242, 5
      %v245 = vor.u32 %v241, %v244
      %v246 = vrot.slane %v245, 4
      %v248 = vshll.u32 %v202, 16
      %v250 = vrot.slane %v248, 5
      %v251 = vsel %vm237, %v246, %v250
      %v252 = vshrl.u32 %v202, 16
      %v254 = vrot.slane %v252, 4
      %v255 = vor.u32 %v254, %v250
      %v256 = vrot.slane %v255, 4
      %v258 = vshll.u32 %v203, 16
      %v260 = vrot.slane %v258, 5
      %v261 = vsel %vm237, %v256, %v260
      %v263 = vshrl.u32 %v204, 16
      %v265 = vrot.slane %v263, 4
      %v266 = vshll.u32 %v204, 16
      %v268 = vrot.slane %v266, 5
      %v269 = vor.u32 %v265, %v268
      %v270 = vrot.slane %v269, 4
      %v272 = vshll.u32 %v205, 16
      %v274 = vrot.slane %v272, 5
      %v275 = vsel %vm237, %v270, %v274
      %v276 = vshrl.u32 %v205, 16
      %v278 = vrot.slane %v276, 4
      %v279 = vor.u32 %v278, %v274
      %v280 = vrot.slane %v279, 4
      %v282 = vshll.u32 %v206, 16
      %v284 = vrot.slane %v282, 5
      %v285 = vsel %vm237, %v280, %v284
      %v287 = vshrl.u32 %v207, 16
      %v289 = vrot.slane %v287, 4
      %v290 = vshll.u32 %v207, 16
      %v292 = vrot.slane %v290, 5
      %v293 = vor.u32 %v289, %v292
      %v294 = vrot.slane %v293, 4
      %v296 = vshll.u32 %v208, 16
      %v298 = vrot.slane %v296, 5
      %v299 = vsel %vm237, %v294, %v298
      %v300 = vshrl.u32 %v208, 16
      %v302 = vrot.slane %v300, 4
      %v303 = vor.u32 %v302, %v298
      %v304 = vrot.slane %v303, 4
      %v306 = vshll.u32 %v209, 16
      %v308 = vrot.slane %v306, 5
      %v309 = vsel %vm237, %v304, %v308
      %v311 = vshrl.u32 %v210, 16
      %v313 = vrot.slane %v311, 4
      %v314 = vshll.u32 %v210, 16
      %v316 = vrot.slane %v314, 5
      %v317 = vor.u32 %v313, %v316
      %v318 = vrot.slane %v317, 4
      %v320 = vshll.u32 %v211, 16
      %v322 = vrot.slane %v320, 5
      %v323 = vsel %vm237, %v318, %v322
      %v324 = vshrl.u32 %v211, 16
      %v326 = vrot.slane %v324, 4
      %v327 = vor.u32 %v326, %v322
      %v328 = vrot.slane %v327, 4
      %v330 = vshll.u32 %v212, 16
      %v332 = vrot.slane %v330, 5
      %v333 = vsel %vm237, %v328, %v332
      %v335 = vshrl.u32 %v213, 16
      %v337 = vrot.slane %v335, 4
      %v338 = vshll.u32 %v213, 16
      %v340 = vrot.slane %v338, 5
      %v341 = vor.u32 %v337, %v340
      %v342 = vrot.slane %v341, 4
      %v344 = vshll.u32 %v214, 16
      %v346 = vrot.slane %v344, 5
      %v347 = vsel %vm237, %v342, %v346
      %v348 = vshrl.u32 %v214, 16
      %v350 = vrot.slane %v348, 4
      %v351 = vor.u32 %v350, %v346
      %v352 = vrot.slane %v351, 4
      %v354 = vshll.u32 %v215, 16
      %v356 = vrot.slane %v354, 5
      %v357 = vsel %vm237, %v352, %v356
      %v359 = vshrl.u32 %v216, 16
      %v361 = vrot.slane %v359, 4
      %v362 = vshll.u32 %v216, 16
      %v364 = vrot.slane %v362, 5
      %v365 = vor.u32 %v361, %v364
      %v366 = vrot.slane %v365, 4
      %v368 = vshll.u32 %v217, 16
      %v370 = vrot.slane %v368, 5
      %v371 = vsel %vm237, %v366, %v370
      %v372 = vshrl.u32 %v217, 16
      %v374 = vrot.slane %v372, 4
      %v375 = vor.u32 %v374, %v370
      %v376 = vrot.slane %v375, 4
      %v378 = vshll.u32 %v218, 16
      %v380 = vrot.slane %v378, 5
      %v381 = vsel %vm237, %v376, %v380
      %v383 = vshrl.u32 %v219, 16
      %v385 = vrot.slane %v383, 4
      %v386 = vshll.u32 %v219, 16
      %v388 = vrot.slane %v386, 5
      %v389 = vor.u32 %v385, %v388
      %v390 = vrot.slane %v389, 4
      %v392 = vshll.u32 %v220, 16
      %v394 = vrot.slane %v392, 5
      %v395 = vsel %vm237, %v390, %v394
      %v396 = vshrl.u32 %v220, 16
      %v398 = vrot.slane %v396, 4
      %v399 = vor.u32 %v398, %v394
      %v400 = vrot.slane %v399, 4
      %v402 = vshll.u32 %v221, 16
      %v404 = vrot.slane %v402, 5
      %v405 = vsel %vm237, %v400, %v404
      %v407 = vshrl.u32 %v222, 16
      %v409 = vrot.slane %v407, 4
      %v410 = vshll.u32 %v222, 16
      %v412 = vrot.slane %v410, 5
      %v413 = vor.u32 %v409, %v412
      %v414 = vrot.slane %v413, 4
      %v416 = vshll.u32 %v223, 16
      %v418 = vrot.slane %v416, 5
      %v419 = vsel %vm237, %v414, %v418
      %v420 = vshrl.u32 %v223, 16
      %v422 = vrot.slane %v420, 4
      %v423 = vor.u32 %v422, %v418
      %v424 = vrot.slane %v423, 4
      %v426 = vshll.u32 %v224, 16
      %v428 = vrot.slane %v426, 5
      %v429 = vsel %vm237, %v424, %v428
      %s430 = scalar_lea.vmem %s1, 16
      %v431 = vld [vmem:[%s430] sm:$0xf]
      %v432 = vld [vmem:[%s430 + $0x4] sm:$0xf]
      %v433 = vld [vmem:[%s430 + $0x8] sm:$0xf]
      %v434 = vld [vmem:[%s430 + $0xc] sm:$0xf]
      %v435 = vunpack.c.l.b16 %v251
      %v436 = vunpack.c.l.b16 %v261
      %v437 = vunpack.c.l.b16 %v275
      %v438 = vunpack.c.l.b16 %v285
      %v439 = vunpack.c.l.b16 %v299
      %v440 = vunpack.c.l.b16 %v309
      %v441 = vunpack.c.l.b16 %v323
      %v442 = vunpack.c.l.b16 %v333
      %v443 = vunpack.c.l.b16 %v347
      %v444 = vunpack.c.l.b16 %v357
      %v445 = vunpack.c.l.b16 %v371
      %v446 = vunpack.c.l.b16 %v381
      %v447 = vunpack.c.l.b16 %v395
      %v448 = vunpack.c.l.b16 %v405
      %v449 = vunpack.c.l.b16 %v419
      %v450 = vunpack.c.l.b16 %v429
      %v451 = vpack.c.b16 %v436, %v435
      %v452 = vpack.c.b16 %v438, %v437
      %v453 = vpack.c.b16 %v440, %v439
      %v454 = vpack.c.b16 %v442, %v441
      %v455 = vpack.c.b16 %v444, %v443
      %v456 = vpack.c.b16 %v446, %v445
      %v457 = vpack.c.b16 %v448, %v447
      %v458 = vpack.c.b16 %v450, %v449
      %v463 = vunpack.c.l.b16 %v431
      %v464 = vunpack.c.l.b16 %v432
      %v465 = vunpack.c.l.b16 %v433
      %v466 = vunpack.c.l.b16 %v434
      %v467 = vpack.c.b16 %v464, %v463
      %v468 = vpack.c.b16 %v466, %v465
      %vm471 = vcmask 261120
      %v473 = vsel %vm471, %v451, 0
      %v476 = vsel %vm471, %v452, 0
      %v479 = vsel %vm471, %v453, 0
      %v482 = vsel %vm471, %v454, 0
      %v485 = vsel %vm471, %v455, 0
      %v488 = vsel %vm471, %v456, 0
      %v491 = vsel %vm471, %v457, 0
      %v494 = vsel %vm471, %v458, 0
      %496 = vmatprep.subr.bf16.mxu0 0
      %497 = vmatpush1.bf16.msra.mxu0 %v467
      %498 = vmatprep.subr.bf16.mxu0 0
      %499 = vmatpush1.bf16.msra.mxu0 %v468
      %500 = vmatprep.subr.bf16.mxu0 0
      %501 = vmatpush1.bf16.msra.mxu0 0
      %502 = vmatprep.subr.bf16.mxu0 0
      %503 = vmatpush1.bf16.msra.mxu0 0
      %504 = vmatprep.subr.bf16.mxu0 0
      %505 = vmatpush1.bf16.msra.mxu0 0
      %506 = vmatprep.subr.bf16.mxu0 0
      %507 = vmatpush1.bf16.msra.mxu0 0
      %508 = vmatprep.subr.bf16.mxu0 0
      %509 = vmatpush1.bf16.msra.mxu0 0
      %510 = vmatprep.subr.bf16.mxu0 0
      %511 = vmatpush1.bf16.msra.mxu0 0
      %512 = vmatprep.subr.bf16.mxu0 0
      %513 = vmatpush1.bf16.msra.mxu0 0
      %514 = vmatprep.subr.bf16.mxu0 0
      %515 = vmatpush1.bf16.msra.mxu0 0
      %516 = vmatprep.subr.bf16.mxu0 0
      %517 = vmatpush1.bf16.msra.mxu0 0
      %518 = vmatprep.subr.bf16.mxu0 0
      %519 = vmatpush1.bf16.msra.mxu0 0
      %520 = vmatprep.subr.bf16.mxu0 0
      %521 = vmatpush1.bf16.msra.mxu0 0
      %522 = vmatprep.subr.bf16.mxu0 0
      %523 = vmatpush1.bf16.msra.mxu0 0
      %524 = vmatprep.subr.bf16.mxu0 0
      %525 = vmatpush1.bf16.msra.mxu0 0
      %526 = vmatprep.subr.bf16.mxu0 0
      %527 = vmatpush1.bf16.msra.mxu0 0
      %528 = vmatprep.mubr.bf16.mxu0 0
      %529 = vmatmul.mubr.bf16.gmra.mrb[0].mxu0 %v473
      %v530 = vpop.f32.mrb[0].mxu0
      %v531 = vadd.f32 0.0, %v530
      %v532 = vpop.f32.mrb[0].mxu0
      %v533 = vpop.f32.mrb[0].mxu0
      %v534 = vadd.f32 0.0, %v533
      %v535 = vpop.f32.mrb[0].mxu0
      %536 = vmatprep.mubr.bf16.mxu0 0
      %537 = vmatmul.mubr.bf16.gmra.mrb[0].mxu0 %v476
      %v538 = vpop.f32.mrb[0].mxu0
      %v539 = vadd.f32 0.0, %v538
      %v540 = vpop.f32.mrb[0].mxu0
      %v541 = vpop.f32.mrb[0].mxu0
      %v542 = vadd.f32 0.0, %v541
      %v543 = vpop.f32.mrb[0].mxu0
      %544 = vmatprep.mubr.bf16.mxu0 0
      %545 = vmatmul.mubr.bf16.gmra.mrb[0].mxu0 %v479
      %v546 = vpop.f32.mrb[0].mxu0
      %v547 = vadd.f32 0.0, %v546
      %v548 = vpop.f32.mrb[0].mxu0
      %v549 = vpop.f32.mrb[0].mxu0
      %v550 = vadd.f32 0.0, %v549
      %v551 = vpop.f32.mrb[0].mxu0
      %552 = vmatprep.mubr.bf16.mxu0 0
      %553 = vmatmul.mubr.bf16.gmra.mrb[0].mxu0 %v482
      %v554 = vpop.f32.mrb[0].mxu0
      %v555 = vadd.f32 0.0, %v554
      %v556 = vpop.f32.mrb[0].mxu0
      %v557 = vpop.f32.mrb[0].mxu0
      %v558 = vadd.f32 0.0, %v557
      %v559 = vpop.f32.mrb[0].mxu0
      %560 = vmatprep.mubr.bf16.mxu0 0
      %561 = vmatmul.mubr.bf16.gmra.mrb[0].mxu0 %v485
      %v562 = vpop.f32.mrb[0].mxu0
      %v563 = vadd.f32 0.0, %v562
      %v564 = vpop.f32.mrb[0].mxu0
      %v565 = vpop.f32.mrb[0].mxu0
      %v566 = vadd.f32 0.0, %v565
      %v567 = vpop.f32.mrb[0].mxu0
      %568 = vmatprep.mubr.bf16.mxu0 0
      %569 = vmatmul.mubr.bf16.gmra.mrb[0].mxu0 %v488
      %v570 = vpop.f32.mrb[0].mxu0
      %v571 = vadd.f32 0.0, %v570
      %v572 = vpop.f32.mrb[0].mxu0
      %v573 = vpop.f32.mrb[0].mxu0
      %v574 = vadd.f32 0.0, %v573
      %v575 = vpop.f32.mrb[0].mxu0
      %576 = vmatprep.mubr.bf16.mxu0 0
      %577 = vmatmul.mubr.bf16.gmra.mrb[0].mxu0 %v491
      %v578 = vpop.f32.mrb[0].mxu0
      %v579 = vadd.f32 0.0, %v578
      %v580 = vpop.f32.mrb[0].mxu0
      %v581 = vpop.f32.mrb[0].mxu0
      %v582 = vadd.f32 0.0, %v581
      %v583 = vpop.f32.mrb[0].mxu0
      %584 = vmatprep.mubr.bf16.mxu0 0
      %585 = vmatmul.mubr.bf16.gmra.mrb[0].mxu0 %v494
      %v586 = vpop.f32.mrb[0].mxu0
      %v587 = vadd.f32 0.0, %v586
      %v588 = vpop.f32.mrb[0].mxu0
      %v589 = vpop.f32.mrb[0].mxu0
      %v590 = vadd.f32 0.0, %v589
      %v591 = vpop.f32.mrb[0].mxu0
      %592 = vdwg.mxu0
      %v609 = vunpack.c.l.b16 %v201
      %v610 = vunpack.c.l.b16 %v202
      %v611 = vunpack.c.l.b16 %v204
      %v612 = vunpack.c.l.b16 %v205
      %v613 = vunpack.c.l.b16 %v207
      %v614 = vunpack.c.l.b16 %v208
      %v615 = vunpack.c.l.b16 %v210
      %v616 = vunpack.c.l.b16 %v211
      %v617 = vunpack.c.l.b16 %v213
      %v618 = vunpack.c.l.b16 %v214
      %v619 = vunpack.c.l.b16 %v216
      %v620 = vunpack.c.l.b16 %v217
      %v621 = vunpack.c.l.b16 %v219
      %v622 = vunpack.c.l.b16 %v220
      %v623 = vunpack.c.l.b16 %v222
      %v624 = vunpack.c.l.b16 %v223
      %v625 = vpack.c.b16 %v610, %v609
      %v626 = vpack.c.b16 %v612, %v611
      %v627 = vpack.c.b16 %v614, %v613
      %v628 = vpack.c.b16 %v616, %v615
      %v629 = vpack.c.b16 %v618, %v617
      %v630 = vpack.c.b16 %v620, %v619
      %v631 = vpack.c.b16 %v622, %v621
      %v632 = vpack.c.b16 %v624, %v623
      %v637 = vunpack.c.l.b16 %v231
      %v638 = vunpack.c.l.b16 %v232
      %v639 = vunpack.c.l.b16 %v233
      %v640 = vunpack.c.l.b16 %v234
      %v641 = vpack.c.b16 %v638, %v637
      %v642 = vpack.c.b16 %v640, %v639
      %v646 = vsel %vm471, %v625, 0
      %v649 = vsel %vm471, %v626, 0
      %v652 = vsel %vm471, %v627, 0
      %v655 = vsel %vm471, %v628, 0
      %v658 = vsel %vm471, %v629, 0
      %v661 = vsel %vm471, %v630, 0
      %v664 = vsel %vm471, %v631, 0
      %v667 = vsel %vm471, %v632, 0
      %669 = vmatprep.subr.bf16.mxu0 0
      %670 = vmatpush1.bf16.msra.mxu0 %v641
      %671 = vmatprep.subr.bf16.mxu0 0
      %672 = vmatpush1.bf16.msra.mxu0 %v642
      %673 = vmatprep.subr.bf16.mxu0 0
      %674 = vmatpush1.bf16.msra.mxu0 0
      %675 = vmatprep.subr.bf16.mxu0 0
      %676 = vmatpush1.bf16.msra.mxu0 0
      %677 = vmatprep.subr.bf16.mxu0 0
      %678 = vmatpush1.bf16.msra.mxu0 0
      %679 = vmatprep.subr.bf16.mxu0 0
      %680 = vmatpush1.bf16.msra.mxu0 0
      %681 = vmatprep.subr.bf16.mxu0 0
      %682 = vmatpush1.bf16.msra.mxu0 0
      %683 = vmatprep.subr.bf16.mxu0 0
      %684 = vmatpush1.bf16.msra.mxu0 0
      %685 = vmatprep.subr.bf16.mxu0 0
      %686 = vmatpush1.bf16.msra.mxu0 0
      %687 = vmatprep.subr.bf16.mxu0 0
      %688 = vmatpush1.bf16.msra.mxu0 0
      %689 = vmatprep.subr.bf16.mxu0 0
      %690 = vmatpush1.bf16.msra.mxu0 0
      %691 = vmatprep.subr.bf16.mxu0 0
      %692 = vmatpush1.bf16.msra.mxu0 0
      %693 = vmatprep.subr.bf16.mxu0 0
      %694 = vmatpush1.bf16.msra.mxu0 0
      %695 = vmatprep.subr.bf16.mxu0 0
      %696 = vmatpush1.bf16.msra.mxu0 0
      %697 = vmatprep.subr.bf16.mxu0 0
      %698 = vmatpush1.bf16.msra.mxu0 0
      %699 = vmatprep.subr.bf16.mxu0 0
      %700 = vmatpush1.bf16.msra.mxu0 0
      %701 = vmatprep.mubr.bf16.mxu0 0
      %702 = vmatmul.mubr.bf16.gmra.mrb[0].mxu0 %v646
      %v703 = vpop.f32.mrb[0].mxu0
      %v704 = vadd.f32 %v531, %v703
      %v705 = vpop.f32.mrb[0].mxu0
      %v706 = vpop.f32.mrb[0].mxu0
      %v707 = vadd.f32 %v534, %v706
      %v708 = vpop.f32.mrb[0].mxu0
      %709 = vmatprep.mubr.bf16.mxu0 0
      %710 = vmatmul.mubr.bf16.gmra.mrb[0].mxu0 %v649
      %v711 = vpop.f32.mrb[0].mxu0
      %v712 = vadd.f32 %v539, %v711
      %v713 = vpop.f32.mrb[0].mxu0
      %v714 = vpop.f32.mrb[0].mxu0
      %v715 = vadd.f32 %v542, %v714
      %v716 = vpop.f32.mrb[0].mxu0
      %717 = vmatprep.mubr.bf16.mxu0 0
      %718 = vmatmul.mubr.bf16.gmra.mrb[0].mxu0 %v652
      %v719 = vpop.f32.mrb[0].mxu0
      %v720 = vadd.f32 %v547, %v719
      %v721 = vpop.f32.mrb[0].mxu0
      %v722 = vpop.f32.mrb[0].mxu0
      %v723 = vadd.f32 %v550, %v722
      %v724 = vpop.f32.mrb[0].mxu0
      %725 = vmatprep.mubr.bf16.mxu0 0
      %726 = vmatmul.mubr.bf16.gmra.mrb[0].mxu0 %v655
      %v727 = vpop.f32.mrb[0].mxu0
      %v728 = vadd.f32 %v555, %v727
      %v729 = vpop.f32.mrb[0].mxu0
      %v730 = vpop.f32.mrb[0].mxu0
      %v731 = vadd.f32 %v558, %v730
      %v732 = vpop.f32.mrb[0].mxu0
      %733 = vmatprep.mubr.bf16.mxu0 0
      %734 = vmatmul.mubr.bf16.gmra.mrb[0].mxu0 %v658
      %v735 = vpop.f32.mrb[0].mxu0
      %v736 = vadd.f32 %v563, %v735
      %v737 = vpop.f32.mrb[0].mxu0
      %v738 = vpop.f32.mrb[0].mxu0
      %v739 = vadd.f32 %v566, %v738
      %v740 = vpop.f32.mrb[0].mxu0
      %741 = vmatprep.mubr.bf16.mxu0 0
      %742 = vmatmul.mubr.bf16.gmra.mrb[0].mxu0 %v661
      %v743 = vpop.f32.mrb[0].mxu0
      %v744 = vadd.f32 %v571, %v743
      %v745 = vpop.f32.mrb[0].mxu0
      %v746 = vpop.f32.mrb[0].mxu0
      %v747 = vadd.f32 %v574, %v746
      %v748 = vpop.f32.mrb[0].mxu0
      %749 = vmatprep.mubr.bf16.mxu0 0
      %750 = vmatmul.mubr.bf16.gmra.mrb[0].mxu0 %v664
      %v751 = vpop.f32.mrb[0].mxu0
      %v752 = vadd.f32 %v579, %v751
      %v753 = vpop.f32.mrb[0].mxu0
      %v754 = vpop.f32.mrb[0].mxu0
      %v755 = vadd.f32 %v582, %v754
      %v756 = vpop.f32.mrb[0].mxu0
      %757 = vmatprep.mubr.bf16.mxu0 0
      %758 = vmatmul.mubr.bf16.gmra.mrb[0].mxu0 %v667
      %v759 = vpop.f32.mrb[0].mxu0
      %v760 = vadd.f32 %v587, %v759
      %v761 = vpop.f32.mrb[0].mxu0
      %v762 = vpop.f32.mrb[0].mxu0
      %v763 = vadd.f32 %v590, %v762
      %v764 = vpop.f32.mrb[0].mxu0
      %765 = vdwg.mxu0
      %vm774 = vcmask 1042432
      %vm775 = vcmask 1046532
      %vm776 = vmor %vm774, %vm775
      %v777 = vrot.slane %v201, 5
      %v778 = vrot.slane %v777, 4
      %v779 = vrot.slane %v202, 5
      %v780 = vsel %vm776, %v778, %v779
      %v781 = vrot.slane %v779, 4
      %v782 = vrot.slane %v203, 5
      %v783 = vsel %vm776, %v781, %v782
      %v784 = vrot.slane %v204, 5
      %v785 = vrot.slane %v784, 4
      %v786 = vrot.slane %v205, 5
      %v787 = vsel %vm776, %v785, %v786
      %v788 = vrot.slane %v786, 4
      %v789 = vrot.slane %v206, 5
      %v790 = vsel %vm776, %v788, %v789
      %v791 = vrot.slane %v207, 5
      %v792 = vrot.slane %v791, 4
      %v793 = vrot.slane %v208, 5
      %v794 = vsel %vm776, %v792, %v793
      %v795 = vrot.slane %v793, 4
      %v796 = vrot.slane %v209, 5
      %v797 = vsel %vm776, %v795, %v796
      %v798 = vrot.slane %v210, 5
      %v799 = vrot.slane %v798, 4
      %v800 = vrot.slane %v211, 5
      %v801 = vsel %vm776, %v799, %v800
      %v802 = vrot.slane %v800, 4
      %v803 = vrot.slane %v212, 5
      %v804 = vsel %vm776, %v802, %v803
      %v805 = vrot.slane %v213, 5
      %v806 = vrot.slane %v805, 4
      %v807 = vrot.slane %v214, 5
      %v808 = vsel %vm776, %v806, %v807
      %v809 = vrot.slane %v807, 4
      %v810 = vrot.slane %v215, 5
      %v811 = vsel %vm776, %v809, %v810
      %v812 = vrot.slane %v216, 5
      %v813 = vrot.slane %v812, 4
      %v814 = vrot.slane %v217, 5
      %v815 = vsel %vm776, %v813, %v814
      %v816 = vrot.slane %v814, 4
      %v817 = vrot.slane %v218, 5
      %v818 = vsel %vm776, %v816, %v817
      %v819 = vrot.slane %v219, 5
      %v820 = vrot.slane %v819, 4
      %v821 = vrot.slane %v220, 5
      %v822 = vsel %vm776, %v820, %v821
      %v823 = vrot.slane %v821, 4
      %v824 = vrot.slane %v221, 5
      %v825 = vsel %vm776, %v823, %v824
      %v826 = vrot.slane %v222, 5
      %v827 = vrot.slane %v826, 4
      %v828 = vrot.slane %v223, 5
      %v829 = vsel %vm776, %v827, %v828
      %v830 = vrot.slane %v828, 4
      %v831 = vrot.slane %v224, 5
      %v832 = vsel %vm776, %v830, %v831
      %s833 = scalar_lea.vmem %s1, 32
      %v834 = vld [vmem:[%s833] sm:$0xf]
      %v835 = vld [vmem:[%s833 + $0x4] sm:$0xf]
      %v836 = vld [vmem:[%s833 + $0x8] sm:$0xf]
      %v837 = vld [vmem:[%s833 + $0xc] sm:$0xf]
      %v838 = vunpack.c.l.b16 %v780
      %v839 = vunpack.c.l.b16 %v783
      %v840 = vunpack.c.l.b16 %v787
      %v841 = vunpack.c.l.b16 %v790
      %v842 = vunpack.c.l.b16 %v794
      %v843 = vunpack.c.l.b16 %v797
      %v844 = vunpack.c.l.b16 %v801
      %v845 = vunpack.c.l.b16 %v804
      %v846 = vunpack.c.l.b16 %v808
      %v847 = vunpack.c.l.b16 %v811
      %v848 = vunpack.c.l.b16 %v815
      %v849 = vunpack.c.l.b16 %v818
      %v850 = vunpack.c.l.b16 %v822
      %v851 = vunpack.c.l.b16 %v825
      %v852 = vunpack.c.l.b16 %v829
      %v853 = vunpack.c.l.b16 %v832
      %v854 = vpack.c.b16 %v839, %v838
      %v855 = vpack.c.b16 %v841, %v840
      %v856 = vpack.c.b16 %v843, %v842
      %v857 = vpack.c.b16 %v845, %v844
      %v858 = vpack.c.b16 %v847, %v846
      %v859 = vpack.c.b16 %v849, %v848
      %v860 = vpack.c.b16 %v851, %v850
      %v861 = vpack.c.b16 %v853, %v852
      %v866 = vunpack.c.l.b16 %v834
      %v867 = vunpack.c.l.b16 %v835
      %v868 = vunpack.c.l.b16 %v836
      %v869 = vunpack.c.l.b16 %v837
      %v870 = vpack.c.b16 %v867, %v866
      %v871 = vpack.c.b16 %v869, %v868
      %v875 = vsel %vm471, %v854, 0
      %v878 = vsel %vm471, %v855, 0
      %v881 = vsel %vm471, %v856, 0
      %v884 = vsel %vm471, %v857, 0
      %v887 = vsel %vm471, %v858, 0
      %v890 = vsel %vm471, %v859, 0
      %v893 = vsel %vm471, %v860, 0
      %v896 = vsel %vm471, %v861, 0
      %898 = vmatprep.subr.bf16.mxu0 0
      %899 = vmatpush1.bf16.msra.mxu0 %v870
      %900 = vmatprep.subr.bf16.mxu0 0
      %901 = vmatpush1.bf16.msra.mxu0 %v871
      %902 = vmatprep.subr.bf16.mxu0 0
      %903 = vmatpush1.bf16.msra.mxu0 0
      %904 = vmatprep.subr.bf16.mxu0 0
      %905 = vmatpush1.bf16.msra.mxu0 0
      %906 = vmatprep.subr.bf16.mxu0 0
      %907 = vmatpush1.bf16.msra.mxu0 0
      %908 = vmatprep.subr.bf16.mxu0 0
      %909 = vmatpush1.bf16.msra.mxu0 0
      %910 = vmatprep.subr.bf16.mxu0 0
      %911 = vmatpush1.bf16.msra.mxu0 0
      %912 = vmatprep.subr.bf16.mxu0 0
      %913 = vmatpush1.bf16.msra.mxu0 0
      %914 = vmatprep.subr.bf16.mxu0 0
      %915 = vmatpush1.bf16.msra.mxu0 0
      %916 = vmatprep.subr.bf16.mxu0 0
      %917 = vmatpush1.bf16.msra.mxu0 0
      %918 = vmatprep.subr.bf16.mxu0 0
      %919 = vmatpush1.bf16.msra.mxu0 0
      %920 = vmatprep.subr.bf16.mxu0 0
      %921 = vmatpush1.bf16.msra.mxu0 0
      %922 = vmatprep.subr.bf16.mxu0 0
      %923 = vmatpush1.bf16.msra.mxu0 0
      %924 = vmatprep.subr.bf16.mxu0 0
      %925 = vmatpush1.bf16.msra.mxu0 0
      %926 = vmatprep.subr.bf16.mxu0 0
      %927 = vmatpush1.bf16.msra.mxu0 0
      %928 = vmatprep.subr.bf16.mxu0 0
      %929 = vmatpush1.bf16.msra.mxu0 0
      %930 = vmatprep.mubr.bf16.mxu0 0
      %931 = vmatmul.mubr.bf16.gmra.mrb[0].mxu0 %v875
      %v932 = vpop.f32.mrb[0].mxu0
      %v933 = vadd.f32 0.0, %v932
      %v934 = vpop.f32.mrb[0].mxu0
      %v935 = vpop.f32.mrb[0].mxu0
      %v936 = vadd.f32 0.0, %v935
      %v937 = vpop.f32.mrb[0].mxu0
      %938 = vmatprep.mubr.bf16.mxu0 0
      %939 = vmatmul.mubr.bf16.gmra.mrb[0].mxu0 %v878
      %v940 = vpop.f32.mrb[0].mxu0
      %v941 = vadd.f32 0.0, %v940
      %v942 = vpop.f32.mrb[0].mxu0
      %v943 = vpop.f32.mrb[0].mxu0
      %v944 = vadd.f32 0.0, %v943
      %v945 = vpop.f32.mrb[0].mxu0
      %946 = vmatprep.mubr.bf16.mxu0 0
      %947 = vmatmul.mubr.bf16.gmra.mrb[0].mxu0 %v881
      %v948 = vpop.f32.mrb[0].mxu0
      %v949 = vadd.f32 0.0, %v948
      %v950 = vpop.f32.mrb[0].mxu0
      %v951 = vpop.f32.mrb[0].mxu0
      %v952 = vadd.f32 0.0, %v951
      %v953 = vpop.f32.mrb[0].mxu0
      %954 = vmatprep.mubr.bf16.mxu0 0
      %955 = vmatmul.mubr.bf16.gmra.mrb[0].mxu0 %v884
      %v956 = vpop.f32.mrb[0].mxu0
      %v957 = vadd.f32 0.0, %v956
      %v958 = vpop.f32.mrb[0].mxu0
      %v959 = vpop.f32.mrb[0].mxu0
      %v960 = vadd.f32 0.0, %v959
      %v961 = vpop.f32.mrb[0].mxu0
      %962 = vmatprep.mubr.bf16.mxu0 0
      %963 = vmatmul.mubr.bf16.gmra.mrb[0].mxu0 %v887
      %v964 = vpop.f32.mrb[0].mxu0
      %v965 = vadd.f32 0.0, %v964
      %v966 = vpop.f32.mrb[0].mxu0
      %v967 = vpop.f32.mrb[0].mxu0
      %v968 = vadd.f32 0.0, %v967
      %v969 = vpop.f32.mrb[0].mxu0
      %970 = vmatprep.mubr.bf16.mxu0 0
      %971 = vmatmul.mubr.bf16.gmra.mrb[0].mxu0 %v890
      %v972 = vpop.f32.mrb[0].mxu0
      %v973 = vadd.f32 0.0, %v972
      %v974 = vpop.f32.mrb[0].mxu0
      %v975 = vpop.f32.mrb[0].mxu0
      %v976 = vadd.f32 0.0, %v975
      %v977 = vpop.f32.mrb[0].mxu0
      %978 = vmatprep.mubr.bf16.mxu0 0
      %979 = vmatmul.mubr.bf16.gmra.mrb[0].mxu0 %v893
      %v980 = vpop.f32.mrb[0].mxu0
      %v981 = vadd.f32 0.0, %v980
      %v982 = vpop.f32.mrb[0].mxu0
      %v983 = vpop.f32.mrb[0].mxu0
      %v984 = vadd.f32 0.0, %v983
      %v985 = vpop.f32.mrb[0].mxu0
      %986 = vmatprep.mubr.bf16.mxu0 0
      %987 = vmatmul.mubr.bf16.gmra.mrb[0].mxu0 %v896
      %v988 = vpop.f32.mrb[0].mxu0
      %v989 = vadd.f32 0.0, %v988
      %v990 = vpop.f32.mrb[0].mxu0
      %v991 = vpop.f32.mrb[0].mxu0
      %v992 = vadd.f32 0.0, %v991
      %v993 = vpop.f32.mrb[0].mxu0
      %994 = vdwg.mxu0
      %v995 = vadd.f32 %v704, %v933
      %v996 = vadd.f32 %v707, %v936
      %v997 = vadd.f32 %v712, %v941
      %v998 = vadd.f32 %v715, %v944
      %v999 = vadd.f32 %v720, %v949
      %v1000 = vadd.f32 %v723, %v952
      %v1001 = vadd.f32 %v728, %v957
      %v1002 = vadd.f32 %v731, %v960
      %v1003 = vadd.f32 %v736, %v965
      %v1004 = vadd.f32 %v739, %v968
      %v1005 = vadd.f32 %v744, %v973
      %v1006 = vadd.f32 %v747, %v976
      %v1007 = vadd.f32 %v752, %v981
      %v1008 = vadd.f32 %v755, %v984
      %v1009 = vadd.f32 %v760, %v989
      %v1010 = vadd.f32 %v763, %v992
      %s1011 = scalar_lea.vmem %s1, 48
      %v1012 = vld [vmem:[%s1011] sm:$0xf]
      %v1013 = vld [vmem:[%s1011 + $0x4] sm:$0xf]
      %v1014 = vld [vmem:[%s1011 + $0x8] sm:$0xf]
      %v1015 = vld [vmem:[%s1011 + $0xc] sm:$0xf]
      %v1018 = vunpack.c.l.b16 %v225
      %v1019 = vunpack.c.l.b16 %v226
      %v1020 = vpack.c.b16 %v1019, %v1018
      %v1025 = vunpack.c.l.b16 %v1012
      %v1026 = vunpack.c.l.b16 %v1013
      %v1027 = vunpack.c.l.b16 %v1014
      %v1028 = vunpack.c.l.b16 %v1015
      %v1029 = vpack.c.b16 %v1026, %v1025
      %v1030 = vpack.c.b16 %v1028, %v1027
      %v1034 = vsel %vm471, %v1020, 0
      %1036 = vmatprep.subr.bf16.mxu0 0
      %1037 = vmatpush1.bf16.msra.mxu0 %v1029
      %1038 = vmatprep.subr.bf16.mxu0 0
      %1039 = vmatpush1.bf16.msra.mxu0 %v1030
      %1040 = vmatprep.subr.bf16.mxu0 0
      %1041 = vmatpush1.bf16.msra.mxu0 0
      %1042 = vmatprep.subr.bf16.mxu0 0
      %1043 = vmatpush1.bf16.msra.mxu0 0
      %1044 = vmatprep.subr.bf16.mxu0 0
      %1045 = vmatpush1.bf16.msra.mxu0 0
      %1046 = vmatprep.subr.bf16.mxu0 0
      %1047 = vmatpush1.bf16.msra.mxu0 0
      %1048 = vmatprep.subr.bf16.mxu0 0
      %1049 = vmatpush1.bf16.msra.mxu0 0
      %1050 = vmatprep.subr.bf16.mxu0 0
      %1051 = vmatpush1.bf16.msra.mxu0 0
      %1052 = vmatprep.subr.bf16.mxu0 0
      %1053 = vmatpush1.bf16.msra.mxu0 0
      %1054 = vmatprep.subr.bf16.mxu0 0
      %1055 = vmatpush1.bf16.msra.mxu0 0
      %1056 = vmatprep.subr.bf16.mxu0 0
      %1057 = vmatpush1.bf16.msra.mxu0 0
      %1058 = vmatprep.subr.bf16.mxu0 0
      %1059 = vmatpush1.bf16.msra.mxu0 0
      %1060 = vmatprep.subr.bf16.mxu0 0
      %1061 = vmatpush1.bf16.msra.mxu0 0
      %1062 = vmatprep.subr.bf16.mxu0 0
      %1063 = vmatpush1.bf16.msra.mxu0 0
      %1064 = vmatprep.subr.bf16.mxu0 0
      %1065 = vmatpush1.bf16.msra.mxu0 0
      %1066 = vmatprep.subr.bf16.mxu0 0
      %1067 = vmatpush1.bf16.msra.mxu0 0
      %1068 = vmatprep.mubr.bf16.mxu0 0
      %1069 = vmatmul.mubr.bf16.gmra.mrb[0].mxu0 %v649
      %v1070 = vpop.f32.mrb[0].mxu0
      %v1071 = vadd.f32 0.0, %v1070
      %v1072 = vpop.f32.mrb[0].mxu0
      %v1073 = vpop.f32.mrb[0].mxu0
      %v1074 = vadd.f32 0.0, %v1073
      %v1075 = vpop.f32.mrb[0].mxu0
      %1076 = vmatprep.mubr.bf16.mxu0 0
      %1077 = vmatmul.mubr.bf16.gmra.mrb[0].mxu0 %v652
      %v1078 = vpop.f32.mrb[0].mxu0
      %v1079 = vadd.f32 0.0, %v1078
      %v1080 = vpop.f32.mrb[0].mxu0
      %v1081 = vpop.f32.mrb[0].mxu0
      %v1082 = vadd.f32 0.0, %v1081
      %v1083 = vpop.f32.mrb[0].mxu0
      %1084 = vmatprep.mubr.bf16.mxu0 0
      %1085 = vmatmul.mubr.bf16.gmra.mrb[0].mxu0 %v655
      %v1086 = vpop.f32.mrb[0].mxu0
      %v1087 = vadd.f32 0.0, %v1086
      %v1088 = vpop.f32.mrb[0].mxu0
      %v1089 = vpop.f32.mrb[0].mxu0
      %v1090 = vadd.f32 0.0, %v1089
      %v1091 = vpop.f32.mrb[0].mxu0
      %1092 = vmatprep.mubr.bf16.mxu0 0
      %1093 = vmatmul.mubr.bf16.gmra.mrb[0].mxu0 %v658
      %v1094 = vpop.f32.mrb[0].mxu0
      %v1095 = vadd.f32 0.0, %v1094
      %v1096 = vpop.f32.mrb[0].mxu0
      %v1097 = vpop.f32.mrb[0].mxu0
      %v1098 = vadd.f32 0.0, %v1097
      %v1099 = vpop.f32.mrb[0].mxu0
      %1100 = vmatprep.mubr.bf16.mxu0 0
      %1101 = vmatmul.mubr.bf16.gmra.mrb[0].mxu0 %v661
      %v1102 = vpop.f32.mrb[0].mxu0
      %v1103 = vadd.f32 0.0, %v1102
      %v1104 = vpop.f32.mrb[0].mxu0
      %v1105 = vpop.f32.mrb[0].mxu0
      %v1106 = vadd.f32 0.0, %v1105
      %v1107 = vpop.f32.mrb[0].mxu0
      %1108 = vmatprep.mubr.bf16.mxu0 0
      %1109 = vmatmul.mubr.bf16.gmra.mrb[0].mxu0 %v664
      %v1110 = vpop.f32.mrb[0].mxu0
      %v1111 = vadd.f32 0.0, %v1110
      %v1112 = vpop.f32.mrb[0].mxu0
      %v1113 = vpop.f32.mrb[0].mxu0
      %v1114 = vadd.f32 0.0, %v1113
      %v1115 = vpop.f32.mrb[0].mxu0
      %1116 = vmatprep.mubr.bf16.mxu0 0
      %1117 = vmatmul.mubr.bf16.gmra.mrb[0].mxu0 %v667
      %v1118 = vpop.f32.mrb[0].mxu0
      %v1119 = vadd.f32 0.0, %v1118
      %v1120 = vpop.f32.mrb[0].mxu0
      %v1121 = vpop.f32.mrb[0].mxu0
      %v1122 = vadd.f32 0.0, %v1121
      %v1123 = vpop.f32.mrb[0].mxu0
      %1124 = vmatprep.mubr.bf16.mxu0 0
      %1125 = vmatmul.mubr.bf16.gmra.mrb[0].mxu0 %v1034
      %v1126 = vpop.f32.mrb[0].mxu0
      %v1127 = vadd.f32 0.0, %v1126
      %v1128 = vpop.f32.mrb[0].mxu0
      %v1129 = vpop.f32.mrb[0].mxu0
      %v1130 = vadd.f32 0.0, %v1129
      %v1131 = vpop.f32.mrb[0].mxu0
      %1132 = vdwg.mxu0
      %v1133 = vadd.f32 %v995, %v1071
      %v1134 = vadd.f32 %v996, %v1074
      %v1135 = vadd.f32 %v997, %v1079
      %v1136 = vadd.f32 %v998, %v1082
      %v1137 = vadd.f32 %v999, %v1087
      %v1138 = vadd.f32 %v1000, %v1090
      %v1139 = vadd.f32 %v1001, %v1095
      %v1140 = vadd.f32 %v1002, %v1098
      %v1141 = vadd.f32 %v1003, %v1103
      %v1142 = vadd.f32 %v1004, %v1106
      %v1143 = vadd.f32 %v1005, %v1111
      %v1144 = vadd.f32 %v1006, %v1114
      %v1145 = vadd.f32 %v1007, %v1119
      %v1146 = vadd.f32 %v1008, %v1122
      %v1147 = vadd.f32 %v1009, %v1127
      %v1148 = vadd.f32 %v1010, %v1130
      %v1150 = vshrl.u32 %v225, 16
      %v1152 = vrot.slane %v1150, 4
      %v1153 = vshll.u32 %v225, 16
      %v1155 = vrot.slane %v1153, 5
      %v1156 = vor.u32 %v1152, %v1155
      %v1157 = vrot.slane %v1156, 4
      %v1159 = vshll.u32 %v226, 16
      %v1161 = vrot.slane %v1159, 5
      %v1162 = vsel %vm237, %v1157, %v1161
      %v1163 = vshrl.u32 %v226, 16
      %v1165 = vrot.slane %v1163, 4
      %v1166 = vor.u32 %v1165, %v1161
      %v1167 = vrot.slane %v1166, 4
      %v1169 = vshll.u32 %v227, 16
      %v1171 = vrot.slane %v1169, 5
      %v1172 = vsel %vm237, %v1167, %v1171
      %s1173 = scalar_lea.vmem %s1, 64
      %v1174 = vld [vmem:[%s1173] sm:$0xf]
      %v1175 = vld [vmem:[%s1173 + $0x4] sm:$0xf]
      %v1176 = vld [vmem:[%s1173 + $0x8] sm:$0xf]
      %v1177 = vld [vmem:[%s1173 + $0xc] sm:$0xf]
      %v1178 = vunpack.c.l.b16 %v1162
      %v1179 = vunpack.c.l.b16 %v1172
      %v1180 = vpack.c.b16 %v1179, %v1178
      %v1185 = vunpack.c.l.b16 %v1174
      %v1186 = vunpack.c.l.b16 %v1175
      %v1187 = vunpack.c.l.b16 %v1176
      %v1188 = vunpack.c.l.b16 %v1177
      %v1189 = vpack.c.b16 %v1186, %v1185
      %v1190 = vpack.c.b16 %v1188, %v1187
      %v1194 = vsel %vm471, %v1180, 0
      %1196 = vmatprep.subr.bf16.mxu0 0
      %1197 = vmatpush1.bf16.msra.mxu0 %v1189
      %1198 = vmatprep.subr.bf16.mxu0 0
      %1199 = vmatpush1.bf16.msra.mxu0 %v1190
      %1200 = vmatprep.subr.bf16.mxu0 0
      %1201 = vmatpush1.bf16.msra.mxu0 0
      %1202 = vmatprep.subr.bf16.mxu0 0
      %1203 = vmatpush1.bf16.msra.mxu0 0
      %1204 = vmatprep.subr.bf16.mxu0 0
      %1205 = vmatpush1.bf16.msra.mxu0 0
      %1206 = vmatprep.subr.bf16.mxu0 0
      %1207 = vmatpush1.bf16.msra.mxu0 0
      %1208 = vmatprep.subr.bf16.mxu0 0
      %1209 = vmatpush1.bf16.msra.mxu0 0
      %1210 = vmatprep.subr.bf16.mxu0 0
      %1211 = vmatpush1.bf16.msra.mxu0 0
      %1212 = vmatprep.subr.bf16.mxu0 0
      %1213 = vmatpush1.bf16.msra.mxu0 0
      %1214 = vmatprep.subr.bf16.mxu0 0
      %1215 = vmatpush1.bf16.msra.mxu0 0
      %1216 = vmatprep.subr.bf16.mxu0 0
      %1217 = vmatpush1.bf16.msra.mxu0 0
      %1218 = vmatprep.subr.bf16.mxu0 0
      %1219 = vmatpush1.bf16.msra.mxu0 0
      %1220 = vmatprep.subr.bf16.mxu0 0
      %1221 = vmatpush1.bf16.msra.mxu0 0
      %1222 = vmatprep.subr.bf16.mxu0 0
      %1223 = vmatpush1.bf16.msra.mxu0 0
      %1224 = vmatprep.subr.bf16.mxu0 0
      %1225 = vmatpush1.bf16.msra.mxu0 0
      %1226 = vmatprep.subr.bf16.mxu0 0
      %1227 = vmatpush1.bf16.msra.mxu0 0
      %1228 = vmatprep.mubr.bf16.mxu0 0
      %1229 = vmatmul.mubr.bf16.gmra.mrb[0].mxu0 %v476
      %v1230 = vpop.f32.mrb[0].mxu0
      %v1231 = vadd.f32 0.0, %v1230
      %v1232 = vpop.f32.mrb[0].mxu0
      %v1233 = vpop.f32.mrb[0].mxu0
      %v1234 = vadd.f32 0.0, %v1233
      %v1235 = vpop.f32.mrb[0].mxu0
      %1236 = vmatprep.mubr.bf16.mxu0 0
      %1237 = vmatmul.mubr.bf16.gmra.mrb[0].mxu0 %v479
      %v1238 = vpop.f32.mrb[0].mxu0
      %v1239 = vadd.f32 0.0, %v1238
      %v1240 = vpop.f32.mrb[0].mxu0
      %v1241 = vpop.f32.mrb[0].mxu0
      %v1242 = vadd.f32 0.0, %v1241
      %v1243 = vpop.f32.mrb[0].mxu0
      %1244 = vmatprep.mubr.bf16.mxu0 0
      %1245 = vmatmul.mubr.bf16.gmra.mrb[0].mxu0 %v482
      %v1246 = vpop.f32.mrb[0].mxu0
      %v1247 = vadd.f32 0.0, %v1246
      %v1248 = vpop.f32.mrb[0].mxu0
      %v1249 = vpop.f32.mrb[0].mxu0
      %v1250 = vadd.f32 0.0, %v1249
      %v1251 = vpop.f32.mrb[0].mxu0
      %1252 = vmatprep.mubr.bf16.mxu0 0
      %1253 = vmatmul.mubr.bf16.gmra.mrb[0].mxu0 %v485
      %v1254 = vpop.f32.mrb[0].mxu0
      %v1255 = vadd.f32 0.0, %v1254
      %v1256 = vpop.f32.mrb[0].mxu0
      %v1257 = vpop.f32.mrb[0].mxu0
      %v1258 = vadd.f32 0.0, %v1257
      %v1259 = vpop.f32.mrb[0].mxu0
      %1260 = vmatprep.mubr.bf16.mxu0 0
      %1261 = vmatmul.mubr.bf16.gmra.mrb[0].mxu0 %v488
      %v1262 = vpop.f32.mrb[0].mxu0
      %v1263 = vadd.f32 0.0, %v1262
      %v1264 = vpop.f32.mrb[0].mxu0
      %v1265 = vpop.f32.mrb[0].mxu0
      %v1266 = vadd.f32 0.0, %v1265
      %v1267 = vpop.f32.mrb[0].mxu0
      %1268 = vmatprep.mubr.bf16.mxu0 0
      %1269 = vmatmul.mubr.bf16.gmra.mrb[0].mxu0 %v491
      %v1270 = vpop.f32.mrb[0].mxu0
      %v1271 = vadd.f32 0.0, %v1270
      %v1272 = vpop.f32.mrb[0].mxu0
      %v1273 = vpop.f32.mrb[0].mxu0
      %v1274 = vadd.f32 0.0, %v1273
      %v1275 = vpop.f32.mrb[0].mxu0
      %1276 = vmatprep.mubr.bf16.mxu0 0
      %1277 = vmatmul.mubr.bf16.gmra.mrb[0].mxu0 %v494
      %v1278 = vpop.f32.mrb[0].mxu0
      %v1279 = vadd.f32 0.0, %v1278
      %v1280 = vpop.f32.mrb[0].mxu0
      %v1281 = vpop.f32.mrb[0].mxu0
      %v1282 = vadd.f32 0.0, %v1281
      %v1283 = vpop.f32.mrb[0].mxu0
      %1284 = vmatprep.mubr.bf16.mxu0 0
      %1285 = vmatmul.mubr.bf16.gmra.mrb[0].mxu0 %v1194
      %v1286 = vpop.f32.mrb[0].mxu0
      %v1287 = vadd.f32 0.0, %v1286
      %v1288 = vpop.f32.mrb[0].mxu0
      %v1289 = vpop.f32.mrb[0].mxu0
      %v1290 = vadd.f32 0.0, %v1289
      %v1291 = vpop.f32.mrb[0].mxu0
      %1292 = vdwg.mxu0
      %v1293 = vadd.f32 %v1133, %v1231
      %v1294 = vadd.f32 %v1134, %v1234
      %v1295 = vadd.f32 %v1135, %v1239
      %v1296 = vadd.f32 %v1136, %v1242
      %v1297 = vadd.f32 %v1137, %v1247
      %v1298 = vadd.f32 %v1138, %v1250
      %v1299 = vadd.f32 %v1139, %v1255
      %v1300 = vadd.f32 %v1140, %v1258
      %v1301 = vadd.f32 %v1141, %v1263
      %v1302 = vadd.f32 %v1142, %v1266
      %v1303 = vadd.f32 %v1143, %v1271
      %v1304 = vadd.f32 %v1144, %v1274
      %v1305 = vadd.f32 %v1145, %v1279
      %v1306 = vadd.f32 %v1146, %v1282
      %v1307 = vadd.f32 %v1147, %v1287
      %v1308 = vadd.f32 %v1148, %v1290
      %v1310 = vrot.slane %v225, 5
      %v1311 = vrot.slane %v1310, 4
      %v1312 = vrot.slane %v226, 5
      %v1313 = vsel %vm776, %v1311, %v1312
      %v1314 = vrot.slane %v1312, 4
      %v1315 = vrot.slane %v227, 5
      %v1316 = vsel %vm776, %v1314, %v1315
      %s1317 = scalar_lea.vmem %s1, 80
      %v1318 = vld [vmem:[%s1317] sm:$0xf]
      %v1319 = vld [vmem:[%s1317 + $0x4] sm:$0xf]
      %v1320 = vld [vmem:[%s1317 + $0x8] sm:$0xf]
      %v1321 = vld [vmem:[%s1317 + $0xc] sm:$0xf]
      %v1322 = vunpack.c.l.b16 %v1313
      %v1323 = vunpack.c.l.b16 %v1316
      %v1324 = vpack.c.b16 %v1323, %v1322
      %v1329 = vunpack.c.l.b16 %v1318
      %v1330 = vunpack.c.l.b16 %v1319
      %v1331 = vunpack.c.l.b16 %v1320
      %v1332 = vunpack.c.l.b16 %v1321
      %v1333 = vpack.c.b16 %v1330, %v1329
      %v1334 = vpack.c.b16 %v1332, %v1331
      %v1338 = vsel %vm471, %v1324, 0
      %1340 = vmatprep.subr.bf16.mxu0 0
      %1341 = vmatpush1.bf16.msra.mxu0 %v1333
      %1342 = vmatprep.subr.bf16.mxu0 0
      %1343 = vmatpush1.bf16.msra.mxu0 %v1334
      %1344 = vmatprep.subr.bf16.mxu0 0
      %1345 = vmatpush1.bf16.msra.mxu0 0
      %1346 = vmatprep.subr.bf16.mxu0 0
      %1347 = vmatpush1.bf16.msra.mxu0 0
      %1348 = vmatprep.subr.bf16.mxu0 0
      %1349 = vmatpush1.bf16.msra.mxu0 0
      %1350 = vmatprep.subr.bf16.mxu0 0
      %1351 = vmatpush1.bf16.msra.mxu0 0
      %1352 = vmatprep.subr.bf16.mxu0 0
      %1353 = vmatpush1.bf16.msra.mxu0 0
      %1354 = vmatprep.subr.bf16.mxu0 0
      %1355 = vmatpush1.bf16.msra.mxu0 0
      %1356 = vmatprep.subr.bf16.mxu0 0
      %1357 = vmatpush1.bf16.msra.mxu0 0
      %1358 = vmatprep.subr.bf16.mxu0 0
      %1359 = vmatpush1.bf16.msra.mxu0 0
      %1360 = vmatprep.subr.bf16.mxu0 0
      %1361 = vmatpush1.bf16.msra.mxu0 0
      %1362 = vmatprep.subr.bf16.mxu0 0
      %1363 = vmatpush1.bf16.msra.mxu0 0
      %1364 = vmatprep.subr.bf16.mxu0 0
      %1365 = vmatpush1.bf16.msra.mxu0 0
      %1366 = vmatprep.subr.bf16.mxu0 0
      %1367 = vmatpush1.bf16.msra.mxu0 0
      %1368 = vmatprep.subr.bf16.mxu0 0
      %1369 = vmatpush1.bf16.msra.mxu0 0
      %1370 = vmatprep.subr.bf16.mxu0 0
      %1371 = vmatpush1.bf16.msra.mxu0 0
      %1372 = vmatprep.mubr.bf16.mxu0 0
      %1373 = vmatmul.mubr.bf16.gmra.mrb[0].mxu0 %v878
      %v1374 = vpop.f32.mrb[0].mxu0
      %v1375 = vadd.f32 0.0, %v1374
      %v1376 = vpop.f32.mrb[0].mxu0
      %v1377 = vpop.f32.mrb[0].mxu0
      %v1378 = vadd.f32 0.0, %v1377
      %v1379 = vpop.f32.mrb[0].mxu0
      %1380 = vmatprep.mubr.bf16.mxu0 0
      %1381 = vmatmul.mubr.bf16.gmra.mrb[0].mxu0 %v881
      %v1382 = vpop.f32.mrb[0].mxu0
      %v1383 = vadd.f32 0.0, %v1382
      %v1384 = vpop.f32.mrb[0].mxu0
      %v1385 = vpop.f32.mrb[0].mxu0
      %v1386 = vadd.f32 0.0, %v1385
      %v1387 = vpop.f32.mrb[0].mxu0
      %1388 = vmatprep.mubr.bf16.mxu0 0
      %1389 = vmatmul.mubr.bf16.gmra.mrb[0].mxu0 %v884
      %v1390 = vpop.f32.mrb[0].mxu0
      %v1391 = vadd.f32 0.0, %v1390
      %v1392 = vpop.f32.mrb[0].mxu0
      %v1393 = vpop.f32.mrb[0].mxu0
      %v1394 = vadd.f32 0.0, %v1393
      %v1395 = vpop.f32.mrb[0].mxu0
      %1396 = vmatprep.mubr.bf16.mxu0 0
      %1397 = vmatmul.mubr.bf16.gmra.mrb[0].mxu0 %v887
      %v1398 = vpop.f32.mrb[0].mxu0
      %v1399 = vadd.f32 0.0, %v1398
      %v1400 = vpop.f32.mrb[0].mxu0
      %v1401 = vpop.f32.mrb[0].mxu0
      %v1402 = vadd.f32 0.0, %v1401
      %v1403 = vpop.f32.mrb[0].mxu0
      %1404 = vmatprep.mubr.bf16.mxu0 0
      %1405 = vmatmul.mubr.bf16.gmra.mrb[0].mxu0 %v890
      %v1406 = vpop.f32.mrb[0].mxu0
      %v1407 = vadd.f32 0.0, %v1406
      %v1408 = vpop.f32.mrb[0].mxu0
      %v1409 = vpop.f32.mrb[0].mxu0
      %v1410 = vadd.f32 0.0, %v1409
      %v1411 = vpop.f32.mrb[0].mxu0
      %1412 = vmatprep.mubr.bf16.mxu0 0
      %1413 = vmatmul.mubr.bf16.gmra.mrb[0].mxu0 %v893
      %v1414 = vpop.f32.mrb[0].mxu0
      %v1415 = vadd.f32 0.0, %v1414
      %v1416 = vpop.f32.mrb[0].mxu0
      %v1417 = vpop.f32.mrb[0].mxu0
      %v1418 = vadd.f32 0.0, %v1417
      %v1419 = vpop.f32.mrb[0].mxu0
      %1420 = vmatprep.mubr.bf16.mxu0 0
      %1421 = vmatmul.mubr.bf16.gmra.mrb[0].mxu0 %v896
      %v1422 = vpop.f32.mrb[0].mxu0
      %v1423 = vadd.f32 0.0, %v1422
      %v1424 = vpop.f32.mrb[0].mxu0
      %v1425 = vpop.f32.mrb[0].mxu0
      %v1426 = vadd.f32 0.0, %v1425
      %v1427 = vpop.f32.mrb[0].mxu0
      %1428 = vmatprep.mubr.bf16.mxu0 0
      %1429 = vmatmul.mubr.bf16.gmra.mrb[0].mxu0 %v1338
      %v1430 = vpop.f32.mrb[0].mxu0
      %v1431 = vadd.f32 0.0, %v1430
      %v1432 = vpop.f32.mrb[0].mxu0
      %v1433 = vpop.f32.mrb[0].mxu0
      %v1434 = vadd.f32 0.0, %v1433
      %v1435 = vpop.f32.mrb[0].mxu0
      %1436 = vdwg.mxu0
      %v1437 = vadd.f32 %v1293, %v1375
      %v1438 = vadd.f32 %v1294, %v1378
      %v1439 = vadd.f32 %v1295, %v1383
      %v1440 = vadd.f32 %v1296, %v1386
      %v1441 = vadd.f32 %v1297, %v1391
      %v1442 = vadd.f32 %v1298, %v1394
      %v1443 = vadd.f32 %v1299, %v1399
      %v1444 = vadd.f32 %v1300, %v1402
      %v1445 = vadd.f32 %v1301, %v1407
      %v1446 = vadd.f32 %v1302, %v1410
      %v1447 = vadd.f32 %v1303, %v1415
      %v1448 = vadd.f32 %v1304, %v1418
      %v1449 = vadd.f32 %v1305, %v1423
      %v1450 = vadd.f32 %v1306, %v1426
      %v1451 = vadd.f32 %v1307, %v1431
      %v1452 = vadd.f32 %v1308, %v1434
      %s1453 = scalar_lea.vmem %s1, 96
      %v1454 = vld [vmem:[%s1453] sm:$0xf]
      %v1455 = vld [vmem:[%s1453 + $0x4] sm:$0xf]
      %v1456 = vld [vmem:[%s1453 + $0x8] sm:$0xf]
      %v1457 = vld [vmem:[%s1453 + $0xc] sm:$0xf]
      %v1460 = vunpack.c.l.b16 %v228
      %v1461 = vunpack.c.l.b16 %v229
      %v1462 = vpack.c.b16 %v1461, %v1460
      %v1467 = vunpack.c.l.b16 %v1454
      %v1468 = vunpack.c.l.b16 %v1455
      %v1469 = vunpack.c.l.b16 %v1456
      %v1470 = vunpack.c.l.b16 %v1457
      %v1471 = vpack.c.b16 %v1468, %v1467
      %v1472 = vpack.c.b16 %v1470, %v1469
      %v1476 = vsel %vm471, %v1462, 0
      %1478 = vmatprep.subr.bf16.mxu0 0
      %1479 = vmatpush1.bf16.msra.mxu0 %v1471
      %1480 = vmatprep.subr.bf16.mxu0 0
      %1481 = vmatpush1.bf16.msra.mxu0 %v1472
      %1482 = vmatprep.subr.bf16.mxu0 0
      %1483 = vmatpush1.bf16.msra.mxu0 0
      %1484 = vmatprep.subr.bf16.mxu0 0
      %1485 = vmatpush1.bf16.msra.mxu0 0
      %1486 = vmatprep.subr.bf16.mxu0 0
      %1487 = vmatpush1.bf16.msra.mxu0 0
      %1488 = vmatprep.subr.bf16.mxu0 0
      %1489 = vmatpush1.bf16.msra.mxu0 0
      %1490 = vmatprep.subr.bf16.mxu0 0
      %1491 = vmatpush1.bf16.msra.mxu0 0
      %1492 = vmatprep.subr.bf16.mxu0 0
      %1493 = vmatpush1.bf16.msra.mxu0 0
      %1494 = vmatprep.subr.bf16.mxu0 0
      %1495 = vmatpush1.bf16.msra.mxu0 0
      %1496 = vmatprep.subr.bf16.mxu0 0
      %1497 = vmatpush1.bf16.msra.mxu0 0
      %1498 = vmatprep.subr.bf16.mxu0 0
      %1499 = vmatpush1.bf16.msra.mxu0 0
      %1500 = vmatprep.subr.bf16.mxu0 0
      %1501 = vmatpush1.bf16.msra.mxu0 0
      %1502 = vmatprep.subr.bf16.mxu0 0
      %1503 = vmatpush1.bf16.msra.mxu0 0
      %1504 = vmatprep.subr.bf16.mxu0 0
      %1505 = vmatpush1.bf16.msra.mxu0 0
      %1506 = vmatprep.subr.bf16.mxu0 0
      %1507 = vmatpush1.bf16.msra.mxu0 0
      %1508 = vmatprep.subr.bf16.mxu0 0
      %1509 = vmatpush1.bf16.msra.mxu0 0
      %1510 = vmatprep.mubr.bf16.mxu0 0
      %1511 = vmatmul.mubr.bf16.gmra.mrb[0].mxu0 %v652
      %v1512 = vpop.f32.mrb[0].mxu0
      %v1513 = vadd.f32 0.0, %v1512
      %v1514 = vpop.f32.mrb[0].mxu0
      %v1515 = vpop.f32.mrb[0].mxu0
      %v1516 = vadd.f32 0.0, %v1515
      %v1517 = vpop.f32.mrb[0].mxu0
      %1518 = vmatprep.mubr.bf16.mxu0 0
      %1519 = vmatmul.mubr.bf16.gmra.mrb[0].mxu0 %v655
      %v1520 = vpop.f32.mrb[0].mxu0
      %v1521 = vadd.f32 0.0, %v1520
      %v1522 = vpop.f32.mrb[0].mxu0
      %v1523 = vpop.f32.mrb[0].mxu0
      %v1524 = vadd.f32 0.0, %v1523
      %v1525 = vpop.f32.mrb[0].mxu0
      %1526 = vmatprep.mubr.bf16.mxu0 0
      %1527 = vmatmul.mubr.bf16.gmra.mrb[0].mxu0 %v658
      %v1528 = vpop.f32.mrb[0].mxu0
      %v1529 = vadd.f32 0.0, %v1528
      %v1530 = vpop.f32.mrb[0].mxu0
      %v1531 = vpop.f32.mrb[0].mxu0
      %v1532 = vadd.f32 0.0, %v1531
      %v1533 = vpop.f32.mrb[0].mxu0
      %1534 = vmatprep.mubr.bf16.mxu0 0
      %1535 = vmatmul.mubr.bf16.gmra.mrb[0].mxu0 %v661
      %v1536 = vpop.f32.mrb[0].mxu0
      %v1537 = vadd.f32 0.0, %v1536
      %v1538 = vpop.f32.mrb[0].mxu0
      %v1539 = vpop.f32.mrb[0].mxu0
      %v1540 = vadd.f32 0.0, %v1539
      %v1541 = vpop.f32.mrb[0].mxu0
      %1542 = vmatprep.mubr.bf16.mxu0 0
      %1543 = vmatmul.mubr.bf16.gmra.mrb[0].mxu0 %v664
      %v1544 = vpop.f32.mrb[0].mxu0
      %v1545 = vadd.f32 0.0, %v1544
      %v1546 = vpop.f32.mrb[0].mxu0
      %v1547 = vpop.f32.mrb[0].mxu0
      %v1548 = vadd.f32 0.0, %v1547
      %v1549 = vpop.f32.mrb[0].mxu0
      %1550 = vmatprep.mubr.bf16.mxu0 0
      %1551 = vmatmul.mubr.bf16.gmra.mrb[0].mxu0 %v667
      %v1552 = vpop.f32.mrb[0].mxu0
      %v1553 = vadd.f32 0.0, %v1552
      %v1554 = vpop.f32.mrb[0].mxu0
      %v1555 = vpop.f32.mrb[0].mxu0
      %v1556 = vadd.f32 0.0, %v1555
      %v1557 = vpop.f32.mrb[0].mxu0
      %1558 = vmatprep.mubr.bf16.mxu0 0
      %1559 = vmatmul.mubr.bf16.gmra.mrb[0].mxu0 %v1034
      %v1560 = vpop.f32.mrb[0].mxu0
      %v1561 = vadd.f32 0.0, %v1560
      %v1562 = vpop.f32.mrb[0].mxu0
      %v1563 = vpop.f32.mrb[0].mxu0
      %v1564 = vadd.f32 0.0, %v1563
      %v1565 = vpop.f32.mrb[0].mxu0
      %1566 = vmatprep.mubr.bf16.mxu0 0
      %1567 = vmatmul.mubr.bf16.gmra.mrb[0].mxu0 %v1476
      %v1568 = vpop.f32.mrb[0].mxu0
      %v1569 = vadd.f32 0.0, %v1568
      %v1570 = vpop.f32.mrb[0].mxu0
      %v1571 = vpop.f32.mrb[0].mxu0
      %v1572 = vadd.f32 0.0, %v1571
      %v1573 = vpop.f32.mrb[0].mxu0
      %1574 = vdwg.mxu0
      %v1575 = vadd.f32 %v1437, %v1513
      %v1576 = vadd.f32 %v1438, %v1516
      %v1577 = vadd.f32 %v1439, %v1521
      %v1578 = vadd.f32 %v1440, %v1524
      %v1579 = vadd.f32 %v1441, %v1529
      %v1580 = vadd.f32 %v1442, %v1532
      %v1581 = vadd.f32 %v1443, %v1537
      %v1582 = vadd.f32 %v1444, %v1540
      %v1583 = vadd.f32 %v1445, %v1545
      %v1584 = vadd.f32 %v1446, %v1548
      %v1585 = vadd.f32 %v1447, %v1553
      %v1586 = vadd.f32 %v1448, %v1556
      %v1587 = vadd.f32 %v1449, %v1561
      %v1588 = vadd.f32 %v1450, %v1564
      %v1589 = vadd.f32 %v1451, %v1569
      %v1590 = vadd.f32 %v1452, %v1572
      %v1592 = vshrl.u32 %v228, 16
      %v1594 = vrot.slane %v1592, 4
      %v1595 = vshll.u32 %v228, 16
      %v1597 = vrot.slane %v1595, 5
      %v1598 = vor.u32 %v1594, %v1597
      %v1599 = vrot.slane %v1598, 4
      %v1601 = vshll.u32 %v229, 16
      %v1603 = vrot.slane %v1601, 5
      %v1604 = vsel %vm237, %v1599, %v1603
      %v1605 = vshrl.u32 %v229, 16
      %v1607 = vrot.slane %v1605, 4
      %v1608 = vor.u32 %v1607, %v1603
      %v1609 = vrot.slane %v1608, 4
      %v1611 = vshll.u32 %v230, 16
      %v1613 = vrot.slane %v1611, 5
      %v1614 = vsel %vm237, %v1609, %v1613
      %s1615 = scalar_lea.vmem %s1, 112
      %v1616 = vld [vmem:[%s1615] sm:$0xf]
      %v1617 = vld [vmem:[%s1615 + $0x4] sm:$0xf]
      %v1618 = vld [vmem:[%s1615 + $0x8] sm:$0xf]
      %v1619 = vld [vmem:[%s1615 + $0xc] sm:$0xf]
      %v1620 = vunpack.c.l.b16 %v1604
      %v1621 = vunpack.c.l.b16 %v1614
      %v1622 = vpack.c.b16 %v1621, %v1620
      %v1627 = vunpack.c.l.b16 %v1616
      %v1628 = vunpack.c.l.b16 %v1617
      %v1629 = vunpack.c.l.b16 %v1618
      %v1630 = vunpack.c.l.b16 %v1619
      %v1631 = vpack.c.b16 %v1628, %v1627
      %v1632 = vpack.c.b16 %v1630, %v1629
      %v1636 = vsel %vm471, %v1622, 0
      %1638 = vmatprep.subr.bf16.mxu0 0
      %1639 = vmatpush1.bf16.msra.mxu0 %v1631
      %1640 = vmatprep.subr.bf16.mxu0 0
      %1641 = vmatpush1.bf16.msra.mxu0 %v1632
      %1642 = vmatprep.subr.bf16.mxu0 0
      %1643 = vmatpush1.bf16.msra.mxu0 0
      %1644 = vmatprep.subr.bf16.mxu0 0
      %1645 = vmatpush1.bf16.msra.mxu0 0
      %1646 = vmatprep.subr.bf16.mxu0 0
      %1647 = vmatpush1.bf16.msra.mxu0 0
      %1648 = vmatprep.subr.bf16.mxu0 0
      %1649 = vmatpush1.bf16.msra.mxu0 0
      %1650 = vmatprep.subr.bf16.mxu0 0
      %1651 = vmatpush1.bf16.msra.mxu0 0
      %1652 = vmatprep.subr.bf16.mxu0 0
      %1653 = vmatpush1.bf16.msra.mxu0 0
      %1654 = vmatprep.subr.bf16.mxu0 0
      %1655 = vmatpush1.bf16.msra.mxu0 0
      %1656 = vmatprep.subr.bf16.mxu0 0
      %1657 = vmatpush1.bf16.msra.mxu0 0
      %1658 = vmatprep.subr.bf16.mxu0 0
      %1659 = vmatpush1.bf16.msra.mxu0 0
      %1660 = vmatprep.subr.bf16.mxu0 0
      %1661 = vmatpush1.bf16.msra.mxu0 0
      %1662 = vmatprep.subr.bf16.mxu0 0
      %1663 = vmatpush1.bf16.msra.mxu0 0
      %1664 = vmatprep.subr.bf16.mxu0 0
      %1665 = vmatpush1.bf16.msra.mxu0 0
      %1666 = vmatprep.subr.bf16.mxu0 0
      %1667 = vmatpush1.bf16.msra.mxu0 0
      %1668 = vmatprep.subr.bf16.mxu0 0
      %1669 = vmatpush1.bf16.msra.mxu0 0
      %1670 = vmatprep.mubr.bf16.mxu0 0
      %1671 = vmatmul.mubr.bf16.gmra.mrb[0].mxu0 %v479
      %v1672 = vpop.f32.mrb[0].mxu0
      %v1673 = vadd.f32 0.0, %v1672
      %v1674 = vpop.f32.mrb[0].mxu0
      %v1675 = vpop.f32.mrb[0].mxu0
      %v1676 = vadd.f32 0.0, %v1675
      %v1677 = vpop.f32.mrb[0].mxu0
      %1678 = vmatprep.mubr.bf16.mxu0 0
      %1679 = vmatmul.mubr.bf16.gmra.mrb[0].mxu0 %v482
      %v1680 = vpop.f32.mrb[0].mxu0
      %v1681 = vadd.f32 0.0, %v1680
      %v1682 = vpop.f32.mrb[0].mxu0
      %v1683 = vpop.f32.mrb[0].mxu0
      %v1684 = vadd.f32 0.0, %v1683
      %v1685 = vpop.f32.mrb[0].mxu0
      %1686 = vmatprep.mubr.bf16.mxu0 0
      %1687 = vmatmul.mubr.bf16.gmra.mrb[0].mxu0 %v485
      %v1688 = vpop.f32.mrb[0].mxu0
      %v1689 = vadd.f32 0.0, %v1688
      %v1690 = vpop.f32.mrb[0].mxu0
      %v1691 = vpop.f32.mrb[0].mxu0
      %v1692 = vadd.f32 0.0, %v1691
      %v1693 = vpop.f32.mrb[0].mxu0
      %1694 = vmatprep.mubr.bf16.mxu0 0
      %1695 = vmatmul.mubr.bf16.gmra.mrb[0].mxu0 %v488
      %v1696 = vpop.f32.mrb[0].mxu0
      %v1697 = vadd.f32 0.0, %v1696
      %v1698 = vpop.f32.mrb[0].mxu0
      %v1699 = vpop.f32.mrb[0].mxu0
      %v1700 = vadd.f32 0.0, %v1699
      %v1701 = vpop.f32.mrb[0].mxu0
      %1702 = vmatprep.mubr.bf16.mxu0 0
      %1703 = vmatmul.mubr.bf16.gmra.mrb[0].mxu0 %v491
      %v1704 = vpop.f32.mrb[0].mxu0
      %v1705 = vadd.f32 0.0, %v1704
      %v1706 = vpop.f32.mrb[0].mxu0
      %v1707 = vpop.f32.mrb[0].mxu0
      %v1708 = vadd.f32 0.0, %v1707
      %v1709 = vpop.f32.mrb[0].mxu0
      %1710 = vmatprep.mubr.bf16.mxu0 0
      %1711 = vmatmul.mubr.bf16.gmra.mrb[0].mxu0 %v494
      %v1712 = vpop.f32.mrb[0].mxu0
      %v1713 = vadd.f32 0.0, %v1712
      %v1714 = vpop.f32.mrb[0].mxu0
      %v1715 = vpop.f32.mrb[0].mxu0
      %v1716 = vadd.f32 0.0, %v1715
      %v1717 = vpop.f32.mrb[0].mxu0
      %1718 = vmatprep.mubr.bf16.mxu0 0
      %1719 = vmatmul.mubr.bf16.gmra.mrb[0].mxu0 %v1194
      %v1720 = vpop.f32.mrb[0].mxu0
      %v1721 = vadd.f32 0.0, %v1720
      %v1722 = vpop.f32.mrb[0].mxu0
      %v1723 = vpop.f32.mrb[0].mxu0
      %v1724 = vadd.f32 0.0, %v1723
      %v1725 = vpop.f32.mrb[0].mxu0
      %1726 = vmatprep.mubr.bf16.mxu0 0
      %1727 = vmatmul.mubr.bf16.gmra.mrb[0].mxu0 %v1636
      %v1728 = vpop.f32.mrb[0].mxu0
      %v1729 = vadd.f32 0.0, %v1728
      %v1730 = vpop.f32.mrb[0].mxu0
      %v1731 = vpop.f32.mrb[0].mxu0
      %v1732 = vadd.f32 0.0, %v1731
      %v1733 = vpop.f32.mrb[0].mxu0
      %1734 = vdwg.mxu0
      %v1735 = vadd.f32 %v1575, %v1673
      %v1736 = vadd.f32 %v1576, %v1676
      %v1737 = vadd.f32 %v1577, %v1681
      %v1738 = vadd.f32 %v1578, %v1684
      %v1739 = vadd.f32 %v1579, %v1689
      %v1740 = vadd.f32 %v1580, %v1692
      %v1741 = vadd.f32 %v1581, %v1697
      %v1742 = vadd.f32 %v1582, %v1700
      %v1743 = vadd.f32 %v1583, %v1705
      %v1744 = vadd.f32 %v1584, %v1708
      %v1745 = vadd.f32 %v1585, %v1713
      %v1746 = vadd.f32 %v1586, %v1716
      %v1747 = vadd.f32 %v1587, %v1721
      %v1748 = vadd.f32 %v1588, %v1724
      %v1749 = vadd.f32 %v1589, %v1729
      %v1750 = vadd.f32 %v1590, %v1732
      %v1752 = vrot.slane %v228, 5
      %v1753 = vrot.slane %v1752, 4
      %v1754 = vrot.slane %v229, 5
      %v1755 = vsel %vm776, %v1753, %v1754
      %v1756 = vrot.slane %v1754, 4
      %v1757 = vrot.slane %v230, 5
      %v1758 = vsel %vm776, %v1756, %v1757
      %s1759 = scalar_lea.vmem %s1, 128
      %v1760 = vld [vmem:[%s1759] sm:$0xf]
      %v1761 = vld [vmem:[%s1759 + $0x4] sm:$0xf]
      %v1762 = vld [vmem:[%s1759 + $0x8] sm:$0xf]
      %v1763 = vld [vmem:[%s1759 + $0xc] sm:$0xf]
      %v1764 = vunpack.c.l.b16 %v1755
      %v1765 = vunpack.c.l.b16 %v1758
      %v1766 = vpack.c.b16 %v1765, %v1764
      %v1771 = vunpack.c.l.b16 %v1760
      %v1772 = vunpack.c.l.b16 %v1761
      %v1773 = vunpack.c.l.b16 %v1762
      %v1774 = vunpack.c.l.b16 %v1763
      %v1775 = vpack.c.b16 %v1772, %v1771
      %v1776 = vpack.c.b16 %v1774, %v1773
      %v1780 = vsel %vm471, %v1766, 0
      %1782 = vmatprep.subr.bf16.mxu0 0
      %1783 = vmatpush1.bf16.msra.mxu0 %v1775
      %1784 = vmatprep.subr.bf16.mxu0 0
      %1785 = vmatpush1.bf16.msra.mxu0 %v1776
      %1786 = vmatprep.subr.bf16.mxu0 0
      %1787 = vmatpush1.bf16.msra.mxu0 0
      %1788 = vmatprep.subr.bf16.mxu0 0
      %1789 = vmatpush1.bf16.msra.mxu0 0
      %1790 = vmatprep.subr.bf16.mxu0 0
      %1791 = vmatpush1.bf16.msra.mxu0 0
      %1792 = vmatprep.subr.bf16.mxu0 0
      %1793 = vmatpush1.bf16.msra.mxu0 0
      %1794 = vmatprep.subr.bf16.mxu0 0
      %1795 = vmatpush1.bf16.msra.mxu0 0
      %1796 = vmatprep.subr.bf16.mxu0 0
      %1797 = vmatpush1.bf16.msra.mxu0 0
      %1798 = vmatprep.subr.bf16.mxu0 0
      %1799 = vmatpush1.bf16.msra.mxu0 0
      %1800 = vmatprep.subr.bf16.mxu0 0
      %1801 = vmatpush1.bf16.msra.mxu0 0
      %1802 = vmatprep.subr.bf16.mxu0 0
      %1803 = vmatpush1.bf16.msra.mxu0 0
      %1804 = vmatprep.subr.bf16.mxu0 0
      %1805 = vmatpush1.bf16.msra.mxu0 0
      %1806 = vmatprep.subr.bf16.mxu0 0
      %1807 = vmatpush1.bf16.msra.mxu0 0
      %1808 = vmatprep.subr.bf16.mxu0 0
      %1809 = vmatpush1.bf16.msra.mxu0 0
      %1810 = vmatprep.subr.bf16.mxu0 0
      %1811 = vmatpush1.bf16.msra.mxu0 0
      %1812 = vmatprep.subr.bf16.mxu0 0
      %1813 = vmatpush1.bf16.msra.mxu0 0
      %1814 = vmatprep.mubr.bf16.mxu0 0
      %1815 = vmatmul.mubr.bf16.gmra.mrb[0].mxu0 %v881
      %v1816 = vpop.f32.mrb[0].mxu0
      %v1817 = vadd.f32 0.0, %v1816
      %v1818 = vpop.f32.mrb[0].mxu0
      %v1819 = vpop.f32.mrb[0].mxu0
      %v1820 = vadd.f32 0.0, %v1819
      %v1821 = vpop.f32.mrb[0].mxu0
      %1822 = vmatprep.mubr.bf16.mxu0 0
      %1823 = vmatmul.mubr.bf16.gmra.mrb[0].mxu0 %v884
      %v1824 = vpop.f32.mrb[0].mxu0
      %v1825 = vadd.f32 0.0, %v1824
      %v1826 = vpop.f32.mrb[0].mxu0
      %v1827 = vpop.f32.mrb[0].mxu0
      %v1828 = vadd.f32 0.0, %v1827
      %v1829 = vpop.f32.mrb[0].mxu0
      %1830 = vmatprep.mubr.bf16.mxu0 0
      %1831 = vmatmul.mubr.bf16.gmra.mrb[0].mxu0 %v887
      %v1832 = vpop.f32.mrb[0].mxu0
      %v1833 = vadd.f32 0.0, %v1832
      %v1834 = vpop.f32.mrb[0].mxu0
      %v1835 = vpop.f32.mrb[0].mxu0
      %v1836 = vadd.f32 0.0, %v1835
      %v1837 = vpop.f32.mrb[0].mxu0
      %1838 = vmatprep.mubr.bf16.mxu0 0
      %1839 = vmatmul.mubr.bf16.gmra.mrb[0].mxu0 %v890
      %v1840 = vpop.f32.mrb[0].mxu0
      %v1841 = vadd.f32 0.0, %v1840
      %v1842 = vpop.f32.mrb[0].mxu0
      %v1843 = vpop.f32.mrb[0].mxu0
      %v1844 = vadd.f32 0.0, %v1843
      %v1845 = vpop.f32.mrb[0].mxu0
      %1846 = vmatprep.mubr.bf16.mxu0 0
      %1847 = vmatmul.mubr.bf16.gmra.mrb[0].mxu0 %v893
      %v1848 = vpop.f32.mrb[0].mxu0
      %v1849 = vadd.f32 0.0, %v1848
      %v1850 = vpop.f32.mrb[0].mxu0
      %v1851 = vpop.f32.mrb[0].mxu0
      %v1852 = vadd.f32 0.0, %v1851
      %v1853 = vpop.f32.mrb[0].mxu0
      %1854 = vmatprep.mubr.bf16.mxu0 0
      %1855 = vmatmul.mubr.bf16.gmra.mrb[0].mxu0 %v896
      %v1856 = vpop.f32.mrb[0].mxu0
      %v1857 = vadd.f32 0.0, %v1856
      %v1858 = vpop.f32.mrb[0].mxu0
      %v1859 = vpop.f32.mrb[0].mxu0
      %v1860 = vadd.f32 0.0, %v1859
      %v1861 = vpop.f32.mrb[0].mxu0
      %1862 = vmatprep.mubr.bf16.mxu0 0
      %1863 = vmatmul.mubr.bf16.gmra.mrb[0].mxu0 %v1338
      %v1864 = vpop.f32.mrb[0].mxu0
      %v1865 = vadd.f32 0.0, %v1864
      %v1866 = vpop.f32.mrb[0].mxu0
      %v1867 = vpop.f32.mrb[0].mxu0
      %v1868 = vadd.f32 0.0, %v1867
      %v1869 = vpop.f32.mrb[0].mxu0
      %1870 = vmatprep.mubr.bf16.mxu0 0
      %1871 = vmatmul.mubr.bf16.gmra.mrb[0].mxu0 %v1780
      %v1872 = vpop.f32.mrb[0].mxu0
      %v1873 = vadd.f32 0.0, %v1872
      %v1874 = vpop.f32.mrb[0].mxu0
      %v1875 = vpop.f32.mrb[0].mxu0
      %v1876 = vadd.f32 0.0, %v1875
      %v1877 = vpop.f32.mrb[0].mxu0
      %1878 = vdwg.mxu0
      %v1879 = vadd.f32 %v1735, %v1817
      %v1880 = vadd.f32 %v1736, %v1820
      %v1881 = vadd.f32 %v1737, %v1825
      %v1882 = vadd.f32 %v1738, %v1828
      %v1883 = vadd.f32 %v1739, %v1833
      %v1884 = vadd.f32 %v1740, %v1836
      %v1885 = vadd.f32 %v1741, %v1841
      %v1886 = vadd.f32 %v1742, %v1844
      %v1887 = vadd.f32 %v1743, %v1849
      %v1888 = vadd.f32 %v1744, %v1852
      %v1889 = vadd.f32 %v1745, %v1857
      %v1890 = vadd.f32 %v1746, %v1860
      %v1891 = vadd.f32 %v1747, %v1865
      %v1892 = vadd.f32 %v1748, %v1868
      %v1893 = vadd.f32 %v1749, %v1873
      %v1894 = vadd.f32 %v1750, %v1876
      %v1895 = vld [vmem:[%s2] sm:$0x1]
      %v1897 = vlaneseq
      %v1898 = vshrl.u32 %v1897, 7
      %v1899 = vsub.s32 0, %v1898
      %v1900 = vrot.slane %v1895, %v1899
      %v1902 = vadd.f32 %v1879, %v1900
      %v1903 = vadd.f32 %v1880, %v1900
      %v1904 = vadd.f32 %v1881, %v1900
      %v1905 = vadd.f32 %v1882, %v1900
      %v1906 = vadd.f32 %v1883, %v1900
      %v1907 = vadd.f32 %v1884, %v1900
      %v1908 = vadd.f32 %v1885, %v1900
      %v1909 = vadd.f32 %v1886, %v1900
      %v1910 = vadd.f32 %v1887, %v1900
      %v1911 = vadd.f32 %v1888, %v1900
      %v1912 = vadd.f32 %v1889, %v1900
      %v1913 = vadd.f32 %v1890, %v1900
      %v1914 = vadd.f32 %v1891, %v1900
      %v1915 = vadd.f32 %v1892, %v1900
      %v1916 = vadd.f32 %v1893, %v1900
      %v1917 = vadd.f32 %v1894, %v1900
      %v1918 = vmax.f32 %v1902, 0.0
      %v1919 = vmax.f32 %v1903, 0.0
      %v1920 = vmax.f32 %v1904, 0.0
      %v1921 = vmax.f32 %v1905, 0.0
      %v1922 = vmax.f32 %v1906, 0.0
      %v1923 = vmax.f32 %v1907, 0.0
      %v1924 = vmax.f32 %v1908, 0.0
      %v1925 = vmax.f32 %v1909, 0.0
      %v1926 = vmax.f32 %v1910, 0.0
      %v1927 = vmax.f32 %v1911, 0.0
      %v1928 = vmax.f32 %v1912, 0.0
      %v1929 = vmax.f32 %v1913, 0.0
      %v1930 = vmax.f32 %v1914, 0.0
      %v1931 = vmax.f32 %v1915, 0.0
      %v1932 = vmax.f32 %v1916, 0.0
      %v1933 = vmax.f32 %v1917, 0.0
      %v1934 = vpack.c.bf16 %v1919, %v1918
      %v1935 = vpack.c.bf16 %v1921, %v1920
      %v1936 = vpack.c.bf16 %v1923, %v1922
      %v1937 = vpack.c.bf16 %v1925, %v1924
      %v1938 = vpack.c.bf16 %v1927, %v1926
      %v1939 = vpack.c.bf16 %v1929, %v1928
      %v1940 = vpack.c.bf16 %v1931, %v1930
      %v1941 = vpack.c.bf16 %v1933, %v1932
      %v1950 = vunpack.c.l.b16 %v1934
      %v1951 = vunpack.c.h.b16 %v1934
      %v1952 = vunpack.c.l.b16 %v1935
      %v1953 = vunpack.c.h.b16 %v1935
      %v1954 = vunpack.c.l.b16 %v1936
      %v1955 = vunpack.c.h.b16 %v1936
      %v1956 = vunpack.c.l.b16 %v1937
      %v1957 = vunpack.c.h.b16 %v1937
      %v1958 = vunpack.c.l.b16 %v1938
      %v1959 = vunpack.c.h.b16 %v1938
      %v1960 = vunpack.c.l.b16 %v1939
      %v1961 = vunpack.c.h.b16 %v1939
      %v1962 = vunpack.c.l.b16 %v1940
      %v1963 = vunpack.c.h.b16 %v1940
      %v1964 = vunpack.c.l.b16 %v1941
      %v1965 = vunpack.c.h.b16 %v1941
      %v1966 = vpack.c.b16 %v1950, %v1950
      %v1967 = vpack.c.b16 %v1951, %v1951
      %v1968 = vpack.c.b16 %v1952, %v1952
      %v1969 = vpack.c.b16 %v1953, %v1953
      %v1970 = vpack.c.b16 %v1954, %v1954
      %v1971 = vpack.c.b16 %v1955, %v1955
      %v1972 = vpack.c.b16 %v1956, %v1956
      %v1973 = vpack.c.b16 %v1957, %v1957
      %v1974 = vpack.c.b16 %v1958, %v1958
      %v1975 = vpack.c.b16 %v1959, %v1959
      %v1976 = vpack.c.b16 %v1960, %v1960
      %v1977 = vpack.c.b16 %v1961, %v1961
      %v1978 = vpack.c.b16 %v1962, %v1962
      %v1979 = vpack.c.b16 %v1963, %v1963
      %v1980 = vpack.c.b16 %v1964, %v1964
      %v1981 = vpack.c.b16 %v1965, %v1965
      %vm1998 = vcmask 257024
      %1999 = vst.msk [vmem:[%s194] sm:$0xf] %vm1998, %v1966
      %2000 = vst.msk [vmem:[%s194 + $0x4] sm:$0xf] %vm1998, %v1967
      %2001 = vst.msk [vmem:[%s194 + $0x8] sm:$0xf] %vm1998, %v1968
      %2002 = vst.msk [vmem:[%s194 + $0xc] sm:$0xf] %vm1998, %v1969
      %2003 = vst.msk [vmem:[%s194 + $0x10] sm:$0xf] %vm1998, %v1970
      %2004 = vst.msk [vmem:[%s194 + $0x14] sm:$0xf] %vm1998, %v1971
      %2005 = vst.msk [vmem:[%s194 + $0x18] sm:$0xf] %vm1998, %v1972
      %2006 = vst.msk [vmem:[%s194 + $0x1c] sm:$0xf] %vm1998, %v1973
      %2007 = vst.msk [vmem:[%s194 + $0x20] sm:$0xf] %vm1998, %v1974
      %2008 = vst.msk [vmem:[%s194 + $0x24] sm:$0xf] %vm1998, %v1975
      %2009 = vst.msk [vmem:[%s194 + $0x28] sm:$0xf] %vm1998, %v1976
      %2010 = vst.msk [vmem:[%s194 + $0x2c] sm:$0xf] %vm1998, %v1977
      %2011 = vst.msk [vmem:[%s194 + $0x30] sm:$0xf] %vm1998, %v1978
      %2012 = vst.msk [vmem:[%s194 + $0x34] sm:$0xf] %vm1998, %v1979
      %2013 = vst.msk [vmem:[%s194 + $0x38] sm:$0xf] %vm1998, %v1980
      %2014 = vst.msk [vmem:[%s194 + $0x3c] sm:$0xf] %vm1998, %v1981
      %s2015 = smul.u32 8, %s19
      %p2016 = scmp.lt.s32.totalorder %s18, 1
      %s2017 = scalar_select %p2016, %s18, 1
      %p2018 = scmp.lt.s32.totalorder %s2015, 15
      %s2019 = scalar_select %p2018, %s2015, 15
      %s2020 = smul.addr %s2019, 2
      %s2021 = smul.addr %s2017, 32
      %s2022 = sadd.s32 %s2020, %s2021
      %s2023 = smul.addr %s2022, 4
      %s2024 = scalar_lea.vmem %s3, %s2023
      // Predicated region
      $region33: #{_uaca_forward.7} parent=31 // pred_check
        %p2025 = pneg %p114
      $region34: #{_uaca_forward.7} parent=31 // pred_check_branch
        %2027 = sbr.rel (%p2025) target = $region36
      $region35: #{_uaca_forward.7} parent=31 // pred_region
        %s2028 = smul.u32 8, %s19
      $region36: #{_uaca_forward.7} parent=31 // pred_fallthru
        _
    $region32: #{_uaca_forward.7} parent=5 // pred_fallthru
      _
    %p2029 = scmp.le.s32.totalorder 2, %s9
    // Predicated region
    $region37: #{_uaca_forward.7} parent=5 // pred_check
      %p2030 = pneg %p2029
    $region38: #{_uaca_forward.7} parent=5 // pred_check_branch
      %2032 = sbr.rel (%p2030) target = $region40
    $region39: #{_uaca_forward.7} parent=5 // pred_region
      %s2033 = ssub.s32 %s9, 2
      // Predicated region
      $region41: #{_uaca_forward.7} parent=39 // pred_check
        %p2034 = pneg %p120
      $region42: #{_uaca_forward.7} parent=39 // pred_check_branch
        %2036 = sbr.rel (%p2034) target = $region44
      $region43: #{_uaca_forward.7} parent=39 // pred_region
        %s2037 = smul.u32 8, %s21
        %p2038 = scmp.lt.s32.totalorder %s20, 1
        %s2039 = scalar_select %p2038, %s20, 1
        %p2040 = scmp.lt.s32.totalorder %s2037, 15
        %s2041 = scalar_select %p2040, %s2037, 15
        %s2042 = smul.addr %s2041, 2
        %s2043 = smul.addr %s2039, 32
        %s2044 = sadd.s32 %s2042, %s2043
        %s2045 = smul.addr %s2044, 4
        %s2046 = scalar_lea.vmem %s3, %s2045
      $region44: #{_uaca_forward.7} parent=39 // pred_fallthru
        _
    $region40: #{_uaca_forward.7} parent=5 // pred_fallthru
      _
  $region6: #{_uaca_forward.7} parent=0 // loop_footer
    %s13 = sadd.s32 1, %s9
  $region7: #{_uaca_forward.7} parent=0 // loop_footer_branch
    %8 = sbr.rel target = $region3
  $region8: #{_uaca_forward.7} parent=0 // loop_exit
    _

// kernel: _uaca_forward.8
$region0: #{_uaca_forward.8}
  #allocation0 [shape = 'u32[]', space=smem, size = 0x4, offset = 0x4, fixed_abs, tag = 'smem constant byte address 0x4 - core index']
  #allocation1 [shape = 'u32[144,128]{1,0:T(1,128)}', space=vmem, size = 0x12000, scoped, tag = 'internal scratch']
  %s0 = inlined_call_operand.vmem [shape: f32[2,1,256], index: 0, kind: input, shape index: {}]
  %s1 = inlined_call_operand.vmem [shape: f32[2,256,4], index: 1, kind: input, shape index: {}]
  %s2 = inlined_call_operand.vmem [shape: bf16[2,256,32], index: 2, kind: input, shape index: {}]
  %s3 = inlined_call_operand.vmem [shape: f32[4,64], index: 3, kind: input, shape index: {}]
  %s4 = inlined_call_operand.vmem [shape: f32[1,64], index: 4, kind: input, shape index: {}]
  %s5 = inlined_call_operand.vmem [shape: f32[64,64], index: 5, kind: input, shape index: {}]
  %s6 = inlined_call_operand.vmem [shape: f32[1,64], index: 6, kind: input, shape index: {}]
  %s7 = inlined_call_operand.vmem [shape: bf16[2,256,32], index: 7, kind: output, shape index: {}]
  %s8 = sld [smem:[#allocation0]]
  $region61: #{_uaca_forward.8} parent=0
    _
  %s10 = ssub.s32 1, %s8
  %s11 = scalar_select 0, %s10, %s8
  loop: start=0, step=1, limit=4
  $region2: #{_uaca_forward.8} parent=0 // loop_pre_header
    _
  $region3: #{_uaca_forward.8} parent=0 // loop_header
    %s13 = sphi 0, %s17
    %p14 = scmp.ge.s32.totalorder %s13, 4
    %s23 = sphi 0, %s25
    %s26 = sphi 0, %s23
    %s27 = sphi 0, %s26
    %s43 = sphi 0, %s27
    %s49 = sphi 0, %s51
    %s52 = sphi 0, %s49
    %s53 = sphi 0, %s52
    %s69 = sphi 0, %s53
    %s75 = sphi 0, %s77
    %s78 = sphi 0, %s75
    %s79 = sphi 0, %s78
    %s95 = sphi 0, %s79
    %s99 = sphi 0, %s99
    %s101 = sphi 0, %s99
    %s102 = sphi 0, %s101
    %s116 = sphi 0, %s102
    %s120 = sphi 0, %s120
    %s122 = sphi 0, %s120
    %s123 = sphi 0, %s122
    %s137 = sphi 0, %s123
    %s141 = sphi 0, %s141
    %s143 = sphi 0, %s141
    %s144 = sphi 0, %s143
    %s158 = sphi 0, %s144
    %s162 = sphi 0, %s162
    %s164 = sphi 0, %s162
    %s165 = sphi 0, %s164
    %s179 = sphi 0, %s165
    %s185 = sphi 0, %s187
    %s188 = sphi 0, %s185
    %s189 = sphi 0, %s188
    %s205 = sphi 0, %s189
  $region4: #{_uaca_forward.8} parent=0 // loop_header_branch
    %16 = sbr.rel (%p14) target = $region8
  $region5: #{_uaca_forward.8} parent=0 // loop_body
    %s18 = ssub.s32 %s13, 1
    %s19 = ssub.s32 %s13, 2
    %s20 = sadd.s32 %s13, 1
    %s21 = ssub.s32 %s13, %s20
    %p22 = scmp.eq.s32.totalorder %s21, 0
    %s24 = sadd.s32 %s23, 1
    %s25 = scalar_select %p22, %s23, %s24
    %p28 = pneg %p22
    %p29 = scmp.eq.s32.totalorder %s13, 1
    %p30 = por %p28, %p29
    %p31 = scmp.ne.s32.totalorder %s23, %s26
    %p32 = scmp.eq.s32.totalorder %s13, 0
    %p33 = por %p31, %p32
    %p34 = scmp.ne.s32.totalorder %s23, %s26
    %p35 = scmp.eq.s32.totalorder %s18, 1
    %p36 = por %p34, %p35
    %p37 = scmp.ne.s32.totalorder %s26, %s27
    %p38 = scmp.eq.s32.totalorder %s18, 0
    %p39 = por %p37, %p38
    %p40 = scmp.ne.s32.totalorder %s26, %s27
    %p41 = scmp.eq.s32.totalorder %s19, 1
    %p42 = por %p40, %p41
    %p44 = scmp.ne.s32.totalorder %s27, %s43
    %p45 = scmp.eq.s32.totalorder %s19, 0
    %p46 = por %p44, %p45
    %s47 = ssub.s32 %s13, %s20
    %p48 = scmp.eq.s32.totalorder %s47, 0
    %s50 = sadd.s32 %s49, 1
    %s51 = scalar_select %p48, %s49, %s50
    %p54 = pneg %p48
    %p55 = scmp.eq.s32.totalorder %s13, 1
    %p56 = por %p54, %p55
    %p57 = scmp.ne.s32.totalorder %s49, %s52
    %p58 = scmp.eq.s32.totalorder %s13, 0
    %p59 = por %p57, %p58
    %p60 = scmp.ne.s32.totalorder %s49, %s52
    %p61 = scmp.eq.s32.totalorder %s18, 1
    %p62 = por %p60, %p61
    %p63 = scmp.ne.s32.totalorder %s52, %s53
    %p64 = scmp.eq.s32.totalorder %s18, 0
    %p65 = por %p63, %p64
    %p66 = scmp.ne.s32.totalorder %s52, %s53
    %p67 = scmp.eq.s32.totalorder %s19, 1
    %p68 = por %p66, %p67
    %p70 = scmp.ne.s32.totalorder %s53, %s69
    %p71 = scmp.eq.s32.totalorder %s19, 0
    %p72 = por %p70, %p71
    %s73 = ssub.s32 %s13, %s20
    %p74 = scmp.eq.s32.totalorder %s73, 0
    %s76 = sadd.s32 %s75, 1
    %s77 = scalar_select %p74, %s75, %s76
    %p80 = pneg %p74
    %p81 = scmp.eq.s32.totalorder %s13, 1
    %p82 = por %p80, %p81
    %p83 = scmp.ne.s32.totalorder %s75, %s78
    %p84 = scmp.eq.s32.totalorder %s13, 0
    %p85 = por %p83, %p84
    %p86 = scmp.ne.s32.totalorder %s75, %s78
    %p87 = scmp.eq.s32.totalorder %s18, 1
    %p88 = por %p86, %p87
    %p89 = scmp.ne.s32.totalorder %s78, %s79
    %p90 = scmp.eq.s32.totalorder %s18, 0
    %p91 = por %p89, %p90
    %p92 = scmp.ne.s32.totalorder %s78, %s79
    %p93 = scmp.eq.s32.totalorder %s19, 1
    %p94 = por %p92, %p93
    %p96 = scmp.ne.s32.totalorder %s79, %s95
    %p97 = scmp.eq.s32.totalorder %s19, 0
    %p98 = por %p96, %p97
    %s100 = sadd.s32 %s99, 1
    %p103 = scmp.eq.s32.totalorder %s13, 1
    %p104 = scmp.ne.s32.totalorder %s99, %s101
    %p105 = scmp.eq.s32.totalorder %s13, 0
    %p106 = por %p104, %p105
    %p107 = scmp.ne.s32.totalorder %s99, %s101
    %p108 = scmp.eq.s32.totalorder %s18, 1
    %p109 = por %p107, %p108
    %p110 = scmp.ne.s32.totalorder %s101, %s102
    %p111 = scmp.eq.s32.totalorder %s18, 0
    %p112 = por %p110, %p111
    %p113 = scmp.ne.s32.totalorder %s101, %s102
    %p114 = scmp.eq.s32.totalorder %s19, 1
    %p115 = por %p113, %p114
    %p117 = scmp.ne.s32.totalorder %s102, %s116
    %p118 = scmp.eq.s32.totalorder %s19, 0
    %p119 = por %p117, %p118
    %s121 = sadd.s32 %s120, 1
    %p124 = scmp.eq.s32.totalorder %s13, 1
    %p125 = scmp.ne.s32.totalorder %s120, %s122
    %p126 = scmp.eq.s32.totalorder %s13, 0
    %p127 = por %p125, %p126
    %p128 = scmp.ne.s32.totalorder %s120, %s122
    %p129 = scmp.eq.s32.totalorder %s18, 1
    %p130 = por %p128, %p129
    %p131 = scmp.ne.s32.totalorder %s122, %s123
    %p132 = scmp.eq.s32.totalorder %s18, 0
    %p133 = por %p131, %p132
    %p134 = scmp.ne.s32.totalorder %s122, %s123
    %p135 = scmp.eq.s32.totalorder %s19, 1
    %p136 = por %p134, %p135
    %p138 = scmp.ne.s32.totalorder %s123, %s137
    %p139 = scmp.eq.s32.totalorder %s19, 0
    %p140 = por %p138, %p139
    %s142 = sadd.s32 %s141, 1
    %p145 = scmp.eq.s32.totalorder %s13, 1
    %p146 = scmp.ne.s32.totalorder %s141, %s143
    %p147 = scmp.eq.s32.totalorder %s13, 0
    %p148 = por %p146, %p147
    %p149 = scmp.ne.s32.totalorder %s141, %s143
    %p150 = scmp.eq.s32.totalorder %s18, 1
    %p151 = por %p149, %p150
    %p152 = scmp.ne.s32.totalorder %s143, %s144
    %p153 = scmp.eq.s32.totalorder %s18, 0
    %p154 = por %p152, %p153
    %p155 = scmp.ne.s32.totalorder %s143, %s144
    %p156 = scmp.eq.s32.totalorder %s19, 1
    %p157 = por %p155, %p156
    %p159 = scmp.ne.s32.totalorder %s144, %s158
    %p160 = scmp.eq.s32.totalorder %s19, 0
    %p161 = por %p159, %p160
    %s163 = sadd.s32 %s162, 1
    %p166 = scmp.eq.s32.totalorder %s13, 1
    %p167 = scmp.ne.s32.totalorder %s162, %s164
    %p168 = scmp.eq.s32.totalorder %s13, 0
    %p169 = por %p167, %p168
    %p170 = scmp.ne.s32.totalorder %s162, %s164
    %p171 = scmp.eq.s32.totalorder %s18, 1
    %p172 = por %p170, %p171
    %p173 = scmp.ne.s32.totalorder %s164, %s165
    %p174 = scmp.eq.s32.totalorder %s18, 0
    %p175 = por %p173, %p174
    %p176 = scmp.ne.s32.totalorder %s164, %s165
    %p177 = scmp.eq.s32.totalorder %s19, 1
    %p178 = por %p176, %p177
    %p180 = scmp.ne.s32.totalorder %s165, %s179
    %p181 = scmp.eq.s32.totalorder %s19, 0
    %p182 = por %p180, %p181
    %s183 = ssub.s32 %s13, %s20
    %p184 = scmp.eq.s32.totalorder %s183, 0
    %s186 = sadd.s32 %s185, 1
    %s187 = scalar_select %p184, %s185, %s186
    %p190 = pneg %p184
    %p191 = scmp.eq.s32.totalorder %s13, 1
    %p192 = por %p190, %p191
    %p193 = scmp.ne.s32.totalorder %s185, %s188
    %p194 = scmp.eq.s32.totalorder %s13, 0
    %p195 = por %p193, %p194
    %p196 = scmp.ne.s32.totalorder %s185, %s188
    %p197 = scmp.eq.s32.totalorder %s18, 1
    %p198 = por %p196, %p197
    %p199 = scmp.ne.s32.totalorder %s188, %s189
    %p200 = scmp.eq.s32.totalorder %s18, 0
    %p201 = por %p199, %p200
    %p202 = scmp.ne.s32.totalorder %s188, %s189
    %p203 = scmp.eq.s32.totalorder %s19, 1
    %p204 = por %p202, %p203
    %p206 = scmp.ne.s32.totalorder %s189, %s205
    %p207 = scmp.eq.s32.totalorder %s19, 0
    %p208 = por %p206, %p207
    %p209 = scmp.le.s32.totalorder 1, %s13
    %p210 = scmp.lt.s32.totalorder %s13, 3
    %p211 = pnand %p209, %p210
    %p212 = pneg %p211
    // Predicated region
    $region9: #{_uaca_forward.8} parent=5 // pred_check
      _
    $region10: #{_uaca_forward.8} parent=5 // pred_check_branch
      %214 = sbr.rel (%p211) target = $region12
    $region11: #{_uaca_forward.8} parent=5 // pred_region
      %s215 = ssub.s32 %s13, 1
      // Predicated region
      $region13: #{_uaca_forward.8} parent=11 // pred_check
        %p216 = pneg %p112
      $region14: #{_uaca_forward.8} parent=11 // pred_check_branch
        %218 = sbr.rel (%p216) target = $region16
      $region15: #{_uaca_forward.8} parent=11 // pred_region
        _
      $region16: #{_uaca_forward.8} parent=11 // pred_fallthru
        _
      // Predicated region
      $region17: #{_uaca_forward.8} parent=11 // pred_check
        %p219 = pneg %p133
      $region18: #{_uaca_forward.8} parent=11 // pred_check_branch
        %221 = sbr.rel (%p219) target = $region20
      $region19: #{_uaca_forward.8} parent=11 // pred_region
        _
      $region20: #{_uaca_forward.8} parent=11 // pred_fallthru
        _
      // Predicated region
      $region21: #{_uaca_forward.8} parent=11 // pred_check
        %p222 = pneg %p154
      $region22: #{_uaca_forward.8} parent=11 // pred_check_branch
        %224 = sbr.rel (%p222) target = $region24
      $region23: #{_uaca_forward.8} parent=11 // pred_region
        _
      $region24: #{_uaca_forward.8} parent=11 // pred_fallthru
        _
      // Predicated region
      $region25: #{_uaca_forward.8} parent=11 // pred_check
        %p225 = pneg %p175
      $region26: #{_uaca_forward.8} parent=11 // pred_check_branch
        %227 = sbr.rel (%p225) target = $region28
      $region27: #{_uaca_forward.8} parent=11 // pred_region
        _
      $region28: #{_uaca_forward.8} parent=11 // pred_fallthru
        _
    $region12: #{_uaca_forward.8} parent=5 // pred_fallthru
      _
    %p228 = scmp.lt.s32.totalorder %s13, 2
    // Predicated region
    $region29: #{_uaca_forward.8} parent=5 // pred_check
      %p229 = pneg %p228
    $region30: #{_uaca_forward.8} parent=5 // pred_check_branch
      %231 = sbr.rel (%p229) target = $region32
    $region31: #{_uaca_forward.8} parent=5 // pred_region
      // Predicated region
      $region33: #{_uaca_forward.8} parent=31 // pred_check
        %p232 = pneg %p33
      $region34: #{_uaca_forward.8} parent=31 // pred_check_branch
        %234 = sbr.rel (%p232) target = $region36
      $region35: #{_uaca_forward.8} parent=31 // pred_region
        %p235 = scmp.lt.s32.totalorder %s13, 1
        %s236 = scalar_select %p235, %s13, 1
        %s237 = smul.addr %s236, 2
        %s238 = scalar_lea.vmem %s0, %s237
      $region36: #{_uaca_forward.8} parent=31 // pred_fallthru
        _
      // Predicated region
      $region37: #{_uaca_forward.8} parent=31 // pred_check
        %p239 = pneg %p59
      $region38: #{_uaca_forward.8} parent=31 // pred_check_branch
        %241 = sbr.rel (%p239) target = $region40
      $region39: #{_uaca_forward.8} parent=31 // pred_region
        %p242 = scmp.lt.s32.totalorder %s13, 1
        %s243 = scalar_select %p242, %s13, 1
        %s244 = smul.addr %s243, 32
        %s245 = smul.addr %s244, 8
        %s246 = scalar_lea.vmem %s1, %s245
      $region40: #{_uaca_forward.8} parent=31 // pred_fallthru
        _
      // Predicated region
      $region41: #{_uaca_forward.8} parent=31 // pred_check
        %p247 = pneg %p85
      $region42: #{_uaca_forward.8} parent=31 // pred_check_branch
        %249 = sbr.rel (%p247) target = $region44
      $region43: #{_uaca_forward.8} parent=31 // pred_region
        %p250 = scmp.lt.s32.totalorder %s13, 1
        %s251 = scalar_select %p250, %s13, 1
        %s252 = smul.addr %s251, 32
        %s253 = smul.addr %s252, 4
        %s254 = scalar_lea.vmem %s2, %s253
      $region44: #{_uaca_forward.8} parent=31 // pred_fallthru
        _
    $region32: #{_uaca_forward.8} parent=5 // pred_fallthru
      _
    %p255 = scmp.le.s32.totalorder 1, %s13
    %p256 = scmp.lt.s32.totalorder %s13, 3
    %p257 = pnand %p255, %p256
    %p258 = pneg %p257
    // Predicated region
    $region45: #{_uaca_forward.8} parent=5 // pred_check
      _
    $region46: #{_uaca_forward.8} parent=5 // pred_check_branch
      %260 = sbr.rel (%p257) target = $region48
    $region47: #{_uaca_forward.8} parent=5 // pred_region
      %s261 = ssub.s32 %s13, 1
      %p262 = scmp.lt.s32.totalorder %s18, 1
      %s263 = scalar_select %p262, %s18, 1
      %s264 = smul.addr %s263, 2
      %s265 = scalar_lea.vmem %s0, %s264
      %p266 = pneg %p39
      %p267 = pneg %p36
      %p268 = scmp.lt.s32.totalorder %s18, 1
      %s269 = scalar_select %p268, %s18, 1
      %s270 = smul.addr %s269, 32
      %s271 = smul.addr %s270, 8
      %s272 = scalar_lea.vmem %s1, %s271
      %p273 = pneg %p65
      %p274 = pneg %p62
      %p275 = scmp.lt.s32.totalorder %s18, 1
      %s276 = scalar_select %p275, %s18, 1
      %s277 = smul.addr %s276, 32
      %s278 = smul.addr %s277, 4
      %s279 = scalar_lea.vmem %s2, %s278
      %p280 = pneg %p91
      %p281 = pneg %p88
      %p282 = pneg %p112
      %p283 = pneg %p109
      %p284 = pneg %p133
      %p285 = pneg %p130
      %p286 = pneg %p154
      %p287 = pneg %p151
      %p288 = pneg %p175
      %p289 = pneg %p172
      %p290 = pneg %p201
      %p291 = pneg %p198
      %p292 = scmp.lt.s32.totalorder %s18, 1
      %s293 = scalar_select %p292, %s18, 1
      %s294 = smul.addr %s293, 32
      %s295 = smul.addr %s294, 4
      %s296 = scalar_lea.vmem %s7, %s295
      %p297 = scmp.lt.s32.totalorder %s18, 1
      %s298 = scalar_select %p297, %s18, 1
      %s299 = smul.addr %s298, 2
      %s300 = scalar_lea.vmem %s0, %s299
      %p301 = scmp.lt.s32.totalorder %s18, 1
      %s302 = scalar_select %p301, %s18, 1
      %s303 = smul.addr %s302, 32
      %s304 = smul.addr %s303, 8
      %s305 = scalar_lea.vmem %s1, %s304
      %p306 = scmp.lt.s32.totalorder %s18, 1
      %s307 = scalar_select %p306, %s18, 1
      %s308 = smul.addr %s307, 32
      %s309 = smul.addr %s308, 4
      %s310 = scalar_lea.vmem %s2, %s309
      %p311 = scmp.lt.s32.totalorder %s18, 1
      %s312 = scalar_select %p311, %s18, 1
      %s313 = smul.addr %s312, 32
      %s314 = smul.addr %s313, 4
      %s315 = scalar_lea.vmem %s7, %s314
      %v316 = vld [vmem:[%s300] sm:$0x3]
      %v317 = vxor.u32 %v316, 2147483648
      %v318 = vmul.f32 %v317, 1.442695
      %v319 = vpow.pop %v318
      %v320 = vadd.f32 %v319, 1.0
      %v321 = vrcp.pop %v320
      %v322 = vmul.f32 1.0, %v321
      %v323 = vsub.f32 %v322, 0.5
      %v324 = vmax.f32 %v323, 0.0
      %v325 = vmin.f32 %v324, 1.0
      %v326 = vsub.f32 0.0, %v323
      %v327 = vmax.f32 %v326, 0.0
      %v328 = vmin.f32 %v327, 1.0
      %v329 = vand.u32 2147483647, %v323
      %v330 = vsub.f32 0.5, %v329
      %v332 = vlaneseq
      %v333 = vshrl.u32 %v332, 7
      %v334 = vsub.s32 0, %v333
      %v335 = vrot.slane %v325, %v334
      %v336 = vlaneseq
      %v337 = vshrl.u32 %v336, 7
      %v338 = vsub.s32 1, %v337
      %v339 = vrot.slane %v325, %v338
      %v343 = vlaneseq
      %v344 = vshrl.u32 %v343, 7
      %v345 = vsub.s32 0, %v344
      %v346 = vrot.slane %v328, %v345
      %v347 = vlaneseq
      %v348 = vshrl.u32 %v347, 7
      %v349 = vsub.s32 1, %v348
      %v350 = vrot.slane %v328, %v349
      %v354 = vlaneseq
      %v355 = vshrl.u32 %v354, 7
      %v356 = vsub.s32 0, %v355
      %v357 = vrot.slane %v330, %v356
      %v358 = vlaneseq
      %v359 = vshrl.u32 %v358, 7
      %v360 = vsub.s32 1, %v359
      %v361 = vrot.slane %v330, %v360
      %vm364 = vcmask 1040384
      %v365 = vsel %vm364, %v335, %v346
      %v366 = vsel %vm364, %v339, %v350
      %vm367 = vcmask 1041408
      %v368 = vsel %vm367, %v365, %v357
      %v369 = vsel %vm367, %v366, %v361
      %vm370 = vcmask 1042432
      %v371 = vsel %vm370, %v368, 0.0
      %v372 = vsel %vm370, %v369, 0.0
      %v373 = vld [vmem:[%s305] sm:$0xff]
      %v374 = vld [vmem:[%s305 + $0x8] sm:$0xff]
      %v375 = vld [vmem:[%s305 + $0x10] sm:$0xff]
      %v376 = vld [vmem:[%s305 + $0x18] sm:$0xff]
      %v377 = vld [vmem:[%s305 + $0x20] sm:$0xff]
      %v378 = vld [vmem:[%s305 + $0x28] sm:$0xff]
      %v379 = vld [vmem:[%s305 + $0x30] sm:$0xff]
      %v380 = vld [vmem:[%s305 + $0x38] sm:$0xff]
      %v381 = vld [vmem:[%s305 + $0x40] sm:$0xff]
      %v382 = vld [vmem:[%s305 + $0x48] sm:$0xff]
      %v383 = vld [vmem:[%s305 + $0x50] sm:$0xff]
      %v384 = vld [vmem:[%s305 + $0x58] sm:$0xff]
      %v385 = vld [vmem:[%s305 + $0x60] sm:$0xff]
      %v386 = vld [vmem:[%s305 + $0x68] sm:$0xff]
      %v387 = vld [vmem:[%s305 + $0x70] sm:$0xff]
      %v388 = vld [vmem:[%s305 + $0x78] sm:$0xff]
      %v389 = vld [vmem:[%s305 + $0x80] sm:$0xff]
      %v390 = vld [vmem:[%s305 + $0x88] sm:$0xff]
      %v391 = vld [vmem:[%s305 + $0x90] sm:$0xff]
      %v392 = vld [vmem:[%s305 + $0x98] sm:$0xff]
      %v393 = vld [vmem:[%s305 + $0xa0] sm:$0xff]
      %v394 = vld [vmem:[%s305 + $0xa8] sm:$0xff]
      %v395 = vld [vmem:[%s305 + $0xb0] sm:$0xff]
      %v396 = vld [vmem:[%s305 + $0xb8] sm:$0xff]
      %v397 = vld [vmem:[%s305 + $0xc0] sm:$0xff]
      %v398 = vld [vmem:[%s305 + $0xc8] sm:$0xff]
      %v399 = vld [vmem:[%s305 + $0xd0] sm:$0xff]
      %v400 = vld [vmem:[%s305 + $0xd8] sm:$0xff]
      %v401 = vld [vmem:[%s305 + $0xe0] sm:$0xff]
      %v402 = vld [vmem:[%s305 + $0xe8] sm:$0xff]
      %v403 = vld [vmem:[%s305 + $0xf0] sm:$0xff]
      %v404 = vld [vmem:[%s305 + $0xf8] sm:$0xff]
      %405 = vmatprep.subr.mxu0 0.0
      %406 = vmatpush1.msra.mxu0 %v373
      %407 = vmatprep.subr.mxu0 0.0
      %408 = vmatpush1.msra.mxu0 %v374
      %409 = vmatprep.subr.mxu0 0.0
      %410 = vmatpush1.msra.mxu0 %v375
      %411 = vmatprep.subr.mxu0 0.0
      %412 = vmatpush1.msra.mxu0 %v376
      %413 = vmatprep.subr.mxu0 0.0
      %414 = vmatpush1.msra.mxu0 %v377
      %415 = vmatprep.subr.mxu0 0.0
      %416 = vmatpush1.msra.mxu0 %v378
      %417 = vmatprep.subr.mxu0 0.0
      %418 = vmatpush1.msra.mxu0 %v379
      %419 = vmatprep.subr.mxu0 0.0
      %420 = vmatpush1.msra.mxu0 %v380
      %421 = vmatprep.subr.mxu0 0.0
      %422 = vmatpush1.msra.mxu0 %v381
      %423 = vmatprep.subr.mxu0 0.0
      %424 = vmatpush1.msra.mxu0 %v382
      %425 = vmatprep.subr.mxu0 0.0
      %426 = vmatpush1.msra.mxu0 %v383
      %427 = vmatprep.subr.mxu0 0.0
      %428 = vmatpush1.msra.mxu0 %v384
      %429 = vmatprep.subr.mxu0 0.0
      %430 = vmatpush1.msra.mxu0 %v385
      %431 = vmatprep.subr.mxu0 0.0
      %432 = vmatpush1.msra.mxu0 %v386
      %433 = vmatprep.subr.mxu0 0.0
      %434 = vmatpush1.msra.mxu0 %v387
      %435 = vmatprep.subr.mxu0 0.0
      %436 = vmatpush1.msra.mxu0 %v388
      %437 = vmatprep.subr.mxu0 0.0
      %438 = vmatpush1.msra.mxu0 %v389
      %439 = vmatprep.subr.mxu0 0.0
      %440 = vmatpush1.msra.mxu0 %v390
      %441 = vmatprep.subr.mxu0 0.0
      %442 = vmatpush1.msra.mxu0 %v391
      %443 = vmatprep.subr.mxu0 0.0
      %444 = vmatpush1.msra.mxu0 %v392
      %445 = vmatprep.subr.mxu0 0.0
      %446 = vmatpush1.msra.mxu0 %v393
      %447 = vmatprep.subr.mxu0 0.0
      %448 = vmatpush1.msra.mxu0 %v394
      %449 = vmatprep.subr.mxu0 0.0
      %450 = vmatpush1.msra.mxu0 %v395
      %451 = vmatprep.subr.mxu0 0.0
      %452 = vmatpush1.msra.mxu0 %v396
      %453 = vmatprep.subr.mxu0 0.0
      %454 = vmatpush1.msra.mxu0 %v397
      %455 = vmatprep.subr.mxu0 0.0
      %456 = vmatpush1.msra.mxu0 %v398
      %457 = vmatprep.subr.mxu0 0.0
      %458 = vmatpush1.msra.mxu0 %v399
      %459 = vmatprep.subr.mxu0 0.0
      %460 = vmatpush1.msra.mxu0 %v400
      %461 = vmatprep.subr.mxu0 0.0
      %462 = vmatpush1.msra.mxu0 %v401
      %463 = vmatprep.subr.mxu0 0.0
      %464 = vmatpush1.msra.mxu0 %v402
      %465 = vmatprep.subr.mxu0 0.0
      %466 = vmatpush1.msra.mxu0 %v403
      %467 = vmatprep.subr.mxu0 0.0
      %468 = vmatpush1.msra.mxu0 %v404
      %469 = vmatprep.mubr.f32.mxu0 %v372
      %470 = vmatmul.mubr.f32.gmra.mrb[0].mxu0 %v371
      %v471 = vpop.f32.mrb[0].mxu0
      %v472 = vadd.f32 0.0, %v471
      %v473 = vpop.f32.mrb[0].mxu0
      %474 = vdwg.mxu0
      %v475 = vld [vmem:[%s3] sm:$0xf]
      %v476 = vld [vmem:[%s4] sm:$0x1]
      %v478 = vlaneseq
      %v479 = vshrl.u32 %v478, 7
      %v480 = vsub.s32 0, %v479
      %v481 = vrot.slane %v476, %v480
      %vm483 = vcmask 31744
      %v485 = vsel %vm483, %v472, 0
      %vm487 = vcmask 1043456
      %v489 = vsel %vm487, %v475, 0
      %491 = vmatprep.subr.mxu0 0.0
      %492 = vmatpush1.msra.mxu0 %v489
      %493 = vmatprep.subr.mxu0 0.0
      %494 = vmatpush1.msra.mxu0 0.0
      %495 = vmatprep.subr.mxu0 0.0
      %496 = vmatpush1.msra.mxu0 0.0
      %497 = vmatprep.subr.mxu0 0.0
      %498 = vmatpush1.msra.mxu0 0.0
      %499 = vmatprep.subr.mxu0 0.0
      %500 = vmatpush1.msra.mxu0 0.0
      %501 = vmatprep.subr.mxu0 0.0
      %502 = vmatpush1.msra.mxu0 0.0
      %503 = vmatprep.subr.mxu0 0.0
      %504 = vmatpush1.msra.mxu0 0.0
      %505 = vmatprep.subr.mxu0 0.0
      %506 = vmatpush1.msra.mxu0 0.0
      %507 = vmatprep.subr.mxu0 0.0
      %508 = vmatpush1.msra.mxu0 0.0
      %509 = vmatprep.subr.mxu0 0.0
      %510 = vmatpush1.msra.mxu0 0.0
      %511 = vmatprep.subr.mxu0 0.0
      %512 = vmatpush1.msra.mxu0 0.0
      %513 = vmatprep.subr.mxu0 0.0
      %514 = vmatpush1.msra.mxu0 0.0
      %515 = vmatprep.subr.mxu0 0.0
      %516 = vmatpush1.msra.mxu0 0.0
      %517 = vmatprep.subr.mxu0 0.0
      %518 = vmatpush1.msra.mxu0 0.0
      %519 = vmatprep.subr.mxu0 0.0
      %520 = vmatpush1.msra.mxu0 0.0
      %521 = vmatprep.subr.mxu0 0.0
      %522 = vmatpush1.msra.mxu0 0.0
      %523 = vmatprep.subr.mxu0 0.0
      %524 = vmatpush1.msra.mxu0 0.0
      %525 = vmatprep.subr.mxu0 0.0
      %526 = vmatpush1.msra.mxu0 0.0
      %527 = vmatprep.subr.mxu0 0.0
      %528 = vmatpush1.msra.mxu0 0.0
      %529 = vmatprep.subr.mxu0 0.0
      %530 = vmatpush1.msra.mxu0 0.0
      %531 = vmatprep.subr.mxu0 0.0
      %532 = vmatpush1.msra.mxu0 0.0
      %533 = vmatprep.subr.mxu0 0.0
      %534 = vmatpush1.msra.mxu0 0.0
      %535 = vmatprep.subr.mxu0 0.0
      %536 = vmatpush1.msra.mxu0 0.0
      %537 = vmatprep.subr.mxu0 0.0
      %538 = vmatpush1.msra.mxu0 0.0
      %539 = vmatprep.subr.mxu0 0.0
      %540 = vmatpush1.msra.mxu0 0.0
      %541 = vmatprep.subr.mxu0 0.0
      %542 = vmatpush1.msra.mxu0 0.0
      %543 = vmatprep.subr.mxu0 0.0
      %544 = vmatpush1.msra.mxu0 0.0
      %545 = vmatprep.subr.mxu0 0.0
      %546 = vmatpush1.msra.mxu0 0.0
      %547 = vmatprep.subr.mxu0 0.0
      %548 = vmatpush1.msra.mxu0 0.0
      %549 = vmatprep.subr.mxu0 0.0
      %550 = vmatpush1.msra.mxu0 0.0
      %551 = vmatprep.subr.mxu0 0.0
      %552 = vmatpush1.msra.mxu0 0.0
      %553 = vmatprep.subr.mxu0 0.0
      %554 = vmatpush1.msra.mxu0 0.0
      %555 = vmatprep.mubr.f32.mxu0 0.0
      %556 = vmatmul.mubr.f32.gmra.mrb[0].mxu0 %v485
      %v557 = vpop.f32.mrb[0].mxu0
      %v558 = vadd.f32 %v481, %v557
      %v559 = vpop.f32.mrb[0].mxu0
      %560 = vdwg.mxu0
      %v561 = vmax.f32 %v558, 0.0
      %v562 = vld [vmem:[%s5] sm:$0xff]
      %v563 = vld [vmem:[%s5 + $0x8] sm:$0xff]
      %v564 = vld [vmem:[%s5 + $0x10] sm:$0xff]
      %v565 = vld [vmem:[%s5 + $0x18] sm:$0xff]
      %v566 = vld [vmem:[%s5 + $0x20] sm:$0xff]
      %v567 = vld [vmem:[%s5 + $0x28] sm:$0xff]
      %v568 = vld [vmem:[%s5 + $0x30] sm:$0xff]
      %v569 = vld [vmem:[%s5 + $0x38] sm:$0xff]
      %v570 = vld [vmem:[%s6] sm:$0x1]
      %v572 = vlaneseq
      %v573 = vshrl.u32 %v572, 7
      %v574 = vsub.s32 0, %v573
      %v575 = vrot.slane %v570, %v574
      %vm577 = vcmask 523264
      %v579 = vsel %vm577, %v561, 0
      %581 = vmatprep.subr.mxu0 0.0
      %582 = vmatpush1.msra.mxu0 %v562
      %583 = vmatprep.subr.mxu0 0.0
      %584 = vmatpush1.msra.mxu0 %v563
      %585 = vmatprep.subr.mxu0 0.0
      %586 = vmatpush1.msra.mxu0 %v564
      %587 = vmatprep.subr.mxu0 0.0
      %588 = vmatpush1.msra.mxu0 %v565
      %589 = vmatprep.subr.mxu0 0.0
      %590 = vmatpush1.msra.mxu0 %v566
      %591 = vmatprep.subr.mxu0 0.0
      %592 = vmatpush1.msra.mxu0 %v567
      %593 = vmatprep.subr.mxu0 0.0
      %594 = vmatpush1.msra.mxu0 %v568
      %595 = vmatprep.subr.mxu0 0.0
      %596 = vmatpush1.msra.mxu0 %v569
      %597 = vmatprep.subr.mxu0 0.0
      %598 = vmatpush1.msra.mxu0 0.0
      %599 = vmatprep.subr.mxu0 0.0
      %600 = vmatpush1.msra.mxu0 0.0
      %601 = vmatprep.subr.mxu0 0.0
      %602 = vmatpush1.msra.mxu0 0.0
      %603 = vmatprep.subr.mxu0 0.0
      %604 = vmatpush1.msra.mxu0 0.0
      %605 = vmatprep.subr.mxu0 0.0
      %606 = vmatpush1.msra.mxu0 0.0
      %607 = vmatprep.subr.mxu0 0.0
      %608 = vmatpush1.msra.mxu0 0.0
      %609 = vmatprep.subr.mxu0 0.0
      %610 = vmatpush1.msra.mxu0 0.0
      %611 = vmatprep.subr.mxu0 0.0
      %612 = vmatpush1.msra.mxu0 0.0
      %613 = vmatprep.subr.mxu0 0.0
      %614 = vmatpush1.msra.mxu0 0.0
      %615 = vmatprep.subr.mxu0 0.0
      %616 = vmatpush1.msra.mxu0 0.0
      %617 = vmatprep.subr.mxu0 0.0
      %618 = vmatpush1.msra.mxu0 0.0
      %619 = vmatprep.subr.mxu0 0.0
      %620 = vmatpush1.msra.mxu0 0.0
      %621 = vmatprep.subr.mxu0 0.0
      %622 = vmatpush1.msra.mxu0 0.0
      %623 = vmatprep.subr.mxu0 0.0
      %624 = vmatpush1.msra.mxu0 0.0
      %625 = vmatprep.subr.mxu0 0.0
      %626 = vmatpush1.msra.mxu0 0.0
      %627 = vmatprep.subr.mxu0 0.0
      %628 = vmatpush1.msra.mxu0 0.0
      %629 = vmatprep.subr.mxu0 0.0
      %630 = vmatpush1.msra.mxu0 0.0
      %631 = vmatprep.subr.mxu0 0.0
      %632 = vmatpush1.msra.mxu0 0.0
      %633 = vmatprep.subr.mxu0 0.0
      %634 = vmatpush1.msra.mxu0 0.0
      %635 = vmatprep.subr.mxu0 0.0
      %636 = vmatpush1.msra.mxu0 0.0
      %637 = vmatprep.subr.mxu0 0.0
      %638 = vmatpush1.msra.mxu0 0.0
      %639 = vmatprep.subr.mxu0 0.0
      %640 = vmatpush1.msra.mxu0 0.0
      %641 = vmatprep.subr.mxu0 0.0
      %642 = vmatpush1.msra.mxu0 0.0
      %643 = vmatprep.subr.mxu0 0.0
      %644 = vmatpush1.msra.mxu0 0.0
      %645 = vmatprep.mubr.f32.mxu0 0.0
      %646 = vmatmul.mubr.f32.gmra.mrb[0].mxu0 %v579
      %v647 = vpop.f32.mrb[0].mxu0
      %v648 = vadd.f32 %v575, %v647
      %v649 = vpop.f32.mrb[0].mxu0
      %650 = vdwg.mxu0
      %v651 = vmax.f32 %v648, 0.0
      %v652 = vld [vmem:[%s310] sm:$0xf]
      %v653 = vld [vmem:[%s310 + $0x4] sm:$0xf]
      %v654 = vld [vmem:[%s310 + $0x8] sm:$0xf]
      %v655 = vld [vmem:[%s310 + $0xc] sm:$0xf]
      %v656 = vld [vmem:[%s310 + $0x10] sm:$0xf]
      %v657 = vld [vmem:[%s310 + $0x14] sm:$0xf]
      %v658 = vld [vmem:[%s310 + $0x18] sm:$0xf]
      %v659 = vld [vmem:[%s310 + $0x1c] sm:$0xf]
      %v660 = vld [vmem:[%s310 + $0x20] sm:$0xf]
      %v661 = vld [vmem:[%s310 + $0x24] sm:$0xf]
      %v662 = vld [vmem:[%s310 + $0x28] sm:$0xf]
      %v663 = vld [vmem:[%s310 + $0x2c] sm:$0xf]
      %v664 = vld [vmem:[%s310 + $0x30] sm:$0xf]
      %v665 = vld [vmem:[%s310 + $0x34] sm:$0xf]
      %v666 = vld [vmem:[%s310 + $0x38] sm:$0xf]
      %v667 = vld [vmem:[%s310 + $0x3c] sm:$0xf]
      %v668 = vld [vmem:[%s310 + $0x40] sm:$0xf]
      %v669 = vld [vmem:[%s310 + $0x44] sm:$0xf]
      %v670 = vld [vmem:[%s310 + $0x48] sm:$0xf]
      %v671 = vld [vmem:[%s310 + $0x4c] sm:$0xf]
      %v672 = vld [vmem:[%s310 + $0x50] sm:$0xf]
      %v673 = vld [vmem:[%s310 + $0x54] sm:$0xf]
      %v674 = vld [vmem:[%s310 + $0x58] sm:$0xf]
      %v675 = vld [vmem:[%s310 + $0x5c] sm:$0xf]
      %v676 = vld [vmem:[%s310 + $0x60] sm:$0xf]
      %v677 = vld [vmem:[%s310 + $0x64] sm:$0xf]
      %v678 = vld [vmem:[%s310 + $0x68] sm:$0xf]
      %v679 = vld [vmem:[%s310 + $0x6c] sm:$0xf]
      %v680 = vld [vmem:[%s310 + $0x70] sm:$0xf]
      %v681 = vld [vmem:[%s310 + $0x74] sm:$0xf]
      %v682 = vld [vmem:[%s310 + $0x78] sm:$0xf]
      %v683 = vld [vmem:[%s310 + $0x7c] sm:$0xf]
      %v684 = vunpack.c.l.bf16 %v652
      %v685 = vunpack.c.l.bf16 %v653
      %v686 = vunpack.c.l.bf16 %v654
      %v687 = vunpack.c.l.bf16 %v655
      %v688 = vunpack.c.l.bf16 %v656
      %v689 = vunpack.c.l.bf16 %v657
      %v690 = vunpack.c.l.bf16 %v658
      %v691 = vunpack.c.l.bf16 %v659
      %v692 = vunpack.c.l.bf16 %v660
      %v693 = vunpack.c.l.bf16 %v661
      %v694 = vunpack.c.l.bf16 %v662
      %v695 = vunpack.c.l.bf16 %v663
      %v696 = vunpack.c.l.bf16 %v664
      %v697 = vunpack.c.l.bf16 %v665
      %v698 = vunpack.c.l.bf16 %v666
      %v699 = vunpack.c.l.bf16 %v667
      %v700 = vunpack.c.l.bf16 %v668
      %v701 = vunpack.c.l.bf16 %v669
      %v702 = vunpack.c.l.bf16 %v670
      %v703 = vunpack.c.l.bf16 %v671
      %v704 = vunpack.c.l.bf16 %v672
      %v705 = vunpack.c.l.bf16 %v673
      %v706 = vunpack.c.l.bf16 %v674
      %v707 = vunpack.c.l.bf16 %v675
      %v708 = vunpack.c.l.bf16 %v676
      %v709 = vunpack.c.l.bf16 %v677
      %v710 = vunpack.c.l.bf16 %v678
      %v711 = vunpack.c.l.bf16 %v679
      %v712 = vunpack.c.l.bf16 %v680
      %v713 = vunpack.c.l.bf16 %v681
      %v714 = vunpack.c.l.bf16 %v682
      %v715 = vunpack.c.l.bf16 %v683
      %vm716 = vcmask 261120
      %v718 = vsel %vm716, %v684, 0
      %v721 = vsel %vm716, %v685, 0
      %v724 = vsel %vm716, %v686, 0
      %v727 = vsel %vm716, %v687, 0
      %v730 = vsel %vm716, %v688, 0
      %v733 = vsel %vm716, %v689, 0
      %v736 = vsel %vm716, %v690, 0
      %v739 = vsel %vm716, %v691, 0
      %v742 = vsel %vm716, %v692, 0
      %v745 = vsel %vm716, %v693, 0
      %v748 = vsel %vm716, %v694, 0
      %v751 = vsel %vm716, %v695, 0
      %v754 = vsel %vm716, %v696, 0
      %v757 = vsel %vm716, %v697, 0
      %v760 = vsel %vm716, %v698, 0
      %v763 = vsel %vm716, %v699, 0
      %v766 = vsel %vm716, %v700, 0
      %v769 = vsel %vm716, %v701, 0
      %v772 = vsel %vm716, %v702, 0
      %v775 = vsel %vm716, %v703, 0
      %v778 = vsel %vm716, %v704, 0
      %v781 = vsel %vm716, %v705, 0
      %v784 = vsel %vm716, %v706, 0
      %v787 = vsel %vm716, %v707, 0
      %v790 = vsel %vm716, %v708, 0
      %v793 = vsel %vm716, %v709, 0
      %v796 = vsel %vm716, %v710, 0
      %v799 = vsel %vm716, %v711, 0
      %v802 = vsel %vm716, %v712, 0
      %v805 = vsel %vm716, %v713, 0
      %v808 = vsel %vm716, %v714, 0
      %v811 = vsel %vm716, %v715, 0
      %v814 = vsel %vm716, %v651, 0
      %816 = vmatprep.subr.mxu0 0.0
      %817 = vmatpush1.xpose.msra.mxu0 %v814
      %818 = vmatprep.subr.mxu0 0.0
      %819 = vmatpush1.xpose.msra.mxu0 0.0
      %820 = vmatprep.subr.mxu0 0.0
      %821 = vmatpush1.xpose.msra.mxu0 0.0
      %822 = vmatprep.subr.mxu0 0.0
      %823 = vmatpush1.xpose.msra.mxu0 0.0
      %824 = vmatprep.subr.mxu0 0.0
      %825 = vmatpush1.xpose.msra.mxu0 0.0
      %826 = vmatprep.subr.mxu0 0.0
      %827 = vmatpush1.xpose.msra.mxu0 0.0
      %828 = vmatprep.subr.mxu0 0.0
      %829 = vmatpush1.xpose.msra.mxu0 0.0
      %830 = vmatprep.subr.mxu0 0.0
      %831 = vmatpush1.xpose.msra.mxu0 0.0
      %832 = vmatprep.subr.mxu0 0.0
      %833 = vmatpush1.xpose.msra.mxu0 0.0
      %834 = vmatprep.subr.mxu0 0.0
      %835 = vmatpush1.xpose.msra.mxu0 0.0
      %836 = vmatprep.subr.mxu0 0.0
      %837 = vmatpush1.xpose.msra.mxu0 0.0
      %838 = vmatprep.subr.mxu0 0.0
      %839 = vmatpush1.xpose.msra.mxu0 0.0
      %840 = vmatprep.subr.mxu0 0.0
      %841 = vmatpush1.xpose.msra.mxu0 0.0
      %842 = vmatprep.subr.mxu0 0.0
      %843 = vmatpush1.xpose.msra.mxu0 0.0
      %844 = vmatprep.subr.mxu0 0.0
      %845 = vmatpush1.xpose.msra.mxu0 0.0
      %846 = vmatprep.subr.mxu0 0.0
      %847 = vmatpush1.xpose.msra.mxu0 0.0
      %848 = vmatprep.subr.mxu0 0.0
      %849 = vmatpush1.xpose.msra.mxu0 0.0
      %850 = vmatprep.subr.mxu0 0.0
      %851 = vmatpush1.xpose.msra.mxu0 0.0
      %852 = vmatprep.subr.mxu0 0.0
      %853 = vmatpush1.xpose.msra.mxu0 0.0
      %854 = vmatprep.subr.mxu0 0.0
      %855 = vmatpush1.xpose.msra.mxu0 0.0
      %856 = vmatprep.subr.mxu0 0.0
      %857 = vmatpush1.xpose.msra.mxu0 0.0
      %858 = vmatprep.subr.mxu0 0.0
      %859 = vmatpush1.xpose.msra.mxu0 0.0
      %860 = vmatprep.subr.mxu0 0.0
      %861 = vmatpush1.xpose.msra.mxu0 0.0
      %862 = vmatprep.subr.mxu0 0.0
      %863 = vmatpush1.xpose.msra.mxu0 0.0
      %864 = vmatprep.subr.mxu0 0.0
      %865 = vmatpush1.xpose.msra.mxu0 0.0
      %866 = vmatprep.subr.mxu0 0.0
      %867 = vmatpush1.xpose.msra.mxu0 0.0
      %868 = vmatprep.subr.mxu0 0.0
      %869 = vmatpush1.xpose.msra.mxu0 0.0
      %870 = vmatprep.subr.mxu0 0.0
      %871 = vmatpush1.xpose.msra.mxu0 0.0
      %872 = vmatprep.subr.mxu0 0.0
      %873 = vmatpush1.xpose.msra.mxu0 0.0
      %874 = vmatprep.subr.mxu0 0.0
      %875 = vmatpush1.xpose.msra.mxu0 0.0
      %876 = vmatprep.subr.mxu0 0.0
      %877 = vmatpush1.xpose.msra.mxu0 0.0
      %878 = vmatprep.subr.mxu0 0.0
      %879 = vmatpush1.xpose.msra.mxu0 0.0
      %880 = vmatprep.mubr.f32.mxu0 0.0
      %881 = vmatmul.mubr.f32.gmra.mrb[0].mxu0 %v718
      %v882 = vpop.f32.mrb[0].mxu0
      %v883 = vadd.f32 0.0, %v882
      %v884 = vpop.f32.mrb[0].mxu0
      %885 = vmatprep.mubr.f32.mxu0 0.0
      %886 = vmatmul.mubr.f32.gmra.mrb[0].mxu0 %v721
      %v887 = vpop.f32.mrb[0].mxu0
      %v888 = vadd.f32 0.0, %v887
      %v889 = vpop.f32.mrb[0].mxu0
      %890 = vmatprep.mubr.f32.mxu0 0.0
      %891 = vmatmul.mubr.f32.gmra.mrb[0].mxu0 %v724
      %v892 = vpop.f32.mrb[0].mxu0
      %v893 = vadd.f32 0.0, %v892
      %v894 = vpop.f32.mrb[0].mxu0
      %895 = vmatprep.mubr.f32.mxu0 0.0
      %896 = vmatmul.mubr.f32.gmra.mrb[0].mxu0 %v727
      %v897 = vpop.f32.mrb[0].mxu0
      %v898 = vadd.f32 0.0, %v897
      %v899 = vpop.f32.mrb[0].mxu0
      %900 = vmatprep.mubr.f32.mxu0 0.0
      %901 = vmatmul.mubr.f32.gmra.mrb[0].mxu0 %v730
      %v902 = vpop.f32.mrb[0].mxu0
      %v903 = vadd.f32 0.0, %v902
      %v904 = vpop.f32.mrb[0].mxu0
      %905 = vmatprep.mubr.f32.mxu0 0.0
      %906 = vmatmul.mubr.f32.gmra.mrb[0].mxu0 %v733
      %v907 = vpop.f32.mrb[0].mxu0
      %v908 = vadd.f32 0.0, %v907
      %v909 = vpop.f32.mrb[0].mxu0
      %910 = vmatprep.mubr.f32.mxu0 0.0
      %911 = vmatmul.mubr.f32.gmra.mrb[0].mxu0 %v736
      %v912 = vpop.f32.mrb[0].mxu0
      %v913 = vadd.f32 0.0, %v912
      %v914 = vpop.f32.mrb[0].mxu0
      %915 = vmatprep.mubr.f32.mxu0 0.0
      %916 = vmatmul.mubr.f32.gmra.mrb[0].mxu0 %v739
      %v917 = vpop.f32.mrb[0].mxu0
      %v918 = vadd.f32 0.0, %v917
      %v919 = vpop.f32.mrb[0].mxu0
      %920 = vmatprep.mubr.f32.mxu0 0.0
      %921 = vmatmul.mubr.f32.gmra.mrb[0].mxu0 %v742
      %v922 = vpop.f32.mrb[0].mxu0
      %v923 = vadd.f32 0.0, %v922
      %v924 = vpop.f32.mrb[0].mxu0
      %925 = vmatprep.mubr.f32.mxu0 0.0
      %926 = vmatmul.mubr.f32.gmra.mrb[0].mxu0 %v745
      %v927 = vpop.f32.mrb[0].mxu0
      %v928 = vadd.f32 0.0, %v927
      %v929 = vpop.f32.mrb[0].mxu0
      %930 = vmatprep.mubr.f32.mxu0 0.0
      %931 = vmatmul.mubr.f32.gmra.mrb[0].mxu0 %v748
      %v932 = vpop.f32.mrb[0].mxu0
      %v933 = vadd.f32 0.0, %v932
      %v934 = vpop.f32.mrb[0].mxu0
      %935 = vmatprep.mubr.f32.mxu0 0.0
      %936 = vmatmul.mubr.f32.gmra.mrb[0].mxu0 %v751
      %v937 = vpop.f32.mrb[0].mxu0
      %v938 = vadd.f32 0.0, %v937
      %v939 = vpop.f32.mrb[0].mxu0
      %940 = vmatprep.mubr.f32.mxu0 0.0
      %941 = vmatmul.mubr.f32.gmra.mrb[0].mxu0 %v754
      %v942 = vpop.f32.mrb[0].mxu0
      %v943 = vadd.f32 0.0, %v942
      %v944 = vpop.f32.mrb[0].mxu0
      %945 = vmatprep.mubr.f32.mxu0 0.0
      %946 = vmatmul.mubr.f32.gmra.mrb[0].mxu0 %v757
      %v947 = vpop.f32.mrb[0].mxu0
      %v948 = vadd.f32 0.0, %v947
      %v949 = vpop.f32.mrb[0].mxu0
      %950 = vmatprep.mubr.f32.mxu0 0.0
      %951 = vmatmul.mubr.f32.gmra.mrb[0].mxu0 %v760
      %v952 = vpop.f32.mrb[0].mxu0
      %v953 = vadd.f32 0.0, %v952
      %v954 = vpop.f32.mrb[0].mxu0
      %955 = vmatprep.mubr.f32.mxu0 0.0
      %956 = vmatmul.mubr.f32.gmra.mrb[0].mxu0 %v763
      %v957 = vpop.f32.mrb[0].mxu0
      %v958 = vadd.f32 0.0, %v957
      %v959 = vpop.f32.mrb[0].mxu0
      %960 = vmatprep.mubr.f32.mxu0 0.0
      %961 = vmatmul.mubr.f32.gmra.mrb[0].mxu0 %v766
      %v962 = vpop.f32.mrb[0].mxu0
      %v963 = vadd.f32 0.0, %v962
      %v964 = vpop.f32.mrb[0].mxu0
      %965 = vmatprep.mubr.f32.mxu0 0.0
      %966 = vmatmul.mubr.f32.gmra.mrb[0].mxu0 %v769
      %v967 = vpop.f32.mrb[0].mxu0
      %v968 = vadd.f32 0.0, %v967
      %v969 = vpop.f32.mrb[0].mxu0
      %970 = vmatprep.mubr.f32.mxu0 0.0
      %971 = vmatmul.mubr.f32.gmra.mrb[0].mxu0 %v772
      %v972 = vpop.f32.mrb[0].mxu0
      %v973 = vadd.f32 0.0, %v972
      %v974 = vpop.f32.mrb[0].mxu0
      %975 = vmatprep.mubr.f32.mxu0 0.0
      %976 = vmatmul.mubr.f32.gmra.mrb[0].mxu0 %v775
      %v977 = vpop.f32.mrb[0].mxu0
      %v978 = vadd.f32 0.0, %v977
      %v979 = vpop.f32.mrb[0].mxu0
      %980 = vmatprep.mubr.f32.mxu0 0.0
      %981 = vmatmul.mubr.f32.gmra.mrb[0].mxu0 %v778
      %v982 = vpop.f32.mrb[0].mxu0
      %v983 = vadd.f32 0.0, %v982
      %v984 = vpop.f32.mrb[0].mxu0
      %985 = vmatprep.mubr.f32.mxu0 0.0
      %986 = vmatmul.mubr.f32.gmra.mrb[0].mxu0 %v781
      %v987 = vpop.f32.mrb[0].mxu0
      %v988 = vadd.f32 0.0, %v987
      %v989 = vpop.f32.mrb[0].mxu0
      %990 = vmatprep.mubr.f32.mxu0 0.0
      %991 = vmatmul.mubr.f32.gmra.mrb[0].mxu0 %v784
      %v992 = vpop.f32.mrb[0].mxu0
      %v993 = vadd.f32 0.0, %v992
      %v994 = vpop.f32.mrb[0].mxu0
      %995 = vmatprep.mubr.f32.mxu0 0.0
      %996 = vmatmul.mubr.f32.gmra.mrb[0].mxu0 %v787
      %v997 = vpop.f32.mrb[0].mxu0
      %v998 = vadd.f32 0.0, %v997
      %v999 = vpop.f32.mrb[0].mxu0
      %1000 = vmatprep.mubr.f32.mxu0 0.0
      %1001 = vmatmul.mubr.f32.gmra.mrb[0].mxu0 %v790
      %v1002 = vpop.f32.mrb[0].mxu0
      %v1003 = vadd.f32 0.0, %v1002
      %v1004 = vpop.f32.mrb[0].mxu0
      %1005 = vmatprep.mubr.f32.mxu0 0.0
      %1006 = vmatmul.mubr.f32.gmra.mrb[0].mxu0 %v793
      %v1007 = vpop.f32.mrb[0].mxu0
      %v1008 = vadd.f32 0.0, %v1007
      %v1009 = vpop.f32.mrb[0].mxu0
      %1010 = vmatprep.mubr.f32.mxu0 0.0
      %1011 = vmatmul.mubr.f32.gmra.mrb[0].mxu0 %v796
      %v1012 = vpop.f32.mrb[0].mxu0
      %v1013 = vadd.f32 0.0, %v1012
      %v1014 = vpop.f32.mrb[0].mxu0
      %1015 = vmatprep.mubr.f32.mxu0 0.0
      %1016 = vmatmul.mubr.f32.gmra.mrb[0].mxu0 %v799
      %v1017 = vpop.f32.mrb[0].mxu0
      %v1018 = vadd.f32 0.0, %v1017
      %v1019 = vpop.f32.mrb[0].mxu0
      %1020 = vmatprep.mubr.f32.mxu0 0.0
      %1021 = vmatmul.mubr.f32.gmra.mrb[0].mxu0 %v802
      %v1022 = vpop.f32.mrb[0].mxu0
      %v1023 = vadd.f32 0.0, %v1022
      %v1024 = vpop.f32.mrb[0].mxu0
      %1025 = vmatprep.mubr.f32.mxu0 0.0
      %1026 = vmatmul.mubr.f32.gmra.mrb[0].mxu0 %v805
      %v1027 = vpop.f32.mrb[0].mxu0
      %v1028 = vadd.f32 0.0, %v1027
      %v1029 = vpop.f32.mrb[0].mxu0
      %1030 = vmatprep.mubr.f32.mxu0 0.0
      %1031 = vmatmul.mubr.f32.gmra.mrb[0].mxu0 %v808
      %v1032 = vpop.f32.mrb[0].mxu0
      %v1033 = vadd.f32 0.0, %v1032
      %v1034 = vpop.f32.mrb[0].mxu0
      %1035 = vmatprep.mubr.f32.mxu0 0.0
      %1036 = vmatmul.mubr.f32.gmra.mrb[0].mxu0 %v811
      %v1037 = vpop.f32.mrb[0].mxu0
      %v1038 = vadd.f32 0.0, %v1037
      %v1039 = vpop.f32.mrb[0].mxu0
      %1040 = vdwg.mxu0
      %v1041 = vmul.f32 %v883, 0.17677669
      %v1042 = vmul.f32 %v888, 0.17677669
      %v1043 = vmul.f32 %v893, 0.17677669
      %v1044 = vmul.f32 %v898, 0.17677669
      %v1045 = vmul.f32 %v903, 0.17677669
      %v1046 = vmul.f32 %v908, 0.17677669
      %v1047 = vmul.f32 %v913, 0.17677669
      %v1048 = vmul.f32 %v918, 0.17677669
      %v1049 = vmul.f32 %v923, 0.17677669
      %v1050 = vmul.f32 %v928, 0.17677669
      %v1051 = vmul.f32 %v933, 0.17677669
      %v1052 = vmul.f32 %v938, 0.17677669
      %v1053 = vmul.f32 %v943, 0.17677669
      %v1054 = vmul.f32 %v948, 0.17677669
      %v1055 = vmul.f32 %v953, 0.17677669
      %v1056 = vmul.f32 %v958, 0.17677669
      %v1057 = vmul.f32 %v963, 0.17677669
      %v1058 = vmul.f32 %v968, 0.17677669
      %v1059 = vmul.f32 %v973, 0.17677669
      %v1060 = vmul.f32 %v978, 0.17677669
      %v1061 = vmul.f32 %v983, 0.17677669
      %v1062 = vmul.f32 %v988, 0.17677669
      %v1063 = vmul.f32 %v993, 0.17677669
      %v1064 = vmul.f32 %v998, 0.17677669
      %v1065 = vmul.f32 %v1003, 0.17677669
      %v1066 = vmul.f32 %v1008, 0.17677669
      %v1067 = vmul.f32 %v1013, 0.17677669
      %v1068 = vmul.f32 %v1018, 0.17677669
      %v1069 = vmul.f32 %v1023, 0.17677669
      %v1070 = vmul.f32 %v1028, 0.17677669
      %v1071 = vmul.f32 %v1033, 0.17677669
      %v1072 = vmul.f32 %v1038, 0.17677669
      %vm1073 = vcmask 23552
      %v1074 = vsel %vm1073, %v1041, -inf
      %1075 = vmax.xlane.f32.xlu0 %v1074
      %v1076 = vpop.xlane.xlu0 %1075
      %v1077 = vsel %vm1073, %v1042, -inf
      %1078 = vmax.xlane.f32.xlu0 %v1077
      %v1079 = vpop.xlane.xlu0 %1078
      %v1080 = vsel %vm1073, %v1043, -inf
      %1081 = vmax.xlane.f32.xlu0 %v1080
      %v1082 = vpop.xlane.xlu0 %1081
      %v1083 = vsel %vm1073, %v1044, -inf
      %1084 = vmax.xlane.f32.xlu0 %v1083
      %v1085 = vpop.xlane.xlu0 %1084
      %v1086 = vsel %vm1073, %v1045, -inf
      %1087 = vmax.xlane.f32.xlu0 %v1086
      %v1088 = vpop.xlane.xlu0 %1087
      %v1089 = vsel %vm1073, %v1046, -inf
      %1090 = vmax.xlane.f32.xlu0 %v1089
      %v1091 = vpop.xlane.xlu0 %1090
      %v1092 = vsel %vm1073, %v1047, -inf
      %1093 = vmax.xlane.f32.xlu0 %v1092
      %v1094 = vpop.xlane.xlu0 %1093
      %v1095 = vsel %vm1073, %v1048, -inf
      %1096 = vmax.xlane.f32.xlu0 %v1095
      %v1097 = vpop.xlane.xlu0 %1096
      %v1098 = vsel %vm1073, %v1049, -inf
      %1099 = vmax.xlane.f32.xlu0 %v1098
      %v1100 = vpop.xlane.xlu0 %1099
      %v1101 = vsel %vm1073, %v1050, -inf
      %1102 = vmax.xlane.f32.xlu0 %v1101
      %v1103 = vpop.xlane.xlu0 %1102
      %v1104 = vsel %vm1073, %v1051, -inf
      %1105 = vmax.xlane.f32.xlu0 %v1104
      %v1106 = vpop.xlane.xlu0 %1105
      %v1107 = vsel %vm1073, %v1052, -inf
      %1108 = vmax.xlane.f32.xlu0 %v1107
      %v1109 = vpop.xlane.xlu0 %1108
      %v1110 = vsel %vm1073, %v1053, -inf
      %1111 = vmax.xlane.f32.xlu0 %v1110
      %v1112 = vpop.xlane.xlu0 %1111
      %v1113 = vsel %vm1073, %v1054, -inf
      %1114 = vmax.xlane.f32.xlu0 %v1113
      %v1115 = vpop.xlane.xlu0 %1114
      %v1116 = vsel %vm1073, %v1055, -inf
      %1117 = vmax.xlane.f32.xlu0 %v1116
      %v1118 = vpop.xlane.xlu0 %1117
      %v1119 = vsel %vm1073, %v1056, -inf
      %1120 = vmax.xlane.f32.xlu0 %v1119
      %v1121 = vpop.xlane.xlu0 %1120
      %v1122 = vsel %vm1073, %v1057, -inf
      %1123 = vmax.xlane.f32.xlu0 %v1122
      %v1124 = vpop.xlane.xlu0 %1123
      %v1125 = vsel %vm1073, %v1058, -inf
      %1126 = vmax.xlane.f32.xlu0 %v1125
      %v1127 = vpop.xlane.xlu0 %1126
      %v1128 = vsel %vm1073, %v1059, -inf
      %1129 = vmax.xlane.f32.xlu0 %v1128
      %v1130 = vpop.xlane.xlu0 %1129
      %v1131 = vsel %vm1073, %v1060, -inf
      %1132 = vmax.xlane.f32.xlu0 %v1131
      %v1133 = vpop.xlane.xlu0 %1132
      %v1134 = vsel %vm1073, %v1061, -inf
      %1135 = vmax.xlane.f32.xlu0 %v1134
      %v1136 = vpop.xlane.xlu0 %1135
      %v1137 = vsel %vm1073, %v1062, -inf
      %1138 = vmax.xlane.f32.xlu0 %v1137
      %v1139 = vpop.xlane.xlu0 %1138
      %v1140 = vsel %vm1073, %v1063, -inf
      %1141 = vmax.xlane.f32.xlu0 %v1140
      %v1142 = vpop.xlane.xlu0 %1141
      %v1143 = vsel %vm1073, %v1064, -inf
      %1144 = vmax.xlane.f32.xlu0 %v1143
      %v1145 = vpop.xlane.xlu0 %1144
      %v1146 = vsel %vm1073, %v1065, -inf
      %1147 = vmax.xlane.f32.xlu0 %v1146
      %v1148 = vpop.xlane.xlu0 %1147
      %v1149 = vsel %vm1073, %v1066, -inf
      %1150 = vmax.xlane.f32.xlu0 %v1149
      %v1151 = vpop.xlane.xlu0 %1150
      %v1152 = vsel %vm1073, %v1067, -inf
      %1153 = vmax.xlane.f32.xlu0 %v1152
      %v1154 = vpop.xlane.xlu0 %1153
      %v1155 = vsel %vm1073, %v1068, -inf
      %1156 = vmax.xlane.f32.xlu0 %v1155
      %v1157 = vpop.xlane.xlu0 %1156
      %v1158 = vsel %vm1073, %v1069, -inf
      %1159 = vmax.xlane.f32.xlu0 %v1158
      %v1160 = vpop.xlane.xlu0 %1159
      %v1161 = vsel %vm1073, %v1070, -inf
      %1162 = vmax.xlane.f32.xlu0 %v1161
      %v1163 = vpop.xlane.xlu0 %1162
      %v1164 = vsel %vm1073, %v1071, -inf
      %1165 = vmax.xlane.f32.xlu0 %v1164
      %v1166 = vpop.xlane.xlu0 %1165
      %v1167 = vsel %vm1073, %v1072, -inf
      %1168 = vmax.xlane.f32.xlu0 %v1167
      %v1169 = vpop.xlane.xlu0 %1168
      %v1170 = vsub.f32 %v1041, %v1076
      %v1171 = vsub.f32 %v1042, %v1079
      %v1172 = vsub.f32 %v1043, %v1082
      %v1173 = vsub.f32 %v1044, %v1085
      %v1174 = vsub.f32 %v1045, %v1088
      %v1175 = vsub.f32 %v1046, %v1091
      %v1176 = vsub.f32 %v1047, %v1094
      %v1177 = vsub.f32 %v1048, %v1097
      %v1178 = vsub.f32 %v1049, %v1100
      %v1179 = vsub.f32 %v1050, %v1103
      %v1180 = vsub.f32 %v1051, %v1106
      %v1181 = vsub.f32 %v1052, %v1109
      %v1182 = vsub.f32 %v1053, %v1112
      %v1183 = vsub.f32 %v1054, %v1115
      %v1184 = vsub.f32 %v1055, %v1118
      %v1185 = vsub.f32 %v1056, %v1121
      %v1186 = vsub.f32 %v1057, %v1124
      %v1187 = vsub.f32 %v1058, %v1127
      %v1188 = vsub.f32 %v1059, %v1130
      %v1189 = vsub.f32 %v1060, %v1133
      %v1190 = vsub.f32 %v1061, %v1136
      %v1191 = vsub.f32 %v1062, %v1139
      %v1192 = vsub.f32 %v1063, %v1142
      %v1193 = vsub.f32 %v1064, %v1145
      %v1194 = vsub.f32 %v1065, %v1148
      %v1195 = vsub.f32 %v1066, %v1151
      %v1196 = vsub.f32 %v1067, %v1154
      %v1197 = vsub.f32 %v1068, %v1157
      %v1198 = vsub.f32 %v1069, %v1160
      %v1199 = vsub.f32 %v1070, %v1163
      %v1200 = vsub.f32 %v1071, %v1166
      %v1201 = vsub.f32 %v1072, %v1169
      %v1202 = vmul.f32 %v1170, 1.442695
      %v1203 = vpow.pop %v1202
      %v1204 = vmul.f32 %v1171, 1.442695
      %v1205 = vpow.pop %v1204
      %v1206 = vmul.f32 %v1172, 1.442695
      %v1207 = vpow.pop %v1206
      %v1208 = vmul.f32 %v1173, 1.442695
      %v1209 = vpow.pop %v1208
      %v1210 = vmul.f32 %v1174, 1.442695
      %v1211 = vpow.pop %v1210
      %v1212 = vmul.f32 %v1175, 1.442695
      %v1213 = vpow.pop %v1212
      %v1214 = vmul.f32 %v1176, 1.442695
      %v1215 = vpow.pop %v1214
      %v1216 = vmul.f32 %v1177, 1.442695
      %v1217 = vpow.pop %v1216
      %v1218 = vmul.f32 %v1178, 1.442695
      %v1219 = vpow.pop %v1218
      %v1220 = vmul.f32 %v1179, 1.442695
      %v1221 = vpow.pop %v1220
      %v1222 = vmul.f32 %v1180, 1.442695
      %v1223 = vpow.pop %v1222
      %v1224 = vmul.f32 %v1181, 1.442695
      %v1225 = vpow.pop %v1224
      %v1226 = vmul.f32 %v1182, 1.442695
      %v1227 = vpow.pop %v1226
      %v1228 = vmul.f32 %v1183, 1.442695
      %v1229 = vpow.pop %v1228
      %v1230 = vmul.f32 %v1184, 1.442695
      %v1231 = vpow.pop %v1230
      %v1232 = vmul.f32 %v1185, 1.442695
      %v1233 = vpow.pop %v1232
      %v1234 = vmul.f32 %v1186, 1.442695
      %v1235 = vpow.pop %v1234
      %v1236 = vmul.f32 %v1187, 1.442695
      %v1237 = vpow.pop %v1236
      %v1238 = vmul.f32 %v1188, 1.442695
      %v1239 = vpow.pop %v1238
      %v1240 = vmul.f32 %v1189, 1.442695
      %v1241 = vpow.pop %v1240
      %v1242 = vmul.f32 %v1190, 1.442695
      %v1243 = vpow.pop %v1242
      %v1244 = vmul.f32 %v1191, 1.442695
      %v1245 = vpow.pop %v1244
      %v1246 = vmul.f32 %v1192, 1.442695
      %v1247 = vpow.pop %v1246
      %v1248 = vmul.f32 %v1193, 1.442695
      %v1249 = vpow.pop %v1248
      %v1250 = vmul.f32 %v1194, 1.442695
      %v1251 = vpow.pop %v1250
      %v1252 = vmul.f32 %v1195, 1.442695
      %v1253 = vpow.pop %v1252
      %v1254 = vmul.f32 %v1196, 1.442695
      %v1255 = vpow.pop %v1254
      %v1256 = vmul.f32 %v1197, 1.442695
      %v1257 = vpow.pop %v1256
      %v1258 = vmul.f32 %v1198, 1.442695
      %v1259 = vpow.pop %v1258
      %v1260 = vmul.f32 %v1199, 1.442695
      %v1261 = vpow.pop %v1260
      %v1262 = vmul.f32 %v1200, 1.442695
      %v1263 = vpow.pop %v1262
      %v1264 = vmul.f32 %v1201, 1.442695
      %v1265 = vpow.pop %v1264
      %v1266 = vsel %vm1073, %v1203, 0.0
      %1267 = vadd.xlane.f32.xlu0 %v1266
      %v1268 = vpop.xlane.xlu0 %1267
      %v1269 = vsel %vm1073, %v1205, 0.0
      %1270 = vadd.xlane.f32.xlu0 %v1269
      %v1271 = vpop.xlane.xlu0 %1270
      %v1272 = vsel %vm1073, %v1207, 0.0
      %1273 = vadd.xlane.f32.xlu0 %v1272
      %v1274 = vpop.xlane.xlu0 %1273
      %v1275 = vsel %vm1073, %v1209, 0.0
      %1276 = vadd.xlane.f32.xlu0 %v1275
      %v1277 = vpop.xlane.xlu0 %1276
      %v1278 = vsel %vm1073, %v1211, 0.0
      %1279 = vadd.xlane.f32.xlu0 %v1278
      %v1280 = vpop.xlane.xlu0 %1279
      %v1281 = vsel %vm1073, %v1213, 0.0
      %1282 = vadd.xlane.f32.xlu0 %v1281
      %v1283 = vpop.xlane.xlu0 %1282
      %v1284 = vsel %vm1073, %v1215, 0.0
      %1285 = vadd.xlane.f32.xlu0 %v1284
      %v1286 = vpop.xlane.xlu0 %1285
      %v1287 = vsel %vm1073, %v1217, 0.0
      %1288 = vadd.xlane.f32.xlu0 %v1287
      %v1289 = vpop.xlane.xlu0 %1288
      %v1290 = vsel %vm1073, %v1219, 0.0
      %1291 = vadd.xlane.f32.xlu0 %v1290
      %v1292 = vpop.xlane.xlu0 %1291
      %v1293 = vsel %vm1073, %v1221, 0.0
      %1294 = vadd.xlane.f32.xlu0 %v1293
      %v1295 = vpop.xlane.xlu0 %1294
      %v1296 = vsel %vm1073, %v1223, 0.0
      %1297 = vadd.xlane.f32.xlu0 %v1296
      %v1298 = vpop.xlane.xlu0 %1297
      %v1299 = vsel %vm1073, %v1225, 0.0
      %1300 = vadd.xlane.f32.xlu0 %v1299
      %v1301 = vpop.xlane.xlu0 %1300
      %v1302 = vsel %vm1073, %v1227, 0.0
      %1303 = vadd.xlane.f32.xlu0 %v1302
      %v1304 = vpop.xlane.xlu0 %1303
      %v1305 = vsel %vm1073, %v1229, 0.0
      %1306 = vadd.xlane.f32.xlu0 %v1305
      %v1307 = vpop.xlane.xlu0 %1306
      %v1308 = vsel %vm1073, %v1231, 0.0
      %1309 = vadd.xlane.f32.xlu0 %v1308
      %v1310 = vpop.xlane.xlu0 %1309
      %v1311 = vsel %vm1073, %v1233, 0.0
      %1312 = vadd.xlane.f32.xlu0 %v1311
      %v1313 = vpop.xlane.xlu0 %1312
      %v1314 = vsel %vm1073, %v1235, 0.0
      %1315 = vadd.xlane.f32.xlu0 %v1314
      %v1316 = vpop.xlane.xlu0 %1315
      %v1317 = vsel %vm1073, %v1237, 0.0
      %1318 = vadd.xlane.f32.xlu0 %v1317
      %v1319 = vpop.xlane.xlu0 %1318
      %v1320 = vsel %vm1073, %v1239, 0.0
      %1321 = vadd.xlane.f32.xlu0 %v1320
      %v1322 = vpop.xlane.xlu0 %1321
      %v1323 = vsel %vm1073, %v1241, 0.0
      %1324 = vadd.xlane.f32.xlu0 %v1323
      %v1325 = vpop.xlane.xlu0 %1324
      %v1326 = vsel %vm1073, %v1243, 0.0
      %1327 = vadd.xlane.f32.xlu0 %v1326
      %v1328 = vpop.xlane.xlu0 %1327
      %v1329 = vsel %vm1073, %v1245, 0.0
      %1330 = vadd.xlane.f32.xlu0 %v1329
      %v1331 = vpop.xlane.xlu0 %1330
      %v1332 = vsel %vm1073, %v1247, 0.0
      %1333 = vadd.xlane.f32.xlu0 %v1332
      %v1334 = vpop.xlane.xlu0 %1333
      %v1335 = vsel %vm1073, %v1249, 0.0
      %1336 = vadd.xlane.f32.xlu0 %v1335
      %v1337 = vpop.xlane.xlu0 %1336
      %v1338 = vsel %vm1073, %v1251, 0.0
      %1339 = vadd.xlane.f32.xlu0 %v1338
      %v1340 = vpop.xlane.xlu0 %1339
      %v1341 = vsel %vm1073, %v1253, 0.0
      %1342 = vadd.xlane.f32.xlu0 %v1341
      %v1343 = vpop.xlane.xlu0 %1342
      %v1344 = vsel %vm1073, %v1255, 0.0
      %1345 = vadd.xlane.f32.xlu0 %v1344
      %v1346 = vpop.xlane.xlu0 %1345
      %v1347 = vsel %vm1073, %v1257, 0.0
      %1348 = vadd.xlane.f32.xlu0 %v1347
      %v1349 = vpop.xlane.xlu0 %1348
      %v1350 = vsel %vm1073, %v1259, 0.0
      %1351 = vadd.xlane.f32.xlu0 %v1350
      %v1352 = vpop.xlane.xlu0 %1351
      %v1353 = vsel %vm1073, %v1261, 0.0
      %1354 = vadd.xlane.f32.xlu0 %v1353
      %v1355 = vpop.xlane.xlu0 %1354
      %v1356 = vsel %vm1073, %v1263, 0.0
      %1357 = vadd.xlane.f32.xlu0 %v1356
      %v1358 = vpop.xlane.xlu0 %1357
      %v1359 = vsel %vm1073, %v1265, 0.0
      %1360 = vadd.xlane.f32.xlu0 %v1359
      %v1361 = vpop.xlane.xlu0 %1360
      %v1362 = vrcp.pop %v1268
      %v1363 = vmul.f32 %v1203, %v1362
      %v1364 = vrcp.pop %v1271
      %v1365 = vmul.f32 %v1205, %v1364
      %v1366 = vrcp.pop %v1274
      %v1367 = vmul.f32 %v1207, %v1366
      %v1368 = vrcp.pop %v1277
      %v1369 = vmul.f32 %v1209, %v1368
      %v1370 = vrcp.pop %v1280
      %v1371 = vmul.f32 %v1211, %v1370
      %v1372 = vrcp.pop %v1283
      %v1373 = vmul.f32 %v1213, %v1372
      %v1374 = vrcp.pop %v1286
      %v1375 = vmul.f32 %v1215, %v1374
      %v1376 = vrcp.pop %v1289
      %v1377 = vmul.f32 %v1217, %v1376
      %v1378 = vrcp.pop %v1292
      %v1379 = vmul.f32 %v1219, %v1378
      %v1380 = vrcp.pop %v1295
      %v1381 = vmul.f32 %v1221, %v1380
      %v1382 = vrcp.pop %v1298
      %v1383 = vmul.f32 %v1223, %v1382
      %v1384 = vrcp.pop %v1301
      %v1385 = vmul.f32 %v1225, %v1384
      %v1386 = vrcp.pop %v1304
      %v1387 = vmul.f32 %v1227, %v1386
      %v1388 = vrcp.pop %v1307
      %v1389 = vmul.f32 %v1229, %v1388
      %v1390 = vrcp.pop %v1310
      %v1391 = vmul.f32 %v1231, %v1390
      %v1392 = vrcp.pop %v1313
      %v1393 = vmul.f32 %v1233, %v1392
      %v1394 = vrcp.pop %v1316
      %v1395 = vmul.f32 %v1235, %v1394
      %v1396 = vrcp.pop %v1319
      %v1397 = vmul.f32 %v1237, %v1396
      %v1398 = vrcp.pop %v1322
      %v1399 = vmul.f32 %v1239, %v1398
      %v1400 = vrcp.pop %v1325
      %v1401 = vmul.f32 %v1241, %v1400
      %v1402 = vrcp.pop %v1328
      %v1403 = vmul.f32 %v1243, %v1402
      %v1404 = vrcp.pop %v1331
      %v1405 = vmul.f32 %v1245, %v1404
      %v1406 = vrcp.pop %v1334
      %v1407 = vmul.f32 %v1247, %v1406
      %v1408 = vrcp.pop %v1337
      %v1409 = vmul.f32 %v1249, %v1408
      %v1410 = vrcp.pop %v1340
      %v1411 = vmul.f32 %v1251, %v1410
      %v1412 = vrcp.pop %v1343
      %v1413 = vmul.f32 %v1253, %v1412
      %v1414 = vrcp.pop %v1346
      %v1415 = vmul.f32 %v1255, %v1414
      %v1416 = vrcp.pop %v1349
      %v1417 = vmul.f32 %v1257, %v1416
      %v1418 = vrcp.pop %v1352
      %v1419 = vmul.f32 %v1259, %v1418
      %v1420 = vrcp.pop %v1355
      %v1421 = vmul.f32 %v1261, %v1420
      %v1422 = vrcp.pop %v1358
      %v1423 = vmul.f32 %v1263, %v1422
      %v1424 = vrcp.pop %v1361
      %v1425 = vmul.f32 %v1265, %v1424
      %1426 = vrot.lane.b32.xlu0 %v651, 96
      %v1427 = vpop.permute.xlu0 %1426
      %v1429 = vsel %vm1073, %v1363, 0
      %v1432 = vsel %vm1073, %v1365, 0
      %v1435 = vsel %vm1073, %v1367, 0
      %v1438 = vsel %vm1073, %v1369, 0
      %v1441 = vsel %vm1073, %v1371, 0
      %v1444 = vsel %vm1073, %v1373, 0
      %v1447 = vsel %vm1073, %v1375, 0
      %v1450 = vsel %vm1073, %v1377, 0
      %v1453 = vsel %vm1073, %v1379, 0
      %v1456 = vsel %vm1073, %v1381, 0
      %v1459 = vsel %vm1073, %v1383, 0
      %v1462 = vsel %vm1073, %v1385, 0
      %v1465 = vsel %vm1073, %v1387, 0
      %v1468 = vsel %vm1073, %v1389, 0
      %v1471 = vsel %vm1073, %v1391, 0
      %v1474 = vsel %vm1073, %v1393, 0
      %v1477 = vsel %vm1073, %v1395, 0
      %v1480 = vsel %vm1073, %v1397, 0
      %v1483 = vsel %vm1073, %v1399, 0
      %v1486 = vsel %vm1073, %v1401, 0
      %v1489 = vsel %vm1073, %v1403, 0
      %v1492 = vsel %vm1073, %v1405, 0
      %v1495 = vsel %vm1073, %v1407, 0
      %v1498 = vsel %vm1073, %v1409, 0
      %v1501 = vsel %vm1073, %v1411, 0
      %v1504 = vsel %vm1073, %v1413, 0
      %v1507 = vsel %vm1073, %v1415, 0
      %v1510 = vsel %vm1073, %v1417, 0
      %v1513 = vsel %vm1073, %v1419, 0
      %v1516 = vsel %vm1073, %v1421, 0
      %v1519 = vsel %vm1073, %v1423, 0
      %v1522 = vsel %vm1073, %v1425, 0
      %v1524 = vsel %vm370, %v1427, 0
      %1526 = vmatprep.subr.mxu0 0.0
      %1527 = vmatpush1.msra.mxu0 %v1524
      %1528 = vmatprep.subr.mxu0 0.0
      %1529 = vmatpush1.msra.mxu0 0.0
      %1530 = vmatprep.subr.mxu0 0.0
      %1531 = vmatpush1.msra.mxu0 0.0
      %1532 = vmatprep.subr.mxu0 0.0
      %1533 = vmatpush1.msra.mxu0 0.0
      %1534 = vmatprep.subr.mxu0 0.0
      %1535 = vmatpush1.msra.mxu0 0.0
      %1536 = vmatprep.subr.mxu0 0.0
      %1537 = vmatpush1.msra.mxu0 0.0
      %1538 = vmatprep.subr.mxu0 0.0
      %1539 = vmatpush1.msra.mxu0 0.0
      %1540 = vmatprep.subr.mxu0 0.0
      %1541 = vmatpush1.msra.mxu0 0.0
      %1542 = vmatprep.subr.mxu0 0.0
      %1543 = vmatpush1.msra.mxu0 0.0
      %1544 = vmatprep.subr.mxu0 0.0
      %1545 = vmatpush1.msra.mxu0 0.0
      %1546 = vmatprep.subr.mxu0 0.0
      %1547 = vmatpush1.msra.mxu0 0.0
      %1548 = vmatprep.subr.mxu0 0.0
      %1549 = vmatpush1.msra.mxu0 0.0
      %1550 = vmatprep.subr.mxu0 0.0
      %1551 = vmatpush1.msra.mxu0 0.0
      %1552 = vmatprep.subr.mxu0 0.0
      %1553 = vmatpush1.msra.mxu0 0.0
      %1554 = vmatprep.subr.mxu0 0.0
      %1555 = vmatpush1.msra.mxu0 0.0
      %1556 = vmatprep.subr.mxu0 0.0
      %1557 = vmatpush1.msra.mxu0 0.0
      %1558 = vmatprep.subr.mxu0 0.0
      %1559 = vmatpush1.msra.mxu0 0.0
      %1560 = vmatprep.subr.mxu0 0.0
      %1561 = vmatpush1.msra.mxu0 0.0
      %1562 = vmatprep.subr.mxu0 0.0
      %1563 = vmatpush1.msra.mxu0 0.0
      %1564 = vmatprep.subr.mxu0 0.0
      %1565 = vmatpush1.msra.mxu0 0.0
      %1566 = vmatprep.subr.mxu0 0.0
      %1567 = vmatpush1.msra.mxu0 0.0
      %1568 = vmatprep.subr.mxu0 0.0
      %1569 = vmatpush1.msra.mxu0 0.0
      %1570 = vmatprep.subr.mxu0 0.0
      %1571 = vmatpush1.msra.mxu0 0.0
      %1572 = vmatprep.subr.mxu0 0.0
      %1573 = vmatpush1.msra.mxu0 0.0
      %1574 = vmatprep.subr.mxu0 0.0
      %1575 = vmatpush1.msra.mxu0 0.0
      %1576 = vmatprep.subr.mxu0 0.0
      %1577 = vmatpush1.msra.mxu0 0.0
      %1578 = vmatprep.subr.mxu0 0.0
      %1579 = vmatpush1.msra.mxu0 0.0
      %1580 = vmatprep.subr.mxu0 0.0
      %1581 = vmatpush1.msra.mxu0 0.0
      %1582 = vmatprep.subr.mxu0 0.0
      %1583 = vmatpush1.msra.mxu0 0.0
      %1584 = vmatprep.subr.mxu0 0.0
      %1585 = vmatpush1.msra.mxu0 0.0
      %1586 = vmatprep.subr.mxu0 0.0
      %1587 = vmatpush1.msra.mxu0 0.0
      %1588 = vmatprep.subr.mxu0 0.0
      %1589 = vmatpush1.msra.mxu0 0.0
      %1590 = vmatprep.mubr.f32.mxu0 0.0
      %1591 = vmatmul.mubr.f32.gmra.mrb[0].mxu0 %v1429
      %v1592 = vpop.f32.mrb[0].mxu0
      %v1593 = vadd.f32 0.0, %v1592
      %v1594 = vpop.f32.mrb[0].mxu0
      %1595 = vmatprep.mubr.f32.mxu0 0.0
      %1596 = vmatmul.mubr.f32.gmra.mrb[0].mxu0 %v1432
      %v1597 = vpop.f32.mrb[0].mxu0
      %v1598 = vadd.f32 0.0, %v1597
      %v1599 = vpop.f32.mrb[0].mxu0
      %1600 = vmatprep.mubr.f32.mxu0 0.0
      %1601 = vmatmul.mubr.f32.gmra.mrb[0].mxu0 %v1435
      %v1602 = vpop.f32.mrb[0].mxu0
      %v1603 = vadd.f32 0.0, %v1602
      %v1604 = vpop.f32.mrb[0].mxu0
      %1605 = vmatprep.mubr.f32.mxu0 0.0
      %1606 = vmatmul.mubr.f32.gmra.mrb[0].mxu0 %v1438
      %v1607 = vpop.f32.mrb[0].mxu0
      %v1608 = vadd.f32 0.0, %v1607
      %v1609 = vpop.f32.mrb[0].mxu0
      %1610 = vmatprep.mubr.f32.mxu0 0.0
      %1611 = vmatmul.mubr.f32.gmra.mrb[0].mxu0 %v1441
      %v1612 = vpop.f32.mrb[0].mxu0
      %v1613 = vadd.f32 0.0, %v1612
      %v1614 = vpop.f32.mrb[0].mxu0
      %1615 = vmatprep.mubr.f32.mxu0 0.0
      %1616 = vmatmul.mubr.f32.gmra.mrb[0].mxu0 %v1444
      %v1617 = vpop.f32.mrb[0].mxu0
      %v1618 = vadd.f32 0.0, %v1617
      %v1619 = vpop.f32.mrb[0].mxu0
      %1620 = vmatprep.mubr.f32.mxu0 0.0
      %1621 = vmatmul.mubr.f32.gmra.mrb[0].mxu0 %v1447
      %v1622 = vpop.f32.mrb[0].mxu0
      %v1623 = vadd.f32 0.0, %v1622
      %v1624 = vpop.f32.mrb[0].mxu0
      %1625 = vmatprep.mubr.f32.mxu0 0.0
      %1626 = vmatmul.mubr.f32.gmra.mrb[0].mxu0 %v1450
      %v1627 = vpop.f32.mrb[0].mxu0
      %v1628 = vadd.f32 0.0, %v1627
      %v1629 = vpop.f32.mrb[0].mxu0
      %1630 = vmatprep.mubr.f32.mxu0 0.0
      %1631 = vmatmul.mubr.f32.gmra.mrb[0].mxu0 %v1453
      %v1632 = vpop.f32.mrb[0].mxu0
      %v1633 = vadd.f32 0.0, %v1632
      %v1634 = vpop.f32.mrb[0].mxu0
      %1635 = vmatprep.mubr.f32.mxu0 0.0
      %1636 = vmatmul.mubr.f32.gmra.mrb[0].mxu0 %v1456
      %v1637 = vpop.f32.mrb[0].mxu0
      %v1638 = vadd.f32 0.0, %v1637
      %v1639 = vpop.f32.mrb[0].mxu0
      %1640 = vmatprep.mubr.f32.mxu0 0.0
      %1641 = vmatmul.mubr.f32.gmra.mrb[0].mxu0 %v1459
      %v1642 = vpop.f32.mrb[0].mxu0
      %v1643 = vadd.f32 0.0, %v1642
      %v1644 = vpop.f32.mrb[0].mxu0
      %1645 = vmatprep.mubr.f32.mxu0 0.0
      %1646 = vmatmul.mubr.f32.gmra.mrb[0].mxu0 %v1462
      %v1647 = vpop.f32.mrb[0].mxu0
      %v1648 = vadd.f32 0.0, %v1647
      %v1649 = vpop.f32.mrb[0].mxu0
      %1650 = vmatprep.mubr.f32.mxu0 0.0
      %1651 = vmatmul.mubr.f32.gmra.mrb[0].mxu0 %v1465
      %v1652 = vpop.f32.mrb[0].mxu0
      %v1653 = vadd.f32 0.0, %v1652
      %v1654 = vpop.f32.mrb[0].mxu0
      %1655 = vmatprep.mubr.f32.mxu0 0.0
      %1656 = vmatmul.mubr.f32.gmra.mrb[0].mxu0 %v1468
      %v1657 = vpop.f32.mrb[0].mxu0
      %v1658 = vadd.f32 0.0, %v1657
      %v1659 = vpop.f32.mrb[0].mxu0
      %1660 = vmatprep.mubr.f32.mxu0 0.0
      %1661 = vmatmul.mubr.f32.gmra.mrb[0].mxu0 %v1471
      %v1662 = vpop.f32.mrb[0].mxu0
      %v1663 = vadd.f32 0.0, %v1662
      %v1664 = vpop.f32.mrb[0].mxu0
      %1665 = vmatprep.mubr.f32.mxu0 0.0
      %1666 = vmatmul.mubr.f32.gmra.mrb[0].mxu0 %v1474
      %v1667 = vpop.f32.mrb[0].mxu0
      %v1668 = vadd.f32 0.0, %v1667
      %v1669 = vpop.f32.mrb[0].mxu0
      %1670 = vmatprep.mubr.f32.mxu0 0.0
      %1671 = vmatmul.mubr.f32.gmra.mrb[0].mxu0 %v1477
      %v1672 = vpop.f32.mrb[0].mxu0
      %v1673 = vadd.f32 0.0, %v1672
      %v1674 = vpop.f32.mrb[0].mxu0
      %1675 = vmatprep.mubr.f32.mxu0 0.0
      %1676 = vmatmul.mubr.f32.gmra.mrb[0].mxu0 %v1480
      %v1677 = vpop.f32.mrb[0].mxu0
      %v1678 = vadd.f32 0.0, %v1677
      %v1679 = vpop.f32.mrb[0].mxu0
      %1680 = vmatprep.mubr.f32.mxu0 0.0
      %1681 = vmatmul.mubr.f32.gmra.mrb[0].mxu0 %v1483
      %v1682 = vpop.f32.mrb[0].mxu0
      %v1683 = vadd.f32 0.0, %v1682
      %v1684 = vpop.f32.mrb[0].mxu0
      %1685 = vmatprep.mubr.f32.mxu0 0.0
      %1686 = vmatmul.mubr.f32.gmra.mrb[0].mxu0 %v1486
      %v1687 = vpop.f32.mrb[0].mxu0
      %v1688 = vadd.f32 0.0, %v1687
      %v1689 = vpop.f32.mrb[0].mxu0
      %1690 = vmatprep.mubr.f32.mxu0 0.0
      %1691 = vmatmul.mubr.f32.gmra.mrb[0].mxu0 %v1489
      %v1692 = vpop.f32.mrb[0].mxu0
      %v1693 = vadd.f32 0.0, %v1692
      %v1694 = vpop.f32.mrb[0].mxu0
      %1695 = vmatprep.mubr.f32.mxu0 0.0
      %1696 = vmatmul.mubr.f32.gmra.mrb[0].mxu0 %v1492
      %v1697 = vpop.f32.mrb[0].mxu0
      %v1698 = vadd.f32 0.0, %v1697
      %v1699 = vpop.f32.mrb[0].mxu0
      %1700 = vmatprep.mubr.f32.mxu0 0.0
      %1701 = vmatmul.mubr.f32.gmra.mrb[0].mxu0 %v1495
      %v1702 = vpop.f32.mrb[0].mxu0
      %v1703 = vadd.f32 0.0, %v1702
      %v1704 = vpop.f32.mrb[0].mxu0
      %1705 = vmatprep.mubr.f32.mxu0 0.0
      %1706 = vmatmul.mubr.f32.gmra.mrb[0].mxu0 %v1498
      %v1707 = vpop.f32.mrb[0].mxu0
      %v1708 = vadd.f32 0.0, %v1707
      %v1709 = vpop.f32.mrb[0].mxu0
      %1710 = vmatprep.mubr.f32.mxu0 0.0
      %1711 = vmatmul.mubr.f32.gmra.mrb[0].mxu0 %v1501
      %v1712 = vpop.f32.mrb[0].mxu0
      %v1713 = vadd.f32 0.0, %v1712
      %v1714 = vpop.f32.mrb[0].mxu0
      %1715 = vmatprep.mubr.f32.mxu0 0.0
      %1716 = vmatmul.mubr.f32.gmra.mrb[0].mxu0 %v1504
      %v1717 = vpop.f32.mrb[0].mxu0
      %v1718 = vadd.f32 0.0, %v1717
      %v1719 = vpop.f32.mrb[0].mxu0
      %1720 = vmatprep.mubr.f32.mxu0 0.0
      %1721 = vmatmul.mubr.f32.gmra.mrb[0].mxu0 %v1507
      %v1722 = vpop.f32.mrb[0].mxu0
      %v1723 = vadd.f32 0.0, %v1722
      %v1724 = vpop.f32.mrb[0].mxu0
      %1725 = vmatprep.mubr.f32.mxu0 0.0
      %1726 = vmatmul.mubr.f32.gmra.mrb[0].mxu0 %v1510
      %v1727 = vpop.f32.mrb[0].mxu0
      %v1728 = vadd.f32 0.0, %v1727
      %v1729 = vpop.f32.mrb[0].mxu0
      %1730 = vmatprep.mubr.f32.mxu0 0.0
      %1731 = vmatmul.mubr.f32.gmra.mrb[0].mxu0 %v1513
      %v1732 = vpop.f32.mrb[0].mxu0
      %v1733 = vadd.f32 0.0, %v1732
      %v1734 = vpop.f32.mrb[0].mxu0
      %1735 = vmatprep.mubr.f32.mxu0 0.0
      %1736 = vmatmul.mubr.f32.gmra.mrb[0].mxu0 %v1516
      %v1737 = vpop.f32.mrb[0].mxu0
      %v1738 = vadd.f32 0.0, %v1737
      %v1739 = vpop.f32.mrb[0].mxu0
      %1740 = vmatprep.mubr.f32.mxu0 0.0
      %1741 = vmatmul.mubr.f32.gmra.mrb[0].mxu0 %v1519
      %v1742 = vpop.f32.mrb[0].mxu0
      %v1743 = vadd.f32 0.0, %v1742
      %v1744 = vpop.f32.mrb[0].mxu0
      %1745 = vmatprep.mubr.f32.mxu0 0.0
      %1746 = vmatmul.mubr.f32.gmra.mrb[0].mxu0 %v1522
      %v1747 = vpop.f32.mrb[0].mxu0
      %v1748 = vadd.f32 0.0, %v1747
      %v1749 = vpop.f32.mrb[0].mxu0
      %1750 = vdwg.mxu0
      %v1751 = vpack.c.bf16 %v1598, %v1593
      %v1752 = vpack.c.bf16 %v1608, %v1603
      %v1753 = vpack.c.bf16 %v1618, %v1613
      %v1754 = vpack.c.bf16 %v1628, %v1623
      %v1755 = vpack.c.bf16 %v1638, %v1633
      %v1756 = vpack.c.bf16 %v1648, %v1643
      %v1757 = vpack.c.bf16 %v1658, %v1653
      %v1758 = vpack.c.bf16 %v1668, %v1663
      %v1759 = vpack.c.bf16 %v1678, %v1673
      %v1760 = vpack.c.bf16 %v1688, %v1683
      %v1761 = vpack.c.bf16 %v1698, %v1693
      %v1762 = vpack.c.bf16 %v1708, %v1703
      %v1763 = vpack.c.bf16 %v1718, %v1713
      %v1764 = vpack.c.bf16 %v1728, %v1723
      %v1765 = vpack.c.bf16 %v1738, %v1733
      %v1766 = vpack.c.bf16 %v1748, %v1743
      %v1783 = vunpack.c.l.b16 %v1751
      %v1784 = vunpack.c.h.b16 %v1751
      %v1785 = vunpack.c.l.b16 %v1752
      %v1786 = vunpack.c.h.b16 %v1752
      %v1787 = vunpack.c.l.b16 %v1753
      %v1788 = vunpack.c.h.b16 %v1753
      %v1789 = vunpack.c.l.b16 %v1754
      %v1790 = vunpack.c.h.b16 %v1754
      %v1791 = vunpack.c.l.b16 %v1755
      %v1792 = vunpack.c.h.b16 %v1755
      %v1793 = vunpack.c.l.b16 %v1756
      %v1794 = vunpack.c.h.b16 %v1756
      %v1795 = vunpack.c.l.b16 %v1757
      %v1796 = vunpack.c.h.b16 %v1757
      %v1797 = vunpack.c.l.b16 %v1758
      %v1798 = vunpack.c.h.b16 %v1758
      %v1799 = vunpack.c.l.b16 %v1759
      %v1800 = vunpack.c.h.b16 %v1759
      %v1801 = vunpack.c.l.b16 %v1760
      %v1802 = vunpack.c.h.b16 %v1760
      %v1803 = vunpack.c.l.b16 %v1761
      %v1804 = vunpack.c.h.b16 %v1761
      %v1805 = vunpack.c.l.b16 %v1762
      %v1806 = vunpack.c.h.b16 %v1762
      %v1807 = vunpack.c.l.b16 %v1763
      %v1808 = vunpack.c.h.b16 %v1763
      %v1809 = vunpack.c.l.b16 %v1764
      %v1810 = vunpack.c.h.b16 %v1764
      %v1811 = vunpack.c.l.b16 %v1765
      %v1812 = vunpack.c.h.b16 %v1765
      %v1813 = vunpack.c.l.b16 %v1766
      %v1814 = vunpack.c.h.b16 %v1766
      %v1815 = vpack.c.b16 %v1783, %v1783
      %v1816 = vpack.c.b16 %v1784, %v1784
      %v1817 = vpack.c.b16 %v1785, %v1785
      %v1818 = vpack.c.b16 %v1786, %v1786
      %v1819 = vpack.c.b16 %v1787, %v1787
      %v1820 = vpack.c.b16 %v1788, %v1788
      %v1821 = vpack.c.b16 %v1789, %v1789
      %v1822 = vpack.c.b16 %v1790, %v1790
      %v1823 = vpack.c.b16 %v1791, %v1791
      %v1824 = vpack.c.b16 %v1792, %v1792
      %v1825 = vpack.c.b16 %v1793, %v1793
      %v1826 = vpack.c.b16 %v1794, %v1794
      %v1827 = vpack.c.b16 %v1795, %v1795
      %v1828 = vpack.c.b16 %v1796, %v1796
      %v1829 = vpack.c.b16 %v1797, %v1797
      %v1830 = vpack.c.b16 %v1798, %v1798
      %v1831 = vpack.c.b16 %v1799, %v1799
      %v1832 = vpack.c.b16 %v1800, %v1800
      %v1833 = vpack.c.b16 %v1801, %v1801
      %v1834 = vpack.c.b16 %v1802, %v1802
      %v1835 = vpack.c.b16 %v1803, %v1803
      %v1836 = vpack.c.b16 %v1804, %v1804
      %v1837 = vpack.c.b16 %v1805, %v1805
      %v1838 = vpack.c.b16 %v1806, %v1806
      %v1839 = vpack.c.b16 %v1807, %v1807
      %v1840 = vpack.c.b16 %v1808, %v1808
      %v1841 = vpack.c.b16 %v1809, %v1809
      %v1842 = vpack.c.b16 %v1810, %v1810
      %v1843 = vpack.c.b16 %v1811, %v1811
      %v1844 = vpack.c.b16 %v1812, %v1812
      %v1845 = vpack.c.b16 %v1813, %v1813
      %v1846 = vpack.c.b16 %v1814, %v1814
      %vm1879 = vcmask 257024
      %1880 = vst.msk [vmem:[%s315] sm:$0xf] %vm1879, %v1815
      %1881 = vst.msk [vmem:[%s315 + $0x4] sm:$0xf] %vm1879, %v1816
      %1882 = vst.msk [vmem:[%s315 + $0x8] sm:$0xf] %vm1879, %v1817
      %1883 = vst.msk [vmem:[%s315 + $0xc] sm:$0xf] %vm1879, %v1818
      %1884 = vst.msk [vmem:[%s315 + $0x10] sm:$0xf] %vm1879, %v1819
      %1885 = vst.msk [vmem:[%s315 + $0x14] sm:$0xf] %vm1879, %v1820
      %1886 = vst.msk [vmem:[%s315 + $0x18] sm:$0xf] %vm1879, %v1821
      %1887 = vst.msk [vmem:[%s315 + $0x1c] sm:$0xf] %vm1879, %v1822
      %1888 = vst.msk [vmem:[%s315 + $0x20] sm:$0xf] %vm1879, %v1823
      %1889 = vst.msk [vmem:[%s315 + $0x24] sm:$0xf] %vm1879, %v1824
      %1890 = vst.msk [vmem:[%s315 + $0x28] sm:$0xf] %vm1879, %v1825
      %1891 = vst.msk [vmem:[%s315 + $0x2c] sm:$0xf] %vm1879, %v1826
      %1892 = vst.msk [vmem:[%s315 + $0x30] sm:$0xf] %vm1879, %v1827
      %1893 = vst.msk [vmem:[%s315 + $0x34] sm:$0xf] %vm1879, %v1828
      %1894 = vst.msk [vmem:[%s315 + $0x38] sm:$0xf] %vm1879, %v1829
      %1895 = vst.msk [vmem:[%s315 + $0x3c] sm:$0xf] %vm1879, %v1830
      %1896 = vst.msk [vmem:[%s315 + $0x40] sm:$0xf] %vm1879, %v1831
      %1897 = vst.msk [vmem:[%s315 + $0x44] sm:$0xf] %vm1879, %v1832
      %1898 = vst.msk [vmem:[%s315 + $0x48] sm:$0xf] %vm1879, %v1833
      %1899 = vst.msk [vmem:[%s315 + $0x4c] sm:$0xf] %vm1879, %v1834
      %1900 = vst.msk [vmem:[%s315 + $0x50] sm:$0xf] %vm1879, %v1835
      %1901 = vst.msk [vmem:[%s315 + $0x54] sm:$0xf] %vm1879, %v1836
      %1902 = vst.msk [vmem:[%s315 + $0x58] sm:$0xf] %vm1879, %v1837
      %1903 = vst.msk [vmem:[%s315 + $0x5c] sm:$0xf] %vm1879, %v1838
      %1904 = vst.msk [vmem:[%s315 + $0x60] sm:$0xf] %vm1879, %v1839
      %1905 = vst.msk [vmem:[%s315 + $0x64] sm:$0xf] %vm1879, %v1840
      %1906 = vst.msk [vmem:[%s315 + $0x68] sm:$0xf] %vm1879, %v1841
      %1907 = vst.msk [vmem:[%s315 + $0x6c] sm:$0xf] %vm1879, %v1842
      %1908 = vst.msk [vmem:[%s315 + $0x70] sm:$0xf] %vm1879, %v1843
      %1909 = vst.msk [vmem:[%s315 + $0x74] sm:$0xf] %vm1879, %v1844
      %1910 = vst.msk [vmem:[%s315 + $0x78] sm:$0xf] %vm1879, %v1845
      %1911 = vst.msk [vmem:[%s315 + $0x7c] sm:$0xf] %vm1879, %v1846
      %p1912 = scmp.lt.s32.totalorder %s18, 1
      %s1913 = scalar_select %p1912, %s18, 1
      %s1914 = smul.addr %s1913, 32
      %s1915 = smul.addr %s1914, 4
      %s1916 = scalar_lea.vmem %s7, %s1915
      // Predicated region
      $region49: #{_uaca_forward.8} parent=47 // pred_check
        %p1917 = pneg %p198
      $region50: #{_uaca_forward.8} parent=47 // pred_check_branch
        %1919 = sbr.rel (%p1917) target = $region52
      $region51: #{_uaca_forward.8} parent=47 // pred_region
        _
      $region52: #{_uaca_forward.8} parent=47 // pred_fallthru
        _
    $region48: #{_uaca_forward.8} parent=5 // pred_fallthru
      _
    %p1920 = scmp.le.s32.totalorder 2, %s13
    // Predicated region
    $region53: #{_uaca_forward.8} parent=5 // pred_check
      %p1921 = pneg %p1920
    $region54: #{_uaca_forward.8} parent=5 // pred_check_branch
      %1923 = sbr.rel (%p1921) target = $region56
    $region55: #{_uaca_forward.8} parent=5 // pred_region
      %s1924 = ssub.s32 %s13, 2
      // Predicated region
      $region57: #{_uaca_forward.8} parent=55 // pred_check
        %p1925 = pneg %p204
      $region58: #{_uaca_forward.8} parent=55 // pred_check_branch
        %1927 = sbr.rel (%p1925) target = $region60
      $region59: #{_uaca_forward.8} parent=55 // pred_region
        %p1928 = scmp.lt.s32.totalorder %s19, 1
        %s1929 = scalar_select %p1928, %s19, 1
        %s1930 = smul.addr %s1929, 32
        %s1931 = smul.addr %s1930, 4
        %s1932 = scalar_lea.vmem %s7, %s1931
      $region60: #{_uaca_forward.8} parent=55 // pred_fallthru
        _
    $region56: #{_uaca_forward.8} parent=5 // pred_fallthru
      _
  $region6: #{_uaca_forward.8} parent=0 // loop_footer
    %s17 = sadd.s32 1, %s13
  $region7: #{_uaca_forward.8} parent=0 // loop_footer_branch
    %12 = sbr.rel target = $region3
  $region8: #{_uaca_forward.8} parent=0 // loop_exit
    _

// kernel: _uaca_forward.10
$region0: #{_uaca_forward.10}
  #allocation0 [shape = 'u32[]', space=smem, size = 0x4, offset = 0x4, fixed_abs, tag = 'smem constant byte address 0x4 - core index']
  #allocation1 [shape = 'u32[144,128]{1,0:T(1,128)}', space=vmem, size = 0x12000, scoped, tag = 'internal scratch']
  %s0 = inlined_call_operand.vmem [shape: bf16[2,18,18,36], index: 0, kind: input, shape index: {}]
  %s1 = inlined_call_operand.vmem [shape: bf16[9,36,32], index: 1, kind: input, shape index: {}]
  %s2 = inlined_call_operand.vmem [shape: f32[1,32], index: 2, kind: input, shape index: {}]
  %s3 = inlined_call_operand.vmem [shape: bf16[2,16,16,32], index: 3, kind: output, shape index: {}]
  %s4 = sld [smem:[#allocation0]]
  $region45: #{_uaca_forward.10} parent=0
    _
  %s6 = ssub.s32 1, %s4
  %s7 = scalar_select 0, %s6, %s4
  loop: start=0, step=1, limit=6
  $region2: #{_uaca_forward.10} parent=0 // loop_pre_header
    _
  $region3: #{_uaca_forward.10} parent=0 // loop_header
    %s9 = sphi 0, %s13
    %p10 = scmp.ge.s32.totalorder %s9, 6
    %s16 = sphi 0, %s28
    %s17 = sphi 0, %s24
    %s18 = sphi 0, %s16
    %s19 = sphi 0, %s17
    %s20 = sphi 0, %s18
    %s21 = sphi 0, %s19
    %s31 = sphi 0, %s33
    %s34 = sphi 0, %s31
    %s35 = sphi 0, %s34
    %s51 = sphi 0, %s35
    %s55 = sphi 0, %s55
    %s57 = sphi 0, %s55
    %s58 = sphi 0, %s57
    %s72 = sphi 0, %s58
    %s76 = sphi 0, %s76
    %s78 = sphi 0, %s76
    %s79 = sphi 0, %s78
    %s93 = sphi 0, %s79
    %s101 = sphi 0, %s103
    %s104 = sphi 0, %s101
    %s105 = sphi 0, %s104
    %s121 = sphi 0, %s105
  $region4: #{_uaca_forward.10} parent=0 // loop_header_branch
    %12 = sbr.rel (%p10) target = $region8
  $region5: #{_uaca_forward.10} parent=0 // loop_body
    %s14 = ssub.s32 %s9, 1
    %s15 = ssub.s32 %s9, 2
    %s22 = sadd.s32 1, %s17
    %p23 = scmp.ge.s32.totalorder %s22, 2
    %s24 = scalar_select %p23, 0, %s22
    %s25 = sadd.s32 1, %s16
    %s26 = scalar_select %p23, %s25, %s16
    %p27 = scmp.ge.s32.totalorder %s26, 2
    %s28 = scalar_select %p27, 0, %s26
    %s29 = ssub.s32 %s16, %s28
    %p30 = scmp.eq.s32.totalorder %s29, 0
    %s32 = sadd.s32 %s31, 1
    %s33 = scalar_select %p30, %s31, %s32
    %p36 = pneg %p30
    %p37 = scmp.eq.s32.totalorder %s9, 3
    %p38 = por %p36, %p37
    %p39 = scmp.ne.s32.totalorder %s31, %s34
    %p40 = scmp.eq.s32.totalorder %s9, 0
    %p41 = por %p39, %p40
    %p42 = scmp.ne.s32.totalorder %s31, %s34
    %p43 = scmp.eq.s32.totalorder %s14, 3
    %p44 = por %p42, %p43
    %p45 = scmp.ne.s32.totalorder %s34, %s35
    %p46 = scmp.eq.s32.totalorder %s14, 0
    %p47 = por %p45, %p46
    %p48 = scmp.ne.s32.totalorder %s34, %s35
    %p49 = scmp.eq.s32.totalorder %s15, 3
    %p50 = por %p48, %p49
    %p52 = scmp.ne.s32.totalorder %s35, %s51
    %p53 = scmp.eq.s32.totalorder %s15, 0
    %p54 = por %p52, %p53
    %s56 = sadd.s32 %s55, 1
    %p59 = scmp.eq.s32.totalorder %s9, 3
    %p60 = scmp.ne.s32.totalorder %s55, %s57
    %p61 = scmp.eq.s32.totalorder %s9, 0
    %p62 = por %p60, %p61
    %p63 = scmp.ne.s32.totalorder %s55, %s57
    %p64 = scmp.eq.s32.totalorder %s14, 3
    %p65 = por %p63, %p64
    %p66 = scmp.ne.s32.totalorder %s57, %s58
    %p67 = scmp.eq.s32.totalorder %s14, 0
    %p68 = por %p66, %p67
    %p69 = scmp.ne.s32.totalorder %s57, %s58
    %p70 = scmp.eq.s32.totalorder %s15, 3
    %p71 = por %p69, %p70
    %p73 = scmp.ne.s32.totalorder %s58, %s72
    %p74 = scmp.eq.s32.totalorder %s15, 0
    %p75 = por %p73, %p74
    %s77 = sadd.s32 %s76, 1
    %p80 = scmp.eq.s32.totalorder %s9, 3
    %p81 = scmp.ne.s32.totalorder %s76, %s78
    %p82 = scmp.eq.s32.totalorder %s9, 0
    %p83 = por %p81, %p82
    %p84 = scmp.ne.s32.totalorder %s76, %s78
    %p85 = scmp.eq.s32.totalorder %s14, 3
    %p86 = por %p84, %p85
    %p87 = scmp.ne.s32.totalorder %s78, %s79
    %p88 = scmp.eq.s32.totalorder %s14, 0
    %p89 = por %p87, %p88
    %p90 = scmp.ne.s32.totalorder %s78, %s79
    %p91 = scmp.eq.s32.totalorder %s15, 3
    %p92 = por %p90, %p91
    %p94 = scmp.ne.s32.totalorder %s79, %s93
    %p95 = scmp.eq.s32.totalorder %s15, 0
    %p96 = por %p94, %p95
    %s97 = ssub.s32 %s16, %s28
    %s98 = ssub.s32 %s17, %s24
    %s99 = sor.u32 %s97, %s98
    %p100 = scmp.eq.s32.totalorder %s99, 0
    %s102 = sadd.s32 %s101, 1
    %s103 = scalar_select %p100, %s101, %s102
    %p106 = pneg %p100
    %p107 = scmp.eq.s32.totalorder %s9, 3
    %p108 = por %p106, %p107
    %p109 = scmp.ne.s32.totalorder %s101, %s104
    %p110 = scmp.eq.s32.totalorder %s9, 0
    %p111 = por %p109, %p110
    %p112 = scmp.ne.s32.totalorder %s101, %s104
    %p113 = scmp.eq.s32.totalorder %s14, 3
    %p114 = por %p112, %p113
    %p115 = scmp.ne.s32.totalorder %s104, %s105
    %p116 = scmp.eq.s32.totalorder %s14, 0
    %p117 = por %p115, %p116
    %p118 = scmp.ne.s32.totalorder %s104, %s105
    %p119 = scmp.eq.s32.totalorder %s15, 3
    %p120 = por %p118, %p119
    %p122 = scmp.ne.s32.totalorder %s105, %s121
    %p123 = scmp.eq.s32.totalorder %s15, 0
    %p124 = por %p122, %p123
    %p125 = scmp.le.s32.totalorder 1, %s9
    %p126 = scmp.lt.s32.totalorder %s9, 5
    %p127 = pnand %p125, %p126
    %p128 = pneg %p127
    // Predicated region
    $region9: #{_uaca_forward.10} parent=5 // pred_check
      _
    $region10: #{_uaca_forward.10} parent=5 // pred_check_branch
      %130 = sbr.rel (%p127) target = $region12
    $region11: #{_uaca_forward.10} parent=5 // pred_region
      %s131 = ssub.s32 %s9, 1
      // Predicated region
      $region13: #{_uaca_forward.10} parent=11 // pred_check
        %p132 = pneg %p68
      $region14: #{_uaca_forward.10} parent=11 // pred_check_branch
        %134 = sbr.rel (%p132) target = $region16
      $region15: #{_uaca_forward.10} parent=11 // pred_region
        _
      $region16: #{_uaca_forward.10} parent=11 // pred_fallthru
        _
      // Predicated region
      $region17: #{_uaca_forward.10} parent=11 // pred_check
        %p135 = pneg %p89
      $region18: #{_uaca_forward.10} parent=11 // pred_check_branch
        %137 = sbr.rel (%p135) target = $region20
      $region19: #{_uaca_forward.10} parent=11 // pred_region
        _
      $region20: #{_uaca_forward.10} parent=11 // pred_fallthru
        _
    $region12: #{_uaca_forward.10} parent=5 // pred_fallthru
      _
    %p138 = scmp.lt.s32.totalorder %s9, 4
    // Predicated region
    $region21: #{_uaca_forward.10} parent=5 // pred_check
      %p139 = pneg %p138
    $region22: #{_uaca_forward.10} parent=5 // pred_check_branch
      %141 = sbr.rel (%p139) target = $region24
    $region23: #{_uaca_forward.10} parent=5 // pred_region
      // Predicated region
      $region25: #{_uaca_forward.10} parent=23 // pred_check
        %p142 = pneg %p41
      $region26: #{_uaca_forward.10} parent=23 // pred_check_branch
        %144 = sbr.rel (%p142) target = $region28
      $region27: #{_uaca_forward.10} parent=23 // pred_region
        %p145 = scmp.lt.s32.totalorder %s16, 1
        %s146 = scalar_select %p145, %s16, 1
        %s147 = smul.addr %s146, 54
        %s148 = smul.addr %s147, 4
        %s149 = scalar_lea.vmem %s0, %s148
      $region28: #{_uaca_forward.10} parent=23 // pred_fallthru
        _
    $region24: #{_uaca_forward.10} parent=5 // pred_fallthru
      _
    %p150 = scmp.le.s32.totalorder 1, %s9
    %p151 = scmp.lt.s32.totalorder %s9, 5
    %p152 = pnand %p150, %p151
    %p153 = pneg %p152
    // Predicated region
    $region29: #{_uaca_forward.10} parent=5 // pred_check
      _
    $region30: #{_uaca_forward.10} parent=5 // pred_check_branch
      %155 = sbr.rel (%p152) target = $region32
    $region31: #{_uaca_forward.10} parent=5 // pred_region
      %s156 = ssub.s32 %s9, 1
      %p157 = scmp.lt.s32.totalorder %s18, 1
      %s158 = scalar_select %p157, %s18, 1
      %s159 = smul.addr %s158, 54
      %s160 = smul.addr %s159, 4
      %s161 = scalar_lea.vmem %s0, %s160
      %p162 = pneg %p47
      %p163 = pneg %p44
      %p164 = pneg %p68
      %p165 = pneg %p65
      %p166 = pneg %p89
      %p167 = pneg %p86
      %p168 = pneg %p117
      %p169 = pneg %p114
      %s170 = smul.u32 8, %s19
      %p171 = scmp.lt.s32.totalorder %s18, 1
      %s172 = scalar_select %p171, %s18, 1
      %p173 = scmp.lt.s32.totalorder %s170, 15
      %s174 = scalar_select %p173, %s170, 15
      %s175 = smul.addr %s174, 2
      %s176 = smul.addr %s172, 32
      %s177 = sadd.s32 %s175, %s176
      %s178 = smul.addr %s177, 4
      %s179 = scalar_lea.vmem %s3, %s178
      %p180 = scmp.lt.s32.totalorder %s18, 1
      %s181 = scalar_select %p180, %s18, 1
      %s182 = smul.addr %s181, 54
      %s183 = smul.addr %s182, 4
      %s184 = scalar_lea.vmem %s0, %s183
      %s185 = smul.u32 8, %s19
      %p186 = scmp.lt.s32.totalorder %s18, 1
      %s187 = scalar_select %p186, %s18, 1
      %p188 = scmp.lt.s32.totalorder %s185, 15
      %s189 = scalar_select %p188, %s185, 15
      %s190 = smul.addr %s189, 2
      %s191 = smul.addr %s187, 32
      %s192 = sadd.s32 %s190, %s191
      %s193 = smul.addr %s192, 4
      %s194 = scalar_lea.vmem %s3, %s193
      %s195 = smul.u32 8, %s19
      %s197 = smul.u32 %s19, 8
      %s198 = smul.u32 %s197, 3
      %s199 = smul.addr %s198, 4
      %s200 = scalar_lea.vmem %s184, %s199
      %v201 = vld [vmem:[%s200] sm:$0xf]
      %v202 = vld [vmem:[%s200 + $0x4] sm:$0xf]
      %v203 = vld [vmem:[%s200 + $0x8] sm:$0x1]
      %v204 = vld [vmem:[%s200 + $0xc] sm:$0xf]
      %v205 = vld [vmem:[%s200 + $0x10] sm:$0xf]
      %v206 = vld [vmem:[%s200 + $0x14] sm:$0x1]
      %v207 = vld [vmem:[%s200 + $0x18] sm:$0xf]
      %v208 = vld [vmem:[%s200 + $0x1c] sm:$0xf]
      %v209 = vld [vmem:[%s200 + $0x20] sm:$0x1]
      %v210 = vld [vmem:[%s200 + $0x24] sm:$0xf]
      %v211 = vld [vmem:[%s200 + $0x28] sm:$0xf]
      %v212 = vld [vmem:[%s200 + $0x2c] sm:$0x1]
      %v213 = vld [vmem:[%s200 + $0x30] sm:$0xf]
      %v214 = vld [vmem:[%s200 + $0x34] sm:$0xf]
      %v215 = vld [vmem:[%s200 + $0x38] sm:$0x1]
      %v216 = vld [vmem:[%s200 + $0x3c] sm:$0xf]
      %v217 = vld [vmem:[%s200 + $0x40] sm:$0xf]
      %v218 = vld [vmem:[%s200 + $0x44] sm:$0x1]
      %v219 = vld [vmem:[%s200 + $0x48] sm:$0xf]
      %v220 = vld [vmem:[%s200 + $0x4c] sm:$0xf]
      %v221 = vld [vmem:[%s200 + $0x50] sm:$0x1]
      %v222 = vld [vmem:[%s200 + $0x54] sm:$0xf]
      %v223 = vld [vmem:[%s200 + $0x58] sm:$0xf]
      %v224 = vld [vmem:[%s200 + $0x5c] sm:$0x1]
      %v225 = vld [vmem:[%s200 + $0x60] sm:$0xf]
      %v226 = vld [vmem:[%s200 + $0x64] sm:$0xf]
      %v227 = vld [vmem:[%s200 + $0x68] sm:$0x1]
      %v228 = vld [vmem:[%s200 + $0x6c] sm:$0xf]
      %v229 = vld [vmem:[%s200 + $0x70] sm:$0xf]
      %v230 = vld [vmem:[%s200 + $0x74] sm:$0x1]
      %v231 = vld [vmem:[%s1] sm:$0xf]
      %v232 = vld [vmem:[%s1 + $0x4] sm:$0xf]
      %v233 = vld [vmem:[%s1 + $0x8] sm:$0xf]
      %v234 = vld [vmem:[%s1 + $0xc] sm:$0xf]
      %v235 = vld [vmem:[%s1 + $0x10] sm:$0x3]
      %vm236 = vsmask.f32 3328
      %vm237 = vsmask.f32 7440
      %vm238 = vmor %vm236, %vm237
      %v240 = vshrl.u32 %v201, 16
      %v242 = vrot.slane %v240, 4
      %v243 = vshll.u32 %v201, 16
      %v245 = vrot.slane %v243, 5
      %v246 = vor.u32 %v242, %v245
      %v247 = vrot.slane %v246, 4
      %v249 = vshll.u32 %v202, 16
      %v251 = vrot.slane %v249, 5
      %v252 = vsel %vm238, %v247, %v251
      %v253 = vshrl.u32 %v202, 16
      %v255 = vrot.slane %v253, 4
      %v256 = vor.u32 %v255, %v251
      %v257 = vrot.slane %v256, 4
      %v259 = vshll.u32 %v203, 16
      %v261 = vrot.slane %v259, 5
      %v262 = vsel %vm238, %v257, %v261
      %v264 = vshrl.u32 %v204, 16
      %v266 = vrot.slane %v264, 4
      %v267 = vshll.u32 %v204, 16
      %v269 = vrot.slane %v267, 5
      %v270 = vor.u32 %v266, %v269
      %v271 = vrot.slane %v270, 4
      %v273 = vshll.u32 %v205, 16
      %v275 = vrot.slane %v273, 5
      %v276 = vsel %vm238, %v271, %v275
      %v277 = vshrl.u32 %v205, 16
      %v279 = vrot.slane %v277, 4
      %v280 = vor.u32 %v279, %v275
      %v281 = vrot.slane %v280, 4
      %v283 = vshll.u32 %v206, 16
      %v285 = vrot.slane %v283, 5
      %v286 = vsel %vm238, %v281, %v285
      %v288 = vshrl.u32 %v207, 16
      %v290 = vrot.slane %v288, 4
      %v291 = vshll.u32 %v207, 16
      %v293 = vrot.slane %v291, 5
      %v294 = vor.u32 %v290, %v293
      %v295 = vrot.slane %v294, 4
      %v297 = vshll.u32 %v208, 16
      %v299 = vrot.slane %v297, 5
      %v300 = vsel %vm238, %v295, %v299
      %v301 = vshrl.u32 %v208, 16
      %v303 = vrot.slane %v301, 4
      %v304 = vor.u32 %v303, %v299
      %v305 = vrot.slane %v304, 4
      %v307 = vshll.u32 %v209, 16
      %v309 = vrot.slane %v307, 5
      %v310 = vsel %vm238, %v305, %v309
      %v312 = vshrl.u32 %v210, 16
      %v314 = vrot.slane %v312, 4
      %v315 = vshll.u32 %v210, 16
      %v317 = vrot.slane %v315, 5
      %v318 = vor.u32 %v314, %v317
      %v319 = vrot.slane %v318, 4
      %v321 = vshll.u32 %v211, 16
      %v323 = vrot.slane %v321, 5
      %v324 = vsel %vm238, %v319, %v323
      %v325 = vshrl.u32 %v211, 16
      %v327 = vrot.slane %v325, 4
      %v328 = vor.u32 %v327, %v323
      %v329 = vrot.slane %v328, 4
      %v331 = vshll.u32 %v212, 16
      %v333 = vrot.slane %v331, 5
      %v334 = vsel %vm238, %v329, %v333
      %v336 = vshrl.u32 %v213, 16
      %v338 = vrot.slane %v336, 4
      %v339 = vshll.u32 %v213, 16
      %v341 = vrot.slane %v339, 5
      %v342 = vor.u32 %v338, %v341
      %v343 = vrot.slane %v342, 4
      %v345 = vshll.u32 %v214, 16
      %v347 = vrot.slane %v345, 5
      %v348 = vsel %vm238, %v343, %v347
      %v349 = vshrl.u32 %v214, 16
      %v351 = vrot.slane %v349, 4
      %v352 = vor.u32 %v351, %v347
      %v353 = vrot.slane %v352, 4
      %v355 = vshll.u32 %v215, 16
      %v357 = vrot.slane %v355, 5
      %v358 = vsel %vm238, %v353, %v357
      %v360 = vshrl.u32 %v216, 16
      %v362 = vrot.slane %v360, 4
      %v363 = vshll.u32 %v216, 16
      %v365 = vrot.slane %v363, 5
      %v366 = vor.u32 %v362, %v365
      %v367 = vrot.slane %v366, 4
      %v369 = vshll.u32 %v217, 16
      %v371 = vrot.slane %v369, 5
      %v372 = vsel %vm238, %v367, %v371
      %v373 = vshrl.u32 %v217, 16
      %v375 = vrot.slane %v373, 4
      %v376 = vor.u32 %v375, %v371
      %v377 = vrot.slane %v376, 4
      %v379 = vshll.u32 %v218, 16
      %v381 = vrot.slane %v379, 5
      %v382 = vsel %vm238, %v377, %v381
      %v384 = vshrl.u32 %v219, 16
      %v386 = vrot.slane %v384, 4
      %v387 = vshll.u32 %v219, 16
      %v389 = vrot.slane %v387, 5
      %v390 = vor.u32 %v386, %v389
      %v391 = vrot.slane %v390, 4
      %v393 = vshll.u32 %v220, 16
      %v395 = vrot.slane %v393, 5
      %v396 = vsel %vm238, %v391, %v395
      %v397 = vshrl.u32 %v220, 16
      %v399 = vrot.slane %v397, 4
      %v400 = vor.u32 %v399, %v395
      %v401 = vrot.slane %v400, 4
      %v403 = vshll.u32 %v221, 16
      %v405 = vrot.slane %v403, 5
      %v406 = vsel %vm238, %v401, %v405
      %v408 = vshrl.u32 %v222, 16
      %v410 = vrot.slane %v408, 4
      %v411 = vshll.u32 %v222, 16
      %v413 = vrot.slane %v411, 5
      %v414 = vor.u32 %v410, %v413
      %v415 = vrot.slane %v414, 4
      %v417 = vshll.u32 %v223, 16
      %v419 = vrot.slane %v417, 5
      %v420 = vsel %vm238, %v415, %v419
      %v421 = vshrl.u32 %v223, 16
      %v423 = vrot.slane %v421, 4
      %v424 = vor.u32 %v423, %v419
      %v425 = vrot.slane %v424, 4
      %v427 = vshll.u32 %v224, 16
      %v429 = vrot.slane %v427, 5
      %v430 = vsel %vm238, %v425, %v429
      %s431 = scalar_lea.vmem %s1, 20
      %v432 = vld [vmem:[%s431] sm:$0xf]
      %v433 = vld [vmem:[%s431 + $0x4] sm:$0xf]
      %v434 = vld [vmem:[%s431 + $0x8] sm:$0xf]
      %v435 = vld [vmem:[%s431 + $0xc] sm:$0xf]
      %v436 = vld [vmem:[%s431 + $0x10] sm:$0x3]
      %v437 = vunpack.c.l.b16 %v252
      %v438 = vunpack.c.l.b16 %v262
      %v439 = vunpack.c.l.b16 %v276
      %v440 = vunpack.c.l.b16 %v286
      %v441 = vunpack.c.l.b16 %v300
      %v442 = vunpack.c.l.b16 %v310
      %v443 = vunpack.c.l.b16 %v324
      %v444 = vunpack.c.l.b16 %v334
      %v445 = vunpack.c.l.b16 %v348
      %v446 = vunpack.c.l.b16 %v358
      %v447 = vunpack.c.l.b16 %v372
      %v448 = vunpack.c.l.b16 %v382
      %v449 = vunpack.c.l.b16 %v396
      %v450 = vunpack.c.l.b16 %v406
      %v451 = vunpack.c.l.b16 %v420
      %v452 = vunpack.c.l.b16 %v430
      %v453 = vpack.c.b16 %v438, %v437
      %v454 = vpack.c.b16 %v440, %v439
      %v455 = vpack.c.b16 %v442, %v441
      %v456 = vpack.c.b16 %v444, %v443
      %v457 = vpack.c.b16 %v446, %v445
      %v458 = vpack.c.b16 %v448, %v447
      %v459 = vpack.c.b16 %v450, %v449
      %v460 = vpack.c.b16 %v452, %v451
      %v466 = vunpack.c.l.b16 %v432
      %v467 = vunpack.c.l.b16 %v433
      %v468 = vunpack.c.l.b16 %v434
      %v469 = vunpack.c.l.b16 %v435
      %v470 = vunpack.c.l.b16 %v436
      %v471 = vpack.c.b16 %v467, %v466
      %v472 = vpack.c.b16 %v469, %v468
      %v473 = vpack.c.b16 %v470, %v470
      %vm476 = vcmask 293888
      %v478 = vsel %vm476, %v453, 0
      %v481 = vsel %vm476, %v454, 0
      %v484 = vsel %vm476, %v455, 0
      %v487 = vsel %vm476, %v456, 0
      %v490 = vsel %vm476, %v457, 0
      %v493 = vsel %vm476, %v458, 0
      %v496 = vsel %vm476, %v459, 0
      %v499 = vsel %vm476, %v460, 0
      %vm501 = vcmask 1041408
      %v503 = vsel %vm501, %v473, 0
      %505 = vmatprep.subr.bf16.mxu0 0
      %506 = vmatpush1.bf16.msra.mxu0 %v471
      %507 = vmatprep.subr.bf16.mxu0 0
      %508 = vmatpush1.bf16.msra.mxu0 %v472
      %509 = vmatprep.subr.bf16.mxu0 0
      %510 = vmatpush1.bf16.msra.mxu0 %v503
      %511 = vmatprep.subr.bf16.mxu0 0
      %512 = vmatpush1.bf16.msra.mxu0 0
      %513 = vmatprep.subr.bf16.mxu0 0
      %514 = vmatpush1.bf16.msra.mxu0 0
      %515 = vmatprep.subr.bf16.mxu0 0
      %516 = vmatpush1.bf16.msra.mxu0 0
      %517 = vmatprep.subr.bf16.mxu0 0
      %518 = vmatpush1.bf16.msra.mxu0 0
      %519 = vmatprep.subr.bf16.mxu0 0
      %520 = vmatpush1.bf16.msra.mxu0 0
      %521 = vmatprep.subr.bf16.mxu0 0
      %522 = vmatpush1.bf16.msra.mxu0 0
      %523 = vmatprep.subr.bf16.mxu0 0
      %524 = vmatpush1.bf16.msra.mxu0 0
      %525 = vmatprep.subr.bf16.mxu0 0
      %526 = vmatpush1.bf16.msra.mxu0 0
      %527 = vmatprep.subr.bf16.mxu0 0
      %528 = vmatpush1.bf16.msra.mxu0 0
      %529 = vmatprep.subr.bf16.mxu0 0
      %530 = vmatpush1.bf16.msra.mxu0 0
      %531 = vmatprep.subr.bf16.mxu0 0
      %532 = vmatpush1.bf16.msra.mxu0 0
      %533 = vmatprep.subr.bf16.mxu0 0
      %534 = vmatpush1.bf16.msra.mxu0 0
      %535 = vmatprep.subr.bf16.mxu0 0
      %536 = vmatpush1.bf16.msra.mxu0 0
      %537 = vmatprep.mubr.bf16.mxu0 0
      %538 = vmatmul.mubr.bf16.gmra.mrb[0].mxu0 %v478
      %v539 = vpop.f32.mrb[0].mxu0
      %v540 = vadd.f32 0.0, %v539
      %v541 = vpop.f32.mrb[0].mxu0
      %v542 = vpop.f32.mrb[0].mxu0
      %v543 = vadd.f32 0.0, %v542
      %v544 = vpop.f32.mrb[0].mxu0
      %545 = vmatprep.mubr.bf16.mxu0 0
      %546 = vmatmul.mubr.bf16.gmra.mrb[0].mxu0 %v481
      %v547 = vpop.f32.mrb[0].mxu0
      %v548 = vadd.f32 0.0, %v547
      %v549 = vpop.f32.mrb[0].mxu0
      %v550 = vpop.f32.mrb[0].mxu0
      %v551 = vadd.f32 0.0, %v550
      %v552 = vpop.f32.mrb[0].mxu0
      %553 = vmatprep.mubr.bf16.mxu0 0
      %554 = vmatmul.mubr.bf16.gmra.mrb[0].mxu0 %v484
      %v555 = vpop.f32.mrb[0].mxu0
      %v556 = vadd.f32 0.0, %v555
      %v557 = vpop.f32.mrb[0].mxu0
      %v558 = vpop.f32.mrb[0].mxu0
      %v559 = vadd.f32 0.0, %v558
      %v560 = vpop.f32.mrb[0].mxu0
      %561 = vmatprep.mubr.bf16.mxu0 0
      %562 = vmatmul.mubr.bf16.gmra.mrb[0].mxu0 %v487
      %v563 = vpop.f32.mrb[0].mxu0
      %v564 = vadd.f32 0.0, %v563
      %v565 = vpop.f32.mrb[0].mxu0
      %v566 = vpop.f32.mrb[0].mxu0
      %v567 = vadd.f32 0.0, %v566
      %v568 = vpop.f32.mrb[0].mxu0
      %569 = vmatprep.mubr.bf16.mxu0 0
      %570 = vmatmul.mubr.bf16.gmra.mrb[0].mxu0 %v490
      %v571 = vpop.f32.mrb[0].mxu0
      %v572 = vadd.f32 0.0, %v571
      %v573 = vpop.f32.mrb[0].mxu0
      %v574 = vpop.f32.mrb[0].mxu0
      %v575 = vadd.f32 0.0, %v574
      %v576 = vpop.f32.mrb[0].mxu0
      %577 = vmatprep.mubr.bf16.mxu0 0
      %578 = vmatmul.mubr.bf16.gmra.mrb[0].mxu0 %v493
      %v579 = vpop.f32.mrb[0].mxu0
      %v580 = vadd.f32 0.0, %v579
      %v581 = vpop.f32.mrb[0].mxu0
      %v582 = vpop.f32.mrb[0].mxu0
      %v583 = vadd.f32 0.0, %v582
      %v584 = vpop.f32.mrb[0].mxu0
      %585 = vmatprep.mubr.bf16.mxu0 0
      %586 = vmatmul.mubr.bf16.gmra.mrb[0].mxu0 %v496
      %v587 = vpop.f32.mrb[0].mxu0
      %v588 = vadd.f32 0.0, %v587
      %v589 = vpop.f32.mrb[0].mxu0
      %v590 = vpop.f32.mrb[0].mxu0
      %v591 = vadd.f32 0.0, %v590
      %v592 = vpop.f32.mrb[0].mxu0
      %593 = vmatprep.mubr.bf16.mxu0 0
      %594 = vmatmul.mubr.bf16.gmra.mrb[0].mxu0 %v499
      %v595 = vpop.f32.mrb[0].mxu0
      %v596 = vadd.f32 0.0, %v595
      %v597 = vpop.f32.mrb[0].mxu0
      %v598 = vpop.f32.mrb[0].mxu0
      %v599 = vadd.f32 0.0, %v598
      %v600 = vpop.f32.mrb[0].mxu0
      %601 = vdwg.mxu0
      %v618 = vunpack.c.l.b16 %v201
      %v619 = vunpack.c.l.b16 %v202
      %v620 = vunpack.c.l.b16 %v204
      %v621 = vunpack.c.l.b16 %v205
      %v622 = vunpack.c.l.b16 %v207
      %v623 = vunpack.c.l.b16 %v208
      %v624 = vunpack.c.l.b16 %v210
      %v625 = vunpack.c.l.b16 %v211
      %v626 = vunpack.c.l.b16 %v213
      %v627 = vunpack.c.l.b16 %v214
      %v628 = vunpack.c.l.b16 %v216
      %v629 = vunpack.c.l.b16 %v217
      %v630 = vunpack.c.l.b16 %v219
      %v631 = vunpack.c.l.b16 %v220
      %v632 = vunpack.c.l.b16 %v222
      %v633 = vunpack.c.l.b16 %v223
      %v634 = vpack.c.b16 %v619, %v618
      %v635 = vpack.c.b16 %v621, %v620
      %v636 = vpack.c.b16 %v623, %v622
      %v637 = vpack.c.b16 %v625, %v624
      %v638 = vpack.c.b16 %v627, %v626
      %v639 = vpack.c.b16 %v629, %v628
      %v640 = vpack.c.b16 %v631, %v630
      %v641 = vpack.c.b16 %v633, %v632
      %v647 = vunpack.c.l.b16 %v231
      %v648 = vunpack.c.l.b16 %v232
      %v649 = vunpack.c.l.b16 %v233
      %v650 = vunpack.c.l.b16 %v234
      %v651 = vunpack.c.l.b16 %v235
      %v652 = vpack.c.b16 %v648, %v647
      %v653 = vpack.c.b16 %v650, %v649
      %v654 = vpack.c.b16 %v651, %v651
      %v658 = vsel %vm476, %v634, 0
      %v661 = vsel %vm476, %v635, 0
      %v664 = vsel %vm476, %v636, 0
      %v667 = vsel %vm476, %v637, 0
      %v670 = vsel %vm476, %v638, 0
      %v673 = vsel %vm476, %v639, 0
      %v676 = vsel %vm476, %v640, 0
      %v679 = vsel %vm476, %v641, 0
      %v682 = vsel %vm501, %v654, 0
      %684 = vmatprep.subr.bf16.mxu0 0
      %685 = vmatpush1.bf16.msra.mxu0 %v652
      %686 = vmatprep.subr.bf16.mxu0 0
      %687 = vmatpush1.bf16.msra.mxu0 %v653
      %688 = vmatprep.subr.bf16.mxu0 0
      %689 = vmatpush1.bf16.msra.mxu0 %v682
      %690 = vmatprep.subr.bf16.mxu0 0
      %691 = vmatpush1.bf16.msra.mxu0 0
      %692 = vmatprep.subr.bf16.mxu0 0
      %693 = vmatpush1.bf16.msra.mxu0 0
      %694 = vmatprep.subr.bf16.mxu0 0
      %695 = vmatpush1.bf16.msra.mxu0 0
      %696 = vmatprep.subr.bf16.mxu0 0
      %697 = vmatpush1.bf16.msra.mxu0 0
      %698 = vmatprep.subr.bf16.mxu0 0
      %699 = vmatpush1.bf16.msra.mxu0 0
      %700 = vmatprep.subr.bf16.mxu0 0
      %701 = vmatpush1.bf16.msra.mxu0 0
      %702 = vmatprep.subr.bf16.mxu0 0
      %703 = vmatpush1.bf16.msra.mxu0 0
      %704 = vmatprep.subr.bf16.mxu0 0
      %705 = vmatpush1.bf16.msra.mxu0 0
      %706 = vmatprep.subr.bf16.mxu0 0
      %707 = vmatpush1.bf16.msra.mxu0 0
      %708 = vmatprep.subr.bf16.mxu0 0
      %709 = vmatpush1.bf16.msra.mxu0 0
      %710 = vmatprep.subr.bf16.mxu0 0
      %711 = vmatpush1.bf16.msra.mxu0 0
      %712 = vmatprep.subr.bf16.mxu0 0
      %713 = vmatpush1.bf16.msra.mxu0 0
      %714 = vmatprep.subr.bf16.mxu0 0
      %715 = vmatpush1.bf16.msra.mxu0 0
      %716 = vmatprep.mubr.bf16.mxu0 0
      %717 = vmatmul.mubr.bf16.gmra.mrb[0].mxu0 %v658
      %v718 = vpop.f32.mrb[0].mxu0
      %v719 = vadd.f32 %v540, %v718
      %v720 = vpop.f32.mrb[0].mxu0
      %v721 = vpop.f32.mrb[0].mxu0
      %v722 = vadd.f32 %v543, %v721
      %v723 = vpop.f32.mrb[0].mxu0
      %724 = vmatprep.mubr.bf16.mxu0 0
      %725 = vmatmul.mubr.bf16.gmra.mrb[0].mxu0 %v661
      %v726 = vpop.f32.mrb[0].mxu0
      %v727 = vadd.f32 %v548, %v726
      %v728 = vpop.f32.mrb[0].mxu0
      %v729 = vpop.f32.mrb[0].mxu0
      %v730 = vadd.f32 %v551, %v729
      %v731 = vpop.f32.mrb[0].mxu0
      %732 = vmatprep.mubr.bf16.mxu0 0
      %733 = vmatmul.mubr.bf16.gmra.mrb[0].mxu0 %v664
      %v734 = vpop.f32.mrb[0].mxu0
      %v735 = vadd.f32 %v556, %v734
      %v736 = vpop.f32.mrb[0].mxu0
      %v737 = vpop.f32.mrb[0].mxu0
      %v738 = vadd.f32 %v559, %v737
      %v739 = vpop.f32.mrb[0].mxu0
      %740 = vmatprep.mubr.bf16.mxu0 0
      %741 = vmatmul.mubr.bf16.gmra.mrb[0].mxu0 %v667
      %v742 = vpop.f32.mrb[0].mxu0
      %v743 = vadd.f32 %v564, %v742
      %v744 = vpop.f32.mrb[0].mxu0
      %v745 = vpop.f32.mrb[0].mxu0
      %v746 = vadd.f32 %v567, %v745
      %v747 = vpop.f32.mrb[0].mxu0
      %748 = vmatprep.mubr.bf16.mxu0 0
      %749 = vmatmul.mubr.bf16.gmra.mrb[0].mxu0 %v670
      %v750 = vpop.f32.mrb[0].mxu0
      %v751 = vadd.f32 %v572, %v750
      %v752 = vpop.f32.mrb[0].mxu0
      %v753 = vpop.f32.mrb[0].mxu0
      %v754 = vadd.f32 %v575, %v753
      %v755 = vpop.f32.mrb[0].mxu0
      %756 = vmatprep.mubr.bf16.mxu0 0
      %757 = vmatmul.mubr.bf16.gmra.mrb[0].mxu0 %v673
      %v758 = vpop.f32.mrb[0].mxu0
      %v759 = vadd.f32 %v580, %v758
      %v760 = vpop.f32.mrb[0].mxu0
      %v761 = vpop.f32.mrb[0].mxu0
      %v762 = vadd.f32 %v583, %v761
      %v763 = vpop.f32.mrb[0].mxu0
      %764 = vmatprep.mubr.bf16.mxu0 0
      %765 = vmatmul.mubr.bf16.gmra.mrb[0].mxu0 %v676
      %v766 = vpop.f32.mrb[0].mxu0
      %v767 = vadd.f32 %v588, %v766
      %v768 = vpop.f32.mrb[0].mxu0
      %v769 = vpop.f32.mrb[0].mxu0
      %v770 = vadd.f32 %v591, %v769
      %v771 = vpop.f32.mrb[0].mxu0
      %772 = vmatprep.mubr.bf16.mxu0 0
      %773 = vmatmul.mubr.bf16.gmra.mrb[0].mxu0 %v679
      %v774 = vpop.f32.mrb[0].mxu0
      %v775 = vadd.f32 %v596, %v774
      %v776 = vpop.f32.mrb[0].mxu0
      %v777 = vpop.f32.mrb[0].mxu0
      %v778 = vadd.f32 %v599, %v777
      %v779 = vpop.f32.mrb[0].mxu0
      %780 = vdwg.mxu0
      %vm789 = vcmask 1042432
      %vm790 = vcmask 1046532
      %vm791 = vmor %vm789, %vm790
      %v792 = vrot.slane %v201, 5
      %v793 = vrot.slane %v792, 4
      %v794 = vrot.slane %v202, 5
      %v795 = vsel %vm791, %v793, %v794
      %v796 = vrot.slane %v794, 4
      %v797 = vrot.slane %v203, 5
      %v798 = vsel %vm791, %v796, %v797
      %v799 = vrot.slane %v204, 5
      %v800 = vrot.slane %v799, 4
      %v801 = vrot.slane %v205, 5
      %v802 = vsel %vm791, %v800, %v801
      %v803 = vrot.slane %v801, 4
      %v804 = vrot.slane %v206, 5
      %v805 = vsel %vm791, %v803, %v804
      %v806 = vrot.slane %v207, 5
      %v807 = vrot.slane %v806, 4
      %v808 = vrot.slane %v208, 5
      %v809 = vsel %vm791, %v807, %v808
      %v810 = vrot.slane %v808, 4
      %v811 = vrot.slane %v209, 5
      %v812 = vsel %vm791, %v810, %v811
      %v813 = vrot.slane %v210, 5
      %v814 = vrot.slane %v813, 4
      %v815 = vrot.slane %v211, 5
      %v816 = vsel %vm791, %v814, %v815
      %v817 = vrot.slane %v815, 4
      %v818 = vrot.slane %v212, 5
      %v819 = vsel %vm791, %v817, %v818
      %v820 = vrot.slane %v213, 5
      %v821 = vrot.slane %v820, 4
      %v822 = vrot.slane %v214, 5
      %v823 = vsel %vm791, %v821, %v822
      %v824 = vrot.slane %v822, 4
      %v825 = vrot.slane %v215, 5
      %v826 = vsel %vm791, %v824, %v825
      %v827 = vrot.slane %v216, 5
      %v828 = vrot.slane %v827, 4
      %v829 = vrot.slane %v217, 5
      %v830 = vsel %vm791, %v828, %v829
      %v831 = vrot.slane %v829, 4
      %v832 = vrot.slane %v218, 5
      %v833 = vsel %vm791, %v831, %v832
      %v834 = vrot.slane %v219, 5
      %v835 = vrot.slane %v834, 4
      %v836 = vrot.slane %v220, 5
      %v837 = vsel %vm791, %v835, %v836
      %v838 = vrot.slane %v836, 4
      %v839 = vrot.slane %v221, 5
      %v840 = vsel %vm791, %v838, %v839
      %v841 = vrot.slane %v222, 5
      %v842 = vrot.slane %v841, 4
      %v843 = vrot.slane %v223, 5
      %v844 = vsel %vm791, %v842, %v843
      %v845 = vrot.slane %v843, 4
      %v846 = vrot.slane %v224, 5
      %v847 = vsel %vm791, %v845, %v846
      %s848 = scalar_lea.vmem %s1, 40
      %v849 = vld [vmem:[%s848] sm:$0xf]
      %v850 = vld [vmem:[%s848 + $0x4] sm:$0xf]
      %v851 = vld [vmem:[%s848 + $0x8] sm:$0xf]
      %v852 = vld [vmem:[%s848 + $0xc] sm:$0xf]
      %v853 = vld [vmem:[%s848 + $0x10] sm:$0x3]
      %v854 = vunpack.c.l.b16 %v795
      %v855 = vunpack.c.l.b16 %v798
      %v856 = vunpack.c.l.b16 %v802
      %v857 = vunpack.c.l.b16 %v805
      %v858 = vunpack.c.l.b16 %v809
      %v859 = vunpack.c.l.b16 %v812
      %v860 = vunpack.c.l.b16 %v816
      %v861 = vunpack.c.l.b16 %v819
      %v862 = vunpack.c.l.b16 %v823
      %v863 = vunpack.c.l.b16 %v826
      %v864 = vunpack.c.l.b16 %v830
      %v865 = vunpack.c.l.b16 %v833
      %v866 = vunpack.c.l.b16 %v837
      %v867 = vunpack.c.l.b16 %v840
      %v868 = vunpack.c.l.b16 %v844
      %v869 = vunpack.c.l.b16 %v847
      %v870 = vpack.c.b16 %v855, %v854
      %v871 = vpack.c.b16 %v857, %v856
      %v872 = vpack.c.b16 %v859, %v858
      %v873 = vpack.c.b16 %v861, %v860
      %v874 = vpack.c.b16 %v863, %v862
      %v875 = vpack.c.b16 %v865, %v864
      %v876 = vpack.c.b16 %v867, %v866
      %v877 = vpack.c.b16 %v869, %v868
      %v883 = vunpack.c.l.b16 %v849
      %v884 = vunpack.c.l.b16 %v850
      %v885 = vunpack.c.l.b16 %v851
      %v886 = vunpack.c.l.b16 %v852
      %v887 = vunpack.c.l.b16 %v853
      %v888 = vpack.c.b16 %v884, %v883
      %v889 = vpack.c.b16 %v886, %v885
      %v890 = vpack.c.b16 %v887, %v887
      %v894 = vsel %vm476, %v870, 0
      %v897 = vsel %vm476, %v871, 0
      %v900 = vsel %vm476, %v872, 0
      %v903 = vsel %vm476, %v873, 0
      %v906 = vsel %vm476, %v874, 0
      %v909 = vsel %vm476, %v875, 0
      %v912 = vsel %vm476, %v876, 0
      %v915 = vsel %vm476, %v877, 0
      %v918 = vsel %vm501, %v890, 0
      %920 = vmatprep.subr.bf16.mxu0 0
      %921 = vmatpush1.bf16.msra.mxu0 %v888
      %922 = vmatprep.subr.bf16.mxu0 0
      %923 = vmatpush1.bf16.msra.mxu0 %v889
      %924 = vmatprep.subr.bf16.mxu0 0
      %925 = vmatpush1.bf16.msra.mxu0 %v918
      %926 = vmatprep.subr.bf16.mxu0 0
      %927 = vmatpush1.bf16.msra.mxu0 0
      %928 = vmatprep.subr.bf16.mxu0 0
      %929 = vmatpush1.bf16.msra.mxu0 0
      %930 = vmatprep.subr.bf16.mxu0 0
      %931 = vmatpush1.bf16.msra.mxu0 0
      %932 = vmatprep.subr.bf16.mxu0 0
      %933 = vmatpush1.bf16.msra.mxu0 0
      %934 = vmatprep.subr.bf16.mxu0 0
      %935 = vmatpush1.bf16.msra.mxu0 0
      %936 = vmatprep.subr.bf16.mxu0 0
      %937 = vmatpush1.bf16.msra.mxu0 0
      %938 = vmatprep.subr.bf16.mxu0 0
      %939 = vmatpush1.bf16.msra.mxu0 0
      %940 = vmatprep.subr.bf16.mxu0 0
      %941 = vmatpush1.bf16.msra.mxu0 0
      %942 = vmatprep.subr.bf16.mxu0 0
      %943 = vmatpush1.bf16.msra.mxu0 0
      %944 = vmatprep.subr.bf16.mxu0 0
      %945 = vmatpush1.bf16.msra.mxu0 0
      %946 = vmatprep.subr.bf16.mxu0 0
      %947 = vmatpush1.bf16.msra.mxu0 0
      %948 = vmatprep.subr.bf16.mxu0 0
      %949 = vmatpush1.bf16.msra.mxu0 0
      %950 = vmatprep.subr.bf16.mxu0 0
      %951 = vmatpush1.bf16.msra.mxu0 0
      %952 = vmatprep.mubr.bf16.mxu0 0
      %953 = vmatmul.mubr.bf16.gmra.mrb[0].mxu0 %v894
      %v954 = vpop.f32.mrb[0].mxu0
      %v955 = vadd.f32 0.0, %v954
      %v956 = vpop.f32.mrb[0].mxu0
      %v957 = vpop.f32.mrb[0].mxu0
      %v958 = vadd.f32 0.0, %v957
      %v959 = vpop.f32.mrb[0].mxu0
      %960 = vmatprep.mubr.bf16.mxu0 0
      %961 = vmatmul.mubr.bf16.gmra.mrb[0].mxu0 %v897
      %v962 = vpop.f32.mrb[0].mxu0
      %v963 = vadd.f32 0.0, %v962
      %v964 = vpop.f32.mrb[0].mxu0
      %v965 = vpop.f32.mrb[0].mxu0
      %v966 = vadd.f32 0.0, %v965
      %v967 = vpop.f32.mrb[0].mxu0
      %968 = vmatprep.mubr.bf16.mxu0 0
      %969 = vmatmul.mubr.bf16.gmra.mrb[0].mxu0 %v900
      %v970 = vpop.f32.mrb[0].mxu0
      %v971 = vadd.f32 0.0, %v970
      %v972 = vpop.f32.mrb[0].mxu0
      %v973 = vpop.f32.mrb[0].mxu0
      %v974 = vadd.f32 0.0, %v973
      %v975 = vpop.f32.mrb[0].mxu0
      %976 = vmatprep.mubr.bf16.mxu0 0
      %977 = vmatmul.mubr.bf16.gmra.mrb[0].mxu0 %v903
      %v978 = vpop.f32.mrb[0].mxu0
      %v979 = vadd.f32 0.0, %v978
      %v980 = vpop.f32.mrb[0].mxu0
      %v981 = vpop.f32.mrb[0].mxu0
      %v982 = vadd.f32 0.0, %v981
      %v983 = vpop.f32.mrb[0].mxu0
      %984 = vmatprep.mubr.bf16.mxu0 0
      %985 = vmatmul.mubr.bf16.gmra.mrb[0].mxu0 %v906
      %v986 = vpop.f32.mrb[0].mxu0
      %v987 = vadd.f32 0.0, %v986
      %v988 = vpop.f32.mrb[0].mxu0
      %v989 = vpop.f32.mrb[0].mxu0
      %v990 = vadd.f32 0.0, %v989
      %v991 = vpop.f32.mrb[0].mxu0
      %992 = vmatprep.mubr.bf16.mxu0 0
      %993 = vmatmul.mubr.bf16.gmra.mrb[0].mxu0 %v909
      %v994 = vpop.f32.mrb[0].mxu0
      %v995 = vadd.f32 0.0, %v994
      %v996 = vpop.f32.mrb[0].mxu0
      %v997 = vpop.f32.mrb[0].mxu0
      %v998 = vadd.f32 0.0, %v997
      %v999 = vpop.f32.mrb[0].mxu0
      %1000 = vmatprep.mubr.bf16.mxu0 0
      %1001 = vmatmul.mubr.bf16.gmra.mrb[0].mxu0 %v912
      %v1002 = vpop.f32.mrb[0].mxu0
      %v1003 = vadd.f32 0.0, %v1002
      %v1004 = vpop.f32.mrb[0].mxu0
      %v1005 = vpop.f32.mrb[0].mxu0
      %v1006 = vadd.f32 0.0, %v1005
      %v1007 = vpop.f32.mrb[0].mxu0
      %1008 = vmatprep.mubr.bf16.mxu0 0
      %1009 = vmatmul.mubr.bf16.gmra.mrb[0].mxu0 %v915
      %v1010 = vpop.f32.mrb[0].mxu0
      %v1011 = vadd.f32 0.0, %v1010
      %v1012 = vpop.f32.mrb[0].mxu0
      %v1013 = vpop.f32.mrb[0].mxu0
      %v1014 = vadd.f32 0.0, %v1013
      %v1015 = vpop.f32.mrb[0].mxu0
      %1016 = vdwg.mxu0
      %v1017 = vadd.f32 %v719, %v955
      %v1018 = vadd.f32 %v722, %v958
      %v1019 = vadd.f32 %v727, %v963
      %v1020 = vadd.f32 %v730, %v966
      %v1021 = vadd.f32 %v735, %v971
      %v1022 = vadd.f32 %v738, %v974
      %v1023 = vadd.f32 %v743, %v979
      %v1024 = vadd.f32 %v746, %v982
      %v1025 = vadd.f32 %v751, %v987
      %v1026 = vadd.f32 %v754, %v990
      %v1027 = vadd.f32 %v759, %v995
      %v1028 = vadd.f32 %v762, %v998
      %v1029 = vadd.f32 %v767, %v1003
      %v1030 = vadd.f32 %v770, %v1006
      %v1031 = vadd.f32 %v775, %v1011
      %v1032 = vadd.f32 %v778, %v1014
      %s1033 = scalar_lea.vmem %s1, 60
      %v1034 = vld [vmem:[%s1033] sm:$0xf]
      %v1035 = vld [vmem:[%s1033 + $0x4] sm:$0xf]
      %v1036 = vld [vmem:[%s1033 + $0x8] sm:$0xf]
      %v1037 = vld [vmem:[%s1033 + $0xc] sm:$0xf]
      %v1038 = vld [vmem:[%s1033 + $0x10] sm:$0x3]
      %v1041 = vunpack.c.l.b16 %v225
      %v1042 = vunpack.c.l.b16 %v226
      %v1043 = vpack.c.b16 %v1042, %v1041
      %v1049 = vunpack.c.l.b16 %v1034
      %v1050 = vunpack.c.l.b16 %v1035
      %v1051 = vunpack.c.l.b16 %v1036
      %v1052 = vunpack.c.l.b16 %v1037
      %v1053 = vunpack.c.l.b16 %v1038
      %v1054 = vpack.c.b16 %v1050, %v1049
      %v1055 = vpack.c.b16 %v1052, %v1051
      %v1056 = vpack.c.b16 %v1053, %v1053
      %v1060 = vsel %vm476, %v1043, 0
      %v1063 = vsel %vm501, %v1056, 0
      %1065 = vmatprep.subr.bf16.mxu0 0
      %1066 = vmatpush1.bf16.msra.mxu0 %v1054
      %1067 = vmatprep.subr.bf16.mxu0 0
      %1068 = vmatpush1.bf16.msra.mxu0 %v1055
      %1069 = vmatprep.subr.bf16.mxu0 0
      %1070 = vmatpush1.bf16.msra.mxu0 %v1063
      %1071 = vmatprep.subr.bf16.mxu0 0
      %1072 = vmatpush1.bf16.msra.mxu0 0
      %1073 = vmatprep.subr.bf16.mxu0 0
      %1074 = vmatpush1.bf16.msra.mxu0 0
      %1075 = vmatprep.subr.bf16.mxu0 0
      %1076 = vmatpush1.bf16.msra.mxu0 0
      %1077 = vmatprep.subr.bf16.mxu0 0
      %1078 = vmatpush1.bf16.msra.mxu0 0
      %1079 = vmatprep.subr.bf16.mxu0 0
      %1080 = vmatpush1.bf16.msra.mxu0 0
      %1081 = vmatprep.subr.bf16.mxu0 0
      %1082 = vmatpush1.bf16.msra.mxu0 0
      %1083 = vmatprep.subr.bf16.mxu0 0
      %1084 = vmatpush1.bf16.msra.mxu0 0
      %1085 = vmatprep.subr.bf16.mxu0 0
      %1086 = vmatpush1.bf16.msra.mxu0 0
      %1087 = vmatprep.subr.bf16.mxu0 0
      %1088 = vmatpush1.bf16.msra.mxu0 0
      %1089 = vmatprep.subr.bf16.mxu0 0
      %1090 = vmatpush1.bf16.msra.mxu0 0
      %1091 = vmatprep.subr.bf16.mxu0 0
      %1092 = vmatpush1.bf16.msra.mxu0 0
      %1093 = vmatprep.subr.bf16.mxu0 0
      %1094 = vmatpush1.bf16.msra.mxu0 0
      %1095 = vmatprep.subr.bf16.mxu0 0
      %1096 = vmatpush1.bf16.msra.mxu0 0
      %1097 = vmatprep.mubr.bf16.mxu0 0
      %1098 = vmatmul.mubr.bf16.gmra.mrb[0].mxu0 %v661
      %v1099 = vpop.f32.mrb[0].mxu0
      %v1100 = vadd.f32 0.0, %v1099
      %v1101 = vpop.f32.mrb[0].mxu0
      %v1102 = vpop.f32.mrb[0].mxu0
      %v1103 = vadd.f32 0.0, %v1102
      %v1104 = vpop.f32.mrb[0].mxu0
      %1105 = vmatprep.mubr.bf16.mxu0 0
      %1106 = vmatmul.mubr.bf16.gmra.mrb[0].mxu0 %v664
      %v1107 = vpop.f32.mrb[0].mxu0
      %v1108 = vadd.f32 0.0, %v1107
      %v1109 = vpop.f32.mrb[0].mxu0
      %v1110 = vpop.f32.mrb[0].mxu0
      %v1111 = vadd.f32 0.0, %v1110
      %v1112 = vpop.f32.mrb[0].mxu0
      %1113 = vmatprep.mubr.bf16.mxu0 0
      %1114 = vmatmul.mubr.bf16.gmra.mrb[0].mxu0 %v667
      %v1115 = vpop.f32.mrb[0].mxu0
      %v1116 = vadd.f32 0.0, %v1115
      %v1117 = vpop.f32.mrb[0].mxu0
      %v1118 = vpop.f32.mrb[0].mxu0
      %v1119 = vadd.f32 0.0, %v1118
      %v1120 = vpop.f32.mrb[0].mxu0
      %1121 = vmatprep.mubr.bf16.mxu0 0
      %1122 = vmatmul.mubr.bf16.gmra.mrb[0].mxu0 %v670
      %v1123 = vpop.f32.mrb[0].mxu0
      %v1124 = vadd.f32 0.0, %v1123
      %v1125 = vpop.f32.mrb[0].mxu0
      %v1126 = vpop.f32.mrb[0].mxu0
      %v1127 = vadd.f32 0.0, %v1126
      %v1128 = vpop.f32.mrb[0].mxu0
      %1129 = vmatprep.mubr.bf16.mxu0 0
      %1130 = vmatmul.mubr.bf16.gmra.mrb[0].mxu0 %v673
      %v1131 = vpop.f32.mrb[0].mxu0
      %v1132 = vadd.f32 0.0, %v1131
      %v1133 = vpop.f32.mrb[0].mxu0
      %v1134 = vpop.f32.mrb[0].mxu0
      %v1135 = vadd.f32 0.0, %v1134
      %v1136 = vpop.f32.mrb[0].mxu0
      %1137 = vmatprep.mubr.bf16.mxu0 0
      %1138 = vmatmul.mubr.bf16.gmra.mrb[0].mxu0 %v676
      %v1139 = vpop.f32.mrb[0].mxu0
      %v1140 = vadd.f32 0.0, %v1139
      %v1141 = vpop.f32.mrb[0].mxu0
      %v1142 = vpop.f32.mrb[0].mxu0
      %v1143 = vadd.f32 0.0, %v1142
      %v1144 = vpop.f32.mrb[0].mxu0
      %1145 = vmatprep.mubr.bf16.mxu0 0
      %1146 = vmatmul.mubr.bf16.gmra.mrb[0].mxu0 %v679
      %v1147 = vpop.f32.mrb[0].mxu0
      %v1148 = vadd.f32 0.0, %v1147
      %v1149 = vpop.f32.mrb[0].mxu0
      %v1150 = vpop.f32.mrb[0].mxu0
      %v1151 = vadd.f32 0.0, %v1150
      %v1152 = vpop.f32.mrb[0].mxu0
      %1153 = vmatprep.mubr.bf16.mxu0 0
      %1154 = vmatmul.mubr.bf16.gmra.mrb[0].mxu0 %v1060
      %v1155 = vpop.f32.mrb[0].mxu0
      %v1156 = vadd.f32 0.0, %v1155
      %v1157 = vpop.f32.mrb[0].mxu0
      %v1158 = vpop.f32.mrb[0].mxu0
      %v1159 = vadd.f32 0.0, %v1158
      %v1160 = vpop.f32.mrb[0].mxu0
      %1161 = vdwg.mxu0
      %v1162 = vadd.f32 %v1017, %v1100
      %v1163 = vadd.f32 %v1018, %v1103
      %v1164 = vadd.f32 %v1019, %v1108
      %v1165 = vadd.f32 %v1020, %v1111
      %v1166 = vadd.f32 %v1021, %v1116
      %v1167 = vadd.f32 %v1022, %v1119
      %v1168 = vadd.f32 %v1023, %v1124
      %v1169 = vadd.f32 %v1024, %v1127
      %v1170 = vadd.f32 %v1025, %v1132
      %v1171 = vadd.f32 %v1026, %v1135
      %v1172 = vadd.f32 %v1027, %v1140
      %v1173 = vadd.f32 %v1028, %v1143
      %v1174 = vadd.f32 %v1029, %v1148
      %v1175 = vadd.f32 %v1030, %v1151
      %v1176 = vadd.f32 %v1031, %v1156
      %v1177 = vadd.f32 %v1032, %v1159
      %v1179 = vshrl.u32 %v225, 16
      %v1181 = vrot.slane %v1179, 4
      %v1182 = vshll.u32 %v225, 16
      %v1184 = vrot.slane %v1182, 5
      %v1185 = vor.u32 %v1181, %v1184
      %v1186 = vrot.slane %v1185, 4
      %v1188 = vshll.u32 %v226, 16
      %v1190 = vrot.slane %v1188, 5
      %v1191 = vsel %vm238, %v1186, %v1190
      %v1192 = vshrl.u32 %v226, 16
      %v1194 = vrot.slane %v1192, 4
      %v1195 = vor.u32 %v1194, %v1190
      %v1196 = vrot.slane %v1195, 4
      %v1198 = vshll.u32 %v227, 16
      %v1200 = vrot.slane %v1198, 5
      %v1201 = vsel %vm238, %v1196, %v1200
      %s1202 = scalar_lea.vmem %s1, 80
      %v1203 = vld [vmem:[%s1202] sm:$0xf]
      %v1204 = vld [vmem:[%s1202 + $0x4] sm:$0xf]
      %v1205 = vld [vmem:[%s1202 + $0x8] sm:$0xf]
      %v1206 = vld [vmem:[%s1202 + $0xc] sm:$0xf]
      %v1207 = vld [vmem:[%s1202 + $0x10] sm:$0x3]
      %v1208 = vunpack.c.l.b16 %v1191
      %v1209 = vunpack.c.l.b16 %v1201
      %v1210 = vpack.c.b16 %v1209, %v1208
      %v1216 = vunpack.c.l.b16 %v1203
      %v1217 = vunpack.c.l.b16 %v1204
      %v1218 = vunpack.c.l.b16 %v1205
      %v1219 = vunpack.c.l.b16 %v1206
      %v1220 = vunpack.c.l.b16 %v1207
      %v1221 = vpack.c.b16 %v1217, %v1216
      %v1222 = vpack.c.b16 %v1219, %v1218
      %v1223 = vpack.c.b16 %v1220, %v1220
      %v1227 = vsel %vm476, %v1210, 0
      %v1230 = vsel %vm501, %v1223, 0
      %1232 = vmatprep.subr.bf16.mxu0 0
      %1233 = vmatpush1.bf16.msra.mxu0 %v1221
      %1234 = vmatprep.subr.bf16.mxu0 0
      %1235 = vmatpush1.bf16.msra.mxu0 %v1222
      %1236 = vmatprep.subr.bf16.mxu0 0
      %1237 = vmatpush1.bf16.msra.mxu0 %v1230
      %1238 = vmatprep.subr.bf16.mxu0 0
      %1239 = vmatpush1.bf16.msra.mxu0 0
      %1240 = vmatprep.subr.bf16.mxu0 0
      %1241 = vmatpush1.bf16.msra.mxu0 0
      %1242 = vmatprep.subr.bf16.mxu0 0
      %1243 = vmatpush1.bf16.msra.mxu0 0
      %1244 = vmatprep.subr.bf16.mxu0 0
      %1245 = vmatpush1.bf16.msra.mxu0 0
      %1246 = vmatprep.subr.bf16.mxu0 0
      %1247 = vmatpush1.bf16.msra.mxu0 0
      %1248 = vmatprep.subr.bf16.mxu0 0
      %1249 = vmatpush1.bf16.msra.mxu0 0
      %1250 = vmatprep.subr.bf16.mxu0 0
      %1251 = vmatpush1.bf16.msra.mxu0 0
      %1252 = vmatprep.subr.bf16.mxu0 0
      %1253 = vmatpush1.bf16.msra.mxu0 0
      %1254 = vmatprep.subr.bf16.mxu0 0
      %1255 = vmatpush1.bf16.msra.mxu0 0
      %1256 = vmatprep.subr.bf16.mxu0 0
      %1257 = vmatpush1.bf16.msra.mxu0 0
      %1258 = vmatprep.subr.bf16.mxu0 0
      %1259 = vmatpush1.bf16.msra.mxu0 0
      %1260 = vmatprep.subr.bf16.mxu0 0
      %1261 = vmatpush1.bf16.msra.mxu0 0
      %1262 = vmatprep.subr.bf16.mxu0 0
      %1263 = vmatpush1.bf16.msra.mxu0 0
      %1264 = vmatprep.mubr.bf16.mxu0 0
      %1265 = vmatmul.mubr.bf16.gmra.mrb[0].mxu0 %v481
      %v1266 = vpop.f32.mrb[0].mxu0
      %v1267 = vadd.f32 0.0, %v1266
      %v1268 = vpop.f32.mrb[0].mxu0
      %v1269 = vpop.f32.mrb[0].mxu0
      %v1270 = vadd.f32 0.0, %v1269
      %v1271 = vpop.f32.mrb[0].mxu0
      %1272 = vmatprep.mubr.bf16.mxu0 0
      %1273 = vmatmul.mubr.bf16.gmra.mrb[0].mxu0 %v484
      %v1274 = vpop.f32.mrb[0].mxu0
      %v1275 = vadd.f32 0.0, %v1274
      %v1276 = vpop.f32.mrb[0].mxu0
      %v1277 = vpop.f32.mrb[0].mxu0
      %v1278 = vadd.f32 0.0, %v1277
      %v1279 = vpop.f32.mrb[0].mxu0
      %1280 = vmatprep.mubr.bf16.mxu0 0
      %1281 = vmatmul.mubr.bf16.gmra.mrb[0].mxu0 %v487
      %v1282 = vpop.f32.mrb[0].mxu0
      %v1283 = vadd.f32 0.0, %v1282
      %v1284 = vpop.f32.mrb[0].mxu0
      %v1285 = vpop.f32.mrb[0].mxu0
      %v1286 = vadd.f32 0.0, %v1285
      %v1287 = vpop.f32.mrb[0].mxu0
      %1288 = vmatprep.mubr.bf16.mxu0 0
      %1289 = vmatmul.mubr.bf16.gmra.mrb[0].mxu0 %v490
      %v1290 = vpop.f32.mrb[0].mxu0
      %v1291 = vadd.f32 0.0, %v1290
      %v1292 = vpop.f32.mrb[0].mxu0
      %v1293 = vpop.f32.mrb[0].mxu0
      %v1294 = vadd.f32 0.0, %v1293
      %v1295 = vpop.f32.mrb[0].mxu0
      %1296 = vmatprep.mubr.bf16.mxu0 0
      %1297 = vmatmul.mubr.bf16.gmra.mrb[0].mxu0 %v493
      %v1298 = vpop.f32.mrb[0].mxu0
      %v1299 = vadd.f32 0.0, %v1298
      %v1300 = vpop.f32.mrb[0].mxu0
      %v1301 = vpop.f32.mrb[0].mxu0
      %v1302 = vadd.f32 0.0, %v1301
      %v1303 = vpop.f32.mrb[0].mxu0
      %1304 = vmatprep.mubr.bf16.mxu0 0
      %1305 = vmatmul.mubr.bf16.gmra.mrb[0].mxu0 %v496
      %v1306 = vpop.f32.mrb[0].mxu0
      %v1307 = vadd.f32 0.0, %v1306
      %v1308 = vpop.f32.mrb[0].mxu0
      %v1309 = vpop.f32.mrb[0].mxu0
      %v1310 = vadd.f32 0.0, %v1309
      %v1311 = vpop.f32.mrb[0].mxu0
      %1312 = vmatprep.mubr.bf16.mxu0 0
      %1313 = vmatmul.mubr.bf16.gmra.mrb[0].mxu0 %v499
      %v1314 = vpop.f32.mrb[0].mxu0
      %v1315 = vadd.f32 0.0, %v1314
      %v1316 = vpop.f32.mrb[0].mxu0
      %v1317 = vpop.f32.mrb[0].mxu0
      %v1318 = vadd.f32 0.0, %v1317
      %v1319 = vpop.f32.mrb[0].mxu0
      %1320 = vmatprep.mubr.bf16.mxu0 0
      %1321 = vmatmul.mubr.bf16.gmra.mrb[0].mxu0 %v1227
      %v1322 = vpop.f32.mrb[0].mxu0
      %v1323 = vadd.f32 0.0, %v1322
      %v1324 = vpop.f32.mrb[0].mxu0
      %v1325 = vpop.f32.mrb[0].mxu0
      %v1326 = vadd.f32 0.0, %v1325
      %v1327 = vpop.f32.mrb[0].mxu0
      %1328 = vdwg.mxu0
      %v1329 = vadd.f32 %v1162, %v1267
      %v1330 = vadd.f32 %v1163, %v1270
      %v1331 = vadd.f32 %v1164, %v1275
      %v1332 = vadd.f32 %v1165, %v1278
      %v1333 = vadd.f32 %v1166, %v1283
      %v1334 = vadd.f32 %v1167, %v1286
      %v1335 = vadd.f32 %v1168, %v1291
      %v1336 = vadd.f32 %v1169, %v1294
      %v1337 = vadd.f32 %v1170, %v1299
      %v1338 = vadd.f32 %v1171, %v1302
      %v1339 = vadd.f32 %v1172, %v1307
      %v1340 = vadd.f32 %v1173, %v1310
      %v1341 = vadd.f32 %v1174, %v1315
      %v1342 = vadd.f32 %v1175, %v1318
      %v1343 = vadd.f32 %v1176, %v1323
      %v1344 = vadd.f32 %v1177, %v1326
      %v1346 = vrot.slane %v225, 5
      %v1347 = vrot.slane %v1346, 4
      %v1348 = vrot.slane %v226, 5
      %v1349 = vsel %vm791, %v1347, %v1348
      %v1350 = vrot.slane %v1348, 4
      %v1351 = vrot.slane %v227, 5
      %v1352 = vsel %vm791, %v1350, %v1351
      %s1353 = scalar_lea.vmem %s1, 100
      %v1354 = vld [vmem:[%s1353] sm:$0xf]
      %v1355 = vld [vmem:[%s1353 + $0x4] sm:$0xf]
      %v1356 = vld [vmem:[%s1353 + $0x8] sm:$0xf]
      %v1357 = vld [vmem:[%s1353 + $0xc] sm:$0xf]
      %v1358 = vld [vmem:[%s1353 + $0x10] sm:$0x3]
      %v1359 = vunpack.c.l.b16 %v1349
      %v1360 = vunpack.c.l.b16 %v1352
      %v1361 = vpack.c.b16 %v1360, %v1359
      %v1367 = vunpack.c.l.b16 %v1354
      %v1368 = vunpack.c.l.b16 %v1355
      %v1369 = vunpack.c.l.b16 %v1356
      %v1370 = vunpack.c.l.b16 %v1357
      %v1371 = vunpack.c.l.b16 %v1358
      %v1372 = vpack.c.b16 %v1368, %v1367
      %v1373 = vpack.c.b16 %v1370, %v1369
      %v1374 = vpack.c.b16 %v1371, %v1371
      %v1378 = vsel %vm476, %v1361, 0
      %v1381 = vsel %vm501, %v1374, 0
      %1383 = vmatprep.subr.bf16.mxu0 0
      %1384 = vmatpush1.bf16.msra.mxu0 %v1372
      %1385 = vmatprep.subr.bf16.mxu0 0
      %1386 = vmatpush1.bf16.msra.mxu0 %v1373
      %1387 = vmatprep.subr.bf16.mxu0 0
      %1388 = vmatpush1.bf16.msra.mxu0 %v1381
      %1389 = vmatprep.subr.bf16.mxu0 0
      %1390 = vmatpush1.bf16.msra.mxu0 0
      %1391 = vmatprep.subr.bf16.mxu0 0
      %1392 = vmatpush1.bf16.msra.mxu0 0
      %1393 = vmatprep.subr.bf16.mxu0 0
      %1394 = vmatpush1.bf16.msra.mxu0 0
      %1395 = vmatprep.subr.bf16.mxu0 0
      %1396 = vmatpush1.bf16.msra.mxu0 0
      %1397 = vmatprep.subr.bf16.mxu0 0
      %1398 = vmatpush1.bf16.msra.mxu0 0
      %1399 = vmatprep.subr.bf16.mxu0 0
      %1400 = vmatpush1.bf16.msra.mxu0 0
      %1401 = vmatprep.subr.bf16.mxu0 0
      %1402 = vmatpush1.bf16.msra.mxu0 0
      %1403 = vmatprep.subr.bf16.mxu0 0
      %1404 = vmatpush1.bf16.msra.mxu0 0
      %1405 = vmatprep.subr.bf16.mxu0 0
      %1406 = vmatpush1.bf16.msra.mxu0 0
      %1407 = vmatprep.subr.bf16.mxu0 0
      %1408 = vmatpush1.bf16.msra.mxu0 0
      %1409 = vmatprep.subr.bf16.mxu0 0
      %1410 = vmatpush1.bf16.msra.mxu0 0
      %1411 = vmatprep.subr.bf16.mxu0 0
      %1412 = vmatpush1.bf16.msra.mxu0 0
      %1413 = vmatprep.subr.bf16.mxu0 0
      %1414 = vmatpush1.bf16.msra.mxu0 0
      %1415 = vmatprep.mubr.bf16.mxu0 0
      %1416 = vmatmul.mubr.bf16.gmra.mrb[0].mxu0 %v897
      %v1417 = vpop.f32.mrb[0].mxu0
      %v1418 = vadd.f32 0.0, %v1417
      %v1419 = vpop.f32.mrb[0].mxu0
      %v1420 = vpop.f32.mrb[0].mxu0
      %v1421 = vadd.f32 0.0, %v1420
      %v1422 = vpop.f32.mrb[0].mxu0
      %1423 = vmatprep.mubr.bf16.mxu0 0
      %1424 = vmatmul.mubr.bf16.gmra.mrb[0].mxu0 %v900
      %v1425 = vpop.f32.mrb[0].mxu0
      %v1426 = vadd.f32 0.0, %v1425
      %v1427 = vpop.f32.mrb[0].mxu0
      %v1428 = vpop.f32.mrb[0].mxu0
      %v1429 = vadd.f32 0.0, %v1428
      %v1430 = vpop.f32.mrb[0].mxu0
      %1431 = vmatprep.mubr.bf16.mxu0 0
      %1432 = vmatmul.mubr.bf16.gmra.mrb[0].mxu0 %v903
      %v1433 = vpop.f32.mrb[0].mxu0
      %v1434 = vadd.f32 0.0, %v1433
      %v1435 = vpop.f32.mrb[0].mxu0
      %v1436 = vpop.f32.mrb[0].mxu0
      %v1437 = vadd.f32 0.0, %v1436
      %v1438 = vpop.f32.mrb[0].mxu0
      %1439 = vmatprep.mubr.bf16.mxu0 0
      %1440 = vmatmul.mubr.bf16.gmra.mrb[0].mxu0 %v906
      %v1441 = vpop.f32.mrb[0].mxu0
      %v1442 = vadd.f32 0.0, %v1441
      %v1443 = vpop.f32.mrb[0].mxu0
      %v1444 = vpop.f32.mrb[0].mxu0
      %v1445 = vadd.f32 0.0, %v1444
      %v1446 = vpop.f32.mrb[0].mxu0
      %1447 = vmatprep.mubr.bf16.mxu0 0
      %1448 = vmatmul.mubr.bf16.gmra.mrb[0].mxu0 %v909
      %v1449 = vpop.f32.mrb[0].mxu0
      %v1450 = vadd.f32 0.0, %v1449
      %v1451 = vpop.f32.mrb[0].mxu0
      %v1452 = vpop.f32.mrb[0].mxu0
      %v1453 = vadd.f32 0.0, %v1452
      %v1454 = vpop.f32.mrb[0].mxu0
      %1455 = vmatprep.mubr.bf16.mxu0 0
      %1456 = vmatmul.mubr.bf16.gmra.mrb[0].mxu0 %v912
      %v1457 = vpop.f32.mrb[0].mxu0
      %v1458 = vadd.f32 0.0, %v1457
      %v1459 = vpop.f32.mrb[0].mxu0
      %v1460 = vpop.f32.mrb[0].mxu0
      %v1461 = vadd.f32 0.0, %v1460
      %v1462 = vpop.f32.mrb[0].mxu0
      %1463 = vmatprep.mubr.bf16.mxu0 0
      %1464 = vmatmul.mubr.bf16.gmra.mrb[0].mxu0 %v915
      %v1465 = vpop.f32.mrb[0].mxu0
      %v1466 = vadd.f32 0.0, %v1465
      %v1467 = vpop.f32.mrb[0].mxu0
      %v1468 = vpop.f32.mrb[0].mxu0
      %v1469 = vadd.f32 0.0, %v1468
      %v1470 = vpop.f32.mrb[0].mxu0
      %1471 = vmatprep.mubr.bf16.mxu0 0
      %1472 = vmatmul.mubr.bf16.gmra.mrb[0].mxu0 %v1378
      %v1473 = vpop.f32.mrb[0].mxu0
      %v1474 = vadd.f32 0.0, %v1473
      %v1475 = vpop.f32.mrb[0].mxu0
      %v1476 = vpop.f32.mrb[0].mxu0
      %v1477 = vadd.f32 0.0, %v1476
      %v1478 = vpop.f32.mrb[0].mxu0
      %1479 = vdwg.mxu0
      %v1480 = vadd.f32 %v1329, %v1418
      %v1481 = vadd.f32 %v1330, %v1421
      %v1482 = vadd.f32 %v1331, %v1426
      %v1483 = vadd.f32 %v1332, %v1429
      %v1484 = vadd.f32 %v1333, %v1434
      %v1485 = vadd.f32 %v1334, %v1437
      %v1486 = vadd.f32 %v1335, %v1442
      %v1487 = vadd.f32 %v1336, %v1445
      %v1488 = vadd.f32 %v1337, %v1450
      %v1489 = vadd.f32 %v1338, %v1453
      %v1490 = vadd.f32 %v1339, %v1458
      %v1491 = vadd.f32 %v1340, %v1461
      %v1492 = vadd.f32 %v1341, %v1466
      %v1493 = vadd.f32 %v1342, %v1469
      %v1494 = vadd.f32 %v1343, %v1474
      %v1495 = vadd.f32 %v1344, %v1477
      %s1496 = scalar_lea.vmem %s1, 120
      %v1497 = vld [vmem:[%s1496] sm:$0xf]
      %v1498 = vld [vmem:[%s1496 + $0x4] sm:$0xf]
      %v1499 = vld [vmem:[%s1496 + $0x8] sm:$0xf]
      %v1500 = vld [vmem:[%s1496 + $0xc] sm:$0xf]
      %v1501 = vld [vmem:[%s1496 + $0x10] sm:$0x3]
      %v1504 = vunpack.c.l.b16 %v228
      %v1505 = vunpack.c.l.b16 %v229
      %v1506 = vpack.c.b16 %v1505, %v1504
      %v1512 = vunpack.c.l.b16 %v1497
      %v1513 = vunpack.c.l.b16 %v1498
      %v1514 = vunpack.c.l.b16 %v1499
      %v1515 = vunpack.c.l.b16 %v1500
      %v1516 = vunpack.c.l.b16 %v1501
      %v1517 = vpack.c.b16 %v1513, %v1512
      %v1518 = vpack.c.b16 %v1515, %v1514
      %v1519 = vpack.c.b16 %v1516, %v1516
      %v1523 = vsel %vm476, %v1506, 0
      %v1526 = vsel %vm501, %v1519, 0
      %1528 = vmatprep.subr.bf16.mxu0 0
      %1529 = vmatpush1.bf16.msra.mxu0 %v1517
      %1530 = vmatprep.subr.bf16.mxu0 0
      %1531 = vmatpush1.bf16.msra.mxu0 %v1518
      %1532 = vmatprep.subr.bf16.mxu0 0
      %1533 = vmatpush1.bf16.msra.mxu0 %v1526
      %1534 = vmatprep.subr.bf16.mxu0 0
      %1535 = vmatpush1.bf16.msra.mxu0 0
      %1536 = vmatprep.subr.bf16.mxu0 0
      %1537 = vmatpush1.bf16.msra.mxu0 0
      %1538 = vmatprep.subr.bf16.mxu0 0
      %1539 = vmatpush1.bf16.msra.mxu0 0
      %1540 = vmatprep.subr.bf16.mxu0 0
      %1541 = vmatpush1.bf16.msra.mxu0 0
      %1542 = vmatprep.subr.bf16.mxu0 0
      %1543 = vmatpush1.bf16.msra.mxu0 0
      %1544 = vmatprep.subr.bf16.mxu0 0
      %1545 = vmatpush1.bf16.msra.mxu0 0
      %1546 = vmatprep.subr.bf16.mxu0 0
      %1547 = vmatpush1.bf16.msra.mxu0 0
      %1548 = vmatprep.subr.bf16.mxu0 0
      %1549 = vmatpush1.bf16.msra.mxu0 0
      %1550 = vmatprep.subr.bf16.mxu0 0
      %1551 = vmatpush1.bf16.msra.mxu0 0
      %1552 = vmatprep.subr.bf16.mxu0 0
      %1553 = vmatpush1.bf16.msra.mxu0 0
      %1554 = vmatprep.subr.bf16.mxu0 0
      %1555 = vmatpush1.bf16.msra.mxu0 0
      %1556 = vmatprep.subr.bf16.mxu0 0
      %1557 = vmatpush1.bf16.msra.mxu0 0
      %1558 = vmatprep.subr.bf16.mxu0 0
      %1559 = vmatpush1.bf16.msra.mxu0 0
      %1560 = vmatprep.mubr.bf16.mxu0 0
      %1561 = vmatmul.mubr.bf16.gmra.mrb[0].mxu0 %v664
      %v1562 = vpop.f32.mrb[0].mxu0
      %v1563 = vadd.f32 0.0, %v1562
      %v1564 = vpop.f32.mrb[0].mxu0
      %v1565 = vpop.f32.mrb[0].mxu0
      %v1566 = vadd.f32 0.0, %v1565
      %v1567 = vpop.f32.mrb[0].mxu0
      %1568 = vmatprep.mubr.bf16.mxu0 0
      %1569 = vmatmul.mubr.bf16.gmra.mrb[0].mxu0 %v667
      %v1570 = vpop.f32.mrb[0].mxu0
      %v1571 = vadd.f32 0.0, %v1570
      %v1572 = vpop.f32.mrb[0].mxu0
      %v1573 = vpop.f32.mrb[0].mxu0
      %v1574 = vadd.f32 0.0, %v1573
      %v1575 = vpop.f32.mrb[0].mxu0
      %1576 = vmatprep.mubr.bf16.mxu0 0
      %1577 = vmatmul.mubr.bf16.gmra.mrb[0].mxu0 %v670
      %v1578 = vpop.f32.mrb[0].mxu0
      %v1579 = vadd.f32 0.0, %v1578
      %v1580 = vpop.f32.mrb[0].mxu0
      %v1581 = vpop.f32.mrb[0].mxu0
      %v1582 = vadd.f32 0.0, %v1581
      %v1583 = vpop.f32.mrb[0].mxu0
      %1584 = vmatprep.mubr.bf16.mxu0 0
      %1585 = vmatmul.mubr.bf16.gmra.mrb[0].mxu0 %v673
      %v1586 = vpop.f32.mrb[0].mxu0
      %v1587 = vadd.f32 0.0, %v1586
      %v1588 = vpop.f32.mrb[0].mxu0
      %v1589 = vpop.f32.mrb[0].mxu0
      %v1590 = vadd.f32 0.0, %v1589
      %v1591 = vpop.f32.mrb[0].mxu0
      %1592 = vmatprep.mubr.bf16.mxu0 0
      %1593 = vmatmul.mubr.bf16.gmra.mrb[0].mxu0 %v676
      %v1594 = vpop.f32.mrb[0].mxu0
      %v1595 = vadd.f32 0.0, %v1594
      %v1596 = vpop.f32.mrb[0].mxu0
      %v1597 = vpop.f32.mrb[0].mxu0
      %v1598 = vadd.f32 0.0, %v1597
      %v1599 = vpop.f32.mrb[0].mxu0
      %1600 = vmatprep.mubr.bf16.mxu0 0
      %1601 = vmatmul.mubr.bf16.gmra.mrb[0].mxu0 %v679
      %v1602 = vpop.f32.mrb[0].mxu0
      %v1603 = vadd.f32 0.0, %v1602
      %v1604 = vpop.f32.mrb[0].mxu0
      %v1605 = vpop.f32.mrb[0].mxu0
      %v1606 = vadd.f32 0.0, %v1605
      %v1607 = vpop.f32.mrb[0].mxu0
      %1608 = vmatprep.mubr.bf16.mxu0 0
      %1609 = vmatmul.mubr.bf16.gmra.mrb[0].mxu0 %v1060
      %v1610 = vpop.f32.mrb[0].mxu0
      %v1611 = vadd.f32 0.0, %v1610
      %v1612 = vpop.f32.mrb[0].mxu0
      %v1613 = vpop.f32.mrb[0].mxu0
      %v1614 = vadd.f32 0.0, %v1613
      %v1615 = vpop.f32.mrb[0].mxu0
      %1616 = vmatprep.mubr.bf16.mxu0 0
      %1617 = vmatmul.mubr.bf16.gmra.mrb[0].mxu0 %v1523
      %v1618 = vpop.f32.mrb[0].mxu0
      %v1619 = vadd.f32 0.0, %v1618
      %v1620 = vpop.f32.mrb[0].mxu0
      %v1621 = vpop.f32.mrb[0].mxu0
      %v1622 = vadd.f32 0.0, %v1621
      %v1623 = vpop.f32.mrb[0].mxu0
      %1624 = vdwg.mxu0
      %v1625 = vadd.f32 %v1480, %v1563
      %v1626 = vadd.f32 %v1481, %v1566
      %v1627 = vadd.f32 %v1482, %v1571
      %v1628 = vadd.f32 %v1483, %v1574
      %v1629 = vadd.f32 %v1484, %v1579
      %v1630 = vadd.f32 %v1485, %v1582
      %v1631 = vadd.f32 %v1486, %v1587
      %v1632 = vadd.f32 %v1487, %v1590
      %v1633 = vadd.f32 %v1488, %v1595
      %v1634 = vadd.f32 %v1489, %v1598
      %v1635 = vadd.f32 %v1490, %v1603
      %v1636 = vadd.f32 %v1491, %v1606
      %v1637 = vadd.f32 %v1492, %v1611
      %v1638 = vadd.f32 %v1493, %v1614
      %v1639 = vadd.f32 %v1494, %v1619
      %v1640 = vadd.f32 %v1495, %v1622
      %v1642 = vshrl.u32 %v228, 16
      %v1644 = vrot.slane %v1642, 4
      %v1645 = vshll.u32 %v228, 16
      %v1647 = vrot.slane %v1645, 5
      %v1648 = vor.u32 %v1644, %v1647
      %v1649 = vrot.slane %v1648, 4
      %v1651 = vshll.u32 %v229, 16
      %v1653 = vrot.slane %v1651, 5
      %v1654 = vsel %vm238, %v1649, %v1653
      %v1655 = vshrl.u32 %v229, 16
      %v1657 = vrot.slane %v1655, 4
      %v1658 = vor.u32 %v1657, %v1653
      %v1659 = vrot.slane %v1658, 4
      %v1661 = vshll.u32 %v230, 16
      %v1663 = vrot.slane %v1661, 5
      %v1664 = vsel %vm238, %v1659, %v1663
      %s1665 = scalar_lea.vmem %s1, 140
      %v1666 = vld [vmem:[%s1665] sm:$0xf]
      %v1667 = vld [vmem:[%s1665 + $0x4] sm:$0xf]
      %v1668 = vld [vmem:[%s1665 + $0x8] sm:$0xf]
      %v1669 = vld [vmem:[%s1665 + $0xc] sm:$0xf]
      %v1670 = vld [vmem:[%s1665 + $0x10] sm:$0x3]
      %v1671 = vunpack.c.l.b16 %v1654
      %v1672 = vunpack.c.l.b16 %v1664
      %v1673 = vpack.c.b16 %v1672, %v1671
      %v1679 = vunpack.c.l.b16 %v1666
      %v1680 = vunpack.c.l.b16 %v1667
      %v1681 = vunpack.c.l.b16 %v1668
      %v1682 = vunpack.c.l.b16 %v1669
      %v1683 = vunpack.c.l.b16 %v1670
      %v1684 = vpack.c.b16 %v1680, %v1679
      %v1685 = vpack.c.b16 %v1682, %v1681
      %v1686 = vpack.c.b16 %v1683, %v1683
      %v1690 = vsel %vm476, %v1673, 0
      %v1693 = vsel %vm501, %v1686, 0
      %1695 = vmatprep.subr.bf16.mxu0 0
      %1696 = vmatpush1.bf16.msra.mxu0 %v1684
      %1697 = vmatprep.subr.bf16.mxu0 0
      %1698 = vmatpush1.bf16.msra.mxu0 %v1685
      %1699 = vmatprep.subr.bf16.mxu0 0
      %1700 = vmatpush1.bf16.msra.mxu0 %v1693
      %1701 = vmatprep.subr.bf16.mxu0 0
      %1702 = vmatpush1.bf16.msra.mxu0 0
      %1703 = vmatprep.subr.bf16.mxu0 0
      %1704 = vmatpush1.bf16.msra.mxu0 0
      %1705 = vmatprep.subr.bf16.mxu0 0
      %1706 = vmatpush1.bf16.msra.mxu0 0
      %1707 = vmatprep.subr.bf16.mxu0 0
      %1708 = vmatpush1.bf16.msra.mxu0 0
      %1709 = vmatprep.subr.bf16.mxu0 0
      %1710 = vmatpush1.bf16.msra.mxu0 0
      %1711 = vmatprep.subr.bf16.mxu0 0
      %1712 = vmatpush1.bf16.msra.mxu0 0
      %1713 = vmatprep.subr.bf16.mxu0 0
      %1714 = vmatpush1.bf16.msra.mxu0 0
      %1715 = vmatprep.subr.bf16.mxu0 0
      %1716 = vmatpush1.bf16.msra.mxu0 0
      %1717 = vmatprep.subr.bf16.mxu0 0
      %1718 = vmatpush1.bf16.msra.mxu0 0
      %1719 = vmatprep.subr.bf16.mxu0 0
      %1720 = vmatpush1.bf16.msra.mxu0 0
      %1721 = vmatprep.subr.bf16.mxu0 0
      %1722 = vmatpush1.bf16.msra.mxu0 0
      %1723 = vmatprep.subr.bf16.mxu0 0
      %1724 = vmatpush1.bf16.msra.mxu0 0
      %1725 = vmatprep.subr.bf16.mxu0 0
      %1726 = vmatpush1.bf16.msra.mxu0 0
      %1727 = vmatprep.mubr.bf16.mxu0 0
      %1728 = vmatmul.mubr.bf16.gmra.mrb[0].mxu0 %v484
      %v1729 = vpop.f32.mrb[0].mxu0
      %v1730 = vadd.f32 0.0, %v1729
      %v1731 = vpop.f32.mrb[0].mxu0
      %v1732 = vpop.f32.mrb[0].mxu0
      %v1733 = vadd.f32 0.0, %v1732
      %v1734 = vpop.f32.mrb[0].mxu0
      %1735 = vmatprep.mubr.bf16.mxu0 0
      %1736 = vmatmul.mubr.bf16.gmra.mrb[0].mxu0 %v487
      %v1737 = vpop.f32.mrb[0].mxu0
      %v1738 = vadd.f32 0.0, %v1737
      %v1739 = vpop.f32.mrb[0].mxu0
      %v1740 = vpop.f32.mrb[0].mxu0
      %v1741 = vadd.f32 0.0, %v1740
      %v1742 = vpop.f32.mrb[0].mxu0
      %1743 = vmatprep.mubr.bf16.mxu0 0
      %1744 = vmatmul.mubr.bf16.gmra.mrb[0].mxu0 %v490
      %v1745 = vpop.f32.mrb[0].mxu0
      %v1746 = vadd.f32 0.0, %v1745
      %v1747 = vpop.f32.mrb[0].mxu0
      %v1748 = vpop.f32.mrb[0].mxu0
      %v1749 = vadd.f32 0.0, %v1748
      %v1750 = vpop.f32.mrb[0].mxu0
      %1751 = vmatprep.mubr.bf16.mxu0 0
      %1752 = vmatmul.mubr.bf16.gmra.mrb[0].mxu0 %v493
      %v1753 = vpop.f32.mrb[0].mxu0
      %v1754 = vadd.f32 0.0, %v1753
      %v1755 = vpop.f32.mrb[0].mxu0
      %v1756 = vpop.f32.mrb[0].mxu0
      %v1757 = vadd.f32 0.0, %v1756
      %v1758 = vpop.f32.mrb[0].mxu0
      %1759 = vmatprep.mubr.bf16.mxu0 0
      %1760 = vmatmul.mubr.bf16.gmra.mrb[0].mxu0 %v496
      %v1761 = vpop.f32.mrb[0].mxu0
      %v1762 = vadd.f32 0.0, %v1761
      %v1763 = vpop.f32.mrb[0].mxu0
      %v1764 = vpop.f32.mrb[0].mxu0
      %v1765 = vadd.f32 0.0, %v1764
      %v1766 = vpop.f32.mrb[0].mxu0
      %1767 = vmatprep.mubr.bf16.mxu0 0
      %1768 = vmatmul.mubr.bf16.gmra.mrb[0].mxu0 %v499
      %v1769 = vpop.f32.mrb[0].mxu0
      %v1770 = vadd.f32 0.0, %v1769
      %v1771 = vpop.f32.mrb[0].mxu0
      %v1772 = vpop.f32.mrb[0].mxu0
      %v1773 = vadd.f32 0.0, %v1772
      %v1774 = vpop.f32.mrb[0].mxu0
      %1775 = vmatprep.mubr.bf16.mxu0 0
      %1776 = vmatmul.mubr.bf16.gmra.mrb[0].mxu0 %v1227
      %v1777 = vpop.f32.mrb[0].mxu0
      %v1778 = vadd.f32 0.0, %v1777
      %v1779 = vpop.f32.mrb[0].mxu0
      %v1780 = vpop.f32.mrb[0].mxu0
      %v1781 = vadd.f32 0.0, %v1780
      %v1782 = vpop.f32.mrb[0].mxu0
      %1783 = vmatprep.mubr.bf16.mxu0 0
      %1784 = vmatmul.mubr.bf16.gmra.mrb[0].mxu0 %v1690
      %v1785 = vpop.f32.mrb[0].mxu0
      %v1786 = vadd.f32 0.0, %v1785
      %v1787 = vpop.f32.mrb[0].mxu0
      %v1788 = vpop.f32.mrb[0].mxu0
      %v1789 = vadd.f32 0.0, %v1788
      %v1790 = vpop.f32.mrb[0].mxu0
      %1791 = vdwg.mxu0
      %v1792 = vadd.f32 %v1625, %v1730
      %v1793 = vadd.f32 %v1626, %v1733
      %v1794 = vadd.f32 %v1627, %v1738
      %v1795 = vadd.f32 %v1628, %v1741
      %v1796 = vadd.f32 %v1629, %v1746
      %v1797 = vadd.f32 %v1630, %v1749
      %v1798 = vadd.f32 %v1631, %v1754
      %v1799 = vadd.f32 %v1632, %v1757
      %v1800 = vadd.f32 %v1633, %v1762
      %v1801 = vadd.f32 %v1634, %v1765
      %v1802 = vadd.f32 %v1635, %v1770
      %v1803 = vadd.f32 %v1636, %v1773
      %v1804 = vadd.f32 %v1637, %v1778
      %v1805 = vadd.f32 %v1638, %v1781
      %v1806 = vadd.f32 %v1639, %v1786
      %v1807 = vadd.f32 %v1640, %v1789
      %v1809 = vrot.slane %v228, 5
      %v1810 = vrot.slane %v1809, 4
      %v1811 = vrot.slane %v229, 5
      %v1812 = vsel %vm791, %v1810, %v1811
      %v1813 = vrot.slane %v1811, 4
      %v1814 = vrot.slane %v230, 5
      %v1815 = vsel %vm791, %v1813, %v1814
      %s1816 = scalar_lea.vmem %s1, 160
      %v1817 = vld [vmem:[%s1816] sm:$0xf]
      %v1818 = vld [vmem:[%s1816 + $0x4] sm:$0xf]
      %v1819 = vld [vmem:[%s1816 + $0x8] sm:$0xf]
      %v1820 = vld [vmem:[%s1816 + $0xc] sm:$0xf]
      %v1821 = vld [vmem:[%s1816 + $0x10] sm:$0x3]
      %v1822 = vunpack.c.l.b16 %v1812
      %v1823 = vunpack.c.l.b16 %v1815
      %v1824 = vpack.c.b16 %v1823, %v1822
      %v1830 = vunpack.c.l.b16 %v1817
      %v1831 = vunpack.c.l.b16 %v1818
      %v1832 = vunpack.c.l.b16 %v1819
      %v1833 = vunpack.c.l.b16 %v1820
      %v1834 = vunpack.c.l.b16 %v1821
      %v1835 = vpack.c.b16 %v1831, %v1830
      %v1836 = vpack.c.b16 %v1833, %v1832
      %v1837 = vpack.c.b16 %v1834, %v1834
      %v1841 = vsel %vm476, %v1824, 0
      %v1844 = vsel %vm501, %v1837, 0
      %1846 = vmatprep.subr.bf16.mxu0 0
      %1847 = vmatpush1.bf16.msra.mxu0 %v1835
      %1848 = vmatprep.subr.bf16.mxu0 0
      %1849 = vmatpush1.bf16.msra.mxu0 %v1836
      %1850 = vmatprep.subr.bf16.mxu0 0
      %1851 = vmatpush1.bf16.msra.mxu0 %v1844
      %1852 = vmatprep.subr.bf16.mxu0 0
      %1853 = vmatpush1.bf16.msra.mxu0 0
      %1854 = vmatprep.subr.bf16.mxu0 0
      %1855 = vmatpush1.bf16.msra.mxu0 0
      %1856 = vmatprep.subr.bf16.mxu0 0
      %1857 = vmatpush1.bf16.msra.mxu0 0
      %1858 = vmatprep.subr.bf16.mxu0 0
      %1859 = vmatpush1.bf16.msra.mxu0 0
      %1860 = vmatprep.subr.bf16.mxu0 0
      %1861 = vmatpush1.bf16.msra.mxu0 0
      %1862 = vmatprep.subr.bf16.mxu0 0
      %1863 = vmatpush1.bf16.msra.mxu0 0
      %1864 = vmatprep.subr.bf16.mxu0 0
      %1865 = vmatpush1.bf16.msra.mxu0 0
      %1866 = vmatprep.subr.bf16.mxu0 0
      %1867 = vmatpush1.bf16.msra.mxu0 0
      %1868 = vmatprep.subr.bf16.mxu0 0
      %1869 = vmatpush1.bf16.msra.mxu0 0
      %1870 = vmatprep.subr.bf16.mxu0 0
      %1871 = vmatpush1.bf16.msra.mxu0 0
      %1872 = vmatprep.subr.bf16.mxu0 0
      %1873 = vmatpush1.bf16.msra.mxu0 0
      %1874 = vmatprep.subr.bf16.mxu0 0
      %1875 = vmatpush1.bf16.msra.mxu0 0
      %1876 = vmatprep.subr.bf16.mxu0 0
      %1877 = vmatpush1.bf16.msra.mxu0 0
      %1878 = vmatprep.mubr.bf16.mxu0 0
      %1879 = vmatmul.mubr.bf16.gmra.mrb[0].mxu0 %v900
      %v1880 = vpop.f32.mrb[0].mxu0
      %v1881 = vadd.f32 0.0, %v1880
      %v1882 = vpop.f32.mrb[0].mxu0
      %v1883 = vpop.f32.mrb[0].mxu0
      %v1884 = vadd.f32 0.0, %v1883
      %v1885 = vpop.f32.mrb[0].mxu0
      %1886 = vmatprep.mubr.bf16.mxu0 0
      %1887 = vmatmul.mubr.bf16.gmra.mrb[0].mxu0 %v903
      %v1888 = vpop.f32.mrb[0].mxu0
      %v1889 = vadd.f32 0.0, %v1888
      %v1890 = vpop.f32.mrb[0].mxu0
      %v1891 = vpop.f32.mrb[0].mxu0
      %v1892 = vadd.f32 0.0, %v1891
      %v1893 = vpop.f32.mrb[0].mxu0
      %1894 = vmatprep.mubr.bf16.mxu0 0
      %1895 = vmatmul.mubr.bf16.gmra.mrb[0].mxu0 %v906
      %v1896 = vpop.f32.mrb[0].mxu0
      %v1897 = vadd.f32 0.0, %v1896
      %v1898 = vpop.f32.mrb[0].mxu0
      %v1899 = vpop.f32.mrb[0].mxu0
      %v1900 = vadd.f32 0.0, %v1899
      %v1901 = vpop.f32.mrb[0].mxu0
      %1902 = vmatprep.mubr.bf16.mxu0 0
      %1903 = vmatmul.mubr.bf16.gmra.mrb[0].mxu0 %v909
      %v1904 = vpop.f32.mrb[0].mxu0
      %v1905 = vadd.f32 0.0, %v1904
      %v1906 = vpop.f32.mrb[0].mxu0
      %v1907 = vpop.f32.mrb[0].mxu0
      %v1908 = vadd.f32 0.0, %v1907
      %v1909 = vpop.f32.mrb[0].mxu0
      %1910 = vmatprep.mubr.bf16.mxu0 0
      %1911 = vmatmul.mubr.bf16.gmra.mrb[0].mxu0 %v912
      %v1912 = vpop.f32.mrb[0].mxu0
      %v1913 = vadd.f32 0.0, %v1912
      %v1914 = vpop.f32.mrb[0].mxu0
      %v1915 = vpop.f32.mrb[0].mxu0
      %v1916 = vadd.f32 0.0, %v1915
      %v1917 = vpop.f32.mrb[0].mxu0
      %1918 = vmatprep.mubr.bf16.mxu0 0
      %1919 = vmatmul.mubr.bf16.gmra.mrb[0].mxu0 %v915
      %v1920 = vpop.f32.mrb[0].mxu0
      %v1921 = vadd.f32 0.0, %v1920
      %v1922 = vpop.f32.mrb[0].mxu0
      %v1923 = vpop.f32.mrb[0].mxu0
      %v1924 = vadd.f32 0.0, %v1923
      %v1925 = vpop.f32.mrb[0].mxu0
      %1926 = vmatprep.mubr.bf16.mxu0 0
      %1927 = vmatmul.mubr.bf16.gmra.mrb[0].mxu0 %v1378
      %v1928 = vpop.f32.mrb[0].mxu0
      %v1929 = vadd.f32 0.0, %v1928
      %v1930 = vpop.f32.mrb[0].mxu0
      %v1931 = vpop.f32.mrb[0].mxu0
      %v1932 = vadd.f32 0.0, %v1931
      %v1933 = vpop.f32.mrb[0].mxu0
      %1934 = vmatprep.mubr.bf16.mxu0 0
      %1935 = vmatmul.mubr.bf16.gmra.mrb[0].mxu0 %v1841
      %v1936 = vpop.f32.mrb[0].mxu0
      %v1937 = vadd.f32 0.0, %v1936
      %v1938 = vpop.f32.mrb[0].mxu0
      %v1939 = vpop.f32.mrb[0].mxu0
      %v1940 = vadd.f32 0.0, %v1939
      %v1941 = vpop.f32.mrb[0].mxu0
      %1942 = vdwg.mxu0
      %v1943 = vadd.f32 %v1792, %v1881
      %v1944 = vadd.f32 %v1793, %v1884
      %v1945 = vadd.f32 %v1794, %v1889
      %v1946 = vadd.f32 %v1795, %v1892
      %v1947 = vadd.f32 %v1796, %v1897
      %v1948 = vadd.f32 %v1797, %v1900
      %v1949 = vadd.f32 %v1798, %v1905
      %v1950 = vadd.f32 %v1799, %v1908
      %v1951 = vadd.f32 %v1800, %v1913
      %v1952 = vadd.f32 %v1801, %v1916
      %v1953 = vadd.f32 %v1802, %v1921
      %v1954 = vadd.f32 %v1803, %v1924
      %v1955 = vadd.f32 %v1804, %v1929
      %v1956 = vadd.f32 %v1805, %v1932
      %v1957 = vadd.f32 %v1806, %v1937
      %v1958 = vadd.f32 %v1807, %v1940
      %v1959 = vld [vmem:[%s2] sm:$0x1]
      %v1961 = vlaneseq
      %v1962 = vshrl.u32 %v1961, 7
      %v1963 = vsub.s32 0, %v1962
      %v1964 = vrot.slane %v1959, %v1963
      %v1966 = vadd.f32 %v1943, %v1964
      %v1967 = vadd.f32 %v1944, %v1964
      %v1968 = vadd.f32 %v1945, %v1964
      %v1969 = vadd.f32 %v1946, %v1964
      %v1970 = vadd.f32 %v1947, %v1964
      %v1971 = vadd.f32 %v1948, %v1964
      %v1972 = vadd.f32 %v1949, %v1964
      %v1973 = vadd.f32 %v1950, %v1964
      %v1974 = vadd.f32 %v1951, %v1964
      %v1975 = vadd.f32 %v1952, %v1964
      %v1976 = vadd.f32 %v1953, %v1964
      %v1977 = vadd.f32 %v1954, %v1964
      %v1978 = vadd.f32 %v1955, %v1964
      %v1979 = vadd.f32 %v1956, %v1964
      %v1980 = vadd.f32 %v1957, %v1964
      %v1981 = vadd.f32 %v1958, %v1964
      %v1982 = vmax.f32 %v1966, 0.0
      %v1983 = vmax.f32 %v1967, 0.0
      %v1984 = vmax.f32 %v1968, 0.0
      %v1985 = vmax.f32 %v1969, 0.0
      %v1986 = vmax.f32 %v1970, 0.0
      %v1987 = vmax.f32 %v1971, 0.0
      %v1988 = vmax.f32 %v1972, 0.0
      %v1989 = vmax.f32 %v1973, 0.0
      %v1990 = vmax.f32 %v1974, 0.0
      %v1991 = vmax.f32 %v1975, 0.0
      %v1992 = vmax.f32 %v1976, 0.0
      %v1993 = vmax.f32 %v1977, 0.0
      %v1994 = vmax.f32 %v1978, 0.0
      %v1995 = vmax.f32 %v1979, 0.0
      %v1996 = vmax.f32 %v1980, 0.0
      %v1997 = vmax.f32 %v1981, 0.0
      %v1998 = vpack.c.bf16 %v1983, %v1982
      %v1999 = vpack.c.bf16 %v1985, %v1984
      %v2000 = vpack.c.bf16 %v1987, %v1986
      %v2001 = vpack.c.bf16 %v1989, %v1988
      %v2002 = vpack.c.bf16 %v1991, %v1990
      %v2003 = vpack.c.bf16 %v1993, %v1992
      %v2004 = vpack.c.bf16 %v1995, %v1994
      %v2005 = vpack.c.bf16 %v1997, %v1996
      %v2014 = vunpack.c.l.b16 %v1998
      %v2015 = vunpack.c.h.b16 %v1998
      %v2016 = vunpack.c.l.b16 %v1999
      %v2017 = vunpack.c.h.b16 %v1999
      %v2018 = vunpack.c.l.b16 %v2000
      %v2019 = vunpack.c.h.b16 %v2000
      %v2020 = vunpack.c.l.b16 %v2001
      %v2021 = vunpack.c.h.b16 %v2001
      %v2022 = vunpack.c.l.b16 %v2002
      %v2023 = vunpack.c.h.b16 %v2002
      %v2024 = vunpack.c.l.b16 %v2003
      %v2025 = vunpack.c.h.b16 %v2003
      %v2026 = vunpack.c.l.b16 %v2004
      %v2027 = vunpack.c.h.b16 %v2004
      %v2028 = vunpack.c.l.b16 %v2005
      %v2029 = vunpack.c.h.b16 %v2005
      %v2030 = vpack.c.b16 %v2014, %v2014
      %v2031 = vpack.c.b16 %v2015, %v2015
      %v2032 = vpack.c.b16 %v2016, %v2016
      %v2033 = vpack.c.b16 %v2017, %v2017
      %v2034 = vpack.c.b16 %v2018, %v2018
      %v2035 = vpack.c.b16 %v2019, %v2019
      %v2036 = vpack.c.b16 %v2020, %v2020
      %v2037 = vpack.c.b16 %v2021, %v2021
      %v2038 = vpack.c.b16 %v2022, %v2022
      %v2039 = vpack.c.b16 %v2023, %v2023
      %v2040 = vpack.c.b16 %v2024, %v2024
      %v2041 = vpack.c.b16 %v2025, %v2025
      %v2042 = vpack.c.b16 %v2026, %v2026
      %v2043 = vpack.c.b16 %v2027, %v2027
      %v2044 = vpack.c.b16 %v2028, %v2028
      %v2045 = vpack.c.b16 %v2029, %v2029
      %vm2062 = vcmask 257024
      %2063 = vst.msk [vmem:[%s194] sm:$0xf] %vm2062, %v2030
      %2064 = vst.msk [vmem:[%s194 + $0x4] sm:$0xf] %vm2062, %v2031
      %2065 = vst.msk [vmem:[%s194 + $0x8] sm:$0xf] %vm2062, %v2032
      %2066 = vst.msk [vmem:[%s194 + $0xc] sm:$0xf] %vm2062, %v2033
      %2067 = vst.msk [vmem:[%s194 + $0x10] sm:$0xf] %vm2062, %v2034
      %2068 = vst.msk [vmem:[%s194 + $0x14] sm:$0xf] %vm2062, %v2035
      %2069 = vst.msk [vmem:[%s194 + $0x18] sm:$0xf] %vm2062, %v2036
      %2070 = vst.msk [vmem:[%s194 + $0x1c] sm:$0xf] %vm2062, %v2037
      %2071 = vst.msk [vmem:[%s194 + $0x20] sm:$0xf] %vm2062, %v2038
      %2072 = vst.msk [vmem:[%s194 + $0x24] sm:$0xf] %vm2062, %v2039
      %2073 = vst.msk [vmem:[%s194 + $0x28] sm:$0xf] %vm2062, %v2040
      %2074 = vst.msk [vmem:[%s194 + $0x2c] sm:$0xf] %vm2062, %v2041
      %2075 = vst.msk [vmem:[%s194 + $0x30] sm:$0xf] %vm2062, %v2042
      %2076 = vst.msk [vmem:[%s194 + $0x34] sm:$0xf] %vm2062, %v2043
      %2077 = vst.msk [vmem:[%s194 + $0x38] sm:$0xf] %vm2062, %v2044
      %2078 = vst.msk [vmem:[%s194 + $0x3c] sm:$0xf] %vm2062, %v2045
      %s2079 = smul.u32 8, %s19
      %p2080 = scmp.lt.s32.totalorder %s18, 1
      %s2081 = scalar_select %p2080, %s18, 1
      %p2082 = scmp.lt.s32.totalorder %s2079, 15
      %s2083 = scalar_select %p2082, %s2079, 15
      %s2084 = smul.addr %s2083, 2
      %s2085 = smul.addr %s2081, 32
      %s2086 = sadd.s32 %s2084, %s2085
      %s2087 = smul.addr %s2086, 4
      %s2088 = scalar_lea.vmem %s3, %s2087
      // Predicated region
      $region33: #{_uaca_forward.10} parent=31 // pred_check
        %p2089 = pneg %p114
      $region34: #{_uaca_forward.10} parent=31 // pred_check_branch
        %2091 = sbr.rel (%p2089) target = $region36
      $region35: #{_uaca_forward.10} parent=31 // pred_region
        %s2092 = smul.u32 8, %s19
      $region36: #{_uaca_forward.10} parent=31 // pred_fallthru
        _
    $region32: #{_uaca_forward.10} parent=5 // pred_fallthru
      _
    %p2093 = scmp.le.s32.totalorder 2, %s9
    // Predicated region
    $region37: #{_uaca_forward.10} parent=5 // pred_check
      %p2094 = pneg %p2093
    $region38: #{_uaca_forward.10} parent=5 // pred_check_branch
      %2096 = sbr.rel (%p2094) target = $region40
    $region39: #{_uaca_forward.10} parent=5 // pred_region
      %s2097 = ssub.s32 %s9, 2
      // Predicated region
      $region41: #{_uaca_forward.10} parent=39 // pred_check
        %p2098 = pneg %p120
      $region42: #{_uaca_forward.10} parent=39 // pred_check_branch
        %2100 = sbr.rel (%p2098) target = $region44
      $region43: #{_uaca_forward.10} parent=39 // pred_region
        %s2101 = smul.u32 8, %s21
        %p2102 = scmp.lt.s32.totalorder %s20, 1
        %s2103 = scalar_select %p2102, %s20, 1
        %p2104 = scmp.lt.s32.totalorder %s2101, 15
        %s2105 = scalar_select %p2104, %s2101, 15
        %s2106 = smul.addr %s2105, 2
        %s2107 = smul.addr %s2103, 32
        %s2108 = sadd.s32 %s2106, %s2107
        %s2109 = smul.addr %s2108, 4
        %s2110 = scalar_lea.vmem %s3, %s2109
      $region44: #{_uaca_forward.10} parent=39 // pred_fallthru
        _
    $region40: #{_uaca_forward.10} parent=5 // pred_fallthru
      _
  $region6: #{_uaca_forward.10} parent=0 // loop_footer
    %s13 = sadd.s32 1, %s9
  $region7: #{_uaca_forward.10} parent=0 // loop_footer_branch
    %8 = sbr.rel target = $region3
  $region8: #{_uaca_forward.10} parent=0 // loop_exit
    _

// kernel: _uaca_forward.11
$region0: #{_uaca_forward.11}
  #allocation0 [shape = 'u32[]', space=smem, size = 0x4, offset = 0x4, fixed_abs, tag = 'smem constant byte address 0x4 - core index']
  #allocation1 [shape = 'u32[144,128]{1,0:T(1,128)}', space=vmem, size = 0x12000, scoped, tag = 'internal scratch']
  #allocation2 [shape = 'f32[1,1,1]{2,1,0:T(1,128)S(1)}', space=vmem, size = 0x200, scoped, tag = 'scoped memory for _uaca_forward.11']
  %s0 = inlined_call_operand.vmem [shape: bf16[2,18,18,32], index: 0, kind: input, shape index: {}]
  %s1 = inlined_call_operand.vmem [shape: bf16[9,32,32], index: 1, kind: input, shape index: {}]
  %s2 = inlined_call_operand.vmem [shape: f32[1,32], index: 2, kind: input, shape index: {}]
  %s3 = inlined_call_operand.vmem [shape: f32[1,1,32], index: 3, kind: input, shape index: {}]
  %s4 = inlined_call_operand.<no memory space> [shape: f32[1,1,1], index: 4, kind: input, shape index: {}]
  %s5 = inlined_call_operand.vmem [shape: f32[2,16,16,1], index: 5, kind: input, shape index: {}]
  %s6 = inlined_call_operand.hbm [shape: f32[2,16,16,32], index: 6, kind: output, shape index: {0}]
  %s7 = inlined_call_operand.vmem [shape: f32[2,16,16,1], index: 7, kind: output, shape index: {1}]
  %8 = xla_tuple %s6, %s7
  %s9 = sld [smem:[#allocation0]]
  $region65: #{_uaca_forward.11} parent=0
    _
  %s11 = ssub.s32 1, %s9
  %s12 = scalar_select 0, %s11, %s9
  %v13 = vstv %s4
  %14 = vst [vmem:[#allocation2] sm:$0x1] %v13
  $region1: #{_uaca_forward.11} parent=0
    #allocation3 [shape = 'u8[131072]{0}', space=vmem, size = 0x20000, scoped, tag = 'output window, operand 0']
    #allocation4 [shape = 's32[2]{0}', space=sflag, size = 0x8, scoped, tag = 'scoped memory for _uaca_forward.11']
    %15 = vsyncpa [#allocation4], 0
    %s16 = scalar_lea.sflag [#allocation4], 1
    %17 = vsyncpa %s16, 0
    loop: start=0, step=1, limit=6
    $region2: #{_uaca_forward.11} parent=1 // loop_pre_header
      _
    $region3: #{_uaca_forward.11} parent=1 // loop_header
      %s19 = sphi 0, %s23
      %p20 = scmp.ge.s32.totalorder %s19, 6
      %s26 = sphi 0, %s38
      %s27 = sphi 0, %s34
      %s28 = sphi 0, %s26
      %s29 = sphi 0, %s27
      %s30 = sphi 0, %s28
      %s31 = sphi 0, %s29
      %s41 = sphi 0, %s43
      %s44 = sphi 0, %s41
      %s45 = sphi 0, %s44
      %s61 = sphi 0, %s45
      %s65 = sphi 0, %s65
      %s67 = sphi 0, %s65
      %s68 = sphi 0, %s67
      %s82 = sphi 0, %s68
      %s86 = sphi 0, %s86
      %s88 = sphi 0, %s86
      %s89 = sphi 0, %s88
      %s103 = sphi 0, %s89
      %s107 = sphi 0, %s107
      %s109 = sphi 0, %s107
      %s110 = sphi 0, %s109
      %s124 = sphi 0, %s110
      %s128 = sphi 0, %s128
      %s130 = sphi 0, %s128
      %s131 = sphi 0, %s130
      %s145 = sphi 0, %s131
      %s153 = sphi 0, %s155
      %s156 = sphi 0, %s153
      %s157 = sphi 0, %s156
      %s173 = sphi 0, %s157
      %s181 = sphi 0, %s183
      %s184 = sphi 0, %s181
      %s185 = sphi 0, %s184
      %s201 = sphi 0, %s185
      %s209 = sphi 0, %s211
      %s212 = sphi 0, %s209
      %s213 = sphi 0, %s212
      %s229 = sphi 0, %s213
    $region4: #{_uaca_forward.11} parent=1 // loop_header_branch
      %22 = sbr.rel (%p20) target = $region8
    $region5: #{_uaca_forward.11} parent=1 // loop_body
      %s24 = ssub.s32 %s19, 1
      %s25 = ssub.s32 %s19, 2
      %s32 = sadd.s32 1, %s27
      %p33 = scmp.ge.s32.totalorder %s32, 2
      %s34 = scalar_select %p33, 0, %s32
      %s35 = sadd.s32 1, %s26
      %s36 = scalar_select %p33, %s35, %s26
      %p37 = scmp.ge.s32.totalorder %s36, 2
      %s38 = scalar_select %p37, 0, %s36
      %s39 = ssub.s32 %s26, %s38
      %p40 = scmp.eq.s32.totalorder %s39, 0
      %s42 = sadd.s32 %s41, 1
      %s43 = scalar_select %p40, %s41, %s42
      %p46 = pneg %p40
      %p47 = scmp.eq.s32.totalorder %s19, 3
      %p48 = por %p46, %p47
      %p49 = scmp.ne.s32.totalorder %s41, %s44
      %p50 = scmp.eq.s32.totalorder %s19, 0
      %p51 = por %p49, %p50
      %p52 = scmp.ne.s32.totalorder %s41, %s44
      %p53 = scmp.eq.s32.totalorder %s24, 3
      %p54 = por %p52, %p53
      %p55 = scmp.ne.s32.totalorder %s44, %s45
      %p56 = scmp.eq.s32.totalorder %s24, 0
      %p57 = por %p55, %p56
      %p58 = scmp.ne.s32.totalorder %s44, %s45
      %p59 = scmp.eq.s32.totalorder %s25, 3
      %p60 = por %p58, %p59
      %p62 = scmp.ne.s32.totalorder %s45, %s61
      %p63 = scmp.eq.s32.totalorder %s25, 0
      %p64 = por %p62, %p63
      %s66 = sadd.s32 %s65, 1
      %p69 = scmp.eq.s32.totalorder %s19, 3
      %p70 = scmp.ne.s32.totalorder %s65, %s67
      %p71 = scmp.eq.s32.totalorder %s19, 0
      %p72 = por %p70, %p71
      %p73 = scmp.ne.s32.totalorder %s65, %s67
      %p74 = scmp.eq.s32.totalorder %s24, 3
      %p75 = por %p73, %p74
      %p76 = scmp.ne.s32.totalorder %s67, %s68
      %p77 = scmp.eq.s32.totalorder %s24, 0
      %p78 = por %p76, %p77
      %p79 = scmp.ne.s32.totalorder %s67, %s68
      %p80 = scmp.eq.s32.totalorder %s25, 3
      %p81 = por %p79, %p80
      %p83 = scmp.ne.s32.totalorder %s68, %s82
      %p84 = scmp.eq.s32.totalorder %s25, 0
      %p85 = por %p83, %p84
      %s87 = sadd.s32 %s86, 1
      %p90 = scmp.eq.s32.totalorder %s19, 3
      %p91 = scmp.ne.s32.totalorder %s86, %s88
      %p92 = scmp.eq.s32.totalorder %s19, 0
      %p93 = por %p91, %p92
      %p94 = scmp.ne.s32.totalorder %s86, %s88
      %p95 = scmp.eq.s32.totalorder %s24, 3
      %p96 = por %p94, %p95
      %p97 = scmp.ne.s32.totalorder %s88, %s89
      %p98 = scmp.eq.s32.totalorder %s24, 0
      %p99 = por %p97, %p98
      %p100 = scmp.ne.s32.totalorder %s88, %s89
      %p101 = scmp.eq.s32.totalorder %s25, 3
      %p102 = por %p100, %p101
      %p104 = scmp.ne.s32.totalorder %s89, %s103
      %p105 = scmp.eq.s32.totalorder %s25, 0
      %p106 = por %p104, %p105
      %s108 = sadd.s32 %s107, 1
      %p111 = scmp.eq.s32.totalorder %s19, 3
      %p112 = scmp.ne.s32.totalorder %s107, %s109
      %p113 = scmp.eq.s32.totalorder %s19, 0
      %p114 = por %p112, %p113
      %p115 = scmp.ne.s32.totalorder %s107, %s109
      %p116 = scmp.eq.s32.totalorder %s24, 3
      %p117 = por %p115, %p116
      %p118 = scmp.ne.s32.totalorder %s109, %s110
      %p119 = scmp.eq.s32.totalorder %s24, 0
      %p120 = por %p118, %p119
      %p121 = scmp.ne.s32.totalorder %s109, %s110
      %p122 = scmp.eq.s32.totalorder %s25, 3
      %p123 = por %p121, %p122
      %p125 = scmp.ne.s32.totalorder %s110, %s124
      %p126 = scmp.eq.s32.totalorder %s25, 0
      %p127 = por %p125, %p126
      %s129 = sadd.s32 %s128, 1
      %p132 = scmp.eq.s32.totalorder %s19, 3
      %p133 = scmp.ne.s32.totalorder %s128, %s130
      %p134 = scmp.eq.s32.totalorder %s19, 0
      %p135 = por %p133, %p134
      %p136 = scmp.ne.s32.totalorder %s128, %s130
      %p137 = scmp.eq.s32.totalorder %s24, 3
      %p138 = por %p136, %p137
      %p139 = scmp.ne.s32.totalorder %s130, %s131
      %p140 = scmp.eq.s32.totalorder %s24, 0
      %p141 = por %p139, %p140
      %p142 = scmp.ne.s32.totalorder %s130, %s131
      %p143 = scmp.eq.s32.totalorder %s25, 3
      %p144 = por %p142, %p143
      %p146 = scmp.ne.s32.totalorder %s131, %s145
      %p147 = scmp.eq.s32.totalorder %s25, 0
      %p148 = por %p146, %p147
      %s149 = ssub.s32 %s26, %s38
      %s150 = ssub.s32 %s27, %s34
      %s151 = sor.u32 %s149, %s150
      %p152 = scmp.eq.s32.totalorder %s151, 0
      %s154 = sadd.s32 %s153, 1
      %s155 = scalar_select %p152, %s153, %s154
      %p158 = pneg %p152
      %p159 = scmp.eq.s32.totalorder %s19, 3
      %p160 = por %p158, %p159
      %p161 = scmp.ne.s32.totalorder %s153, %s156
      %p162 = scmp.eq.s32.totalorder %s19, 0
      %p163 = por %p161, %p162
      %p164 = scmp.ne.s32.totalorder %s153, %s156
      %p165 = scmp.eq.s32.totalorder %s24, 3
      %p166 = por %p164, %p165
      %p167 = scmp.ne.s32.totalorder %s156, %s157
      %p168 = scmp.eq.s32.totalorder %s24, 0
      %p169 = por %p167, %p168
      %p170 = scmp.ne.s32.totalorder %s156, %s157
      %p171 = scmp.eq.s32.totalorder %s25, 3
      %p172 = por %p170, %p171
      %p174 = scmp.ne.s32.totalorder %s157, %s173
      %p175 = scmp.eq.s32.totalorder %s25, 0
      %p176 = por %p174, %p175
      %s177 = ssub.s32 %s26, %s38
      %s178 = ssub.s32 %s27, %s34
      %s179 = sor.u32 %s177, %s178
      %p180 = scmp.eq.s32.totalorder %s179, 0
      %s182 = sadd.s32 %s181, 1
      %s183 = scalar_select %p180, %s181, %s182
      %p186 = pneg %p180
      %p187 = scmp.eq.s32.totalorder %s19, 3
      %p188 = por %p186, %p187
      %p189 = scmp.ne.s32.totalorder %s181, %s184
      %p190 = scmp.eq.s32.totalorder %s19, 0
      %p191 = por %p189, %p190
      %p192 = scmp.ne.s32.totalorder %s181, %s184
      %p193 = scmp.eq.s32.totalorder %s24, 3
      %p194 = por %p192, %p193
      %p195 = scmp.ne.s32.totalorder %s184, %s185
      %p196 = scmp.eq.s32.totalorder %s24, 0
      %p197 = por %p195, %p196
      %p198 = scmp.ne.s32.totalorder %s184, %s185
      %p199 = scmp.eq.s32.totalorder %s25, 3
      %p200 = por %p198, %p199
      %p202 = scmp.ne.s32.totalorder %s185, %s201
      %p203 = scmp.eq.s32.totalorder %s25, 0
      %p204 = por %p202, %p203
      %s205 = ssub.s32 %s26, %s38
      %s206 = ssub.s32 %s27, %s34
      %s207 = sor.u32 %s205, %s206
      %p208 = scmp.eq.s32.totalorder %s207, 0
      %s210 = sadd.s32 %s209, 1
      %s211 = scalar_select %p208, %s209, %s210
      %p214 = pneg %p208
      %p215 = scmp.eq.s32.totalorder %s19, 3
      %p216 = por %p214, %p215
      %p217 = scmp.ne.s32.totalorder %s209, %s212
      %p218 = scmp.eq.s32.totalorder %s19, 0
      %p219 = por %p217, %p218
      %p220 = scmp.ne.s32.totalorder %s209, %s212
      %p221 = scmp.eq.s32.totalorder %s24, 3
      %p222 = por %p220, %p221
      %p223 = scmp.ne.s32.totalorder %s212, %s213
      %p224 = scmp.eq.s32.totalorder %s24, 0
      %p225 = por %p223, %p224
      %p226 = scmp.ne.s32.totalorder %s212, %s213
      %p227 = scmp.eq.s32.totalorder %s25, 3
      %p228 = por %p226, %p227
      %p230 = scmp.ne.s32.totalorder %s213, %s229
      %p231 = scmp.eq.s32.totalorder %s25, 0
      %p232 = por %p230, %p231
      %p233 = scmp.le.s32.totalorder 1, %s19
      %p234 = scmp.lt.s32.totalorder %s19, 5
      %p235 = pnand %p233, %p234
      %p236 = pneg %p235
      // Predicated region
      $region9: #{_uaca_forward.11} parent=5 // pred_check
        _
      $region10: #{_uaca_forward.11} parent=5 // pred_check_branch
        %238 = sbr.rel (%p235) target = $region12
      $region11: #{_uaca_forward.11} parent=5 // pred_region
        %s239 = ssub.s32 %s19, 1
        // Predicated region
        $region13: #{_uaca_forward.11} parent=11 // pred_check
          %p240 = pneg %p78
        $region14: #{_uaca_forward.11} parent=11 // pred_check_branch
          %242 = sbr.rel (%p240) target = $region16
        $region15: #{_uaca_forward.11} parent=11 // pred_region
          _
        $region16: #{_uaca_forward.11} parent=11 // pred_fallthru
          _
        // Predicated region
        $region17: #{_uaca_forward.11} parent=11 // pred_check
          %p243 = pneg %p99
        $region18: #{_uaca_forward.11} parent=11 // pred_check_branch
          %245 = sbr.rel (%p243) target = $region20
        $region19: #{_uaca_forward.11} parent=11 // pred_region
          _
        $region20: #{_uaca_forward.11} parent=11 // pred_fallthru
          _
        // Predicated region
        $region21: #{_uaca_forward.11} parent=11 // pred_check
          %p246 = pneg %p120
        $region22: #{_uaca_forward.11} parent=11 // pred_check_branch
          %248 = sbr.rel (%p246) target = $region24
        $region23: #{_uaca_forward.11} parent=11 // pred_region
          _
        $region24: #{_uaca_forward.11} parent=11 // pred_fallthru
          _
        // Predicated region
        $region25: #{_uaca_forward.11} parent=11 // pred_check
          %p249 = pneg %p141
        $region26: #{_uaca_forward.11} parent=11 // pred_check_branch
          %251 = sbr.rel (%p249) target = $region28
        $region27: #{_uaca_forward.11} parent=11 // pred_region
          _
        $region28: #{_uaca_forward.11} parent=11 // pred_fallthru
          _
      $region12: #{_uaca_forward.11} parent=5 // pred_fallthru
        _
      %p252 = scmp.lt.s32.totalorder %s19, 4
      // Predicated region
      $region29: #{_uaca_forward.11} parent=5 // pred_check
        %p253 = pneg %p252
      $region30: #{_uaca_forward.11} parent=5 // pred_check_branch
        %255 = sbr.rel (%p253) target = $region32
      $region31: #{_uaca_forward.11} parent=5 // pred_region
        // Predicated region
        $region33: #{_uaca_forward.11} parent=31 // pred_check
          %p256 = pneg %p51
        $region34: #{_uaca_forward.11} parent=31 // pred_check_branch
          %258 = sbr.rel (%p256) target = $region36
        $region35: #{_uaca_forward.11} parent=31 // pred_region
          %p259 = scmp.lt.s32.totalorder %s26, 1
          %s260 = scalar_select %p259, %s26, 1
          %s261 = smul.addr %s260, 54
          %s262 = smul.addr %s261, 4
          %s263 = scalar_lea.vmem %s0, %s262
        $region36: #{_uaca_forward.11} parent=31 // pred_fallthru
          _
        // Predicated region
        $region37: #{_uaca_forward.11} parent=31 // pred_check
          %p264 = pneg %p163
        $region38: #{_uaca_forward.11} parent=31 // pred_check_branch
          %266 = sbr.rel (%p264) target = $region40
        $region39: #{_uaca_forward.11} parent=31 // pred_region
          %s267 = smul.u32 8, %s27
          %p268 = scmp.lt.s32.totalorder %s26, 1
          %s269 = scalar_select %p268, %s26, 1
          %p270 = scmp.lt.s32.totalorder %s267, 15
          %s271 = scalar_select %p270, %s267, 15
          %s272 = smul.addr %s271, 2
          %s273 = smul.addr %s269, 32
          %s274 = sadd.s32 %s272, %s273
          %s275 = smul.addr %s274, 8
          %s276 = scalar_lea.vmem %s5, %s275
          %s277 = smul.u32 8, %s27
        $region40: #{_uaca_forward.11} parent=31 // pred_fallthru
          _
      $region32: #{_uaca_forward.11} parent=5 // pred_fallthru
        _
      %p278 = scmp.le.s32.totalorder 1, %s19
      %p279 = scmp.lt.s32.totalorder %s19, 5
      %p280 = pnand %p278, %p279
      %p281 = pneg %p280
      // Predicated region
      $region41: #{_uaca_forward.11} parent=5 // pred_check
        _
      $region42: #{_uaca_forward.11} parent=5 // pred_check_branch
        %283 = sbr.rel (%p280) target = $region44
      $region43: #{_uaca_forward.11} parent=5 // pred_region
        %s284 = ssub.s32 %s19, 1
        %p285 = scmp.lt.s32.totalorder %s28, 1
        %s286 = scalar_select %p285, %s28, 1
        %s287 = smul.addr %s286, 54
        %s288 = smul.addr %s287, 4
        %s289 = scalar_lea.vmem %s0, %s288
        %p290 = pneg %p57
        %p291 = pneg %p54
        %p292 = pneg %p78
        %p293 = pneg %p75
        %p294 = pneg %p99
        %p295 = pneg %p96
        %p296 = pneg %p120
        %p297 = pneg %p117
        %p298 = pneg %p141
        %p299 = pneg %p138
        %s300 = smul.u32 8, %s29
        %p301 = scmp.lt.s32.totalorder %s28, 1
        %s302 = scalar_select %p301, %s28, 1
        %p303 = scmp.lt.s32.totalorder %s300, 15
        %s304 = scalar_select %p303, %s300, 15
        %s305 = smul.addr %s304, 2
        %s306 = smul.addr %s302, 32
        %s307 = sadd.s32 %s305, %s306
        %s308 = smul.addr %s307, 8
        %s309 = scalar_lea.vmem %s5, %s308
        %p310 = pneg %p169
        %p311 = pneg %p166
        %p312 = pneg %p197
        %p313 = pneg %p194
        %s314 = sand.u32 %s184, 1
        %s315 = scalar_lea.sflag [#allocation4], %s314
        %s316 = sand.u32 %s184, 1
        %s317 = smul.addr %s316, 128
        %s318 = scalar_lea.vmem [#allocation3], %s317
        %p319 = pneg %p225
        %p320 = pneg %p222
        %s321 = smul.u32 8, %s29
        %p322 = scmp.lt.s32.totalorder %s28, 1
        %s323 = scalar_select %p322, %s28, 1
        %p324 = scmp.lt.s32.totalorder %s321, 15
        %s325 = scalar_select %p324, %s321, 15
        %s326 = smul.addr %s325, 2
        %s327 = smul.addr %s323, 32
        %s328 = sadd.s32 %s326, %s327
        %s329 = smul.addr %s328, 8
        %s330 = scalar_lea.vmem %s7, %s329
        %p331 = scmp.lt.s32.totalorder %s28, 1
        %s332 = scalar_select %p331, %s28, 1
        %s333 = smul.addr %s332, 54
        %s334 = smul.addr %s333, 4
        %s335 = scalar_lea.vmem %s0, %s334
        %s336 = smul.u32 8, %s29
        %p337 = scmp.lt.s32.totalorder %s28, 1
        %s338 = scalar_select %p337, %s28, 1
        %p339 = scmp.lt.s32.totalorder %s336, 15
        %s340 = scalar_select %p339, %s336, 15
        %s341 = smul.addr %s340, 2
        %s342 = smul.addr %s338, 32
        %s343 = sadd.s32 %s341, %s342
        %s344 = smul.addr %s343, 8
        %s345 = scalar_lea.vmem %s5, %s344
        %s346 = smul.u32 8, %s29
        %s347 = smul.u32 8, %s29
        %s348 = smul.u32 8, %s29
        %p349 = scmp.lt.s32.totalorder %s28, 1
        %s350 = scalar_select %p349, %s28, 1
        %p351 = scmp.lt.s32.totalorder %s348, 15
        %s352 = scalar_select %p351, %s348, 15
        %s353 = smul.addr %s352, 2
        %s354 = smul.addr %s350, 32
        %s355 = sadd.s32 %s353, %s354
        %s356 = smul.addr %s355, 8
        %s357 = scalar_lea.vmem %s7, %s356
        %s358 = smul.u32 8, %s29
        %s360 = smul.u32 %s29, 8
        %s361 = smul.u32 %s360, 3
        %s362 = smul.addr %s361, 4
        %s363 = scalar_lea.vmem %s335, %s362
        %v364 = vld [vmem:[%s363] sm:$0xf]
        %v365 = vld [vmem:[%s363 + $0x4] sm:$0xf]
        %v366 = vld [vmem:[%s363 + $0x8] sm:$0x1]
        %v367 = vld [vmem:[%s363 + $0xc] sm:$0xf]
        %v368 = vld [vmem:[%s363 + $0x10] sm:$0xf]
        %v369 = vld [vmem:[%s363 + $0x14] sm:$0x1]
        %v370 = vld [vmem:[%s363 + $0x18] sm:$0xf]
        %v371 = vld [vmem:[%s363 + $0x1c] sm:$0xf]
        %v372 = vld [vmem:[%s363 + $0x20] sm:$0x1]
        %v373 = vld [vmem:[%s363 + $0x24] sm:$0xf]
        %v374 = vld [vmem:[%s363 + $0x28] sm:$0xf]
        %v375 = vld [vmem:[%s363 + $0x2c] sm:$0x1]
        %v376 = vld [vmem:[%s363 + $0x30] sm:$0xf]
        %v377 = vld [vmem:[%s363 + $0x34] sm:$0xf]
        %v378 = vld [vmem:[%s363 + $0x38] sm:$0x1]
        %v379 = vld [vmem:[%s363 + $0x3c] sm:$0xf]
        %v380 = vld [vmem:[%s363 + $0x40] sm:$0xf]
        %v381 = vld [vmem:[%s363 + $0x44] sm:$0x1]
        %v382 = vld [vmem:[%s363 + $0x48] sm:$0xf]
        %v383 = vld [vmem:[%s363 + $0x4c] sm:$0xf]
        %v384 = vld [vmem:[%s363 + $0x50] sm:$0x1]
        %v385 = vld [vmem:[%s363 + $0x54] sm:$0xf]
        %v386 = vld [vmem:[%s363 + $0x58] sm:$0xf]
        %v387 = vld [vmem:[%s363 + $0x5c] sm:$0x1]
        %v388 = vld [vmem:[%s363 + $0x60] sm:$0xf]
        %v389 = vld [vmem:[%s363 + $0x64] sm:$0xf]
        %v390 = vld [vmem:[%s363 + $0x68] sm:$0x1]
        %v391 = vld [vmem:[%s363 + $0x6c] sm:$0xf]
        %v392 = vld [vmem:[%s363 + $0x70] sm:$0xf]
        %v393 = vld [vmem:[%s363 + $0x74] sm:$0x1]
        %v394 = vld [vmem:[%s1] sm:$0xf]
        %v395 = vld [vmem:[%s1 + $0x4] sm:$0xf]
        %v396 = vld [vmem:[%s1 + $0x8] sm:$0xf]
        %v397 = vld [vmem:[%s1 + $0xc] sm:$0xf]
        %vm398 = vsmask.f32 3328
        %vm399 = vsmask.f32 7440
        %vm400 = vmor %vm398, %vm399
        %v402 = vshrl.u32 %v364, 16
        %v404 = vrot.slane %v402, 4
        %v405 = vshll.u32 %v364, 16
        %v407 = vrot.slane %v405, 5
        %v408 = vor.u32 %v404, %v407
        %v409 = vrot.slane %v408, 4
        %v411 = vshll.u32 %v365, 16
        %v413 = vrot.slane %v411, 5
        %v414 = vsel %vm400, %v409, %v413
        %v415 = vshrl.u32 %v365, 16
        %v417 = vrot.slane %v415, 4
        %v418 = vor.u32 %v417, %v413
        %v419 = vrot.slane %v418, 4
        %v421 = vshll.u32 %v366, 16
        %v423 = vrot.slane %v421, 5
        %v424 = vsel %vm400, %v419, %v423
        %v426 = vshrl.u32 %v367, 16
        %v428 = vrot.slane %v426, 4
        %v429 = vshll.u32 %v367, 16
        %v431 = vrot.slane %v429, 5
        %v432 = vor.u32 %v428, %v431
        %v433 = vrot.slane %v432, 4
        %v435 = vshll.u32 %v368, 16
        %v437 = vrot.slane %v435, 5
        %v438 = vsel %vm400, %v433, %v437
        %v439 = vshrl.u32 %v368, 16
        %v441 = vrot.slane %v439, 4
        %v442 = vor.u32 %v441, %v437
        %v443 = vrot.slane %v442, 4
        %v445 = vshll.u32 %v369, 16
        %v447 = vrot.slane %v445, 5
        %v448 = vsel %vm400, %v443, %v447
        %v450 = vshrl.u32 %v370, 16
        %v452 = vrot.slane %v450, 4
        %v453 = vshll.u32 %v370, 16
        %v455 = vrot.slane %v453, 5
        %v456 = vor.u32 %v452, %v455
        %v457 = vrot.slane %v456, 4
        %v459 = vshll.u32 %v371, 16
        %v461 = vrot.slane %v459, 5
        %v462 = vsel %vm400, %v457, %v461
        %v463 = vshrl.u32 %v371, 16
        %v465 = vrot.slane %v463, 4
        %v466 = vor.u32 %v465, %v461
        %v467 = vrot.slane %v466, 4
        %v469 = vshll.u32 %v372, 16
        %v471 = vrot.slane %v469, 5
        %v472 = vsel %vm400, %v467, %v471
        %v474 = vshrl.u32 %v373, 16
        %v476 = vrot.slane %v474, 4
        %v477 = vshll.u32 %v373, 16
        %v479 = vrot.slane %v477, 5
        %v480 = vor.u32 %v476, %v479
        %v481 = vrot.slane %v480, 4
        %v483 = vshll.u32 %v374, 16
        %v485 = vrot.slane %v483, 5
        %v486 = vsel %vm400, %v481, %v485
        %v487 = vshrl.u32 %v374, 16
        %v489 = vrot.slane %v487, 4
        %v490 = vor.u32 %v489, %v485
        %v491 = vrot.slane %v490, 4
        %v493 = vshll.u32 %v375, 16
        %v495 = vrot.slane %v493, 5
        %v496 = vsel %vm400, %v491, %v495
        %v498 = vshrl.u32 %v376, 16
        %v500 = vrot.slane %v498, 4
        %v501 = vshll.u32 %v376, 16
        %v503 = vrot.slane %v501, 5
        %v504 = vor.u32 %v500, %v503
        %v505 = vrot.slane %v504, 4
        %v507 = vshll.u32 %v377, 16
        %v509 = vrot.slane %v507, 5
        %v510 = vsel %vm400, %v505, %v509
        %v511 = vshrl.u32 %v377, 16
        %v513 = vrot.slane %v511, 4
        %v514 = vor.u32 %v513, %v509
        %v515 = vrot.slane %v514, 4
        %v517 = vshll.u32 %v378, 16
        %v519 = vrot.slane %v517, 5
        %v520 = vsel %vm400, %v515, %v519
        %v522 = vshrl.u32 %v379, 16
        %v524 = vrot.slane %v522, 4
        %v525 = vshll.u32 %v379, 16
        %v527 = vrot.slane %v525, 5
        %v528 = vor.u32 %v524, %v527
        %v529 = vrot.slane %v528, 4
        %v531 = vshll.u32 %v380, 16
        %v533 = vrot.slane %v531, 5
        %v534 = vsel %vm400, %v529, %v533
        %v535 = vshrl.u32 %v380, 16
        %v537 = vrot.slane %v535, 4
        %v538 = vor.u32 %v537, %v533
        %v539 = vrot.slane %v538, 4
        %v541 = vshll.u32 %v381, 16
        %v543 = vrot.slane %v541, 5
        %v544 = vsel %vm400, %v539, %v543
        %v546 = vshrl.u32 %v382, 16
        %v548 = vrot.slane %v546, 4
        %v549 = vshll.u32 %v382, 16
        %v551 = vrot.slane %v549, 5
        %v552 = vor.u32 %v548, %v551
        %v553 = vrot.slane %v552, 4
        %v555 = vshll.u32 %v383, 16
        %v557 = vrot.slane %v555, 5
        %v558 = vsel %vm400, %v553, %v557
        %v559 = vshrl.u32 %v383, 16
        %v561 = vrot.slane %v559, 4
        %v562 = vor.u32 %v561, %v557
        %v563 = vrot.slane %v562, 4
        %v565 = vshll.u32 %v384, 16
        %v567 = vrot.slane %v565, 5
        %v568 = vsel %vm400, %v563, %v567
        %v570 = vshrl.u32 %v385, 16
        %v572 = vrot.slane %v570, 4
        %v573 = vshll.u32 %v385, 16
        %v575 = vrot.slane %v573, 5
        %v576 = vor.u32 %v572, %v575
        %v577 = vrot.slane %v576, 4
        %v579 = vshll.u32 %v386, 16
        %v581 = vrot.slane %v579, 5
        %v582 = vsel %vm400, %v577, %v581
        %v583 = vshrl.u32 %v386, 16
        %v585 = vrot.slane %v583, 4
        %v586 = vor.u32 %v585, %v581
        %v587 = vrot.slane %v586, 4
        %v589 = vshll.u32 %v387, 16
        %v591 = vrot.slane %v589, 5
        %v592 = vsel %vm400, %v587, %v591
        %s593 = scalar_lea.vmem %s1, 16
        %v594 = vld [vmem:[%s593] sm:$0xf]
        %v595 = vld [vmem:[%s593 + $0x4] sm:$0xf]
        %v596 = vld [vmem:[%s593 + $0x8] sm:$0xf]
        %v597 = vld [vmem:[%s593 + $0xc] sm:$0xf]
        %v598 = vunpack.c.l.b16 %v414
        %v599 = vunpack.c.l.b16 %v424
        %v600 = vunpack.c.l.b16 %v438
        %v601 = vunpack.c.l.b16 %v448
        %v602 = vunpack.c.l.b16 %v462
        %v603 = vunpack.c.l.b16 %v472
        %v604 = vunpack.c.l.b16 %v486
        %v605 = vunpack.c.l.b16 %v496
        %v606 = vunpack.c.l.b16 %v510
        %v607 = vunpack.c.l.b16 %v520
        %v608 = vunpack.c.l.b16 %v534
        %v609 = vunpack.c.l.b16 %v544
        %v610 = vunpack.c.l.b16 %v558
        %v611 = vunpack.c.l.b16 %v568
        %v612 = vunpack.c.l.b16 %v582
        %v613 = vunpack.c.l.b16 %v592
        %v614 = vpack.c.b16 %v599, %v598
        %v615 = vpack.c.b16 %v601, %v600
        %v616 = vpack.c.b16 %v603, %v602
        %v617 = vpack.c.b16 %v605, %v604
        %v618 = vpack.c.b16 %v607, %v606
        %v619 = vpack.c.b16 %v609, %v608
        %v620 = vpack.c.b16 %v611, %v610
        %v621 = vpack.c.b16 %v613, %v612
        %v626 = vunpack.c.l.b16 %v594
        %v627 = vunpack.c.l.b16 %v595
        %v628 = vunpack.c.l.b16 %v596
        %v629 = vunpack.c.l.b16 %v597
        %v630 = vpack.c.b16 %v627, %v626
        %v631 = vpack.c.b16 %v629, %v628
        %vm634 = vcmask 261120
        %v636 = vsel %vm634, %v614, 0
        %v639 = vsel %vm634, %v615, 0
        %v642 = vsel %vm634, %v616, 0
        %v645 = vsel %vm634, %v617, 0
        %v648 = vsel %vm634, %v618, 0
        %v651 = vsel %vm634, %v619, 0
        %v654 = vsel %vm634, %v620, 0
        %v657 = vsel %vm634, %v621, 0
        %659 = vmatprep.subr.bf16.mxu0 0
        %660 = vmatpush1.bf16.msra.mxu0 %v630
        %661 = vmatprep.subr.bf16.mxu0 0
        %662 = vmatpush1.bf16.msra.mxu0 %v631
        %663 = vmatprep.subr.bf16.mxu0 0
        %664 = vmatpush1.bf16.msra.mxu0 0
        %665 = vmatprep.subr.bf16.mxu0 0
        %666 = vmatpush1.bf16.msra.mxu0 0
        %667 = vmatprep.subr.bf16.mxu0 0
        %668 = vmatpush1.bf16.msra.mxu0 0
        %669 = vmatprep.subr.bf16.mxu0 0
        %670 = vmatpush1.bf16.msra.mxu0 0
        %671 = vmatprep.subr.bf16.mxu0 0
        %672 = vmatpush1.bf16.msra.mxu0 0
        %673 = vmatprep.subr.bf16.mxu0 0
        %674 = vmatpush1.bf16.msra.mxu0 0
        %675 = vmatprep.subr.bf16.mxu0 0
        %676 = vmatpush1.bf16.msra.mxu0 0
        %677 = vmatprep.subr.bf16.mxu0 0
        %678 = vmatpush1.bf16.msra.mxu0 0
        %679 = vmatprep.subr.bf16.mxu0 0
        %680 = vmatpush1.bf16.msra.mxu0 0
        %681 = vmatprep.subr.bf16.mxu0 0
        %682 = vmatpush1.bf16.msra.mxu0 0
        %683 = vmatprep.subr.bf16.mxu0 0
        %684 = vmatpush1.bf16.msra.mxu0 0
        %685 = vmatprep.subr.bf16.mxu0 0
        %686 = vmatpush1.bf16.msra.mxu0 0
        %687 = vmatprep.subr.bf16.mxu0 0
        %688 = vmatpush1.bf16.msra.mxu0 0
        %689 = vmatprep.subr.bf16.mxu0 0
        %690 = vmatpush1.bf16.msra.mxu0 0
        %691 = vmatprep.mubr.bf16.mxu0 0
        %692 = vmatmul.mubr.bf16.gmra.mrb[0].mxu0 %v636
        %v693 = vpop.f32.mrb[0].mxu0
        %v694 = vadd.f32 0.0, %v693
        %v695 = vpop.f32.mrb[0].mxu0
        %v696 = vpop.f32.mrb[0].mxu0
        %v697 = vadd.f32 0.0, %v696
        %v698 = vpop.f32.mrb[0].mxu0
        %699 = vmatprep.mubr.bf16.mxu0 0
        %700 = vmatmul.mubr.bf16.gmra.mrb[0].mxu0 %v639
        %v701 = vpop.f32.mrb[0].mxu0
        %v702 = vadd.f32 0.0, %v701
        %v703 = vpop.f32.mrb[0].mxu0
        %v704 = vpop.f32.mrb[0].mxu0
        %v705 = vadd.f32 0.0, %v704
        %v706 = vpop.f32.mrb[0].mxu0
        %707 = vmatprep.mubr.bf16.mxu0 0
        %708 = vmatmul.mubr.bf16.gmra.mrb[0].mxu0 %v642
        %v709 = vpop.f32.mrb[0].mxu0
        %v710 = vadd.f32 0.0, %v709
        %v711 = vpop.f32.mrb[0].mxu0
        %v712 = vpop.f32.mrb[0].mxu0
        %v713 = vadd.f32 0.0, %v712
        %v714 = vpop.f32.mrb[0].mxu0
        %715 = vmatprep.mubr.bf16.mxu0 0
        %716 = vmatmul.mubr.bf16.gmra.mrb[0].mxu0 %v645
        %v717 = vpop.f32.mrb[0].mxu0
        %v718 = vadd.f32 0.0, %v717
        %v719 = vpop.f32.mrb[0].mxu0
        %v720 = vpop.f32.mrb[0].mxu0
        %v721 = vadd.f32 0.0, %v720
        %v722 = vpop.f32.mrb[0].mxu0
        %723 = vmatprep.mubr.bf16.mxu0 0
        %724 = vmatmul.mubr.bf16.gmra.mrb[0].mxu0 %v648
        %v725 = vpop.f32.mrb[0].mxu0
        %v726 = vadd.f32 0.0, %v725
        %v727 = vpop.f32.mrb[0].mxu0
        %v728 = vpop.f32.mrb[0].mxu0
        %v729 = vadd.f32 0.0, %v728
        %v730 = vpop.f32.mrb[0].mxu0
        %731 = vmatprep.mubr.bf16.mxu0 0
        %732 = vmatmul.mubr.bf16.gmra.mrb[0].mxu0 %v651
        %v733 = vpop.f32.mrb[0].mxu0
        %v734 = vadd.f32 0.0, %v733
        %v735 = vpop.f32.mrb[0].mxu0
        %v736 = vpop.f32.mrb[0].mxu0
        %v737 = vadd.f32 0.0, %v736
        %v738 = vpop.f32.mrb[0].mxu0
        %739 = vmatprep.mubr.bf16.mxu0 0
        %740 = vmatmul.mubr.bf16.gmra.mrb[0].mxu0 %v654
        %v741 = vpop.f32.mrb[0].mxu0
        %v742 = vadd.f32 0.0, %v741
        %v743 = vpop.f32.mrb[0].mxu0
        %v744 = vpop.f32.mrb[0].mxu0
        %v745 = vadd.f32 0.0, %v744
        %v746 = vpop.f32.mrb[0].mxu0
        %747 = vmatprep.mubr.bf16.mxu0 0
        %748 = vmatmul.mubr.bf16.gmra.mrb[0].mxu0 %v657
        %v749 = vpop.f32.mrb[0].mxu0
        %v750 = vadd.f32 0.0, %v749
        %v751 = vpop.f32.mrb[0].mxu0
        %v752 = vpop.f32.mrb[0].mxu0
        %v753 = vadd.f32 0.0, %v752
        %v754 = vpop.f32.mrb[0].mxu0
        %755 = vdwg.mxu0
        %v772 = vunpack.c.l.b16 %v364
        %v773 = vunpack.c.l.b16 %v365
        %v774 = vunpack.c.l.b16 %v367
        %v775 = vunpack.c.l.b16 %v368
        %v776 = vunpack.c.l.b16 %v370
        %v777 = vunpack.c.l.b16 %v371
        %v778 = vunpack.c.l.b16 %v373
        %v779 = vunpack.c.l.b16 %v374
        %v780 = vunpack.c.l.b16 %v376
        %v781 = vunpack.c.l.b16 %v377
        %v782 = vunpack.c.l.b16 %v379
        %v783 = vunpack.c.l.b16 %v380
        %v784 = vunpack.c.l.b16 %v382
        %v785 = vunpack.c.l.b16 %v383
        %v786 = vunpack.c.l.b16 %v385
        %v787 = vunpack.c.l.b16 %v386
        %v788 = vpack.c.b16 %v773, %v772
        %v789 = vpack.c.b16 %v775, %v774
        %v790 = vpack.c.b16 %v777, %v776
        %v791 = vpack.c.b16 %v779, %v778
        %v792 = vpack.c.b16 %v781, %v780
        %v793 = vpack.c.b16 %v783, %v782
        %v794 = vpack.c.b16 %v785, %v784
        %v795 = vpack.c.b16 %v787, %v786
        %v800 = vunpack.c.l.b16 %v394
        %v801 = vunpack.c.l.b16 %v395
        %v802 = vunpack.c.l.b16 %v396
        %v803 = vunpack.c.l.b16 %v397
        %v804 = vpack.c.b16 %v801, %v800
        %v805 = vpack.c.b16 %v803, %v802
        %v809 = vsel %vm634, %v788, 0
        %v812 = vsel %vm634, %v789, 0
        %v815 = vsel %vm634, %v790, 0
        %v818 = vsel %vm634, %v791, 0
        %v821 = vsel %vm634, %v792, 0
        %v824 = vsel %vm634, %v793, 0
        %v827 = vsel %vm634, %v794, 0
        %v830 = vsel %vm634, %v795, 0
        %832 = vmatprep.subr.bf16.mxu0 0
        %833 = vmatpush1.bf16.msra.mxu0 %v804
        %834 = vmatprep.subr.bf16.mxu0 0
        %835 = vmatpush1.bf16.msra.mxu0 %v805
        %836 = vmatprep.subr.bf16.mxu0 0
        %837 = vmatpush1.bf16.msra.mxu0 0
        %838 = vmatprep.subr.bf16.mxu0 0
        %839 = vmatpush1.bf16.msra.mxu0 0
        %840 = vmatprep.subr.bf16.mxu0 0
        %841 = vmatpush1.bf16.msra.mxu0 0
        %842 = vmatprep.subr.bf16.mxu0 0
        %843 = vmatpush1.bf16.msra.mxu0 0
        %844 = vmatprep.subr.bf16.mxu0 0
        %845 = vmatpush1.bf16.msra.mxu0 0
        %846 = vmatprep.subr.bf16.mxu0 0
        %847 = vmatpush1.bf16.msra.mxu0 0
        %848 = vmatprep.subr.bf16.mxu0 0
        %849 = vmatpush1.bf16.msra.mxu0 0
        %850 = vmatprep.subr.bf16.mxu0 0
        %851 = vmatpush1.bf16.msra.mxu0 0
        %852 = vmatprep.subr.bf16.mxu0 0
        %853 = vmatpush1.bf16.msra.mxu0 0
        %854 = vmatprep.subr.bf16.mxu0 0
        %855 = vmatpush1.bf16.msra.mxu0 0
        %856 = vmatprep.subr.bf16.mxu0 0
        %857 = vmatpush1.bf16.msra.mxu0 0
        %858 = vmatprep.subr.bf16.mxu0 0
        %859 = vmatpush1.bf16.msra.mxu0 0
        %860 = vmatprep.subr.bf16.mxu0 0
        %861 = vmatpush1.bf16.msra.mxu0 0
        %862 = vmatprep.subr.bf16.mxu0 0
        %863 = vmatpush1.bf16.msra.mxu0 0
        %864 = vmatprep.mubr.bf16.mxu0 0
        %865 = vmatmul.mubr.bf16.gmra.mrb[0].mxu0 %v809
        %v866 = vpop.f32.mrb[0].mxu0
        %v867 = vadd.f32 %v694, %v866
        %v868 = vpop.f32.mrb[0].mxu0
        %v869 = vpop.f32.mrb[0].mxu0
        %v870 = vadd.f32 %v697, %v869
        %v871 = vpop.f32.mrb[0].mxu0
        %872 = vmatprep.mubr.bf16.mxu0 0
        %873 = vmatmul.mubr.bf16.gmra.mrb[0].mxu0 %v812
        %v874 = vpop.f32.mrb[0].mxu0
        %v875 = vadd.f32 %v702, %v874
        %v876 = vpop.f32.mrb[0].mxu0
        %v877 = vpop.f32.mrb[0].mxu0
        %v878 = vadd.f32 %v705, %v877
        %v879 = vpop.f32.mrb[0].mxu0
        %880 = vmatprep.mubr.bf16.mxu0 0
        %881 = vmatmul.mubr.bf16.gmra.mrb[0].mxu0 %v815
        %v882 = vpop.f32.mrb[0].mxu0
        %v883 = vadd.f32 %v710, %v882
        %v884 = vpop.f32.mrb[0].mxu0
        %v885 = vpop.f32.mrb[0].mxu0
        %v886 = vadd.f32 %v713, %v885
        %v887 = vpop.f32.mrb[0].mxu0
        %888 = vmatprep.mubr.bf16.mxu0 0
        %889 = vmatmul.mubr.bf16.gmra.mrb[0].mxu0 %v818
        %v890 = vpop.f32.mrb[0].mxu0
        %v891 = vadd.f32 %v718, %v890
        %v892 = vpop.f32.mrb[0].mxu0
        %v893 = vpop.f32.mrb[0].mxu0
        %v894 = vadd.f32 %v721, %v893
        %v895 = vpop.f32.mrb[0].mxu0
        %896 = vmatprep.mubr.bf16.mxu0 0
        %897 = vmatmul.mubr.bf16.gmra.mrb[0].mxu0 %v821
        %v898 = vpop.f32.mrb[0].mxu0
        %v899 = vadd.f32 %v726, %v898
        %v900 = vpop.f32.mrb[0].mxu0
        %v901 = vpop.f32.mrb[0].mxu0
        %v902 = vadd.f32 %v729, %v901
        %v903 = vpop.f32.mrb[0].mxu0
        %904 = vmatprep.mubr.bf16.mxu0 0
        %905 = vmatmul.mubr.bf16.gmra.mrb[0].mxu0 %v824
        %v906 = vpop.f32.mrb[0].mxu0
        %v907 = vadd.f32 %v734, %v906
        %v908 = vpop.f32.mrb[0].mxu0
        %v909 = vpop.f32.mrb[0].mxu0
        %v910 = vadd.f32 %v737, %v909
        %v911 = vpop.f32.mrb[0].mxu0
        %912 = vmatprep.mubr.bf16.mxu0 0
        %913 = vmatmul.mubr.bf16.gmra.mrb[0].mxu0 %v827
        %v914 = vpop.f32.mrb[0].mxu0
        %v915 = vadd.f32 %v742, %v914
        %v916 = vpop.f32.mrb[0].mxu0
        %v917 = vpop.f32.mrb[0].mxu0
        %v918 = vadd.f32 %v745, %v917
        %v919 = vpop.f32.mrb[0].mxu0
        %920 = vmatprep.mubr.bf16.mxu0 0
        %921 = vmatmul.mubr.bf16.gmra.mrb[0].mxu0 %v830
        %v922 = vpop.f32.mrb[0].mxu0
        %v923 = vadd.f32 %v750, %v922
        %v924 = vpop.f32.mrb[0].mxu0
        %v925 = vpop.f32.mrb[0].mxu0
        %v926 = vadd.f32 %v753, %v925
        %v927 = vpop.f32.mrb[0].mxu0
        %928 = vdwg.mxu0
        %vm937 = vcmask 1042432
        %vm938 = vcmask 1046532
        %vm939 = vmor %vm937, %vm938
        %v940 = vrot.slane %v364, 5
        %v941 = vrot.slane %v940, 4
        %v942 = vrot.slane %v365, 5
        %v943 = vsel %vm939, %v941, %v942
        %v944 = vrot.slane %v942, 4
        %v945 = vrot.slane %v366, 5
        %v946 = vsel %vm939, %v944, %v945
        %v947 = vrot.slane %v367, 5
        %v948 = vrot.slane %v947, 4
        %v949 = vrot.slane %v368, 5
        %v950 = vsel %vm939, %v948, %v949
        %v951 = vrot.slane %v949, 4
        %v952 = vrot.slane %v369, 5
        %v953 = vsel %vm939, %v951, %v952
        %v954 = vrot.slane %v370, 5
        %v955 = vrot.slane %v954, 4
        %v956 = vrot.slane %v371, 5
        %v957 = vsel %vm939, %v955, %v956
        %v958 = vrot.slane %v956, 4
        %v959 = vrot.slane %v372, 5
        %v960 = vsel %vm939, %v958, %v959
        %v961 = vrot.slane %v373, 5
        %v962 = vrot.slane %v961, 4
        %v963 = vrot.slane %v374, 5
        %v964 = vsel %vm939, %v962, %v963
        %v965 = vrot.slane %v963, 4
        %v966 = vrot.slane %v375, 5
        %v967 = vsel %vm939, %v965, %v966
        %v968 = vrot.slane %v376, 5
        %v969 = vrot.slane %v968, 4
        %v970 = vrot.slane %v377, 5
        %v971 = vsel %vm939, %v969, %v970
        %v972 = vrot.slane %v970, 4
        %v973 = vrot.slane %v378, 5
        %v974 = vsel %vm939, %v972, %v973
        %v975 = vrot.slane %v379, 5
        %v976 = vrot.slane %v975, 4
        %v977 = vrot.slane %v380, 5
        %v978 = vsel %vm939, %v976, %v977
        %v979 = vrot.slane %v977, 4
        %v980 = vrot.slane %v381, 5
        %v981 = vsel %vm939, %v979, %v980
        %v982 = vrot.slane %v382, 5
        %v983 = vrot.slane %v982, 4
        %v984 = vrot.slane %v383, 5
        %v985 = vsel %vm939, %v983, %v984
        %v986 = vrot.slane %v984, 4
        %v987 = vrot.slane %v384, 5
        %v988 = vsel %vm939, %v986, %v987
        %v989 = vrot.slane %v385, 5
        %v990 = vrot.slane %v989, 4
        %v991 = vrot.slane %v386, 5
        %v992 = vsel %vm939, %v990, %v991
        %v993 = vrot.slane %v991, 4
        %v994 = vrot.slane %v387, 5
        %v995 = vsel %vm939, %v993, %v994
        %s996 = scalar_lea.vmem %s1, 32
        %v997 = vld [vmem:[%s996] sm:$0xf]
        %v998 = vld [vmem:[%s996 + $0x4] sm:$0xf]
        %v999 = vld [vmem:[%s996 + $0x8] sm:$0xf]
        %v1000 = vld [vmem:[%s996 + $0xc] sm:$0xf]
        %v1001 = vunpack.c.l.b16 %v943
        %v1002 = vunpack.c.l.b16 %v946
        %v1003 = vunpack.c.l.b16 %v950
        %v1004 = vunpack.c.l.b16 %v953
        %v1005 = vunpack.c.l.b16 %v957
        %v1006 = vunpack.c.l.b16 %v960
        %v1007 = vunpack.c.l.b16 %v964
        %v1008 = vunpack.c.l.b16 %v967
        %v1009 = vunpack.c.l.b16 %v971
        %v1010 = vunpack.c.l.b16 %v974
        %v1011 = vunpack.c.l.b16 %v978
        %v1012 = vunpack.c.l.b16 %v981
        %v1013 = vunpack.c.l.b16 %v985
        %v1014 = vunpack.c.l.b16 %v988
        %v1015 = vunpack.c.l.b16 %v992
        %v1016 = vunpack.c.l.b16 %v995
        %v1017 = vpack.c.b16 %v1002, %v1001
        %v1018 = vpack.c.b16 %v1004, %v1003
        %v1019 = vpack.c.b16 %v1006, %v1005
        %v1020 = vpack.c.b16 %v1008, %v1007
        %v1021 = vpack.c.b16 %v1010, %v1009
        %v1022 = vpack.c.b16 %v1012, %v1011
        %v1023 = vpack.c.b16 %v1014, %v1013
        %v1024 = vpack.c.b16 %v1016, %v1015
        %v1029 = vunpack.c.l.b16 %v997
        %v1030 = vunpack.c.l.b16 %v998
        %v1031 = vunpack.c.l.b16 %v999
        %v1032 = vunpack.c.l.b16 %v1000
        %v1033 = vpack.c.b16 %v1030, %v1029
        %v1034 = vpack.c.b16 %v1032, %v1031
        %v1038 = vsel %vm634, %v1017, 0
        %v1041 = vsel %vm634, %v1018, 0
        %v1044 = vsel %vm634, %v1019, 0
        %v1047 = vsel %vm634, %v1020, 0
        %v1050 = vsel %vm634, %v1021, 0
        %v1053 = vsel %vm634, %v1022, 0
        %v1056 = vsel %vm634, %v1023, 0
        %v1059 = vsel %vm634, %v1024, 0
        %1061 = vmatprep.subr.bf16.mxu0 0
        %1062 = vmatpush1.bf16.msra.mxu0 %v1033
        %1063 = vmatprep.subr.bf16.mxu0 0
        %1064 = vmatpush1.bf16.msra.mxu0 %v1034
        %1065 = vmatprep.subr.bf16.mxu0 0
        %1066 = vmatpush1.bf16.msra.mxu0 0
        %1067 = vmatprep.subr.bf16.mxu0 0
        %1068 = vmatpush1.bf16.msra.mxu0 0
        %1069 = vmatprep.subr.bf16.mxu0 0
        %1070 = vmatpush1.bf16.msra.mxu0 0
        %1071 = vmatprep.subr.bf16.mxu0 0
        %1072 = vmatpush1.bf16.msra.mxu0 0
        %1073 = vmatprep.subr.bf16.mxu0 0
        %1074 = vmatpush1.bf16.msra.mxu0 0
        %1075 = vmatprep.subr.bf16.mxu0 0
        %1076 = vmatpush1.bf16.msra.mxu0 0
        %1077 = vmatprep.subr.bf16.mxu0 0
        %1078 = vmatpush1.bf16.msra.mxu0 0
        %1079 = vmatprep.subr.bf16.mxu0 0
        %1080 = vmatpush1.bf16.msra.mxu0 0
        %1081 = vmatprep.subr.bf16.mxu0 0
        %1082 = vmatpush1.bf16.msra.mxu0 0
        %1083 = vmatprep.subr.bf16.mxu0 0
        %1084 = vmatpush1.bf16.msra.mxu0 0
        %1085 = vmatprep.subr.bf16.mxu0 0
        %1086 = vmatpush1.bf16.msra.mxu0 0
        %1087 = vmatprep.subr.bf16.mxu0 0
        %1088 = vmatpush1.bf16.msra.mxu0 0
        %1089 = vmatprep.subr.bf16.mxu0 0
        %1090 = vmatpush1.bf16.msra.mxu0 0
        %1091 = vmatprep.subr.bf16.mxu0 0
        %1092 = vmatpush1.bf16.msra.mxu0 0
        %1093 = vmatprep.mubr.bf16.mxu0 0
        %1094 = vmatmul.mubr.bf16.gmra.mrb[0].mxu0 %v1038
        %v1095 = vpop.f32.mrb[0].mxu0
        %v1096 = vadd.f32 0.0, %v1095
        %v1097 = vpop.f32.mrb[0].mxu0
        %v1098 = vpop.f32.mrb[0].mxu0
        %v1099 = vadd.f32 0.0, %v1098
        %v1100 = vpop.f32.mrb[0].mxu0
        %1101 = vmatprep.mubr.bf16.mxu0 0
        %1102 = vmatmul.mubr.bf16.gmra.mrb[0].mxu0 %v1041
        %v1103 = vpop.f32.mrb[0].mxu0
        %v1104 = vadd.f32 0.0, %v1103
        %v1105 = vpop.f32.mrb[0].mxu0
        %v1106 = vpop.f32.mrb[0].mxu0
        %v1107 = vadd.f32 0.0, %v1106
        %v1108 = vpop.f32.mrb[0].mxu0
        %1109 = vmatprep.mubr.bf16.mxu0 0
        %1110 = vmatmul.mubr.bf16.gmra.mrb[0].mxu0 %v1044
        %v1111 = vpop.f32.mrb[0].mxu0
        %v1112 = vadd.f32 0.0, %v1111
        %v1113 = vpop.f32.mrb[0].mxu0
        %v1114 = vpop.f32.mrb[0].mxu0
        %v1115 = vadd.f32 0.0, %v1114
        %v1116 = vpop.f32.mrb[0].mxu0
        %1117 = vmatprep.mubr.bf16.mxu0 0
        %1118 = vmatmul.mubr.bf16.gmra.mrb[0].mxu0 %v1047
        %v1119 = vpop.f32.mrb[0].mxu0
        %v1120 = vadd.f32 0.0, %v1119
        %v1121 = vpop.f32.mrb[0].mxu0
        %v1122 = vpop.f32.mrb[0].mxu0
        %v1123 = vadd.f32 0.0, %v1122
        %v1124 = vpop.f32.mrb[0].mxu0
        %1125 = vmatprep.mubr.bf16.mxu0 0
        %1126 = vmatmul.mubr.bf16.gmra.mrb[0].mxu0 %v1050
        %v1127 = vpop.f32.mrb[0].mxu0
        %v1128 = vadd.f32 0.0, %v1127
        %v1129 = vpop.f32.mrb[0].mxu0
        %v1130 = vpop.f32.mrb[0].mxu0
        %v1131 = vadd.f32 0.0, %v1130
        %v1132 = vpop.f32.mrb[0].mxu0
        %1133 = vmatprep.mubr.bf16.mxu0 0
        %1134 = vmatmul.mubr.bf16.gmra.mrb[0].mxu0 %v1053
        %v1135 = vpop.f32.mrb[0].mxu0
        %v1136 = vadd.f32 0.0, %v1135
        %v1137 = vpop.f32.mrb[0].mxu0
        %v1138 = vpop.f32.mrb[0].mxu0
        %v1139 = vadd.f32 0.0, %v1138
        %v1140 = vpop.f32.mrb[0].mxu0
        %1141 = vmatprep.mubr.bf16.mxu0 0
        %1142 = vmatmul.mubr.bf16.gmra.mrb[0].mxu0 %v1056
        %v1143 = vpop.f32.mrb[0].mxu0
        %v1144 = vadd.f32 0.0, %v1143
        %v1145 = vpop.f32.mrb[0].mxu0
        %v1146 = vpop.f32.mrb[0].mxu0
        %v1147 = vadd.f32 0.0, %v1146
        %v1148 = vpop.f32.mrb[0].mxu0
        %1149 = vmatprep.mubr.bf16.mxu0 0
        %1150 = vmatmul.mubr.bf16.gmra.mrb[0].mxu0 %v1059
        %v1151 = vpop.f32.mrb[0].mxu0
        %v1152 = vadd.f32 0.0, %v1151
        %v1153 = vpop.f32.mrb[0].mxu0
        %v1154 = vpop.f32.mrb[0].mxu0
        %v1155 = vadd.f32 0.0, %v1154
        %v1156 = vpop.f32.mrb[0].mxu0
        %1157 = vdwg.mxu0
        %v1158 = vadd.f32 %v867, %v1096
        %v1159 = vadd.f32 %v870, %v1099
        %v1160 = vadd.f32 %v875, %v1104
        %v1161 = vadd.f32 %v878, %v1107
        %v1162 = vadd.f32 %v883, %v1112
        %v1163 = vadd.f32 %v886, %v1115
        %v1164 = vadd.f32 %v891, %v1120
        %v1165 = vadd.f32 %v894, %v1123
        %v1166 = vadd.f32 %v899, %v1128
        %v1167 = vadd.f32 %v902, %v1131
        %v1168 = vadd.f32 %v907, %v1136
        %v1169 = vadd.f32 %v910, %v1139
        %v1170 = vadd.f32 %v915, %v1144
        %v1171 = vadd.f32 %v918, %v1147
        %v1172 = vadd.f32 %v923, %v1152
        %v1173 = vadd.f32 %v926, %v1155
        %s1174 = scalar_lea.vmem %s1, 48
        %v1175 = vld [vmem:[%s1174] sm:$0xf]
        %v1176 = vld [vmem:[%s1174 + $0x4] sm:$0xf]
        %v1177 = vld [vmem:[%s1174 + $0x8] sm:$0xf]
        %v1178 = vld [vmem:[%s1174 + $0xc] sm:$0xf]
        %v1181 = vunpack.c.l.b16 %v388
        %v1182 = vunpack.c.l.b16 %v389
        %v1183 = vpack.c.b16 %v1182, %v1181
        %v1188 = vunpack.c.l.b16 %v1175
        %v1189 = vunpack.c.l.b16 %v1176
        %v1190 = vunpack.c.l.b16 %v1177
        %v1191 = vunpack.c.l.b16 %v1178
        %v1192 = vpack.c.b16 %v1189, %v1188
        %v1193 = vpack.c.b16 %v1191, %v1190
        %v1197 = vsel %vm634, %v1183, 0
        %1199 = vmatprep.subr.bf16.mxu0 0
        %1200 = vmatpush1.bf16.msra.mxu0 %v1192
        %1201 = vmatprep.subr.bf16.mxu0 0
        %1202 = vmatpush1.bf16.msra.mxu0 %v1193
        %1203 = vmatprep.subr.bf16.mxu0 0
        %1204 = vmatpush1.bf16.msra.mxu0 0
        %1205 = vmatprep.subr.bf16.mxu0 0
        %1206 = vmatpush1.bf16.msra.mxu0 0
        %1207 = vmatprep.subr.bf16.mxu0 0
        %1208 = vmatpush1.bf16.msra.mxu0 0
        %1209 = vmatprep.subr.bf16.mxu0 0
        %1210 = vmatpush1.bf16.msra.mxu0 0
        %1211 = vmatprep.subr.bf16.mxu0 0
        %1212 = vmatpush1.bf16.msra.mxu0 0
        %1213 = vmatprep.subr.bf16.mxu0 0
        %1214 = vmatpush1.bf16.msra.mxu0 0
        %1215 = vmatprep.subr.bf16.mxu0 0
        %1216 = vmatpush1.bf16.msra.mxu0 0
        %1217 = vmatprep.subr.bf16.mxu0 0
        %1218 = vmatpush1.bf16.msra.mxu0 0
        %1219 = vmatprep.subr.bf16.mxu0 0
        %1220 = vmatpush1.bf16.msra.mxu0 0
        %1221 = vmatprep.subr.bf16.mxu0 0
        %1222 = vmatpush1.bf16.msra.mxu0 0
        %1223 = vmatprep.subr.bf16.mxu0 0
        %1224 = vmatpush1.bf16.msra.mxu0 0
        %1225 = vmatprep.subr.bf16.mxu0 0
        %1226 = vmatpush1.bf16.msra.mxu0 0
        %1227 = vmatprep.subr.bf16.mxu0 0
        %1228 = vmatpush1.bf16.msra.mxu0 0
        %1229 = vmatprep.subr.bf16.mxu0 0
        %1230 = vmatpush1.bf16.msra.mxu0 0
        %1231 = vmatprep.mubr.bf16.mxu0 0
        %1232 = vmatmul.mubr.bf16.gmra.mrb[0].mxu0 %v812
        %v1233 = vpop.f32.mrb[0].mxu0
        %v1234 = vadd.f32 0.0, %v1233
        %v1235 = vpop.f32.mrb[0].mxu0
        %v1236 = vpop.f32.mrb[0].mxu0
        %v1237 = vadd.f32 0.0, %v1236
        %v1238 = vpop.f32.mrb[0].mxu0
        %1239 = vmatprep.mubr.bf16.mxu0 0
        %1240 = vmatmul.mubr.bf16.gmra.mrb[0].mxu0 %v815
        %v1241 = vpop.f32.mrb[0].mxu0
        %v1242 = vadd.f32 0.0, %v1241
        %v1243 = vpop.f32.mrb[0].mxu0
        %v1244 = vpop.f32.mrb[0].mxu0
        %v1245 = vadd.f32 0.0, %v1244
        %v1246 = vpop.f32.mrb[0].mxu0
        %1247 = vmatprep.mubr.bf16.mxu0 0
        %1248 = vmatmul.mubr.bf16.gmra.mrb[0].mxu0 %v818
        %v1249 = vpop.f32.mrb[0].mxu0
        %v1250 = vadd.f32 0.0, %v1249
        %v1251 = vpop.f32.mrb[0].mxu0
        %v1252 = vpop.f32.mrb[0].mxu0
        %v1253 = vadd.f32 0.0, %v1252
        %v1254 = vpop.f32.mrb[0].mxu0
        %1255 = vmatprep.mubr.bf16.mxu0 0
        %1256 = vmatmul.mubr.bf16.gmra.mrb[0].mxu0 %v821
        %v1257 = vpop.f32.mrb[0].mxu0
        %v1258 = vadd.f32 0.0, %v1257
        %v1259 = vpop.f32.mrb[0].mxu0
        %v1260 = vpop.f32.mrb[0].mxu0
        %v1261 = vadd.f32 0.0, %v1260
        %v1262 = vpop.f32.mrb[0].mxu0
        %1263 = vmatprep.mubr.bf16.mxu0 0
        %1264 = vmatmul.mubr.bf16.gmra.mrb[0].mxu0 %v824
        %v1265 = vpop.f32.mrb[0].mxu0
        %v1266 = vadd.f32 0.0, %v1265
        %v1267 = vpop.f32.mrb[0].mxu0
        %v1268 = vpop.f32.mrb[0].mxu0
        %v1269 = vadd.f32 0.0, %v1268
        %v1270 = vpop.f32.mrb[0].mxu0
        %1271 = vmatprep.mubr.bf16.mxu0 0
        %1272 = vmatmul.mubr.bf16.gmra.mrb[0].mxu0 %v827
        %v1273 = vpop.f32.mrb[0].mxu0
        %v1274 = vadd.f32 0.0, %v1273
        %v1275 = vpop.f32.mrb[0].mxu0
        %v1276 = vpop.f32.mrb[0].mxu0
        %v1277 = vadd.f32 0.0, %v1276
        %v1278 = vpop.f32.mrb[0].mxu0
        %1279 = vmatprep.mubr.bf16.mxu0 0
        %1280 = vmatmul.mubr.bf16.gmra.mrb[0].mxu0 %v830
        %v1281 = vpop.f32.mrb[0].mxu0
        %v1282 = vadd.f32 0.0, %v1281
        %v1283 = vpop.f32.mrb[0].mxu0
        %v1284 = vpop.f32.mrb[0].mxu0
        %v1285 = vadd.f32 0.0, %v1284
        %v1286 = vpop.f32.mrb[0].mxu0
        %1287 = vmatprep.mubr.bf16.mxu0 0
        %1288 = vmatmul.mubr.bf16.gmra.mrb[0].mxu0 %v1197
        %v1289 = vpop.f32.mrb[0].mxu0
        %v1290 = vadd.f32 0.0, %v1289
        %v1291 = vpop.f32.mrb[0].mxu0
        %v1292 = vpop.f32.mrb[0].mxu0
        %v1293 = vadd.f32 0.0, %v1292
        %v1294 = vpop.f32.mrb[0].mxu0
        %1295 = vdwg.mxu0
        %v1296 = vadd.f32 %v1158, %v1234
        %v1297 = vadd.f32 %v1159, %v1237
        %v1298 = vadd.f32 %v1160, %v1242
        %v1299 = vadd.f32 %v1161, %v1245
        %v1300 = vadd.f32 %v1162, %v1250
        %v1301 = vadd.f32 %v1163, %v1253
        %v1302 = vadd.f32 %v1164, %v1258
        %v1303 = vadd.f32 %v1165, %v1261
        %v1304 = vadd.f32 %v1166, %v1266
        %v1305 = vadd.f32 %v1167, %v1269
        %v1306 = vadd.f32 %v1168, %v1274
        %v1307 = vadd.f32 %v1169, %v1277
        %v1308 = vadd.f32 %v1170, %v1282
        %v1309 = vadd.f32 %v1171, %v1285
        %v1310 = vadd.f32 %v1172, %v1290
        %v1311 = vadd.f32 %v1173, %v1293
        %v1313 = vshrl.u32 %v388, 16
        %v1315 = vrot.slane %v1313, 4
        %v1316 = vshll.u32 %v388, 16
        %v1318 = vrot.slane %v1316, 5
        %v1319 = vor.u32 %v1315, %v1318
        %v1320 = vrot.slane %v1319, 4
        %v1322 = vshll.u32 %v389, 16
        %v1324 = vrot.slane %v1322, 5
        %v1325 = vsel %vm400, %v1320, %v1324
        %v1326 = vshrl.u32 %v389, 16
        %v1328 = vrot.slane %v1326, 4
        %v1329 = vor.u32 %v1328, %v1324
        %v1330 = vrot.slane %v1329, 4
        %v1332 = vshll.u32 %v390, 16
        %v1334 = vrot.slane %v1332, 5
        %v1335 = vsel %vm400, %v1330, %v1334
        %s1336 = scalar_lea.vmem %s1, 64
        %v1337 = vld [vmem:[%s1336] sm:$0xf]
        %v1338 = vld [vmem:[%s1336 + $0x4] sm:$0xf]
        %v1339 = vld [vmem:[%s1336 + $0x8] sm:$0xf]
        %v1340 = vld [vmem:[%s1336 + $0xc] sm:$0xf]
        %v1341 = vunpack.c.l.b16 %v1325
        %v1342 = vunpack.c.l.b16 %v1335
        %v1343 = vpack.c.b16 %v1342, %v1341
        %v1348 = vunpack.c.l.b16 %v1337
        %v1349 = vunpack.c.l.b16 %v1338
        %v1350 = vunpack.c.l.b16 %v1339
        %v1351 = vunpack.c.l.b16 %v1340
        %v1352 = vpack.c.b16 %v1349, %v1348
        %v1353 = vpack.c.b16 %v1351, %v1350
        %v1357 = vsel %vm634, %v1343, 0
        %1359 = vmatprep.subr.bf16.mxu0 0
        %1360 = vmatpush1.bf16.msra.mxu0 %v1352
        %1361 = vmatprep.subr.bf16.mxu0 0
        %1362 = vmatpush1.bf16.msra.mxu0 %v1353
        %1363 = vmatprep.subr.bf16.mxu0 0
        %1364 = vmatpush1.bf16.msra.mxu0 0
        %1365 = vmatprep.subr.bf16.mxu0 0
        %1366 = vmatpush1.bf16.msra.mxu0 0
        %1367 = vmatprep.subr.bf16.mxu0 0
        %1368 = vmatpush1.bf16.msra.mxu0 0
        %1369 = vmatprep.subr.bf16.mxu0 0
        %1370 = vmatpush1.bf16.msra.mxu0 0
        %1371 = vmatprep.subr.bf16.mxu0 0
        %1372 = vmatpush1.bf16.msra.mxu0 0
        %1373 = vmatprep.subr.bf16.mxu0 0
        %1374 = vmatpush1.bf16.msra.mxu0 0
        %1375 = vmatprep.subr.bf16.mxu0 0
        %1376 = vmatpush1.bf16.msra.mxu0 0
        %1377 = vmatprep.subr.bf16.mxu0 0
        %1378 = vmatpush1.bf16.msra.mxu0 0
        %1379 = vmatprep.subr.bf16.mxu0 0
        %1380 = vmatpush1.bf16.msra.mxu0 0
        %1381 = vmatprep.subr.bf16.mxu0 0
        %1382 = vmatpush1.bf16.msra.mxu0 0
        %1383 = vmatprep.subr.bf16.mxu0 0
        %1384 = vmatpush1.bf16.msra.mxu0 0
        %1385 = vmatprep.subr.bf16.mxu0 0
        %1386 = vmatpush1.bf16.msra.mxu0 0
        %1387 = vmatprep.subr.bf16.mxu0 0
        %1388 = vmatpush1.bf16.msra.mxu0 0
        %1389 = vmatprep.subr.bf16.mxu0 0
        %1390 = vmatpush1.bf16.msra.mxu0 0
        %1391 = vmatprep.mubr.bf16.mxu0 0
        %1392 = vmatmul.mubr.bf16.gmra.mrb[0].mxu0 %v639
        %v1393 = vpop.f32.mrb[0].mxu0
        %v1394 = vadd.f32 0.0, %v1393
        %v1395 = vpop.f32.mrb[0].mxu0
        %v1396 = vpop.f32.mrb[0].mxu0
        %v1397 = vadd.f32 0.0, %v1396
        %v1398 = vpop.f32.mrb[0].mxu0
        %1399 = vmatprep.mubr.bf16.mxu0 0
        %1400 = vmatmul.mubr.bf16.gmra.mrb[0].mxu0 %v642
        %v1401 = vpop.f32.mrb[0].mxu0
        %v1402 = vadd.f32 0.0, %v1401
        %v1403 = vpop.f32.mrb[0].mxu0
        %v1404 = vpop.f32.mrb[0].mxu0
        %v1405 = vadd.f32 0.0, %v1404
        %v1406 = vpop.f32.mrb[0].mxu0
        %1407 = vmatprep.mubr.bf16.mxu0 0
        %1408 = vmatmul.mubr.bf16.gmra.mrb[0].mxu0 %v645
        %v1409 = vpop.f32.mrb[0].mxu0
        %v1410 = vadd.f32 0.0, %v1409
        %v1411 = vpop.f32.mrb[0].mxu0
        %v1412 = vpop.f32.mrb[0].mxu0
        %v1413 = vadd.f32 0.0, %v1412
        %v1414 = vpop.f32.mrb[0].mxu0
        %1415 = vmatprep.mubr.bf16.mxu0 0
        %1416 = vmatmul.mubr.bf16.gmra.mrb[0].mxu0 %v648
        %v1417 = vpop.f32.mrb[0].mxu0
        %v1418 = vadd.f32 0.0, %v1417
        %v1419 = vpop.f32.mrb[0].mxu0
        %v1420 = vpop.f32.mrb[0].mxu0
        %v1421 = vadd.f32 0.0, %v1420
        %v1422 = vpop.f32.mrb[0].mxu0
        %1423 = vmatprep.mubr.bf16.mxu0 0
        %1424 = vmatmul.mubr.bf16.gmra.mrb[0].mxu0 %v651
        %v1425 = vpop.f32.mrb[0].mxu0
        %v1426 = vadd.f32 0.0, %v1425
        %v1427 = vpop.f32.mrb[0].mxu0
        %v1428 = vpop.f32.mrb[0].mxu0
        %v1429 = vadd.f32 0.0, %v1428
        %v1430 = vpop.f32.mrb[0].mxu0
        %1431 = vmatprep.mubr.bf16.mxu0 0
        %1432 = vmatmul.mubr.bf16.gmra.mrb[0].mxu0 %v654
        %v1433 = vpop.f32.mrb[0].mxu0
        %v1434 = vadd.f32 0.0, %v1433
        %v1435 = vpop.f32.mrb[0].mxu0
        %v1436 = vpop.f32.mrb[0].mxu0
        %v1437 = vadd.f32 0.0, %v1436
        %v1438 = vpop.f32.mrb[0].mxu0
        %1439 = vmatprep.mubr.bf16.mxu0 0
        %1440 = vmatmul.mubr.bf16.gmra.mrb[0].mxu0 %v657
        %v1441 = vpop.f32.mrb[0].mxu0
        %v1442 = vadd.f32 0.0, %v1441
        %v1443 = vpop.f32.mrb[0].mxu0
        %v1444 = vpop.f32.mrb[0].mxu0
        %v1445 = vadd.f32 0.0, %v1444
        %v1446 = vpop.f32.mrb[0].mxu0
        %1447 = vmatprep.mubr.bf16.mxu0 0
        %1448 = vmatmul.mubr.bf16.gmra.mrb[0].mxu0 %v1357
        %v1449 = vpop.f32.mrb[0].mxu0
        %v1450 = vadd.f32 0.0, %v1449
        %v1451 = vpop.f32.mrb[0].mxu0
        %v1452 = vpop.f32.mrb[0].mxu0
        %v1453 = vadd.f32 0.0, %v1452
        %v1454 = vpop.f32.mrb[0].mxu0
        %1455 = vdwg.mxu0
        %v1456 = vadd.f32 %v1296, %v1394
        %v1457 = vadd.f32 %v1297, %v1397
        %v1458 = vadd.f32 %v1298, %v1402
        %v1459 = vadd.f32 %v1299, %v1405
        %v1460 = vadd.f32 %v1300, %v1410
        %v1461 = vadd.f32 %v1301, %v1413
        %v1462 = vadd.f32 %v1302, %v1418
        %v1463 = vadd.f32 %v1303, %v1421
        %v1464 = vadd.f32 %v1304, %v1426
        %v1465 = vadd.f32 %v1305, %v1429
        %v1466 = vadd.f32 %v1306, %v1434
        %v1467 = vadd.f32 %v1307, %v1437
        %v1468 = vadd.f32 %v1308, %v1442
        %v1469 = vadd.f32 %v1309, %v1445
        %v1470 = vadd.f32 %v1310, %v1450
        %v1471 = vadd.f32 %v1311, %v1453
        %v1473 = vrot.slane %v388, 5
        %v1474 = vrot.slane %v1473, 4
        %v1475 = vrot.slane %v389, 5
        %v1476 = vsel %vm939, %v1474, %v1475
        %v1477 = vrot.slane %v1475, 4
        %v1478 = vrot.slane %v390, 5
        %v1479 = vsel %vm939, %v1477, %v1478
        %s1480 = scalar_lea.vmem %s1, 80
        %v1481 = vld [vmem:[%s1480] sm:$0xf]
        %v1482 = vld [vmem:[%s1480 + $0x4] sm:$0xf]
        %v1483 = vld [vmem:[%s1480 + $0x8] sm:$0xf]
        %v1484 = vld [vmem:[%s1480 + $0xc] sm:$0xf]
        %v1485 = vunpack.c.l.b16 %v1476
        %v1486 = vunpack.c.l.b16 %v1479
        %v1487 = vpack.c.b16 %v1486, %v1485
        %v1492 = vunpack.c.l.b16 %v1481
        %v1493 = vunpack.c.l.b16 %v1482
        %v1494 = vunpack.c.l.b16 %v1483
        %v1495 = vunpack.c.l.b16 %v1484
        %v1496 = vpack.c.b16 %v1493, %v1492
        %v1497 = vpack.c.b16 %v1495, %v1494
        %v1501 = vsel %vm634, %v1487, 0
        %1503 = vmatprep.subr.bf16.mxu0 0
        %1504 = vmatpush1.bf16.msra.mxu0 %v1496
        %1505 = vmatprep.subr.bf16.mxu0 0
        %1506 = vmatpush1.bf16.msra.mxu0 %v1497
        %1507 = vmatprep.subr.bf16.mxu0 0
        %1508 = vmatpush1.bf16.msra.mxu0 0
        %1509 = vmatprep.subr.bf16.mxu0 0
        %1510 = vmatpush1.bf16.msra.mxu0 0
        %1511 = vmatprep.subr.bf16.mxu0 0
        %1512 = vmatpush1.bf16.msra.mxu0 0
        %1513 = vmatprep.subr.bf16.mxu0 0
        %1514 = vmatpush1.bf16.msra.mxu0 0
        %1515 = vmatprep.subr.bf16.mxu0 0
        %1516 = vmatpush1.bf16.msra.mxu0 0
        %1517 = vmatprep.subr.bf16.mxu0 0
        %1518 = vmatpush1.bf16.msra.mxu0 0
        %1519 = vmatprep.subr.bf16.mxu0 0
        %1520 = vmatpush1.bf16.msra.mxu0 0
        %1521 = vmatprep.subr.bf16.mxu0 0
        %1522 = vmatpush1.bf16.msra.mxu0 0
        %1523 = vmatprep.subr.bf16.mxu0 0
        %1524 = vmatpush1.bf16.msra.mxu0 0
        %1525 = vmatprep.subr.bf16.mxu0 0
        %1526 = vmatpush1.bf16.msra.mxu0 0
        %1527 = vmatprep.subr.bf16.mxu0 0
        %1528 = vmatpush1.bf16.msra.mxu0 0
        %1529 = vmatprep.subr.bf16.mxu0 0
        %1530 = vmatpush1.bf16.msra.mxu0 0
        %1531 = vmatprep.subr.bf16.mxu0 0
        %1532 = vmatpush1.bf16.msra.mxu0 0
        %1533 = vmatprep.subr.bf16.mxu0 0
        %1534 = vmatpush1.bf16.msra.mxu0 0
        %1535 = vmatprep.mubr.bf16.mxu0 0
        %1536 = vmatmul.mubr.bf16.gmra.mrb[0].mxu0 %v1041
        %v1537 = vpop.f32.mrb[0].mxu0
        %v1538 = vadd.f32 0.0, %v1537
        %v1539 = vpop.f32.mrb[0].mxu0
        %v1540 = vpop.f32.mrb[0].mxu0
        %v1541 = vadd.f32 0.0, %v1540
        %v1542 = vpop.f32.mrb[0].mxu0
        %1543 = vmatprep.mubr.bf16.mxu0 0
        %1544 = vmatmul.mubr.bf16.gmra.mrb[0].mxu0 %v1044
        %v1545 = vpop.f32.mrb[0].mxu0
        %v1546 = vadd.f32 0.0, %v1545
        %v1547 = vpop.f32.mrb[0].mxu0
        %v1548 = vpop.f32.mrb[0].mxu0
        %v1549 = vadd.f32 0.0, %v1548
        %v1550 = vpop.f32.mrb[0].mxu0
        %1551 = vmatprep.mubr.bf16.mxu0 0
        %1552 = vmatmul.mubr.bf16.gmra.mrb[0].mxu0 %v1047
        %v1553 = vpop.f32.mrb[0].mxu0
        %v1554 = vadd.f32 0.0, %v1553
        %v1555 = vpop.f32.mrb[0].mxu0
        %v1556 = vpop.f32.mrb[0].mxu0
        %v1557 = vadd.f32 0.0, %v1556
        %v1558 = vpop.f32.mrb[0].mxu0
        %1559 = vmatprep.mubr.bf16.mxu0 0
        %1560 = vmatmul.mubr.bf16.gmra.mrb[0].mxu0 %v1050
        %v1561 = vpop.f32.mrb[0].mxu0
        %v1562 = vadd.f32 0.0, %v1561
        %v1563 = vpop.f32.mrb[0].mxu0
        %v1564 = vpop.f32.mrb[0].mxu0
        %v1565 = vadd.f32 0.0, %v1564
        %v1566 = vpop.f32.mrb[0].mxu0
        %1567 = vmatprep.mubr.bf16.mxu0 0
        %1568 = vmatmul.mubr.bf16.gmra.mrb[0].mxu0 %v1053
        %v1569 = vpop.f32.mrb[0].mxu0
        %v1570 = vadd.f32 0.0, %v1569
        %v1571 = vpop.f32.mrb[0].mxu0
        %v1572 = vpop.f32.mrb[0].mxu0
        %v1573 = vadd.f32 0.0, %v1572
        %v1574 = vpop.f32.mrb[0].mxu0
        %1575 = vmatprep.mubr.bf16.mxu0 0
        %1576 = vmatmul.mubr.bf16.gmra.mrb[0].mxu0 %v1056
        %v1577 = vpop.f32.mrb[0].mxu0
        %v1578 = vadd.f32 0.0, %v1577
        %v1579 = vpop.f32.mrb[0].mxu0
        %v1580 = vpop.f32.mrb[0].mxu0
        %v1581 = vadd.f32 0.0, %v1580
        %v1582 = vpop.f32.mrb[0].mxu0
        %1583 = vmatprep.mubr.bf16.mxu0 0
        %1584 = vmatmul.mubr.bf16.gmra.mrb[0].mxu0 %v1059
        %v1585 = vpop.f32.mrb[0].mxu0
        %v1586 = vadd.f32 0.0, %v1585
        %v1587 = vpop.f32.mrb[0].mxu0
        %v1588 = vpop.f32.mrb[0].mxu0
        %v1589 = vadd.f32 0.0, %v1588
        %v1590 = vpop.f32.mrb[0].mxu0
        %1591 = vmatprep.mubr.bf16.mxu0 0
        %1592 = vmatmul.mubr.bf16.gmra.mrb[0].mxu0 %v1501
        %v1593 = vpop.f32.mrb[0].mxu0
        %v1594 = vadd.f32 0.0, %v1593
        %v1595 = vpop.f32.mrb[0].mxu0
        %v1596 = vpop.f32.mrb[0].mxu0
        %v1597 = vadd.f32 0.0, %v1596
        %v1598 = vpop.f32.mrb[0].mxu0
        %1599 = vdwg.mxu0
        %v1600 = vadd.f32 %v1456, %v1538
        %v1601 = vadd.f32 %v1457, %v1541
        %v1602 = vadd.f32 %v1458, %v1546
        %v1603 = vadd.f32 %v1459, %v1549
        %v1604 = vadd.f32 %v1460, %v1554
        %v1605 = vadd.f32 %v1461, %v1557
        %v1606 = vadd.f32 %v1462, %v1562
        %v1607 = vadd.f32 %v1463, %v1565
        %v1608 = vadd.f32 %v1464, %v1570
        %v1609 = vadd.f32 %v1465, %v1573
        %v1610 = vadd.f32 %v1466, %v1578
        %v1611 = vadd.f32 %v1467, %v1581
        %v1612 = vadd.f32 %v1468, %v1586
        %v1613 = vadd.f32 %v1469, %v1589
        %v1614 = vadd.f32 %v1470, %v1594
        %v1615 = vadd.f32 %v1471, %v1597
        %s1616 = scalar_lea.vmem %s1, 96
        %v1617 = vld [vmem:[%s1616] sm:$0xf]
        %v1618 = vld [vmem:[%s1616 + $0x4] sm:$0xf]
        %v1619 = vld [vmem:[%s1616 + $0x8] sm:$0xf]
        %v1620 = vld [vmem:[%s1616 + $0xc] sm:$0xf]
        %v1623 = vunpack.c.l.b16 %v391
        %v1624 = vunpack.c.l.b16 %v392
        %v1625 = vpack.c.b16 %v1624, %v1623
        %v1630 = vunpack.c.l.b16 %v1617
        %v1631 = vunpack.c.l.b16 %v1618
        %v1632 = vunpack.c.l.b16 %v1619
        %v1633 = vunpack.c.l.b16 %v1620
        %v1634 = vpack.c.b16 %v1631, %v1630
        %v1635 = vpack.c.b16 %v1633, %v1632
        %v1639 = vsel %vm634, %v1625, 0
        %1641 = vmatprep.subr.bf16.mxu0 0
        %1642 = vmatpush1.bf16.msra.mxu0 %v1634
        %1643 = vmatprep.subr.bf16.mxu0 0
        %1644 = vmatpush1.bf16.msra.mxu0 %v1635
        %1645 = vmatprep.subr.bf16.mxu0 0
        %1646 = vmatpush1.bf16.msra.mxu0 0
        %1647 = vmatprep.subr.bf16.mxu0 0
        %1648 = vmatpush1.bf16.msra.mxu0 0
        %1649 = vmatprep.subr.bf16.mxu0 0
        %1650 = vmatpush1.bf16.msra.mxu0 0
        %1651 = vmatprep.subr.bf16.mxu0 0
        %1652 = vmatpush1.bf16.msra.mxu0 0
        %1653 = vmatprep.subr.bf16.mxu0 0
        %1654 = vmatpush1.bf16.msra.mxu0 0
        %1655 = vmatprep.subr.bf16.mxu0 0
        %1656 = vmatpush1.bf16.msra.mxu0 0
        %1657 = vmatprep.subr.bf16.mxu0 0
        %1658 = vmatpush1.bf16.msra.mxu0 0
        %1659 = vmatprep.subr.bf16.mxu0 0
        %1660 = vmatpush1.bf16.msra.mxu0 0
        %1661 = vmatprep.subr.bf16.mxu0 0
        %1662 = vmatpush1.bf16.msra.mxu0 0
        %1663 = vmatprep.subr.bf16.mxu0 0
        %1664 = vmatpush1.bf16.msra.mxu0 0
        %1665 = vmatprep.subr.bf16.mxu0 0
        %1666 = vmatpush1.bf16.msra.mxu0 0
        %1667 = vmatprep.subr.bf16.mxu0 0
        %1668 = vmatpush1.bf16.msra.mxu0 0
        %1669 = vmatprep.subr.bf16.mxu0 0
        %1670 = vmatpush1.bf16.msra.mxu0 0
        %1671 = vmatprep.subr.bf16.mxu0 0
        %1672 = vmatpush1.bf16.msra.mxu0 0
        %1673 = vmatprep.mubr.bf16.mxu0 0
        %1674 = vmatmul.mubr.bf16.gmra.mrb[0].mxu0 %v815
        %v1675 = vpop.f32.mrb[0].mxu0
        %v1676 = vadd.f32 0.0, %v1675
        %v1677 = vpop.f32.mrb[0].mxu0
        %v1678 = vpop.f32.mrb[0].mxu0
        %v1679 = vadd.f32 0.0, %v1678
        %v1680 = vpop.f32.mrb[0].mxu0
        %1681 = vmatprep.mubr.bf16.mxu0 0
        %1682 = vmatmul.mubr.bf16.gmra.mrb[0].mxu0 %v818
        %v1683 = vpop.f32.mrb[0].mxu0
        %v1684 = vadd.f32 0.0, %v1683
        %v1685 = vpop.f32.mrb[0].mxu0
        %v1686 = vpop.f32.mrb[0].mxu0
        %v1687 = vadd.f32 0.0, %v1686
        %v1688 = vpop.f32.mrb[0].mxu0
        %1689 = vmatprep.mubr.bf16.mxu0 0
        %1690 = vmatmul.mubr.bf16.gmra.mrb[0].mxu0 %v821
        %v1691 = vpop.f32.mrb[0].mxu0
        %v1692 = vadd.f32 0.0, %v1691
        %v1693 = vpop.f32.mrb[0].mxu0
        %v1694 = vpop.f32.mrb[0].mxu0
        %v1695 = vadd.f32 0.0, %v1694
        %v1696 = vpop.f32.mrb[0].mxu0
        %1697 = vmatprep.mubr.bf16.mxu0 0
        %1698 = vmatmul.mubr.bf16.gmra.mrb[0].mxu0 %v824
        %v1699 = vpop.f32.mrb[0].mxu0
        %v1700 = vadd.f32 0.0, %v1699
        %v1701 = vpop.f32.mrb[0].mxu0
        %v1702 = vpop.f32.mrb[0].mxu0
        %v1703 = vadd.f32 0.0, %v1702
        %v1704 = vpop.f32.mrb[0].mxu0
        %1705 = vmatprep.mubr.bf16.mxu0 0
        %1706 = vmatmul.mubr.bf16.gmra.mrb[0].mxu0 %v827
        %v1707 = vpop.f32.mrb[0].mxu0
        %v1708 = vadd.f32 0.0, %v1707
        %v1709 = vpop.f32.mrb[0].mxu0
        %v1710 = vpop.f32.mrb[0].mxu0
        %v1711 = vadd.f32 0.0, %v1710
        %v1712 = vpop.f32.mrb[0].mxu0
        %1713 = vmatprep.mubr.bf16.mxu0 0
        %1714 = vmatmul.mubr.bf16.gmra.mrb[0].mxu0 %v830
        %v1715 = vpop.f32.mrb[0].mxu0
        %v1716 = vadd.f32 0.0, %v1715
        %v1717 = vpop.f32.mrb[0].mxu0
        %v1718 = vpop.f32.mrb[0].mxu0
        %v1719 = vadd.f32 0.0, %v1718
        %v1720 = vpop.f32.mrb[0].mxu0
        %1721 = vmatprep.mubr.bf16.mxu0 0
        %1722 = vmatmul.mubr.bf16.gmra.mrb[0].mxu0 %v1197
        %v1723 = vpop.f32.mrb[0].mxu0
        %v1724 = vadd.f32 0.0, %v1723
        %v1725 = vpop.f32.mrb[0].mxu0
        %v1726 = vpop.f32.mrb[0].mxu0
        %v1727 = vadd.f32 0.0, %v1726
        %v1728 = vpop.f32.mrb[0].mxu0
        %1729 = vmatprep.mubr.bf16.mxu0 0
        %1730 = vmatmul.mubr.bf16.gmra.mrb[0].mxu0 %v1639
        %v1731 = vpop.f32.mrb[0].mxu0
        %v1732 = vadd.f32 0.0, %v1731
        %v1733 = vpop.f32.mrb[0].mxu0
        %v1734 = vpop.f32.mrb[0].mxu0
        %v1735 = vadd.f32 0.0, %v1734
        %v1736 = vpop.f32.mrb[0].mxu0
        %1737 = vdwg.mxu0
        %v1738 = vadd.f32 %v1600, %v1676
        %v1739 = vadd.f32 %v1601, %v1679
        %v1740 = vadd.f32 %v1602, %v1684
        %v1741 = vadd.f32 %v1603, %v1687
        %v1742 = vadd.f32 %v1604, %v1692
        %v1743 = vadd.f32 %v1605, %v1695
        %v1744 = vadd.f32 %v1606, %v1700
        %v1745 = vadd.f32 %v1607, %v1703
        %v1746 = vadd.f32 %v1608, %v1708
        %v1747 = vadd.f32 %v1609, %v1711
        %v1748 = vadd.f32 %v1610, %v1716
        %v1749 = vadd.f32 %v1611, %v1719
        %v1750 = vadd.f32 %v1612, %v1724
        %v1751 = vadd.f32 %v1613, %v1727
        %v1752 = vadd.f32 %v1614, %v1732
        %v1753 = vadd.f32 %v1615, %v1735
        %v1755 = vshrl.u32 %v391, 16
        %v1757 = vrot.slane %v1755, 4
        %v1758 = vshll.u32 %v391, 16
        %v1760 = vrot.slane %v1758, 5
        %v1761 = vor.u32 %v1757, %v1760
        %v1762 = vrot.slane %v1761, 4
        %v1764 = vshll.u32 %v392, 16
        %v1766 = vrot.slane %v1764, 5
        %v1767 = vsel %vm400, %v1762, %v1766
        %v1768 = vshrl.u32 %v392, 16
        %v1770 = vrot.slane %v1768, 4
        %v1771 = vor.u32 %v1770, %v1766
        %v1772 = vrot.slane %v1771, 4
        %v1774 = vshll.u32 %v393, 16
        %v1776 = vrot.slane %v1774, 5
        %v1777 = vsel %vm400, %v1772, %v1776
        %s1778 = scalar_lea.vmem %s1, 112
        %v1779 = vld [vmem:[%s1778] sm:$0xf]
        %v1780 = vld [vmem:[%s1778 + $0x4] sm:$0xf]
        %v1781 = vld [vmem:[%s1778 + $0x8] sm:$0xf]
        %v1782 = vld [vmem:[%s1778 + $0xc] sm:$0xf]
        %v1783 = vunpack.c.l.b16 %v1767
        %v1784 = vunpack.c.l.b16 %v1777
        %v1785 = vpack.c.b16 %v1784, %v1783
        %v1790 = vunpack.c.l.b16 %v1779
        %v1791 = vunpack.c.l.b16 %v1780
        %v1792 = vunpack.c.l.b16 %v1781
        %v1793 = vunpack.c.l.b16 %v1782
        %v1794 = vpack.c.b16 %v1791, %v1790
        %v1795 = vpack.c.b16 %v1793, %v1792
        %v1799 = vsel %vm634, %v1785, 0
        %1801 = vmatprep.subr.bf16.mxu0 0
        %1802 = vmatpush1.bf16.msra.mxu0 %v1794
        %1803 = vmatprep.subr.bf16.mxu0 0
        %1804 = vmatpush1.bf16.msra.mxu0 %v1795
        %1805 = vmatprep.subr.bf16.mxu0 0
        %1806 = vmatpush1.bf16.msra.mxu0 0
        %1807 = vmatprep.subr.bf16.mxu0 0
        %1808 = vmatpush1.bf16.msra.mxu0 0
        %1809 = vmatprep.subr.bf16.mxu0 0
        %1810 = vmatpush1.bf16.msra.mxu0 0
        %1811 = vmatprep.subr.bf16.mxu0 0
        %1812 = vmatpush1.bf16.msra.mxu0 0
        %1813 = vmatprep.subr.bf16.mxu0 0
        %1814 = vmatpush1.bf16.msra.mxu0 0
        %1815 = vmatprep.subr.bf16.mxu0 0
        %1816 = vmatpush1.bf16.msra.mxu0 0
        %1817 = vmatprep.subr.bf16.mxu0 0
        %1818 = vmatpush1.bf16.msra.mxu0 0
        %1819 = vmatprep.subr.bf16.mxu0 0
        %1820 = vmatpush1.bf16.msra.mxu0 0
        %1821 = vmatprep.subr.bf16.mxu0 0
        %1822 = vmatpush1.bf16.msra.mxu0 0
        %1823 = vmatprep.subr.bf16.mxu0 0
        %1824 = vmatpush1.bf16.msra.mxu0 0
        %1825 = vmatprep.subr.bf16.mxu0 0
        %1826 = vmatpush1.bf16.msra.mxu0 0
        %1827 = vmatprep.subr.bf16.mxu0 0
        %1828 = vmatpush1.bf16.msra.mxu0 0
        %1829 = vmatprep.subr.bf16.mxu0 0
        %1830 = vmatpush1.bf16.msra.mxu0 0
        %1831 = vmatprep.subr.bf16.mxu0 0
        %1832 = vmatpush1.bf16.msra.mxu0 0
        %1833 = vmatprep.mubr.bf16.mxu0 0
        %1834 = vmatmul.mubr.bf16.gmra.mrb[0].mxu0 %v642
        %v1835 = vpop.f32.mrb[0].mxu0
        %v1836 = vadd.f32 0.0, %v1835
        %v1837 = vpop.f32.mrb[0].mxu0
        %v1838 = vpop.f32.mrb[0].mxu0
        %v1839 = vadd.f32 0.0, %v1838
        %v1840 = vpop.f32.mrb[0].mxu0
        %1841 = vmatprep.mubr.bf16.mxu0 0
        %1842 = vmatmul.mubr.bf16.gmra.mrb[0].mxu0 %v645
        %v1843 = vpop.f32.mrb[0].mxu0
        %v1844 = vadd.f32 0.0, %v1843
        %v1845 = vpop.f32.mrb[0].mxu0
        %v1846 = vpop.f32.mrb[0].mxu0
        %v1847 = vadd.f32 0.0, %v1846
        %v1848 = vpop.f32.mrb[0].mxu0
        %1849 = vmatprep.mubr.bf16.mxu0 0
        %1850 = vmatmul.mubr.bf16.gmra.mrb[0].mxu0 %v648
        %v1851 = vpop.f32.mrb[0].mxu0
        %v1852 = vadd.f32 0.0, %v1851
        %v1853 = vpop.f32.mrb[0].mxu0
        %v1854 = vpop.f32.mrb[0].mxu0
        %v1855 = vadd.f32 0.0, %v1854
        %v1856 = vpop.f32.mrb[0].mxu0
        %1857 = vmatprep.mubr.bf16.mxu0 0
        %1858 = vmatmul.mubr.bf16.gmra.mrb[0].mxu0 %v651
        %v1859 = vpop.f32.mrb[0].mxu0
        %v1860 = vadd.f32 0.0, %v1859
        %v1861 = vpop.f32.mrb[0].mxu0
        %v1862 = vpop.f32.mrb[0].mxu0
        %v1863 = vadd.f32 0.0, %v1862
        %v1864 = vpop.f32.mrb[0].mxu0
        %1865 = vmatprep.mubr.bf16.mxu0 0
        %1866 = vmatmul.mubr.bf16.gmra.mrb[0].mxu0 %v654
        %v1867 = vpop.f32.mrb[0].mxu0
        %v1868 = vadd.f32 0.0, %v1867
        %v1869 = vpop.f32.mrb[0].mxu0
        %v1870 = vpop.f32.mrb[0].mxu0
        %v1871 = vadd.f32 0.0, %v1870
        %v1872 = vpop.f32.mrb[0].mxu0
        %1873 = vmatprep.mubr.bf16.mxu0 0
        %1874 = vmatmul.mubr.bf16.gmra.mrb[0].mxu0 %v657
        %v1875 = vpop.f32.mrb[0].mxu0
        %v1876 = vadd.f32 0.0, %v1875
        %v1877 = vpop.f32.mrb[0].mxu0
        %v1878 = vpop.f32.mrb[0].mxu0
        %v1879 = vadd.f32 0.0, %v1878
        %v1880 = vpop.f32.mrb[0].mxu0
        %1881 = vmatprep.mubr.bf16.mxu0 0
        %1882 = vmatmul.mubr.bf16.gmra.mrb[0].mxu0 %v1357
        %v1883 = vpop.f32.mrb[0].mxu0
        %v1884 = vadd.f32 0.0, %v1883
        %v1885 = vpop.f32.mrb[0].mxu0
        %v1886 = vpop.f32.mrb[0].mxu0
        %v1887 = vadd.f32 0.0, %v1886
        %v1888 = vpop.f32.mrb[0].mxu0
        %1889 = vmatprep.mubr.bf16.mxu0 0
        %1890 = vmatmul.mubr.bf16.gmra.mrb[0].mxu0 %v1799
        %v1891 = vpop.f32.mrb[0].mxu0
        %v1892 = vadd.f32 0.0, %v1891
        %v1893 = vpop.f32.mrb[0].mxu0
        %v1894 = vpop.f32.mrb[0].mxu0
        %v1895 = vadd.f32 0.0, %v1894
        %v1896 = vpop.f32.mrb[0].mxu0
        %1897 = vdwg.mxu0
        %v1898 = vadd.f32 %v1738, %v1836
        %v1899 = vadd.f32 %v1739, %v1839
        %v1900 = vadd.f32 %v1740, %v1844
        %v1901 = vadd.f32 %v1741, %v1847
        %v1902 = vadd.f32 %v1742, %v1852
        %v1903 = vadd.f32 %v1743, %v1855
        %v1904 = vadd.f32 %v1744, %v1860
        %v1905 = vadd.f32 %v1745, %v1863
        %v1906 = vadd.f32 %v1746, %v1868
        %v1907 = vadd.f32 %v1747, %v1871
        %v1908 = vadd.f32 %v1748, %v1876
        %v1909 = vadd.f32 %v1749, %v1879
        %v1910 = vadd.f32 %v1750, %v1884
        %v1911 = vadd.f32 %v1751, %v1887
        %v1912 = vadd.f32 %v1752, %v1892
        %v1913 = vadd.f32 %v1753, %v1895
        %v1915 = vrot.slane %v391, 5
        %v1916 = vrot.slane %v1915, 4
        %v1917 = vrot.slane %v392, 5
        %v1918 = vsel %vm939, %v1916, %v1917
        %v1919 = vrot.slane %v1917, 4
        %v1920 = vrot.slane %v393, 5
        %v1921 = vsel %vm939, %v1919, %v1920
        %s1922 = scalar_lea.vmem %s1, 128
        %v1923 = vld [vmem:[%s1922] sm:$0xf]
        %v1924 = vld [vmem:[%s1922 + $0x4] sm:$0xf]
        %v1925 = vld [vmem:[%s1922 + $0x8] sm:$0xf]
        %v1926 = vld [vmem:[%s1922 + $0xc] sm:$0xf]
        %v1927 = vunpack.c.l.b16 %v1918
        %v1928 = vunpack.c.l.b16 %v1921
        %v1929 = vpack.c.b16 %v1928, %v1927
        %v1934 = vunpack.c.l.b16 %v1923
        %v1935 = vunpack.c.l.b16 %v1924
        %v1936 = vunpack.c.l.b16 %v1925
        %v1937 = vunpack.c.l.b16 %v1926
        %v1938 = vpack.c.b16 %v1935, %v1934
        %v1939 = vpack.c.b16 %v1937, %v1936
        %v1943 = vsel %vm634, %v1929, 0
        %1945 = vmatprep.subr.bf16.mxu0 0
        %1946 = vmatpush1.bf16.msra.mxu0 %v1938
        %1947 = vmatprep.subr.bf16.mxu0 0
        %1948 = vmatpush1.bf16.msra.mxu0 %v1939
        %1949 = vmatprep.subr.bf16.mxu0 0
        %1950 = vmatpush1.bf16.msra.mxu0 0
        %1951 = vmatprep.subr.bf16.mxu0 0
        %1952 = vmatpush1.bf16.msra.mxu0 0
        %1953 = vmatprep.subr.bf16.mxu0 0
        %1954 = vmatpush1.bf16.msra.mxu0 0
        %1955 = vmatprep.subr.bf16.mxu0 0
        %1956 = vmatpush1.bf16.msra.mxu0 0
        %1957 = vmatprep.subr.bf16.mxu0 0
        %1958 = vmatpush1.bf16.msra.mxu0 0
        %1959 = vmatprep.subr.bf16.mxu0 0
        %1960 = vmatpush1.bf16.msra.mxu0 0
        %1961 = vmatprep.subr.bf16.mxu0 0
        %1962 = vmatpush1.bf16.msra.mxu0 0
        %1963 = vmatprep.subr.bf16.mxu0 0
        %1964 = vmatpush1.bf16.msra.mxu0 0
        %1965 = vmatprep.subr.bf16.mxu0 0
        %1966 = vmatpush1.bf16.msra.mxu0 0
        %1967 = vmatprep.subr.bf16.mxu0 0
        %1968 = vmatpush1.bf16.msra.mxu0 0
        %1969 = vmatprep.subr.bf16.mxu0 0
        %1970 = vmatpush1.bf16.msra.mxu0 0
        %1971 = vmatprep.subr.bf16.mxu0 0
        %1972 = vmatpush1.bf16.msra.mxu0 0
        %1973 = vmatprep.subr.bf16.mxu0 0
        %1974 = vmatpush1.bf16.msra.mxu0 0
        %1975 = vmatprep.subr.bf16.mxu0 0
        %1976 = vmatpush1.bf16.msra.mxu0 0
        %1977 = vmatprep.mubr.bf16.mxu0 0
        %1978 = vmatmul.mubr.bf16.gmra.mrb[0].mxu0 %v1044
        %v1979 = vpop.f32.mrb[0].mxu0
        %v1980 = vadd.f32 0.0, %v1979
        %v1981 = vpop.f32.mrb[0].mxu0
        %v1982 = vpop.f32.mrb[0].mxu0
        %v1983 = vadd.f32 0.0, %v1982
        %v1984 = vpop.f32.mrb[0].mxu0
        %1985 = vmatprep.mubr.bf16.mxu0 0
        %1986 = vmatmul.mubr.bf16.gmra.mrb[0].mxu0 %v1047
        %v1987 = vpop.f32.mrb[0].mxu0
        %v1988 = vadd.f32 0.0, %v1987
        %v1989 = vpop.f32.mrb[0].mxu0
        %v1990 = vpop.f32.mrb[0].mxu0
        %v1991 = vadd.f32 0.0, %v1990
        %v1992 = vpop.f32.mrb[0].mxu0
        %1993 = vmatprep.mubr.bf16.mxu0 0
        %1994 = vmatmul.mubr.bf16.gmra.mrb[0].mxu0 %v1050
        %v1995 = vpop.f32.mrb[0].mxu0
        %v1996 = vadd.f32 0.0, %v1995
        %v1997 = vpop.f32.mrb[0].mxu0
        %v1998 = vpop.f32.mrb[0].mxu0
        %v1999 = vadd.f32 0.0, %v1998
        %v2000 = vpop.f32.mrb[0].mxu0
        %2001 = vmatprep.mubr.bf16.mxu0 0
        %2002 = vmatmul.mubr.bf16.gmra.mrb[0].mxu0 %v1053
        %v2003 = vpop.f32.mrb[0].mxu0
        %v2004 = vadd.f32 0.0, %v2003
        %v2005 = vpop.f32.mrb[0].mxu0
        %v2006 = vpop.f32.mrb[0].mxu0
        %v2007 = vadd.f32 0.0, %v2006
        %v2008 = vpop.f32.mrb[0].mxu0
        %2009 = vmatprep.mubr.bf16.mxu0 0
        %2010 = vmatmul.mubr.bf16.gmra.mrb[0].mxu0 %v1056
        %v2011 = vpop.f32.mrb[0].mxu0
        %v2012 = vadd.f32 0.0, %v2011
        %v2013 = vpop.f32.mrb[0].mxu0
        %v2014 = vpop.f32.mrb[0].mxu0
        %v2015 = vadd.f32 0.0, %v2014
        %v2016 = vpop.f32.mrb[0].mxu0
        %2017 = vmatprep.mubr.bf16.mxu0 0
        %2018 = vmatmul.mubr.bf16.gmra.mrb[0].mxu0 %v1059
        %v2019 = vpop.f32.mrb[0].mxu0
        %v2020 = vadd.f32 0.0, %v2019
        %v2021 = vpop.f32.mrb[0].mxu0
        %v2022 = vpop.f32.mrb[0].mxu0
        %v2023 = vadd.f32 0.0, %v2022
        %v2024 = vpop.f32.mrb[0].mxu0
        %2025 = vmatprep.mubr.bf16.mxu0 0
        %2026 = vmatmul.mubr.bf16.gmra.mrb[0].mxu0 %v1501
        %v2027 = vpop.f32.mrb[0].mxu0
        %v2028 = vadd.f32 0.0, %v2027
        %v2029 = vpop.f32.mrb[0].mxu0
        %v2030 = vpop.f32.mrb[0].mxu0
        %v2031 = vadd.f32 0.0, %v2030
        %v2032 = vpop.f32.mrb[0].mxu0
        %2033 = vmatprep.mubr.bf16.mxu0 0
        %2034 = vmatmul.mubr.bf16.gmra.mrb[0].mxu0 %v1943
        %v2035 = vpop.f32.mrb[0].mxu0
        %v2036 = vadd.f32 0.0, %v2035
        %v2037 = vpop.f32.mrb[0].mxu0
        %v2038 = vpop.f32.mrb[0].mxu0
        %v2039 = vadd.f32 0.0, %v2038
        %v2040 = vpop.f32.mrb[0].mxu0
        %2041 = vdwg.mxu0
        %v2042 = vadd.f32 %v1898, %v1980
        %v2043 = vadd.f32 %v1899, %v1983
        %v2044 = vadd.f32 %v1900, %v1988
        %v2045 = vadd.f32 %v1901, %v1991
        %v2046 = vadd.f32 %v1902, %v1996
        %v2047 = vadd.f32 %v1903, %v1999
        %v2048 = vadd.f32 %v1904, %v2004
        %v2049 = vadd.f32 %v1905, %v2007
        %v2050 = vadd.f32 %v1906, %v2012
        %v2051 = vadd.f32 %v1907, %v2015
        %v2052 = vadd.f32 %v1908, %v2020
        %v2053 = vadd.f32 %v1909, %v2023
        %v2054 = vadd.f32 %v1910, %v2028
        %v2055 = vadd.f32 %v1911, %v2031
        %v2056 = vadd.f32 %v1912, %v2036
        %v2057 = vadd.f32 %v1913, %v2039
        %v2058 = vld [vmem:[%s2] sm:$0x1]
        %v2060 = vlaneseq
        %v2061 = vshrl.u32 %v2060, 7
        %v2062 = vsub.s32 0, %v2061
        %v2063 = vrot.slane %v2058, %v2062
        %v2065 = vadd.f32 %v2042, %v2063
        %v2066 = vadd.f32 %v2043, %v2063
        %v2067 = vadd.f32 %v2044, %v2063
        %v2068 = vadd.f32 %v2045, %v2063
        %v2069 = vadd.f32 %v2046, %v2063
        %v2070 = vadd.f32 %v2047, %v2063
        %v2071 = vadd.f32 %v2048, %v2063
        %v2072 = vadd.f32 %v2049, %v2063
        %v2073 = vadd.f32 %v2050, %v2063
        %v2074 = vadd.f32 %v2051, %v2063
        %v2075 = vadd.f32 %v2052, %v2063
        %v2076 = vadd.f32 %v2053, %v2063
        %v2077 = vadd.f32 %v2054, %v2063
        %v2078 = vadd.f32 %v2055, %v2063
        %v2079 = vadd.f32 %v2056, %v2063
        %v2080 = vadd.f32 %v2057, %v2063
        %v2081 = vmax.f32 %v2065, 0.0
        %v2082 = vmax.f32 %v2066, 0.0
        %v2083 = vmax.f32 %v2067, 0.0
        %v2084 = vmax.f32 %v2068, 0.0
        %v2085 = vmax.f32 %v2069, 0.0
        %v2086 = vmax.f32 %v2070, 0.0
        %v2087 = vmax.f32 %v2071, 0.0
        %v2088 = vmax.f32 %v2072, 0.0
        %v2089 = vmax.f32 %v2073, 0.0
        %v2090 = vmax.f32 %v2074, 0.0
        %v2091 = vmax.f32 %v2075, 0.0
        %v2092 = vmax.f32 %v2076, 0.0
        %v2093 = vmax.f32 %v2077, 0.0
        %v2094 = vmax.f32 %v2078, 0.0
        %v2095 = vmax.f32 %v2079, 0.0
        %v2096 = vmax.f32 %v2080, 0.0
        %2097 = vst.msk [vmem:[%s318] sm:$0xff] %vm634, %v2081
        %2098 = vst.msk [vmem:[%s318 + $0x8] sm:$0xff] %vm634, %v2082
        %2099 = vst.msk [vmem:[%s318 + $0x10] sm:$0xff] %vm634, %v2083
        %2100 = vst.msk [vmem:[%s318 + $0x18] sm:$0xff] %vm634, %v2084
        %2101 = vst.msk [vmem:[%s318 + $0x20] sm:$0xff] %vm634, %v2085
        %2102 = vst.msk [vmem:[%s318 + $0x28] sm:$0xff] %vm634, %v2086
        %2103 = vst.msk [vmem:[%s318 + $0x30] sm:$0xff] %vm634, %v2087
        %2104 = vst.msk [vmem:[%s318 + $0x38] sm:$0xff] %vm634, %v2088
        %2105 = vst.msk [vmem:[%s318 + $0x40] sm:$0xff] %vm634, %v2089
        %2106 = vst.msk [vmem:[%s318 + $0x48] sm:$0xff] %vm634, %v2090
        %2107 = vst.msk [vmem:[%s318 + $0x50] sm:$0xff] %vm634, %v2091
        %2108 = vst.msk [vmem:[%s318 + $0x58] sm:$0xff] %vm634, %v2092
        %2109 = vst.msk [vmem:[%s318 + $0x60] sm:$0xff] %vm634, %v2093
        %2110 = vst.msk [vmem:[%s318 + $0x68] sm:$0xff] %vm634, %v2094
        %2111 = vst.msk [vmem:[%s318 + $0x70] sm:$0xff] %vm634, %v2095
        %2112 = vst.msk [vmem:[%s318 + $0x78] sm:$0xff] %vm634, %v2096
        %v2113 = vld [vmem:[%s3] sm:$0x1]
        %v2115 = vlaneseq
        %v2116 = vshrl.u32 %v2115, 7
        %v2117 = vsub.s32 0, %v2116
        %v2118 = vrot.slane %v2113, %v2117
        %v2120 = vmul.f32 %v2081, %v2118
        %v2121 = vmul.f32 %v2082, %v2118
        %v2122 = vmul.f32 %v2083, %v2118
        %v2123 = vmul.f32 %v2084, %v2118
        %v2124 = vmul.f32 %v2085, %v2118
        %v2125 = vmul.f32 %v2086, %v2118
        %v2126 = vmul.f32 %v2087, %v2118
        %v2127 = vmul.f32 %v2088, %v2118
        %v2128 = vmul.f32 %v2089, %v2118
        %v2129 = vmul.f32 %v2090, %v2118
        %v2130 = vmul.f32 %v2091, %v2118
        %v2131 = vmul.f32 %v2092, %v2118
        %v2132 = vmul.f32 %v2093, %v2118
        %v2133 = vmul.f32 %v2094, %v2118
        %v2134 = vmul.f32 %v2095, %v2118
        %v2135 = vmul.f32 %v2096, %v2118
        %v2136 = vsel %vm634, %v2120, 0.0
        %2137 = vadd.xlane.f32.xlu0 %v2136
        %v2138 = vpop.xlane.xlu0 %2137
        %v2139 = vsel %vm634, %v2121, 0.0
        %2140 = vadd.xlane.f32.xlu0 %v2139
        %v2141 = vpop.xlane.xlu0 %2140
        %v2142 = vsel %vm634, %v2122, 0.0
        %2143 = vadd.xlane.f32.xlu0 %v2142
        %v2144 = vpop.xlane.xlu0 %2143
        %v2145 = vsel %vm634, %v2123, 0.0
        %2146 = vadd.xlane.f32.xlu0 %v2145
        %v2147 = vpop.xlane.xlu0 %2146
        %v2148 = vsel %vm634, %v2124, 0.0
        %2149 = vadd.xlane.f32.xlu0 %v2148
        %v2150 = vpop.xlane.xlu0 %2149
        %v2151 = vsel %vm634, %v2125, 0.0
        %2152 = vadd.xlane.f32.xlu0 %v2151
        %v2153 = vpop.xlane.xlu0 %2152
        %v2154 = vsel %vm634, %v2126, 0.0
        %2155 = vadd.xlane.f32.xlu0 %v2154
        %v2156 = vpop.xlane.xlu0 %2155
        %v2157 = vsel %vm634, %v2127, 0.0
        %2158 = vadd.xlane.f32.xlu0 %v2157
        %v2159 = vpop.xlane.xlu0 %2158
        %v2160 = vsel %vm634, %v2128, 0.0
        %2161 = vadd.xlane.f32.xlu0 %v2160
        %v2162 = vpop.xlane.xlu0 %2161
        %v2163 = vsel %vm634, %v2129, 0.0
        %2164 = vadd.xlane.f32.xlu0 %v2163
        %v2165 = vpop.xlane.xlu0 %2164
        %v2166 = vsel %vm634, %v2130, 0.0
        %2167 = vadd.xlane.f32.xlu0 %v2166
        %v2168 = vpop.xlane.xlu0 %2167
        %v2169 = vsel %vm634, %v2131, 0.0
        %2170 = vadd.xlane.f32.xlu0 %v2169
        %v2171 = vpop.xlane.xlu0 %2170
        %v2172 = vsel %vm634, %v2132, 0.0
        %2173 = vadd.xlane.f32.xlu0 %v2172
        %v2174 = vpop.xlane.xlu0 %2173
        %v2175 = vsel %vm634, %v2133, 0.0
        %2176 = vadd.xlane.f32.xlu0 %v2175
        %v2177 = vpop.xlane.xlu0 %2176
        %v2178 = vsel %vm634, %v2134, 0.0
        %2179 = vadd.xlane.f32.xlu0 %v2178
        %v2180 = vpop.xlane.xlu0 %2179
        %v2181 = vsel %vm634, %v2135, 0.0
        %2182 = vadd.xlane.f32.xlu0 %v2181
        %v2183 = vpop.xlane.xlu0 %2182
        %v2184 = vld [vmem:[#allocation2] sm:$0x1]
        %v2186 = vlaneseq
        %v2187 = vshrl.u32 %v2186, 7
        %v2188 = vsub.s32 0, %v2187
        %v2189 = vrot.slane %v2184, %v2188
        %v2191 = vadd.f32 %v2138, %v2189
        %v2192 = vadd.f32 %v2141, %v2189
        %v2193 = vadd.f32 %v2144, %v2189
        %v2194 = vadd.f32 %v2147, %v2189
        %v2195 = vadd.f32 %v2150, %v2189
        %v2196 = vadd.f32 %v2153, %v2189
        %v2197 = vadd.f32 %v2156, %v2189
        %v2198 = vadd.f32 %v2159, %v2189
        %v2199 = vadd.f32 %v2162, %v2189
        %v2200 = vadd.f32 %v2165, %v2189
        %v2201 = vadd.f32 %v2168, %v2189
        %v2202 = vadd.f32 %v2171, %v2189
        %v2203 = vadd.f32 %v2174, %v2189
        %v2204 = vadd.f32 %v2177, %v2189
        %v2205 = vadd.f32 %v2180, %v2189
        %v2206 = vadd.f32 %v2183, %v2189
        %v2207 = vld [vmem:[%s345] sm:$0xff]
        %v2208 = vld [vmem:[%s345 + $0x8] sm:$0xff]
        %v2209 = vld [vmem:[%s345 + $0x10] sm:$0xff]
        %v2210 = vld [vmem:[%s345 + $0x18] sm:$0xff]
        %v2211 = vld [vmem:[%s345 + $0x20] sm:$0xff]
        %v2212 = vld [vmem:[%s345 + $0x28] sm:$0xff]
        %v2213 = vld [vmem:[%s345 + $0x30] sm:$0xff]
        %v2214 = vld [vmem:[%s345 + $0x38] sm:$0xff]
        %v2215 = vld [vmem:[%s345 + $0x40] sm:$0xff]
        %v2216 = vld [vmem:[%s345 + $0x48] sm:$0xff]
        %v2217 = vld [vmem:[%s345 + $0x50] sm:$0xff]
        %v2218 = vld [vmem:[%s345 + $0x58] sm:$0xff]
        %v2219 = vld [vmem:[%s345 + $0x60] sm:$0xff]
        %v2220 = vld [vmem:[%s345 + $0x68] sm:$0xff]
        %v2221 = vld [vmem:[%s345 + $0x70] sm:$0xff]
        %v2222 = vld [vmem:[%s345 + $0x78] sm:$0xff]
        %v2223 = vadd.f32 %v2191, %v2207
        %v2224 = vadd.f32 %v2192, %v2208
        %v2225 = vadd.f32 %v2193, %v2209
        %v2226 = vadd.f32 %v2194, %v2210
        %v2227 = vadd.f32 %v2195, %v2211
        %v2228 = vadd.f32 %v2196, %v2212
        %v2229 = vadd.f32 %v2197, %v2213
        %v2230 = vadd.f32 %v2198, %v2214
        %v2231 = vadd.f32 %v2199, %v2215
        %v2232 = vadd.f32 %v2200, %v2216
        %v2233 = vadd.f32 %v2201, %v2217
        %v2234 = vadd.f32 %v2202, %v2218
        %v2235 = vadd.f32 %v2203, %v2219
        %v2236 = vadd.f32 %v2204, %v2220
        %v2237 = vadd.f32 %v2205, %v2221
        %v2238 = vadd.f32 %v2206, %v2222
        %vm2239 = vcmask 7168
        %2240 = vst.msk [vmem:[%s357] sm:$0xff] %vm2239, %v2223
        %2241 = vst.msk [vmem:[%s357 + $0x8] sm:$0xff] %vm2239, %v2224
        %2242 = vst.msk [vmem:[%s357 + $0x10] sm:$0xff] %vm2239, %v2225
        %2243 = vst.msk [vmem:[%s357 + $0x18] sm:$0xff] %vm2239, %v2226
        %2244 = vst.msk [vmem:[%s357 + $0x20] sm:$0xff] %vm2239, %v2227
        %2245 = vst.msk [vmem:[%s357 + $0x28] sm:$0xff] %vm2239, %v2228
        %2246 = vst.msk [vmem:[%s357 + $0x30] sm:$0xff] %vm2239, %v2229
        %2247 = vst.msk [vmem:[%s357 + $0x38] sm:$0xff] %vm2239, %v2230
        %2248 = vst.msk [vmem:[%s357 + $0x40] sm:$0xff] %vm2239, %v2231
        %2249 = vst.msk [vmem:[%s357 + $0x48] sm:$0xff] %vm2239, %v2232
        %2250 = vst.msk [vmem:[%s357 + $0x50] sm:$0xff] %vm2239, %v2233
        %2251 = vst.msk [vmem:[%s357 + $0x58] sm:$0xff] %vm2239, %v2234
        %2252 = vst.msk [vmem:[%s357 + $0x60] sm:$0xff] %vm2239, %v2235
        %2253 = vst.msk [vmem:[%s357 + $0x68] sm:$0xff] %vm2239, %v2236
        %2254 = vst.msk [vmem:[%s357 + $0x70] sm:$0xff] %vm2239, %v2237
        %2255 = vst.msk [vmem:[%s357 + $0x78] sm:$0xff] %vm2239, %v2238
        %s2256 = sand.u32 %s184, 1
        %s2257 = scalar_lea.sflag [#allocation4], %s2256
        %s2258 = sand.u32 %s184, 1
        %s2259 = smul.addr %s2258, 128
        %s2260 = scalar_lea.vmem [#allocation3], %s2259
        %s2261 = smul.u32 8, %s29
        %p2262 = scmp.lt.s32.totalorder %s28, 1
        %s2263 = scalar_select %p2262, %s28, 1
        %p2264 = scmp.lt.s32.totalorder %s2261, 15
        %s2265 = scalar_select %p2264, %s2261, 15
        %s2266 = smul.addr %s2265, 2
        %s2267 = smul.addr %s2263, 32
        %s2268 = sadd.s32 %s2266, %s2267
        %s2269 = smul.addr %s2268, 8
        %s2270 = scalar_lea.vmem %s7, %s2269
        // Predicated region
        $region45: #{_uaca_forward.11} parent=43 // pred_check
          %p2271 = pneg %p194
        $region46: #{_uaca_forward.11} parent=43 // pred_check_branch
          %2273 = sbr.rel (%p2271) target = $region48
        $region47: #{_uaca_forward.11} parent=43 // pred_region
          %s2274 = smul.u32 8, %s29
          %s2276 = ssub.s32 2048, 2048
          %2277 = vsyncadd %s2257, %s2276
          %s2278 = smul.addr %s2274, 2
          %s2279 = smul.addr %s28, 32
          %s2280 = sadd.s32 %s2278, %s2279
          %s2281 = smul.addr %s2280, 128
          %s2282 = scalar_lea.hbm %s6, %s2281
          %s2283 = sshll.u32 %s2260, 4
          %s2284 = int_to_ptr.vmem [resolvable:$true] %s2283
          %2289 = dma.vmem_to_hbm [thread:$0]  %s2284, 2048, %s2282, %s2257, 128, 128, 8
        $region48: #{_uaca_forward.11} parent=43 // pred_fallthru
          _
        // Predicated region
        $region49: #{_uaca_forward.11} parent=43 // pred_check
          %p2290 = pneg %p222
        $region50: #{_uaca_forward.11} parent=43 // pred_check_branch
          %2292 = sbr.rel (%p2290) target = $region52
        $region51: #{_uaca_forward.11} parent=43 // pred_region
          %s2293 = smul.u32 8, %s29
        $region52: #{_uaca_forward.11} parent=43 // pred_fallthru
          _
      $region44: #{_uaca_forward.11} parent=5 // pred_fallthru
        _
      %p2294 = scmp.le.s32.totalorder 2, %s19
      // Predicated region
      $region53: #{_uaca_forward.11} parent=5 // pred_check
        %p2295 = pneg %p2294
      $region54: #{_uaca_forward.11} parent=5 // pred_check_branch
        %2297 = sbr.rel (%p2295) target = $region56
      $region55: #{_uaca_forward.11} parent=5 // pred_region
        %s2298 = ssub.s32 %s19, 2
        // Predicated region
        $region57: #{_uaca_forward.11} parent=55 // pred_check
          %p2299 = pneg %p200
        $region58: #{_uaca_forward.11} parent=55 // pred_check_branch
          %2301 = sbr.rel (%p2299) target = $region60
        $region59: #{_uaca_forward.11} parent=55 // pred_region
          %s2302 = sand.u32 %s185, 1
          %s2303 = scalar_lea.sflag [#allocation4], %s2302
          %s2304 = sand.u32 %s185, 1
          %s2305 = smul.addr %s2304, 128
          %s2306 = scalar_lea.vmem [#allocation3], %s2305
          %2307 = dma.done %s2303, 2048
        $region60: #{_uaca_forward.11} parent=55 // pred_fallthru
          _
        // Predicated region
        $region61: #{_uaca_forward.11} parent=55 // pred_check
          %p2308 = pneg %p228
        $region62: #{_uaca_forward.11} parent=55 // pred_check_branch
          %2310 = sbr.rel (%p2308) target = $region64
        $region63: #{_uaca_forward.11} parent=55 // pred_region
          %s2311 = smul.u32 8, %s31
          %p2312 = scmp.lt.s32.totalorder %s30, 1
          %s2313 = scalar_select %p2312, %s30, 1
          %p2314 = scmp.lt.s32.totalorder %s2311, 15
          %s2315 = scalar_select %p2314, %s2311, 15
          %s2316 = smul.addr %s2315, 2
          %s2317 = smul.addr %s2313, 32
          %s2318 = sadd.s32 %s2316, %s2317
          %s2319 = smul.addr %s2318, 8
          %s2320 = scalar_lea.vmem %s7, %s2319
        $region64: #{_uaca_forward.11} parent=55 // pred_fallthru
          _
      $region56: #{_uaca_forward.11} parent=5 // pred_fallthru
        _
    $region6: #{_uaca_forward.11} parent=1 // loop_footer
      %s23 = sadd.s32 1, %s19
    $region7: #{_uaca_forward.11} parent=1 // loop_footer_branch
      %18 = sbr.rel target = $region3
    $region8: #{_uaca_forward.11} parent=1 // loop_exit
      _
    %2321 = vsyncpa [#allocation4], 1
    %s2322 = scalar_lea.sflag [#allocation4], 1
    %2323 = vsyncpa %s2322, 1

</llo_original>
